<compile_context>
chip_gen: v5e
topology: v5e:2x2
jax: 0.10.0
libtpu: 0.0.40
codegen_flags: <defaults>
</compile_context>

<pallas_src>
import functools

import jax
import jax.numpy as jnp
from jax import lax
from jax.experimental import pallas as pl
from jax.experimental.pallas import tpu as pltpu

EPS = 1e-5    # nn.BatchNorm2d default eps
LANE = 128    # TPU lane width


def _round_up(x, m):
    return (x + m - 1) // m * m


def _vmem_limit(block_bytes, scratch_bytes):
    """Derived VMEM budget: double-buffered pipeline blocks + scratch + slack."""
    total = 2 * block_bytes + scratch_bytes + (2 << 20)
    return int(min(max(total, 4 << 20), 96 << 20))


# ---------------------------------------------------------------------------
# In-kernel helpers
# ---------------------------------------------------------------------------
def _fill_padded(pad_ref, act_hwc):
    """Write act (H,W,C) into pad_ref (H+2,W+2,C) bf16 with a zero 1-wide halo."""
    H, W, C = act_hwc.shape
    z_row = jnp.zeros((1, W + 2, C), pad_ref.dtype)
    z_col = jnp.zeros((H, 1, C), pad_ref.dtype)
    pad_ref[0:1, :, :] = z_row
    pad_ref[H + 1:H + 2, :, :] = z_row
    pad_ref[1:H + 1, 0:1, :] = z_col
    pad_ref[1:H + 1, W + 1:W + 2, :] = z_col
    pad_ref[1:H + 1, 1:W + 1, :] = act_hwc.astype(pad_ref.dtype)


def _conv3x3_im2col(pad_ref, col_ref, w_ref, H, W, C, Kp):
    """3x3 'same' conv as one MXU matmul with compacted K = 9*C (padded to Kp)."""
    M = H * W
    if Kp > 9 * C:  # static guard: zero only the K-padding tail columns
        col_ref[:, 9 * C:] = jnp.zeros((M, Kp - 9 * C), col_ref.dtype)
    for t in range(9):
        dh, dw = divmod(t, 3)
        patch = pad_ref[dh:dh + H, dw:dw + W, :]            # (H, W, C) bf16
        col_ref[:, t * C:(t + 1) * C] = patch.reshape(M, C)
    # (M, Kp) @ (Kp, Cp), f32 accumulation on the MXU.
    return jnp.dot(col_ref[...], w_ref[...], preferred_element_type=jnp.float32)


def _write_stats(st_ref, y):
    """Per-tile BN partial sums: st[0] = sum(y), st[1] = sum(y*y)."""
    Cp = y.shape[-1]
    st_ref[:, 0:1, :] = jnp.sum(y, axis=0, keepdims=True).reshape(1, 1, Cp)
    st_ref[:, 1:2, :] = jnp.sum(y * y, axis=0, keepdims=True).reshape(1, 1, Cp)


# ---------------------------------------------------------------------------
# Pass 1: conv1 + BN1 partial sums (one image per grid step)
# ---------------------------------------------------------------------------
def _conv1_stats_kernel(x_ref, w_ref, y_ref, st_ref, pad_ref, col_ref,
                        *, H, W, C, Kp):
    Cp = w_ref.shape[1]
    M = H * W
    _fill_padded(pad_ref, x_ref[...].reshape(H, W, C))
    y = _conv3x3_im2col(pad_ref, col_ref, w_ref, H, W, C, Kp)   # (M, Cp) f32
    y_ref[...] = y.reshape(1, M, Cp)
    _write_stats(st_ref, y)


# ---------------------------------------------------------------------------
# Pass 2: BN1 apply + ReLU + conv2 + BN2 partial sums
# ---------------------------------------------------------------------------
def _bn_relu_conv_stats_kernel(y1_ref, sc_ref, sh_ref, w_ref, y2_ref, st_ref,
                               pad_ref, col_ref, *, H, W, C, Kp):
    Cp = w_ref.shape[1]
    M = H * W
    a = jnp.maximum(y1_ref[...].reshape(M, Cp) * sc_ref[...] + sh_ref[...], 0.0)
    # Only the first C channels are real (padded channels are exactly zero).
    # Post-activation values are written into the interior only, so the
    # zero-halo invariant of pad_ref is preserved for conv2.
    _fill_padded(pad_ref, a[:, :C].reshape(H, W, C))
    y = _conv3x3_im2col(pad_ref, col_ref, w_ref, H, W, C, Kp)   # (M, Cp) f32
    y2_ref[...] = y.reshape(1, M, Cp)
    _write_stats(st_ref, y)


# ---------------------------------------------------------------------------
# Pass 3: BN2 apply + residual add + final ReLU
# ---------------------------------------------------------------------------
def _bn_add_relu_kernel(y2_ref, sc_ref, sh_ref, xp_ref, out_ref, *, M, Cp):
    y = y2_ref[...].reshape(M, Cp) * sc_ref[...] + sh_ref[...]
    ident = xp_ref[...].reshape(M, Cp)           # channel-padded identity (lane-dense)
    out_ref[...] = jnp.maximum(y + ident, 0.0).reshape(1, M, Cp)


# ---------------------------------------------------------------------------
# Host-side wrapper
# ---------------------------------------------------------------------------
def _bn_scale_shift(stats, gamma_p, beta_p, m):
    """Reduce per-tile partial sums into a fused per-channel scale/shift.

    Single-pass variance (E[x^2] - mean^2) in f32; fine at these magnitudes.
    """
    s = jnp.sum(stats, axis=0)                   # (2, Cp)
    mean = s[0] / m
    var = s[1] / m - mean * mean                 # biased, like torch training BN
    scale = gamma_p * lax.rsqrt(var + EPS)
    shift = beta_p - mean * scale
    return scale.reshape(1, -1), shift.reshape(1, -1)


def residual_block_nhwc(x_nhwc, w1_hwio, g1, b1, w2_hwio, g2, b2):
    """NHWC activations / HWIO weights entry point (lane-friendly layout)."""
    N, H, W, C = x_nhwc.shape
    assert w1_hwio.shape[-1] == C, "downsample=None path requires in_ch == out_ch"
    Cp = _round_up(C, LANE)        # lane-dense conv *output* channels
    Kp = _round_up(9 * C, LANE)    # compacted im2col contraction depth
    Hp, Wp = H + 2, W + 2
    M = H * W
    Mtot = N * M

    x = x_nhwc.astype(jnp.float32)

    def prep_w(w_hwio):
        # (3,3,Cin,Cout) -> (9*C, C); zero-pad K -> Kp, out-channels -> Cp; bf16.
        w = w_hwio.astype(jnp.float32).reshape(9 * C, C)
        return jnp.pad(w, ((0, Kp - 9 * C), (0, Cp - C))).astype(jnp.bfloat16)

    def prep_p(p):
        # Zero padding keeps padded channels exactly zero through BN/ReLU.
        return jnp.pad(p.astype(jnp.float32), (0, Cp - C))

    w1p, w2p = prep_w(w1_hwio), prep_w(w2_hwio)
    g1p, b1p = prep_p(g1), prep_p(b1)
    g2p, b2p = prep_p(g2), prep_p(b2)

    # Shared specs / scratch for the two conv passes.
    conv_scratch = (pltpu.VMEM((Hp, Wp, C), jnp.bfloat16),   # padded activation
                    pltpu.VMEM((M, Kp), jnp.bfloat16))       # im2col buffer
    scratch_bytes = Hp * Wp * C * 2 + M * Kp * 2
    x_spec = pl.BlockSpec((1, H, W, C), lambda n: (n, 0, 0, 0))
    w_spec = pl.BlockSpec((Kp, Cp), lambda n: (0, 0))
    y_spec = pl.BlockSpec((1, M, Cp), lambda n: (n, 0, 0))
    st_spec = pl.BlockSpec((1, 2, Cp), lambda n: (n, 0, 0))
    p_spec = pl.BlockSpec((1, Cp), lambda n: (0, 0))
    conv_out_shape = (jax.ShapeDtypeStruct((N, M, Cp), jnp.float32),
                      jax.ShapeDtypeStruct((N, 2, Cp), jnp.float32))

    # ---- pass 1: conv1 + BN1 partial stats --------------------------------
    blk1 = H * W * C * 4 + Kp * Cp * 2 + M * Cp * 4 + 2 * Cp * 4
    y1, st1 = pl.pallas_call(
        functools.partial(_conv1_stats_kernel, H=H, W=W, C=C, Kp=Kp),
        grid=(N,),
        in_specs=(x_spec, w_spec),
        out_specs=(y_spec, st_spec),
        out_shape=conv_out_shape,
        scratch_shapes=conv_scratch,
        compiler_params=pltpu.CompilerParams(
            dimension_semantics=("parallel",),
            vmem_limit_bytes=_vmem_limit(blk1, scratch_bytes)),
    )(x, w1p)
    scale1, shift1 = _bn_scale_shift(st1, g1p, b1p, Mtot)

    # ---- pass 2: BN1 apply + ReLU + conv2 + BN2 partial stats -------------
    blk2 = M * Cp * 4 + 2 * Cp * 4 + Kp * Cp * 2 + M * Cp * 4 + 2 * Cp * 4
    y2, st2 = pl.pallas_call(
        functools.partial(_bn_relu_conv_stats_kernel, H=H, W=W, C=C, Kp=Kp),
        grid=(N,),
        in_specs=(y_spec, p_spec, p_spec, w_spec),
        out_specs=(y_spec, st_spec),
        out_shape=conv_out_shape,
        scratch_shapes=conv_scratch,
        compiler_params=pltpu.CompilerParams(
            dimension_semantics=("parallel",),
            vmem_limit_bytes=_vmem_limit(blk2, scratch_bytes)),
    )(y1, scale1, shift1, w2p)
    scale2, shift2 = _bn_scale_shift(st2, g2p, b2p, Mtot)

    # ---- pass 3: BN2 apply + residual add + final ReLU ---------------------
    # Identity is channel-padded to Cp in the wrapper so the kernel's add and
    # store stay fully lane-dense.
    x_pad = jnp.pad(x.reshape(N, M, C), ((0, 0), (0, 0), (0, Cp - C)))
    blk3 = 3 * (M * Cp * 4) + 2 * Cp * 4
    out = pl.pallas_call(
        functools.partial(_bn_add_relu_kernel, M=M, Cp=Cp),
        grid=(N,),
        in_specs=(y_spec, p_spec, p_spec, y_spec),
        out_specs=y_spec,
        out_shape=jax.ShapeDtypeStruct((N, M, Cp), jnp.float32),
        compiler_params=pltpu.CompilerParams(
            dimension_semantics=("parallel",),
            vmem_limit_bytes=_vmem_limit(blk3, 0)),
    )(y2, scale2, shift2, x_pad)

    out = out.reshape(N, H, W, Cp)[..., :C]
    return out.astype(x_nhwc.dtype)


def residual_block(x_nchw, w1_oihw, g1, b1, w2_oihw, g2, b2):
    """PyTorch-convention entry point: NCHW input, OIHW conv weights.

    NOTE: a real model should stay NHWC end-to-end; these boundary transposes
    exist only for PyTorch-layout compatibility in this test.
    """
    x = jnp.transpose(x_nchw, (0, 2, 3, 1))       # NCHW -> NHWC
    w1 = jnp.transpose(w1_oihw, (2, 3, 1, 0))     # OIHW -> HWIO
    w2 = jnp.transpose(w2_oihw, (2, 3, 1, 0))
    out = residual_block_nhwc(x, w1, g1, b1, w2, g2, b2)
    return jnp.transpose(out, (0, 3, 1, 2))       # NHWC -> NCHW


def residual_block_reference(x, w1, g1, b1, w2, g2, b2):
    """Pure-JAX reference mirroring the PyTorch forward (NCHW, training BN)."""
    dn = ("NCHW", "OIHW", "NCHW")
    C = w1.shape[0]

    def bn(o, g, b):
        m = o.mean(axis=(0, 2, 3), keepdims=True)
        v = o.var(axis=(0, 2, 3), keepdims=True)          # biased, like torch
        return (o - m) * lax.rsqrt(v + EPS) * g.reshape(1, C, 1, 1) \
            + b.reshape(1, C, 1, 1)

    out = lax.conv_general_dilated(x, w1, (1, 1), "SAME", dimension_numbers=dn)
    out = jnp.maximum(bn(out, g1, b1), 0.0)
    out = lax.conv_general_dilated(out, w2, (1, 1), "SAME", dimension_numbers=dn)
    out = bn(out, g2, b2)
    return jnp.maximum(out + x, 0.0)


if __name__ == "__main__":
    # Small shapes consistent with the module: batch=2, channels=8, spatial=16.
    N, C, H, W = 2, 8, 16, 16

    key = jax.random.PRNGKey(0)
    kx, kw1, kw2, kg1, kb1, kg2, kb2 = jax.random.split(key, 7)

    x = jax.random.normal(kx, (N, C, H, W), dtype=jnp.float32)
    w1 = 0.1 * jax.random.normal(kw1, (C, C, 3, 3), dtype=jnp.float32)
    w2 = 0.1 * jax.random.normal(kw2, (C, C, 3, 3), dtype=jnp.float32)
    g1 = 1.0 + 0.1 * jax.random.normal(kg1, (C,), dtype=jnp.float32)
    b1 = 0.1 * jax.random.normal(kb1, (C,), dtype=jnp.float32)
    g2 = 1.0 + 0.1 * jax.random.normal(kg2, (C,), dtype=jnp.float32)
    b2 = 0.1 * jax.random.normal(kb2, (C,), dtype=jnp.float32)

    out = jax.jit(residual_block)(x, w1, g1, b1, w2, g2, b2)
    out = jax.block_until_ready(out)

    ref = residual_block_reference(x, w1, g1, b1, w2, g2, b2)
    assert out.shape == (N, C, H, W)
    err = jnp.max(jnp.abs(out - ref))
    # bf16 MXU inputs (f32 accumulation) -> mixed-precision tolerance.
    assert jnp.allclose(out, ref, rtol=2e-2, atol=2e-2), f"max abs err = {err}"

    print("KERNEL_OK")
</pallas_src>

<mosaic_0001>
module attributes {stable_mosaic.version = 11 : i64} {
  func.func @_conv1_stats_kernel(%arg0: i32, %arg1: memref<1x16x16x8xf32, #tpu.memory_space<vmem>>, %arg2: memref<128x128xbf16, #tpu.memory_space<vmem>>, %arg3: memref<1x256x128xf32, #tpu.memory_space<vmem>>, %arg4: memref<1x2x128xf32, #tpu.memory_space<vmem>>, %arg5: memref<18x18x8xbf16, #tpu.memory_space<vmem>>, %arg6: memref<256x128xbf16, #tpu.memory_space<vmem>>) attributes {dimension_semantics = [#tpu.dimension_semantics<parallel>], iteration_bounds = array<i64: 2>, scalar_prefetch = 0 : i64, scratch_operands = 2 : i64, tpu.core_type = #tpu.core_type<tc>, window_params = [{transform_indices = @transform_0, window_bounds = array<i64: 1, 16, 16, 8>}, {pipeline_mode = #tpu.pipeline_mode<synchronous>, transform_indices = @transform_1, window_bounds = array<i64: 128, 128>}, {transform_indices = @transform_2, window_bounds = array<i64: 1, 256, 128>}, {transform_indices = @transform_3, window_bounds = array<i64: 1, 2, 128>}]} {
    %c0 = arith.constant 0 : index
    %c0_0 = arith.constant 0 : index
    %c0_1 = arith.constant 0 : index
    %c0_2 = arith.constant 0 : index
    %0 = vector.load %arg1[%c0, %c0_0, %c0_1, %c0_2] : memref<1x16x16x8xf32, #tpu.memory_space<vmem>>, vector<1x16x16x8xf32>
    %1 = vector.shape_cast %0 : vector<1x16x16x8xf32> to vector<16x16x8xf32>
    %cst = arith.constant 0.000000e+00 : bf16
    %2 = vector.broadcast %cst : bf16 to vector<1x18x8xbf16>
    %cst_3 = arith.constant 0.000000e+00 : bf16
    %3 = vector.broadcast %cst_3 : bf16 to vector<16x1x8xbf16>
    %c0_4 = arith.constant 0 : index
    %c0_5 = arith.constant 0 : index
    %c0_6 = arith.constant 0 : index
    %4 = vector.load %arg5[%c0_4, %c0_5, %c0_6] : memref<18x18x8xbf16, #tpu.memory_space<vmem>>, vector<1x18x8xbf16>
    tpu.vector_store %arg5[%c0_4, %c0_5, %c0_6], %2 {strides = array<i32>} : memref<18x18x8xbf16, #tpu.memory_space<vmem>>, vector<1x18x8xbf16>,
    %c17 = arith.constant 17 : index
    %c0_7 = arith.constant 0 : index
    %c0_8 = arith.constant 0 : index
    %5 = vector.load %arg5[%c17, %c0_7, %c0_8] : memref<18x18x8xbf16, #tpu.memory_space<vmem>>, vector<1x18x8xbf16>
    tpu.vector_store %arg5[%c17, %c0_7, %c0_8], %2 {strides = array<i32>} : memref<18x18x8xbf16, #tpu.memory_space<vmem>>, vector<1x18x8xbf16>,
    %c1 = arith.constant 1 : index
    %c0_9 = arith.constant 0 : index
    %c0_10 = arith.constant 0 : index
    %6 = vector.load %arg5[%c1, %c0_9, %c0_10] : memref<18x18x8xbf16, #tpu.memory_space<vmem>>, vector<16x1x8xbf16>
    tpu.vector_store %arg5[%c1, %c0_9, %c0_10], %3 {strides = array<i32>} : memref<18x18x8xbf16, #tpu.memory_space<vmem>>, vector<16x1x8xbf16>,
    %c1_11 = arith.constant 1 : index
    %c17_12 = arith.constant 17 : index
    %c0_13 = arith.constant 0 : index
    %7 = vector.load %arg5[%c1_11, %c17_12, %c0_13] : memref<18x18x8xbf16, #tpu.memory_space<vmem>>, vector<16x1x8xbf16>
    tpu.vector_store %arg5[%c1_11, %c17_12, %c0_13], %3 {strides = array<i32>} : memref<18x18x8xbf16, #tpu.memory_space<vmem>>, vector<16x1x8xbf16>,
    %8 = arith.truncf %1 : vector<16x16x8xf32> to vector<16x16x8xbf16>
    %c1_14 = arith.constant 1 : index
    %c1_15 = arith.constant 1 : index
    %c0_16 = arith.constant 0 : index
    %9 = vector.load %arg5[%c1_14, %c1_15, %c0_16] : memref<18x18x8xbf16, #tpu.memory_space<vmem>>, vector<16x16x8xbf16>
    tpu.vector_store %arg5[%c1_14, %c1_15, %c0_16], %8 {strides = array<i32>} : memref<18x18x8xbf16, #tpu.memory_space<vmem>>, vector<16x16x8xbf16>,
    %cst_17 = arith.constant 0.000000e+00 : bf16
    %10 = vector.broadcast %cst_17 : bf16 to vector<256x56xbf16>
    %c0_18 = arith.constant 0 : index
    %c72 = arith.constant 72 : index
    %11 = vector.load %arg6[%c0_18, %c72] : memref<256x128xbf16, #tpu.memory_space<vmem>>, vector<256x56xbf16>
    tpu.vector_store %arg6[%c0_18, %c72], %10 {strides = array<i32>} : memref<256x128xbf16, #tpu.memory_space<vmem>>, vector<256x56xbf16>,
    %c0_19 = arith.constant 0 : index
    %c0_20 = arith.constant 0 : index
    %c0_21 = arith.constant 0 : index
    %12 = vector.load %arg5[%c0_19, %c0_20, %c0_21] : memref<18x18x8xbf16, #tpu.memory_space<vmem>>, vector<16x16x8xbf16>
    %13 = vector.shape_cast %12 : vector<16x16x8xbf16> to vector<256x8xbf16>
    %c0_22 = arith.constant 0 : index
    %c0_23 = arith.constant 0 : index
    %14 = vector.load %arg6[%c0_22, %c0_23] : memref<256x128xbf16, #tpu.memory_space<vmem>>, vector<256x8xbf16>
    tpu.vector_store %arg6[%c0_22, %c0_23], %13 {strides = array<i32>} : memref<256x128xbf16, #tpu.memory_space<vmem>>, vector<256x8xbf16>,
    %c0_24 = arith.constant 0 : index
    %c1_25 = arith.constant 1 : index
    %c0_26 = arith.constant 0 : index
    %15 = vector.load %arg5[%c0_24, %c1_25, %c0_26] : memref<18x18x8xbf16, #tpu.memory_space<vmem>>, vector<16x16x8xbf16>
    %16 = vector.shape_cast %15 : vector<16x16x8xbf16> to vector<256x8xbf16>
    %c0_27 = arith.constant 0 : index
    %c8 = arith.constant 8 : index
    %17 = vector.load %arg6[%c0_27, %c8] : memref<256x128xbf16, #tpu.memory_space<vmem>>, vector<256x8xbf16>
    tpu.vector_store %arg6[%c0_27, %c8], %16 {strides = array<i32>} : memref<256x128xbf16, #tpu.memory_space<vmem>>, vector<256x8xbf16>,
    %c0_28 = arith.constant 0 : index
    %c2 = arith.constant 2 : index
    %c0_29 = arith.constant 0 : index
    %18 = vector.load %arg5[%c0_28, %c2, %c0_29] : memref<18x18x8xbf16, #tpu.memory_space<vmem>>, vector<16x16x8xbf16>
    %19 = vector.shape_cast %18 : vector<16x16x8xbf16> to vector<256x8xbf16>
    %c0_30 = arith.constant 0 : index
    %c16 = arith.constant 16 : index
    %20 = vector.load %arg6[%c0_30, %c16] : memref<256x128xbf16, #tpu.memory_space<vmem>>, vector<256x8xbf16>
    tpu.vector_store %arg6[%c0_30, %c16], %19 {strides = array<i32>} : memref<256x128xbf16, #tpu.memory_space<vmem>>, vector<256x8xbf16>,
    %c1_31 = arith.constant 1 : index
    %c0_32 = arith.constant 0 : index
    %c0_33 = arith.constant 0 : index
    %21 = vector.load %arg5[%c1_31, %c0_32, %c0_33] : memref<18x18x8xbf16, #tpu.memory_space<vmem>>, vector<16x16x8xbf16>
    %22 = vector.shape_cast %21 : vector<16x16x8xbf16> to vector<256x8xbf16>
    %c0_34 = arith.constant 0 : index
    %c24 = arith.constant 24 : index
    %23 = vector.load %arg6[%c0_34, %c24] : memref<256x128xbf16, #tpu.memory_space<vmem>>, vector<256x8xbf16>
    tpu.vector_store %arg6[%c0_34, %c24], %22 {strides = array<i32>} : memref<256x128xbf16, #tpu.memory_space<vmem>>, vector<256x8xbf16>,
    %c1_35 = arith.constant 1 : index
    %c1_36 = arith.constant 1 : index
    %c0_37 = arith.constant 0 : index
    %24 = vector.load %arg5[%c1_35, %c1_36, %c0_37] : memref<18x18x8xbf16, #tpu.memory_space<vmem>>, vector<16x16x8xbf16>
    %25 = vector.shape_cast %24 : vector<16x16x8xbf16> to vector<256x8xbf16>
    %c0_38 = arith.constant 0 : index
    %c32 = arith.constant 32 : index
    %26 = vector.load %arg6[%c0_38, %c32] : memref<256x128xbf16, #tpu.memory_space<vmem>>, vector<256x8xbf16>
    tpu.vector_store %arg6[%c0_38, %c32], %25 {strides = array<i32>} : memref<256x128xbf16, #tpu.memory_space<vmem>>, vector<256x8xbf16>,
    %c1_39 = arith.constant 1 : index
    %c2_40 = arith.constant 2 : index
    %c0_41 = arith.constant 0 : index
    %27 = vector.load %arg5[%c1_39, %c2_40, %c0_41] : memref<18x18x8xbf16, #tpu.memory_space<vmem>>, vector<16x16x8xbf16>
    %28 = vector.shape_cast %27 : vector<16x16x8xbf16> to vector<256x8xbf16>
    %c0_42 = arith.constant 0 : index
    %c40 = arith.constant 40 : index
    %29 = vector.load %arg6[%c0_42, %c40] : memref<256x128xbf16, #tpu.memory_space<vmem>>, vector<256x8xbf16>
    tpu.vector_store %arg6[%c0_42, %c40], %28 {strides = array<i32>} : memref<256x128xbf16, #tpu.memory_space<vmem>>, vector<256x8xbf16>,
    %c2_43 = arith.constant 2 : index
    %c0_44 = arith.constant 0 : index
    %c0_45 = arith.constant 0 : index
    %30 = vector.load %arg5[%c2_43, %c0_44, %c0_45] : memref<18x18x8xbf16, #tpu.memory_space<vmem>>, vector<16x16x8xbf16>
    %31 = vector.shape_cast %30 : vector<16x16x8xbf16> to vector<256x8xbf16>
    %c0_46 = arith.constant 0 : index
    %c48 = arith.constant 48 : index
    %32 = vector.load %arg6[%c0_46, %c48] : memref<256x128xbf16, #tpu.memory_space<vmem>>, vector<256x8xbf16>
    tpu.vector_store %arg6[%c0_46, %c48], %31 {strides = array<i32>} : memref<256x128xbf16, #tpu.memory_space<vmem>>, vector<256x8xbf16>,
    %c2_47 = arith.constant 2 : index
    %c1_48 = arith.constant 1 : index
    %c0_49 = arith.constant 0 : index
    %33 = vector.load %arg5[%c2_47, %c1_48, %c0_49] : memref<18x18x8xbf16, #tpu.memory_space<vmem>>, vector<16x16x8xbf16>
    %34 = vector.shape_cast %33 : vector<16x16x8xbf16> to vector<256x8xbf16>
    %c0_50 = arith.constant 0 : index
    %c56 = arith.constant 56 : index
    %35 = vector.load %arg6[%c0_50, %c56] : memref<256x128xbf16, #tpu.memory_space<vmem>>, vector<256x8xbf16>
    tpu.vector_store %arg6[%c0_50, %c56], %34 {strides = array<i32>} : memref<256x128xbf16, #tpu.memory_space<vmem>>, vector<256x8xbf16>,
    %c2_51 = arith.constant 2 : index
    %c2_52 = arith.constant 2 : index
    %c0_53 = arith.constant 0 : index
    %36 = vector.load %arg5[%c2_51, %c2_52, %c0_53] : memref<18x18x8xbf16, #tpu.memory_space<vmem>>, vector<16x16x8xbf16>
    %37 = vector.shape_cast %36 : vector<16x16x8xbf16> to vector<256x8xbf16>
    %c0_54 = arith.constant 0 : index
    %c64 = arith.constant 64 : index
    %38 = vector.load %arg6[%c0_54, %c64] : memref<256x128xbf16, #tpu.memory_space<vmem>>, vector<256x8xbf16>
    tpu.vector_store %arg6[%c0_54, %c64], %37 {strides = array<i32>} : memref<256x128xbf16, #tpu.memory_space<vmem>>, vector<256x8xbf16>,
    %c0_55 = arith.constant 0 : index
    %c0_56 = arith.constant 0 : index
    %39 = vector.load %arg6[%c0_55, %c0_56] : memref<256x128xbf16, #tpu.memory_space<vmem>>, vector<256x128xbf16>
    %c0_57 = arith.constant 0 : index
    %c0_58 = arith.constant 0 : index
    %40 = vector.load %arg2[%c0_57, %c0_58] : memref<128x128xbf16, #tpu.memory_space<vmem>>, vector<128x128xbf16>
    %cst_59 = arith.constant dense<0.000000e+00> : vector<256x128xf32>
    %41 = tpu.matmul %39, %40, %cst_59 {dimension_numbers = #tpu.dot_dimension_numbers<[1], [0], [0], [1], [0, 0, 1, 1], [], []>} : vector<256x128xbf16>, vector<128x128xbf16>, vector<256x128xf32> -> vector<256x128xf32>
    %42 = vector.shape_cast %41 : vector<256x128xf32> to vector<1x256x128xf32>
    %c0_60 = arith.constant 0 : index
    %c0_61 = arith.constant 0 : index
    %c0_62 = arith.constant 0 : index
    %43 = vector.load %arg3[%c0_60, %c0_61, %c0_62] : memref<1x256x128xf32, #tpu.memory_space<vmem>>, vector<1x256x128xf32>
    tpu.vector_store %arg3[%c0_60, %c0_61, %c0_62], %42 {strides = array<i32>} : memref<1x256x128xf32, #tpu.memory_space<vmem>>, vector<1x256x128xf32>,
    %cst_63 = arith.constant dense<0.000000e+00> : vector<128xf32>
    %44 = vector.multi_reduction <add>, %41, %cst_63 [0] : vector<256x128xf32> to vector<128xf32>
    %45 = vector.shape_cast %44 : vector<128xf32> to vector<1x128xf32>
    %46 = vector.shape_cast %45 : vector<1x128xf32> to vector<1x1x128xf32>
    %c0_64 = arith.constant 0 : index
    %c0_65 = arith.constant 0 : index
    %c0_66 = arith.constant 0 : index
    %47 = vector.load %arg4[%c0_64, %c0_65, %c0_66] : memref<1x2x128xf32, #tpu.memory_space<vmem>>, vector<1x1x128xf32>
    tpu.vector_store %arg4[%c0_64, %c0_65, %c0_66], %46 {strides = array<i32>} : memref<1x2x128xf32, #tpu.memory_space<vmem>>, vector<1x1x128xf32>,
    %48 = arith.mulf %41, %41 : vector<256x128xf32>
    %cst_67 = arith.constant dense<0.000000e+00> : vector<128xf32>
    %49 = vector.multi_reduction <add>, %48, %cst_67 [0] : vector<256x128xf32> to vector<128xf32>
    %50 = vector.shape_cast %49 : vector<128xf32> to vector<1x128xf32>
    %51 = vector.shape_cast %50 : vector<1x128xf32> to vector<1x1x128xf32>
    %c0_68 = arith.constant 0 : index
    %c1_69 = arith.constant 1 : index
    %c0_70 = arith.constant 0 : index
    %52 = vector.load %arg4[%c0_68, %c1_69, %c0_70] : memref<1x2x128xf32, #tpu.memory_space<vmem>>, vector<1x1x128xf32>
    tpu.vector_store %arg4[%c0_68, %c1_69, %c0_70], %51 {strides = array<i32>} : memref<1x2x128xf32, #tpu.memory_space<vmem>>, vector<1x1x128xf32>,
    return
  }
  func.func @transform_0(%arg0: i32) -> (i32, i32, i32, i32) {
    %c0_i32 = arith.constant 0 : i32
    %c0_i32_0 = arith.constant 0 : i32
    %c0_i32_1 = arith.constant 0 : i32
    %c0_i32_2 = arith.constant 0 : i32
    return %arg0, %c0_i32, %c0_i32_0, %c0_i32_1 : i32, i32, i32, i32
  }
  func.func @transform_1(%arg0: i32) -> (i32, i32) {
    %c0_i32 = arith.constant 0 : i32
    %c0_i32_0 = arith.constant 0 : i32
    %c0_i32_1 = arith.constant 0 : i32
    return %c0_i32, %c0_i32_0 : i32, i32
  }
  func.func @transform_2(%arg0: i32) -> (i32, i32, i32) {
    %c0_i32 = arith.constant 0 : i32
    %c0_i32_0 = arith.constant 0 : i32
    %c0_i32_1 = arith.constant 0 : i32
    return %arg0, %c0_i32, %c0_i32_0 : i32, i32, i32
  }
  func.func @transform_3(%arg0: i32) -> (i32, i32, i32) {
    %c0_i32 = arith.constant 0 : i32
    %c0_i32_0 = arith.constant 0 : i32
    %c0_i32_1 = arith.constant 0 : i32
    return %arg0, %c0_i32, %c0_i32_0 : i32, i32, i32
  }
}

module attributes {stable_mosaic.version = 11 : i64} {
  func.func @_bn_relu_conv_stats_kernel(%arg0: i32, %arg1: memref<1x256x128xf32, #tpu.memory_space<vmem>>, %arg2: memref<1x128xf32, #tpu.memory_space<vmem>>, %arg3: memref<1x128xf32, #tpu.memory_space<vmem>>, %arg4: memref<128x128xbf16, #tpu.memory_space<vmem>>, %arg5: memref<1x256x128xf32, #tpu.memory_space<vmem>>, %arg6: memref<1x2x128xf32, #tpu.memory_space<vmem>>, %arg7: memref<18x18x8xbf16, #tpu.memory_space<vmem>>, %arg8: memref<256x128xbf16, #tpu.memory_space<vmem>>) attributes {dimension_semantics = [#tpu.dimension_semantics<parallel>], iteration_bounds = array<i64: 2>, scalar_prefetch = 0 : i64, scratch_operands = 2 : i64, tpu.core_type = #tpu.core_type<tc>, window_params = [{transform_indices = @transform_0, window_bounds = array<i64: 1, 256, 128>}, {pipeline_mode = #tpu.pipeline_mode<synchronous>, transform_indices = @transform_1, window_bounds = array<i64: 1, 128>}, {pipeline_mode = #tpu.pipeline_mode<synchronous>, transform_indices = @transform_2, window_bounds = array<i64: 1, 128>}, {pipeline_mode = #tpu.pipeline_mode<synchronous>, transform_indices = @transform_3, window_bounds = array<i64: 128, 128>}, {transform_indices = @transform_4, window_bounds = array<i64: 1, 256, 128>}, {transform_indices = @transform_5, window_bounds = array<i64: 1, 2, 128>}]} {
    %c0 = arith.constant 0 : index
    %c0_0 = arith.constant 0 : index
    %c0_1 = arith.constant 0 : index
    %0 = vector.load %arg1[%c0, %c0_0, %c0_1] : memref<1x256x128xf32, #tpu.memory_space<vmem>>, vector<1x256x128xf32>
    %1 = vector.shape_cast %0 : vector<1x256x128xf32> to vector<256x128xf32>
    %c0_2 = arith.constant 0 : index
    %c0_3 = arith.constant 0 : index
    %2 = vector.load %arg2[%c0_2, %c0_3] : memref<1x128xf32, #tpu.memory_space<vmem>>, vector<1x128xf32>
    %3 = vector.broadcast %2 : vector<1x128xf32> to vector<256x128xf32>
    %4 = arith.mulf %1, %3 : vector<256x128xf32>
    %c0_4 = arith.constant 0 : index
    %c0_5 = arith.constant 0 : index
    %5 = vector.load %arg3[%c0_4, %c0_5] : memref<1x128xf32, #tpu.memory_space<vmem>>, vector<1x128xf32>
    %6 = vector.broadcast %5 : vector<1x128xf32> to vector<256x128xf32>
    %7 = arith.addf %4, %6 : vector<256x128xf32>
    %cst = arith.constant 0.000000e+00 : f32
    %8 = vector.broadcast %cst : f32 to vector<256x128xf32>
    %9 = arith.maximumf %7, %8 : vector<256x128xf32>
    %10 = vector.extract_strided_slice %9 {offsets = [0, 0], sizes = [256, 8], strides = [1, 1]} : vector<256x128xf32> to vector<256x8xf32>
    %11 = vector.shape_cast %10 : vector<256x8xf32> to vector<16x16x8xf32>
    %cst_6 = arith.constant 0.000000e+00 : bf16
    %12 = vector.broadcast %cst_6 : bf16 to vector<1x18x8xbf16>
    %cst_7 = arith.constant 0.000000e+00 : bf16
    %13 = vector.broadcast %cst_7 : bf16 to vector<16x1x8xbf16>
    %c0_8 = arith.constant 0 : index
    %c0_9 = arith.constant 0 : index
    %c0_10 = arith.constant 0 : index
    %14 = vector.load %arg7[%c0_8, %c0_9, %c0_10] : memref<18x18x8xbf16, #tpu.memory_space<vmem>>, vector<1x18x8xbf16>
    tpu.vector_store %arg7[%c0_8, %c0_9, %c0_10], %12 {strides = array<i32>} : memref<18x18x8xbf16, #tpu.memory_space<vmem>>, vector<1x18x8xbf16>,
    %c17 = arith.constant 17 : index
    %c0_11 = arith.constant 0 : index
    %c0_12 = arith.constant 0 : index
    %15 = vector.load %arg7[%c17, %c0_11, %c0_12] : memref<18x18x8xbf16, #tpu.memory_space<vmem>>, vector<1x18x8xbf16>
    tpu.vector_store %arg7[%c17, %c0_11, %c0_12], %12 {strides = array<i32>} : memref<18x18x8xbf16, #tpu.memory_space<vmem>>, vector<1x18x8xbf16>,
    %c1 = arith.constant 1 : index
    %c0_13 = arith.constant 0 : index
    %c0_14 = arith.constant 0 : index
    %16 = vector.load %arg7[%c1, %c0_13, %c0_14] : memref<18x18x8xbf16, #tpu.memory_space<vmem>>, vector<16x1x8xbf16>
    tpu.vector_store %arg7[%c1, %c0_13, %c0_14], %13 {strides = array<i32>} : memref<18x18x8xbf16, #tpu.memory_space<vmem>>, vector<16x1x8xbf16>,
    %c1_15 = arith.constant 1 : index
    %c17_16 = arith.constant 17 : index
    %c0_17 = arith.constant 0 : index
    %17 = vector.load %arg7[%c1_15, %c17_16, %c0_17] : memref<18x18x8xbf16, #tpu.memory_space<vmem>>, vector<16x1x8xbf16>
    tpu.vector_store %arg7[%c1_15, %c17_16, %c0_17], %13 {strides = array<i32>} : memref<18x18x8xbf16, #tpu.memory_space<vmem>>, vector<16x1x8xbf16>,
    %18 = arith.truncf %11 : vector<16x16x8xf32> to vector<16x16x8xbf16>
    %c1_18 = arith.constant 1 : index
    %c1_19 = arith.constant 1 : index
    %c0_20 = arith.constant 0 : index
    %19 = vector.load %arg7[%c1_18, %c1_19, %c0_20] : memref<18x18x8xbf16, #tpu.memory_space<vmem>>, vector<16x16x8xbf16>
    tpu.vector_store %arg7[%c1_18, %c1_19, %c0_20], %18 {strides = array<i32>} : memref<18x18x8xbf16, #tpu.memory_space<vmem>>, vector<16x16x8xbf16>,
    %cst_21 = arith.constant 0.000000e+00 : bf16
    %20 = vector.broadcast %cst_21 : bf16 to vector<256x56xbf16>
    %c0_22 = arith.constant 0 : index
    %c72 = arith.constant 72 : index
    %21 = vector.load %arg8[%c0_22, %c72] : memref<256x128xbf16, #tpu.memory_space<vmem>>, vector<256x56xbf16>
    tpu.vector_store %arg8[%c0_22, %c72], %20 {strides = array<i32>} : memref<256x128xbf16, #tpu.memory_space<vmem>>, vector<256x56xbf16>,
    %c0_23 = arith.constant 0 : index
    %c0_24 = arith.constant 0 : index
    %c0_25 = arith.constant 0 : index
    %22 = vector.load %arg7[%c0_23, %c0_24, %c0_25] : memref<18x18x8xbf16, #tpu.memory_space<vmem>>, vector<16x16x8xbf16>
    %23 = vector.shape_cast %22 : vector<16x16x8xbf16> to vector<256x8xbf16>
    %c0_26 = arith.constant 0 : index
    %c0_27 = arith.constant 0 : index
    %24 = vector.load %arg8[%c0_26, %c0_27] : memref<256x128xbf16, #tpu.memory_space<vmem>>, vector<256x8xbf16>
    tpu.vector_store %arg8[%c0_26, %c0_27], %23 {strides = array<i32>} : memref<256x128xbf16, #tpu.memory_space<vmem>>, vector<256x8xbf16>,
    %c0_28 = arith.constant 0 : index
    %c1_29 = arith.constant 1 : index
    %c0_30 = arith.constant 0 : index
    %25 = vector.load %arg7[%c0_28, %c1_29, %c0_30] : memref<18x18x8xbf16, #tpu.memory_space<vmem>>, vector<16x16x8xbf16>
    %26 = vector.shape_cast %25 : vector<16x16x8xbf16> to vector<256x8xbf16>
    %c0_31 = arith.constant 0 : index
    %c8 = arith.constant 8 : index
    %27 = vector.load %arg8[%c0_31, %c8] : memref<256x128xbf16, #tpu.memory_space<vmem>>, vector<256x8xbf16>
    tpu.vector_store %arg8[%c0_31, %c8], %26 {strides = array<i32>} : memref<256x128xbf16, #tpu.memory_space<vmem>>, vector<256x8xbf16>,
    %c0_32 = arith.constant 0 : index
    %c2 = arith.constant 2 : index
    %c0_33 = arith.constant 0 : index
    %28 = vector.load %arg7[%c0_32, %c2, %c0_33] : memref<18x18x8xbf16, #tpu.memory_space<vmem>>, vector<16x16x8xbf16>
    %29 = vector.shape_cast %28 : vector<16x16x8xbf16> to vector<256x8xbf16>
    %c0_34 = arith.constant 0 : index
    %c16 = arith.constant 16 : index
    %30 = vector.load %arg8[%c0_34, %c16] : memref<256x128xbf16, #tpu.memory_space<vmem>>, vector<256x8xbf16>
    tpu.vector_store %arg8[%c0_34, %c16], %29 {strides = array<i32>} : memref<256x128xbf16, #tpu.memory_space<vmem>>, vector<256x8xbf16>,
    %c1_35 = arith.constant 1 : index
    %c0_36 = arith.constant 0 : index
    %c0_37 = arith.constant 0 : index
    %31 = vector.load %arg7[%c1_35, %c0_36, %c0_37] : memref<18x18x8xbf16, #tpu.memory_space<vmem>>, vector<16x16x8xbf16>
    %32 = vector.shape_cast %31 : vector<16x16x8xbf16> to vector<256x8xbf16>
    %c0_38 = arith.constant 0 : index
    %c24 = arith.constant 24 : index
    %33 = vector.load %arg8[%c0_38, %c24] : memref<256x128xbf16, #tpu.memory_space<vmem>>, vector<256x8xbf16>
    tpu.vector_store %arg8[%c0_38, %c24], %32 {strides = array<i32>} : memref<256x128xbf16, #tpu.memory_space<vmem>>, vector<256x8xbf16>,
    %c1_39 = arith.constant 1 : index
    %c1_40 = arith.constant 1 : index
    %c0_41 = arith.constant 0 : index
    %34 = vector.load %arg7[%c1_39, %c1_40, %c0_41] : memref<18x18x8xbf16, #tpu.memory_space<vmem>>, vector<16x16x8xbf16>
    %35 = vector.shape_cast %34 : vector<16x16x8xbf16> to vector<256x8xbf16>
    %c0_42 = arith.constant 0 : index
    %c32 = arith.constant 32 : index
    %36 = vector.load %arg8[%c0_42, %c32] : memref<256x128xbf16, #tpu.memory_space<vmem>>, vector<256x8xbf16>
    tpu.vector_store %arg8[%c0_42, %c32], %35 {strides = array<i32>} : memref<256x128xbf16, #tpu.memory_space<vmem>>, vector<256x8xbf16>,
    %c1_43 = arith.constant 1 : index
    %c2_44 = arith.constant 2 : index
    %c0_45 = arith.constant 0 : index
    %37 = vector.load %arg7[%c1_43, %c2_44, %c0_45] : memref<18x18x8xbf16, #tpu.memory_space<vmem>>, vector<16x16x8xbf16>
    %38 = vector.shape_cast %37 : vector<16x16x8xbf16> to vector<256x8xbf16>
    %c0_46 = arith.constant 0 : index
    %c40 = arith.constant 40 : index
    %39 = vector.load %arg8[%c0_46, %c40] : memref<256x128xbf16, #tpu.memory_space<vmem>>, vector<256x8xbf16>
    tpu.vector_store %arg8[%c0_46, %c40], %38 {strides = array<i32>} : memref<256x128xbf16, #tpu.memory_space<vmem>>, vector<256x8xbf16>,
    %c2_47 = arith.constant 2 : index
    %c0_48 = arith.constant 0 : index
    %c0_49 = arith.constant 0 : index
    %40 = vector.load %arg7[%c2_47, %c0_48, %c0_49] : memref<18x18x8xbf16, #tpu.memory_space<vmem>>, vector<16x16x8xbf16>
    %41 = vector.shape_cast %40 : vector<16x16x8xbf16> to vector<256x8xbf16>
    %c0_50 = arith.constant 0 : index
    %c48 = arith.constant 48 : index
    %42 = vector.load %arg8[%c0_50, %c48] : memref<256x128xbf16, #tpu.memory_space<vmem>>, vector<256x8xbf16>
    tpu.vector_store %arg8[%c0_50, %c48], %41 {strides = array<i32>} : memref<256x128xbf16, #tpu.memory_space<vmem>>, vector<256x8xbf16>,
    %c2_51 = arith.constant 2 : index
    %c1_52 = arith.constant 1 : index
    %c0_53 = arith.constant 0 : index
    %43 = vector.load %arg7[%c2_51, %c1_52, %c0_53] : memref<18x18x8xbf16, #tpu.memory_space<vmem>>, vector<16x16x8xbf16>
    %44 = vector.shape_cast %43 : vector<16x16x8xbf16> to vector<256x8xbf16>
    %c0_54 = arith.constant 0 : index
    %c56 = arith.constant 56 : index
    %45 = vector.load %arg8[%c0_54, %c56] : memref<256x128xbf16, #tpu.memory_space<vmem>>, vector<256x8xbf16>
    tpu.vector_store %arg8[%c0_54, %c56], %44 {strides = array<i32>} : memref<256x128xbf16, #tpu.memory_space<vmem>>, vector<256x8xbf16>,
    %c2_55 = arith.constant 2 : index
    %c2_56 = arith.constant 2 : index
    %c0_57 = arith.constant 0 : index
    %46 = vector.load %arg7[%c2_55, %c2_56, %c0_57] : memref<18x18x8xbf16, #tpu.memory_space<vmem>>, vector<16x16x8xbf16>
    %47 = vector.shape_cast %46 : vector<16x16x8xbf16> to vector<256x8xbf16>
    %c0_58 = arith.constant 0 : index
    %c64 = arith.constant 64 : index
    %48 = vector.load %arg8[%c0_58, %c64] : memref<256x128xbf16, #tpu.memory_space<vmem>>, vector<256x8xbf16>
    tpu.vector_store %arg8[%c0_58, %c64], %47 {strides = array<i32>} : memref<256x128xbf16, #tpu.memory_space<vmem>>, vector<256x8xbf16>,
    %c0_59 = arith.constant 0 : index
    %c0_60 = arith.constant 0 : index
    %49 = vector.load %arg8[%c0_59, %c0_60] : memref<256x128xbf16, #tpu.memory_space<vmem>>, vector<256x128xbf16>
    %c0_61 = arith.constant 0 : index
    %c0_62 = arith.constant 0 : index
    %50 = vector.load %arg4[%c0_61, %c0_62] : memref<128x128xbf16, #tpu.memory_space<vmem>>, vector<128x128xbf16>
    %cst_63 = arith.constant dense<0.000000e+00> : vector<256x128xf32>
    %51 = tpu.matmul %49, %50, %cst_63 {dimension_numbers = #tpu.dot_dimension_numbers<[1], [0], [0], [1], [0, 0, 1, 1], [], []>} : vector<256x128xbf16>, vector<128x128xbf16>, vector<256x128xf32> -> vector<256x128xf32>
    %52 = vector.shape_cast %51 : vector<256x128xf32> to vector<1x256x128xf32>
    %c0_64 = arith.constant 0 : index
    %c0_65 = arith.constant 0 : index
    %c0_66 = arith.constant 0 : index
    %53 = vector.load %arg5[%c0_64, %c0_65, %c0_66] : memref<1x256x128xf32, #tpu.memory_space<vmem>>, vector<1x256x128xf32>
    tpu.vector_store %arg5[%c0_64, %c0_65, %c0_66], %52 {strides = array<i32>} : memref<1x256x128xf32, #tpu.memory_space<vmem>>, vector<1x256x128xf32>,
    %cst_67 = arith.constant dense<0.000000e+00> : vector<128xf32>
    %54 = vector.multi_reduction <add>, %51, %cst_67 [0] : vector<256x128xf32> to vector<128xf32>
    %55 = vector.shape_cast %54 : vector<128xf32> to vector<1x128xf32>
    %56 = vector.shape_cast %55 : vector<1x128xf32> to vector<1x1x128xf32>
    %c0_68 = arith.constant 0 : index
    %c0_69 = arith.constant 0 : index
    %c0_70 = arith.constant 0 : index
    %57 = vector.load %arg6[%c0_68, %c0_69, %c0_70] : memref<1x2x128xf32, #tpu.memory_space<vmem>>, vector<1x1x128xf32>
    tpu.vector_store %arg6[%c0_68, %c0_69, %c0_70], %56 {strides = array<i32>} : memref<1x2x128xf32, #tpu.memory_space<vmem>>, vector<1x1x128xf32>,
    %58 = arith.mulf %51, %51 : vector<256x128xf32>
    %cst_71 = arith.constant dense<0.000000e+00> : vector<128xf32>
    %59 = vector.multi_reduction <add>, %58, %cst_71 [0] : vector<256x128xf32> to vector<128xf32>
    %60 = vector.shape_cast %59 : vector<128xf32> to vector<1x128xf32>
    %61 = vector.shape_cast %60 : vector<1x128xf32> to vector<1x1x128xf32>
    %c0_72 = arith.constant 0 : index
    %c1_73 = arith.constant 1 : index
    %c0_74 = arith.constant 0 : index
    %62 = vector.load %arg6[%c0_72, %c1_73, %c0_74] : memref<1x2x128xf32, #tpu.memory_space<vmem>>, vector<1x1x128xf32>
    tpu.vector_store %arg6[%c0_72, %c1_73, %c0_74], %61 {strides = array<i32>} : memref<1x2x128xf32, #tpu.memory_space<vmem>>, vector<1x1x128xf32>,
    return
  }
  func.func @transform_0(%arg0: i32) -> (i32, i32, i32) {
    %c0_i32 = arith.constant 0 : i32
    %c0_i32_0 = arith.constant 0 : i32
    %c0_i32_1 = arith.constant 0 : i32
    return %arg0, %c0_i32, %c0_i32_0 : i32, i32, i32
  }
  func.func @transform_1(%arg0: i32) -> (i32, i32) {
    %c0_i32 = arith.constant 0 : i32
    %c0_i32_0 = arith.constant 0 : i32
    %c0_i32_1 = arith.constant 0 : i32
    return %c0_i32, %c0_i32_0 : i32, i32
  }
  func.func @transform_2(%arg0: i32) -> (i32, i32) {
    %c0_i32 = arith.constant 0 : i32
    %c0_i32_0 = arith.constant 0 : i32
    %c0_i32_1 = arith.constant 0 : i32
    return %c0_i32, %c0_i32_0 : i32, i32
  }
  func.func @transform_3(%arg0: i32) -> (i32, i32) {
    %c0_i32 = arith.constant 0 : i32
    %c0_i32_0 = arith.constant 0 : i32
    %c0_i32_1 = arith.constant 0 : i32
    return %c0_i32, %c0_i32_0 : i32, i32
  }
  func.func @transform_4(%arg0: i32) -> (i32, i32, i32) {
    %c0_i32 = arith.constant 0 : i32
    %c0_i32_0 = arith.constant 0 : i32
    %c0_i32_1 = arith.constant 0 : i32
    return %arg0, %c0_i32, %c0_i32_0 : i32, i32, i32
  }
  func.func @transform_5(%arg0: i32) -> (i32, i32, i32) {
    %c0_i32 = arith.constant 0 : i32
    %c0_i32_0 = arith.constant 0 : i32
    %c0_i32_1 = arith.constant 0 : i32
    return %arg0, %c0_i32, %c0_i32_0 : i32, i32, i32
  }
}

module attributes {stable_mosaic.version = 11 : i64} {
  func.func @_bn_add_relu_kernel(%arg0: i32, %arg1: memref<1x256x128xf32, #tpu.memory_space<vmem>>, %arg2: memref<1x128xf32, #tpu.memory_space<vmem>>, %arg3: memref<1x128xf32, #tpu.memory_space<vmem>>, %arg4: memref<1x256x128xf32, #tpu.memory_space<vmem>>, %arg5: memref<1x256x128xf32, #tpu.memory_space<vmem>>) attributes {dimension_semantics = [#tpu.dimension_semantics<parallel>], iteration_bounds = array<i64: 2>, scalar_prefetch = 0 : i64, scratch_operands = 0 : i64, tpu.core_type = #tpu.core_type<tc>, window_params = [{transform_indices = @transform_0, window_bounds = array<i64: 1, 256, 128>}, {pipeline_mode = #tpu.pipeline_mode<synchronous>, transform_indices = @transform_1, window_bounds = array<i64: 1, 128>}, {pipeline_mode = #tpu.pipeline_mode<synchronous>, transform_indices = @transform_2, window_bounds = array<i64: 1, 128>}, {transform_indices = @transform_3, window_bounds = array<i64: 1, 256, 128>}, {transform_indices = @transform_4, window_bounds = array<i64: 1, 256, 128>}]} {
    %c0 = arith.constant 0 : index
    %c0_0 = arith.constant 0 : index
    %c0_1 = arith.constant 0 : index
    %0 = vector.load %arg1[%c0, %c0_0, %c0_1] : memref<1x256x128xf32, #tpu.memory_space<vmem>>, vector<1x256x128xf32>
    %1 = vector.shape_cast %0 : vector<1x256x128xf32> to vector<256x128xf32>
    %c0_2 = arith.constant 0 : index
    %c0_3 = arith.constant 0 : index
    %2 = vector.load %arg2[%c0_2, %c0_3] : memref<1x128xf32, #tpu.memory_space<vmem>>, vector<1x128xf32>
    %3 = vector.broadcast %2 : vector<1x128xf32> to vector<256x128xf32>
    %4 = arith.mulf %1, %3 : vector<256x128xf32>
    %c0_4 = arith.constant 0 : index
    %c0_5 = arith.constant 0 : index
    %5 = vector.load %arg3[%c0_4, %c0_5] : memref<1x128xf32, #tpu.memory_space<vmem>>, vector<1x128xf32>
    %6 = vector.broadcast %5 : vector<1x128xf32> to vector<256x128xf32>
    %7 = arith.addf %4, %6 : vector<256x128xf32>
    %c0_6 = arith.constant 0 : index
    %c0_7 = arith.constant 0 : index
    %c0_8 = arith.constant 0 : index
    %8 = vector.load %arg4[%c0_6, %c0_7, %c0_8] : memref<1x256x128xf32, #tpu.memory_space<vmem>>, vector<1x256x128xf32>
    %9 = vector.shape_cast %8 : vector<1x256x128xf32> to vector<256x128xf32>
    %10 = arith.addf %7, %9 : vector<256x128xf32>
    %cst = arith.constant 0.000000e+00 : f32
    %11 = vector.broadcast %cst : f32 to vector<256x128xf32>
    %12 = arith.maximumf %10, %11 : vector<256x128xf32>
    %13 = vector.shape_cast %12 : vector<256x128xf32> to vector<1x256x128xf32>
    %c0_9 = arith.constant 0 : index
    %c0_10 = arith.constant 0 : index
    %c0_11 = arith.constant 0 : index
    %14 = vector.load %arg5[%c0_9, %c0_10, %c0_11] : memref<1x256x128xf32, #tpu.memory_space<vmem>>, vector<1x256x128xf32>
    tpu.vector_store %arg5[%c0_9, %c0_10, %c0_11], %13 {strides = array<i32>} : memref<1x256x128xf32, #tpu.memory_space<vmem>>, vector<1x256x128xf32>,
    return
  }
  func.func @transform_0(%arg0: i32) -> (i32, i32, i32) {
    %c0_i32 = arith.constant 0 : i32
    %c0_i32_0 = arith.constant 0 : i32
    %c0_i32_1 = arith.constant 0 : i32
    return %arg0, %c0_i32, %c0_i32_0 : i32, i32, i32
  }
  func.func @transform_1(%arg0: i32) -> (i32, i32) {
    %c0_i32 = arith.constant 0 : i32
    %c0_i32_0 = arith.constant 0 : i32
    %c0_i32_1 = arith.constant 0 : i32
    return %c0_i32, %c0_i32_0 : i32, i32
  }
  func.func @transform_2(%arg0: i32) -> (i32, i32) {
    %c0_i32 = arith.constant 0 : i32
    %c0_i32_0 = arith.constant 0 : i32
    %c0_i32_1 = arith.constant 0 : i32
    return %c0_i32, %c0_i32_0 : i32, i32
  }
  func.func @transform_3(%arg0: i32) -> (i32, i32, i32) {
    %c0_i32 = arith.constant 0 : i32
    %c0_i32_0 = arith.constant 0 : i32
    %c0_i32_1 = arith.constant 0 : i32
    return %arg0, %c0_i32, %c0_i32_0 : i32, i32, i32
  }
  func.func @transform_4(%arg0: i32) -> (i32, i32, i32) {
    %c0_i32 = arith.constant 0 : i32
    %c0_i32_0 = arith.constant 0 : i32
    %c0_i32_1 = arith.constant 0 : i32
    return %arg0, %c0_i32, %c0_i32_0 : i32, i32, i32
  }
}

</mosaic_0001>

<llo_original>
// kernel: residual_block.5
$region0: #{residual_block.5}
  #allocation0 [shape = 'u32[]', space=smem, size = 0x4, offset = 0x4, fixed_abs, tag = 'smem constant byte address 0x4 - core index']
  #allocation1 [shape = 'u32[72,128]{1,0:T(1,128)}', space=vmem, size = 0x9000, scoped, tag = 'internal scratch']
  %s0 = inlined_call_operand.vmem [shape: f32[2,256,128], index: 0, kind: input, shape index: {}]
  %s1 = inlined_call_operand.vmem [shape: f32[1,128], index: 1, kind: input, shape index: {}]
  %s2 = inlined_call_operand.vmem [shape: f32[1,128], index: 2, kind: input, shape index: {}]
  %s3 = inlined_call_operand.vmem [shape: f32[2,256,128], index: 3, kind: input, shape index: {}]
  %s4 = inlined_call_operand.vmem [shape: f32[2,256,128], index: 4, kind: output, shape index: {}]
  %s5 = sld [smem:[#allocation0]]
  $region49: #{residual_block.5} parent=0
    _
  %s7 = ssub.s32 1, %s5
  %s8 = scalar_select 0, %s7, %s5
  loop: start=0, step=1, limit=4
  $region2: #{residual_block.5} parent=0 // loop_pre_header
    _
  $region3: #{residual_block.5} parent=0 // loop_header
    %s10 = sphi 0, %s14
    %p11 = scmp.ge.s32.totalorder %s10, 4
    %s20 = sphi 0, %s22
    %s23 = sphi 0, %s20
    %s24 = sphi 0, %s23
    %s40 = sphi 0, %s24
    %s44 = sphi 0, %s44
    %s46 = sphi 0, %s44
    %s47 = sphi 0, %s46
    %s61 = sphi 0, %s47
    %s65 = sphi 0, %s65
    %s67 = sphi 0, %s65
    %s68 = sphi 0, %s67
    %s82 = sphi 0, %s68
    %s88 = sphi 0, %s90
    %s91 = sphi 0, %s88
    %s92 = sphi 0, %s91
    %s108 = sphi 0, %s92
    %s114 = sphi 0, %s116
    %s117 = sphi 0, %s114
    %s118 = sphi 0, %s117
    %s134 = sphi 0, %s118
  $region4: #{residual_block.5} parent=0 // loop_header_branch
    %13 = sbr.rel (%p11) target = $region8
  $region5: #{residual_block.5} parent=0 // loop_body
    %s15 = ssub.s32 %s10, 1
    %s16 = ssub.s32 %s10, 2
    %s17 = sadd.s32 %s10, 1
    %s18 = ssub.s32 %s10, %s17
    %p19 = scmp.eq.s32.totalorder %s18, 0
    %s21 = sadd.s32 %s20, 1
    %s22 = scalar_select %p19, %s20, %s21
    %p25 = pneg %p19
    %p26 = scmp.eq.s32.totalorder %s10, 1
    %p27 = por %p25, %p26
    %p28 = scmp.ne.s32.totalorder %s20, %s23
    %p29 = scmp.eq.s32.totalorder %s10, 0
    %p30 = por %p28, %p29
    %p31 = scmp.ne.s32.totalorder %s20, %s23
    %p32 = scmp.eq.s32.totalorder %s15, 1
    %p33 = por %p31, %p32
    %p34 = scmp.ne.s32.totalorder %s23, %s24
    %p35 = scmp.eq.s32.totalorder %s15, 0
    %p36 = por %p34, %p35
    %p37 = scmp.ne.s32.totalorder %s23, %s24
    %p38 = scmp.eq.s32.totalorder %s16, 1
    %p39 = por %p37, %p38
    %p41 = scmp.ne.s32.totalorder %s24, %s40
    %p42 = scmp.eq.s32.totalorder %s16, 0
    %p43 = por %p41, %p42
    %s45 = sadd.s32 %s44, 1
    %p48 = scmp.eq.s32.totalorder %s10, 1
    %p49 = scmp.ne.s32.totalorder %s44, %s46
    %p50 = scmp.eq.s32.totalorder %s10, 0
    %p51 = por %p49, %p50
    %p52 = scmp.ne.s32.totalorder %s44, %s46
    %p53 = scmp.eq.s32.totalorder %s15, 1
    %p54 = por %p52, %p53
    %p55 = scmp.ne.s32.totalorder %s46, %s47
    %p56 = scmp.eq.s32.totalorder %s15, 0
    %p57 = por %p55, %p56
    %p58 = scmp.ne.s32.totalorder %s46, %s47
    %p59 = scmp.eq.s32.totalorder %s16, 1
    %p60 = por %p58, %p59
    %p62 = scmp.ne.s32.totalorder %s47, %s61
    %p63 = scmp.eq.s32.totalorder %s16, 0
    %p64 = por %p62, %p63
    %s66 = sadd.s32 %s65, 1
    %p69 = scmp.eq.s32.totalorder %s10, 1
    %p70 = scmp.ne.s32.totalorder %s65, %s67
    %p71 = scmp.eq.s32.totalorder %s10, 0
    %p72 = por %p70, %p71
    %p73 = scmp.ne.s32.totalorder %s65, %s67
    %p74 = scmp.eq.s32.totalorder %s15, 1
    %p75 = por %p73, %p74
    %p76 = scmp.ne.s32.totalorder %s67, %s68
    %p77 = scmp.eq.s32.totalorder %s15, 0
    %p78 = por %p76, %p77
    %p79 = scmp.ne.s32.totalorder %s67, %s68
    %p80 = scmp.eq.s32.totalorder %s16, 1
    %p81 = por %p79, %p80
    %p83 = scmp.ne.s32.totalorder %s68, %s82
    %p84 = scmp.eq.s32.totalorder %s16, 0
    %p85 = por %p83, %p84
    %s86 = ssub.s32 %s10, %s17
    %p87 = scmp.eq.s32.totalorder %s86, 0
    %s89 = sadd.s32 %s88, 1
    %s90 = scalar_select %p87, %s88, %s89
    %p93 = pneg %p87
    %p94 = scmp.eq.s32.totalorder %s10, 1
    %p95 = por %p93, %p94
    %p96 = scmp.ne.s32.totalorder %s88, %s91
    %p97 = scmp.eq.s32.totalorder %s10, 0
    %p98 = por %p96, %p97
    %p99 = scmp.ne.s32.totalorder %s88, %s91
    %p100 = scmp.eq.s32.totalorder %s15, 1
    %p101 = por %p99, %p100
    %p102 = scmp.ne.s32.totalorder %s91, %s92
    %p103 = scmp.eq.s32.totalorder %s15, 0
    %p104 = por %p102, %p103
    %p105 = scmp.ne.s32.totalorder %s91, %s92
    %p106 = scmp.eq.s32.totalorder %s16, 1
    %p107 = por %p105, %p106
    %p109 = scmp.ne.s32.totalorder %s92, %s108
    %p110 = scmp.eq.s32.totalorder %s16, 0
    %p111 = por %p109, %p110
    %s112 = ssub.s32 %s10, %s17
    %p113 = scmp.eq.s32.totalorder %s112, 0
    %s115 = sadd.s32 %s114, 1
    %s116 = scalar_select %p113, %s114, %s115
    %p119 = pneg %p113
    %p120 = scmp.eq.s32.totalorder %s10, 1
    %p121 = por %p119, %p120
    %p122 = scmp.ne.s32.totalorder %s114, %s117
    %p123 = scmp.eq.s32.totalorder %s10, 0
    %p124 = por %p122, %p123
    %p125 = scmp.ne.s32.totalorder %s114, %s117
    %p126 = scmp.eq.s32.totalorder %s15, 1
    %p127 = por %p125, %p126
    %p128 = scmp.ne.s32.totalorder %s117, %s118
    %p129 = scmp.eq.s32.totalorder %s15, 0
    %p130 = por %p128, %p129
    %p131 = scmp.ne.s32.totalorder %s117, %s118
    %p132 = scmp.eq.s32.totalorder %s16, 1
    %p133 = por %p131, %p132
    %p135 = scmp.ne.s32.totalorder %s118, %s134
    %p136 = scmp.eq.s32.totalorder %s16, 0
    %p137 = por %p135, %p136
    %p138 = scmp.le.s32.totalorder 1, %s10
    %p139 = scmp.lt.s32.totalorder %s10, 3
    %p140 = pnand %p138, %p139
    %p141 = pneg %p140
    // Predicated region
    $region9: #{residual_block.5} parent=5 // pred_check
      _
    $region10: #{residual_block.5} parent=5 // pred_check_branch
      %143 = sbr.rel (%p140) target = $region12
    $region11: #{residual_block.5} parent=5 // pred_region
      %s144 = ssub.s32 %s10, 1
      // Predicated region
      $region13: #{residual_block.5} parent=11 // pred_check
        %p145 = pneg %p57
      $region14: #{residual_block.5} parent=11 // pred_check_branch
        %147 = sbr.rel (%p145) target = $region16
      $region15: #{residual_block.5} parent=11 // pred_region
        _
      $region16: #{residual_block.5} parent=11 // pred_fallthru
        _
      // Predicated region
      $region17: #{residual_block.5} parent=11 // pred_check
        %p148 = pneg %p78
      $region18: #{residual_block.5} parent=11 // pred_check_branch
        %150 = sbr.rel (%p148) target = $region20
      $region19: #{residual_block.5} parent=11 // pred_region
        _
      $region20: #{residual_block.5} parent=11 // pred_fallthru
        _
    $region12: #{residual_block.5} parent=5 // pred_fallthru
      _
    %p151 = scmp.lt.s32.totalorder %s10, 2
    // Predicated region
    $region21: #{residual_block.5} parent=5 // pred_check
      %p152 = pneg %p151
    $region22: #{residual_block.5} parent=5 // pred_check_branch
      %154 = sbr.rel (%p152) target = $region24
    $region23: #{residual_block.5} parent=5 // pred_region
      // Predicated region
      $region25: #{residual_block.5} parent=23 // pred_check
        %p155 = pneg %p30
      $region26: #{residual_block.5} parent=23 // pred_check_branch
        %157 = sbr.rel (%p155) target = $region28
      $region27: #{residual_block.5} parent=23 // pred_region
        %p158 = scmp.lt.s32.totalorder %s10, 1
        %s159 = scalar_select %p158, %s10, 1
        %s160 = smul.addr %s159, 32
        %s161 = smul.addr %s160, 8
        %s162 = scalar_lea.vmem %s0, %s161
      $region28: #{residual_block.5} parent=23 // pred_fallthru
        _
      // Predicated region
      $region29: #{residual_block.5} parent=23 // pred_check
        %p163 = pneg %p98
      $region30: #{residual_block.5} parent=23 // pred_check_branch
        %165 = sbr.rel (%p163) target = $region32
      $region31: #{residual_block.5} parent=23 // pred_region
        %p166 = scmp.lt.s32.totalorder %s10, 1
        %s167 = scalar_select %p166, %s10, 1
        %s168 = smul.addr %s167, 32
        %s169 = smul.addr %s168, 8
        %s170 = scalar_lea.vmem %s3, %s169
      $region32: #{residual_block.5} parent=23 // pred_fallthru
        _
    $region24: #{residual_block.5} parent=5 // pred_fallthru
      _
    %p171 = scmp.le.s32.totalorder 1, %s10
    %p172 = scmp.lt.s32.totalorder %s10, 3
    %p173 = pnand %p171, %p172
    %p174 = pneg %p173
    // Predicated region
    $region33: #{residual_block.5} parent=5 // pred_check
      _
    $region34: #{residual_block.5} parent=5 // pred_check_branch
      %176 = sbr.rel (%p173) target = $region36
    $region35: #{residual_block.5} parent=5 // pred_region
      %s177 = ssub.s32 %s10, 1
      %p178 = scmp.lt.s32.totalorder %s15, 1
      %s179 = scalar_select %p178, %s15, 1
      %s180 = smul.addr %s179, 32
      %s181 = smul.addr %s180, 8
      %s182 = scalar_lea.vmem %s0, %s181
      %p183 = pneg %p36
      %p184 = pneg %p33
      %p185 = pneg %p57
      %p186 = pneg %p54
      %p187 = pneg %p78
      %p188 = pneg %p75
      %p189 = scmp.lt.s32.totalorder %s15, 1
      %s190 = scalar_select %p189, %s15, 1
      %s191 = smul.addr %s190, 32
      %s192 = smul.addr %s191, 8
      %s193 = scalar_lea.vmem %s3, %s192
      %p194 = pneg %p104
      %p195 = pneg %p101
      %p196 = pneg %p130
      %p197 = pneg %p127
      %p198 = scmp.lt.s32.totalorder %s15, 1
      %s199 = scalar_select %p198, %s15, 1
      %s200 = smul.addr %s199, 32
      %s201 = smul.addr %s200, 8
      %s202 = scalar_lea.vmem %s4, %s201
      %p203 = scmp.lt.s32.totalorder %s15, 1
      %s204 = scalar_select %p203, %s15, 1
      %s205 = smul.addr %s204, 32
      %s206 = smul.addr %s205, 8
      %s207 = scalar_lea.vmem %s0, %s206
      %p208 = scmp.lt.s32.totalorder %s15, 1
      %s209 = scalar_select %p208, %s15, 1
      %s210 = smul.addr %s209, 32
      %s211 = smul.addr %s210, 8
      %s212 = scalar_lea.vmem %s3, %s211
      %p213 = scmp.lt.s32.totalorder %s15, 1
      %s214 = scalar_select %p213, %s15, 1
      %s215 = smul.addr %s214, 32
      %s216 = smul.addr %s215, 8
      %s217 = scalar_lea.vmem %s4, %s216
      %v218 = vld [vmem:[%s207] sm:$0xff]
      %v219 = vld [vmem:[%s207 + $0x8] sm:$0xff]
      %v220 = vld [vmem:[%s207 + $0x10] sm:$0xff]
      %v221 = vld [vmem:[%s207 + $0x18] sm:$0xff]
      %v222 = vld [vmem:[%s207 + $0x20] sm:$0xff]
      %v223 = vld [vmem:[%s207 + $0x28] sm:$0xff]
      %v224 = vld [vmem:[%s207 + $0x30] sm:$0xff]
      %v225 = vld [vmem:[%s207 + $0x38] sm:$0xff]
      %v226 = vld [vmem:[%s207 + $0x40] sm:$0xff]
      %v227 = vld [vmem:[%s207 + $0x48] sm:$0xff]
      %v228 = vld [vmem:[%s207 + $0x50] sm:$0xff]
      %v229 = vld [vmem:[%s207 + $0x58] sm:$0xff]
      %v230 = vld [vmem:[%s207 + $0x60] sm:$0xff]
      %v231 = vld [vmem:[%s207 + $0x68] sm:$0xff]
      %v232 = vld [vmem:[%s207 + $0x70] sm:$0xff]
      %v233 = vld [vmem:[%s207 + $0x78] sm:$0xff]
      %v234 = vld [vmem:[%s207 + $0x80] sm:$0xff]
      %v235 = vld [vmem:[%s207 + $0x88] sm:$0xff]
      %v236 = vld [vmem:[%s207 + $0x90] sm:$0xff]
      %v237 = vld [vmem:[%s207 + $0x98] sm:$0xff]
      %v238 = vld [vmem:[%s207 + $0xa0] sm:$0xff]
      %v239 = vld [vmem:[%s207 + $0xa8] sm:$0xff]
      %v240 = vld [vmem:[%s207 + $0xb0] sm:$0xff]
      %v241 = vld [vmem:[%s207 + $0xb8] sm:$0xff]
      %v242 = vld [vmem:[%s207 + $0xc0] sm:$0xff]
      %v243 = vld [vmem:[%s207 + $0xc8] sm:$0xff]
      %v244 = vld [vmem:[%s207 + $0xd0] sm:$0xff]
      %v245 = vld [vmem:[%s207 + $0xd8] sm:$0xff]
      %v246 = vld [vmem:[%s207 + $0xe0] sm:$0xff]
      %v247 = vld [vmem:[%s207 + $0xe8] sm:$0xff]
      %v248 = vld [vmem:[%s207 + $0xf0] sm:$0xff]
      %v249 = vld [vmem:[%s207 + $0xf8] sm:$0xff]
      %v250 = vld [vmem:[%s1] sm:$0x1]
      %v252 = vperm.slane %v250, 0
      %v254 = vmul.f32 %v218, %v252
      %v255 = vmul.f32 %v219, %v252
      %v256 = vmul.f32 %v220, %v252
      %v257 = vmul.f32 %v221, %v252
      %v258 = vmul.f32 %v222, %v252
      %v259 = vmul.f32 %v223, %v252
      %v260 = vmul.f32 %v224, %v252
      %v261 = vmul.f32 %v225, %v252
      %v262 = vmul.f32 %v226, %v252
      %v263 = vmul.f32 %v227, %v252
      %v264 = vmul.f32 %v228, %v252
      %v265 = vmul.f32 %v229, %v252
      %v266 = vmul.f32 %v230, %v252
      %v267 = vmul.f32 %v231, %v252
      %v268 = vmul.f32 %v232, %v252
      %v269 = vmul.f32 %v233, %v252
      %v270 = vmul.f32 %v234, %v252
      %v271 = vmul.f32 %v235, %v252
      %v272 = vmul.f32 %v236, %v252
      %v273 = vmul.f32 %v237, %v252
      %v274 = vmul.f32 %v238, %v252
      %v275 = vmul.f32 %v239, %v252
      %v276 = vmul.f32 %v240, %v252
      %v277 = vmul.f32 %v241, %v252
      %v278 = vmul.f32 %v242, %v252
      %v279 = vmul.f32 %v243, %v252
      %v280 = vmul.f32 %v244, %v252
      %v281 = vmul.f32 %v245, %v252
      %v282 = vmul.f32 %v246, %v252
      %v283 = vmul.f32 %v247, %v252
      %v284 = vmul.f32 %v248, %v252
      %v285 = vmul.f32 %v249, %v252
      %v286 = vld [vmem:[%s2] sm:$0x1]
      %v288 = vperm.slane %v286, 0
      %v290 = vadd.f32 %v254, %v288
      %v291 = vadd.f32 %v255, %v288
      %v292 = vadd.f32 %v256, %v288
      %v293 = vadd.f32 %v257, %v288
      %v294 = vadd.f32 %v258, %v288
      %v295 = vadd.f32 %v259, %v288
      %v296 = vadd.f32 %v260, %v288
      %v297 = vadd.f32 %v261, %v288
      %v298 = vadd.f32 %v262, %v288
      %v299 = vadd.f32 %v263, %v288
      %v300 = vadd.f32 %v264, %v288
      %v301 = vadd.f32 %v265, %v288
      %v302 = vadd.f32 %v266, %v288
      %v303 = vadd.f32 %v267, %v288
      %v304 = vadd.f32 %v268, %v288
      %v305 = vadd.f32 %v269, %v288
      %v306 = vadd.f32 %v270, %v288
      %v307 = vadd.f32 %v271, %v288
      %v308 = vadd.f32 %v272, %v288
      %v309 = vadd.f32 %v273, %v288
      %v310 = vadd.f32 %v274, %v288
      %v311 = vadd.f32 %v275, %v288
      %v312 = vadd.f32 %v276, %v288
      %v313 = vadd.f32 %v277, %v288
      %v314 = vadd.f32 %v278, %v288
      %v315 = vadd.f32 %v279, %v288
      %v316 = vadd.f32 %v280, %v288
      %v317 = vadd.f32 %v281, %v288
      %v318 = vadd.f32 %v282, %v288
      %v319 = vadd.f32 %v283, %v288
      %v320 = vadd.f32 %v284, %v288
      %v321 = vadd.f32 %v285, %v288
      %v322 = vld [vmem:[%s212] sm:$0xff]
      %v323 = vld [vmem:[%s212 + $0x8] sm:$0xff]
      %v324 = vld [vmem:[%s212 + $0x10] sm:$0xff]
      %v325 = vld [vmem:[%s212 + $0x18] sm:$0xff]
      %v326 = vld [vmem:[%s212 + $0x20] sm:$0xff]
      %v327 = vld [vmem:[%s212 + $0x28] sm:$0xff]
      %v328 = vld [vmem:[%s212 + $0x30] sm:$0xff]
      %v329 = vld [vmem:[%s212 + $0x38] sm:$0xff]
      %v330 = vld [vmem:[%s212 + $0x40] sm:$0xff]
      %v331 = vld [vmem:[%s212 + $0x48] sm:$0xff]
      %v332 = vld [vmem:[%s212 + $0x50] sm:$0xff]
      %v333 = vld [vmem:[%s212 + $0x58] sm:$0xff]
      %v334 = vld [vmem:[%s212 + $0x60] sm:$0xff]
      %v335 = vld [vmem:[%s212 + $0x68] sm:$0xff]
      %v336 = vld [vmem:[%s212 + $0x70] sm:$0xff]
      %v337 = vld [vmem:[%s212 + $0x78] sm:$0xff]
      %v338 = vld [vmem:[%s212 + $0x80] sm:$0xff]
      %v339 = vld [vmem:[%s212 + $0x88] sm:$0xff]
      %v340 = vld [vmem:[%s212 + $0x90] sm:$0xff]
      %v341 = vld [vmem:[%s212 + $0x98] sm:$0xff]
      %v342 = vld [vmem:[%s212 + $0xa0] sm:$0xff]
      %v343 = vld [vmem:[%s212 + $0xa8] sm:$0xff]
      %v344 = vld [vmem:[%s212 + $0xb0] sm:$0xff]
      %v345 = vld [vmem:[%s212 + $0xb8] sm:$0xff]
      %v346 = vld [vmem:[%s212 + $0xc0] sm:$0xff]
      %v347 = vld [vmem:[%s212 + $0xc8] sm:$0xff]
      %v348 = vld [vmem:[%s212 + $0xd0] sm:$0xff]
      %v349 = vld [vmem:[%s212 + $0xd8] sm:$0xff]
      %v350 = vld [vmem:[%s212 + $0xe0] sm:$0xff]
      %v351 = vld [vmem:[%s212 + $0xe8] sm:$0xff]
      %v352 = vld [vmem:[%s212 + $0xf0] sm:$0xff]
      %v353 = vld [vmem:[%s212 + $0xf8] sm:$0xff]
      %v354 = vadd.f32 %v290, %v322
      %v355 = vadd.f32 %v291, %v323
      %v356 = vadd.f32 %v292, %v324
      %v357 = vadd.f32 %v293, %v325
      %v358 = vadd.f32 %v294, %v326
      %v359 = vadd.f32 %v295, %v327
      %v360 = vadd.f32 %v296, %v328
      %v361 = vadd.f32 %v297, %v329
      %v362 = vadd.f32 %v298, %v330
      %v363 = vadd.f32 %v299, %v331
      %v364 = vadd.f32 %v300, %v332
      %v365 = vadd.f32 %v301, %v333
      %v366 = vadd.f32 %v302, %v334
      %v367 = vadd.f32 %v303, %v335
      %v368 = vadd.f32 %v304, %v336
      %v369 = vadd.f32 %v305, %v337
      %v370 = vadd.f32 %v306, %v338
      %v371 = vadd.f32 %v307, %v339
      %v372 = vadd.f32 %v308, %v340
      %v373 = vadd.f32 %v309, %v341
      %v374 = vadd.f32 %v310, %v342
      %v375 = vadd.f32 %v311, %v343
      %v376 = vadd.f32 %v312, %v344
      %v377 = vadd.f32 %v313, %v345
      %v378 = vadd.f32 %v314, %v346
      %v379 = vadd.f32 %v315, %v347
      %v380 = vadd.f32 %v316, %v348
      %v381 = vadd.f32 %v317, %v349
      %v382 = vadd.f32 %v318, %v350
      %v383 = vadd.f32 %v319, %v351
      %v384 = vadd.f32 %v320, %v352
      %v385 = vadd.f32 %v321, %v353
      %v386 = vmax.f32 %v354, 0.0
      %v387 = vmax.f32 %v355, 0.0
      %v388 = vmax.f32 %v356, 0.0
      %v389 = vmax.f32 %v357, 0.0
      %v390 = vmax.f32 %v358, 0.0
      %v391 = vmax.f32 %v359, 0.0
      %v392 = vmax.f32 %v360, 0.0
      %v393 = vmax.f32 %v361, 0.0
      %v394 = vmax.f32 %v362, 0.0
      %v395 = vmax.f32 %v363, 0.0
      %v396 = vmax.f32 %v364, 0.0
      %v397 = vmax.f32 %v365, 0.0
      %v398 = vmax.f32 %v366, 0.0
      %v399 = vmax.f32 %v367, 0.0
      %v400 = vmax.f32 %v368, 0.0
      %v401 = vmax.f32 %v369, 0.0
      %v402 = vmax.f32 %v370, 0.0
      %v403 = vmax.f32 %v371, 0.0
      %v404 = vmax.f32 %v372, 0.0
      %v405 = vmax.f32 %v373, 0.0
      %v406 = vmax.f32 %v374, 0.0
      %v407 = vmax.f32 %v375, 0.0
      %v408 = vmax.f32 %v376, 0.0
      %v409 = vmax.f32 %v377, 0.0
      %v410 = vmax.f32 %v378, 0.0
      %v411 = vmax.f32 %v379, 0.0
      %v412 = vmax.f32 %v380, 0.0
      %v413 = vmax.f32 %v381, 0.0
      %v414 = vmax.f32 %v382, 0.0
      %v415 = vmax.f32 %v383, 0.0
      %v416 = vmax.f32 %v384, 0.0
      %v417 = vmax.f32 %v385, 0.0
      %418 = vst [vmem:[%s217] sm:$0xff] %v386
      %419 = vst [vmem:[%s217 + $0x8] sm:$0xff] %v387
      %420 = vst [vmem:[%s217 + $0x10] sm:$0xff] %v388
      %421 = vst [vmem:[%s217 + $0x18] sm:$0xff] %v389
      %422 = vst [vmem:[%s217 + $0x20] sm:$0xff] %v390
      %423 = vst [vmem:[%s217 + $0x28] sm:$0xff] %v391
      %424 = vst [vmem:[%s217 + $0x30] sm:$0xff] %v392
      %425 = vst [vmem:[%s217 + $0x38] sm:$0xff] %v393
      %426 = vst [vmem:[%s217 + $0x40] sm:$0xff] %v394
      %427 = vst [vmem:[%s217 + $0x48] sm:$0xff] %v395
      %428 = vst [vmem:[%s217 + $0x50] sm:$0xff] %v396
      %429 = vst [vmem:[%s217 + $0x58] sm:$0xff] %v397
      %430 = vst [vmem:[%s217 + $0x60] sm:$0xff] %v398
      %431 = vst [vmem:[%s217 + $0x68] sm:$0xff] %v399
      %432 = vst [vmem:[%s217 + $0x70] sm:$0xff] %v400
      %433 = vst [vmem:[%s217 + $0x78] sm:$0xff] %v401
      %434 = vst [vmem:[%s217 + $0x80] sm:$0xff] %v402
      %435 = vst [vmem:[%s217 + $0x88] sm:$0xff] %v403
      %436 = vst [vmem:[%s217 + $0x90] sm:$0xff] %v404
      %437 = vst [vmem:[%s217 + $0x98] sm:$0xff] %v405
      %438 = vst [vmem:[%s217 + $0xa0] sm:$0xff] %v406
      %439 = vst [vmem:[%s217 + $0xa8] sm:$0xff] %v407
      %440 = vst [vmem:[%s217 + $0xb0] sm:$0xff] %v408
      %441 = vst [vmem:[%s217 + $0xb8] sm:$0xff] %v409
      %442 = vst [vmem:[%s217 + $0xc0] sm:$0xff] %v410
      %443 = vst [vmem:[%s217 + $0xc8] sm:$0xff] %v411
      %444 = vst [vmem:[%s217 + $0xd0] sm:$0xff] %v412
      %445 = vst [vmem:[%s217 + $0xd8] sm:$0xff] %v413
      %446 = vst [vmem:[%s217 + $0xe0] sm:$0xff] %v414
      %447 = vst [vmem:[%s217 + $0xe8] sm:$0xff] %v415
      %448 = vst [vmem:[%s217 + $0xf0] sm:$0xff] %v416
      %449 = vst [vmem:[%s217 + $0xf8] sm:$0xff] %v417
      %p450 = scmp.lt.s32.totalorder %s15, 1
      %s451 = scalar_select %p450, %s15, 1
      %s452 = smul.addr %s451, 32
      %s453 = smul.addr %s452, 8
      %s454 = scalar_lea.vmem %s4, %s453
      // Predicated region
      $region37: #{residual_block.5} parent=35 // pred_check
        %p455 = pneg %p127
      $region38: #{residual_block.5} parent=35 // pred_check_branch
        %457 = sbr.rel (%p455) target = $region40
      $region39: #{residual_block.5} parent=35 // pred_region
        _
      $region40: #{residual_block.5} parent=35 // pred_fallthru
        _
    $region36: #{residual_block.5} parent=5 // pred_fallthru
      _
    %p458 = scmp.le.s32.totalorder 2, %s10
    // Predicated region
    $region41: #{residual_block.5} parent=5 // pred_check
      %p459 = pneg %p458
    $region42: #{residual_block.5} parent=5 // pred_check_branch
      %461 = sbr.rel (%p459) target = $region44
    $region43: #{residual_block.5} parent=5 // pred_region
      %s462 = ssub.s32 %s10, 2
      // Predicated region
      $region45: #{residual_block.5} parent=43 // pred_check
        %p463 = pneg %p133
      $region46: #{residual_block.5} parent=43 // pred_check_branch
        %465 = sbr.rel (%p463) target = $region48
      $region47: #{residual_block.5} parent=43 // pred_region
        %p466 = scmp.lt.s32.totalorder %s16, 1
        %s467 = scalar_select %p466, %s16, 1
        %s468 = smul.addr %s467, 32
        %s469 = smul.addr %s468, 8
        %s470 = scalar_lea.vmem %s4, %s469
      $region48: #{residual_block.5} parent=43 // pred_fallthru
        _
    $region44: #{residual_block.5} parent=5 // pred_fallthru
      _
  $region6: #{residual_block.5} parent=0 // loop_footer
    %s14 = sadd.s32 1, %s10
  $region7: #{residual_block.5} parent=0 // loop_footer_branch
    %9 = sbr.rel target = $region3
  $region8: #{residual_block.5} parent=0 // loop_exit
    _

// kernel: residual_block.3
$region0: #{residual_block.3}
  #allocation0 [shape = 'u32[]', space=smem, size = 0x4, offset = 0x4, fixed_abs, tag = 'smem constant byte address 0x4 - core index']
  #allocation1 [shape = 'u32[72,128]{1,0:T(1,128)}', space=vmem, size = 0x9000, scoped, tag = 'internal scratch']
  #allocation2 [shape = 'bf16[18,18,8]{2,1,0:T(8,128)(2,1)}', space=vmem, size = 0x1b000, scoped, tag = 'scratch operand']
  #allocation3 [shape = 'bf16[256,128]{1,0:T(8,128)(2,1)}', space=vmem, size = 0x10000, scoped, tag = 'scratch operand']
  %s0 = inlined_call_operand.vmem [shape: f32[2,16,16,8], index: 0, kind: input, shape index: {}]
  %s1 = inlined_call_operand.vmem [shape: bf16[128,128], index: 1, kind: input, shape index: {}]
  %s2 = inlined_call_operand.vmem [shape: f32[2,256,128], index: 2, kind: output, shape index: {0}]
  %s3 = inlined_call_operand.vmem [shape: f32[2,2,128], index: 3, kind: output, shape index: {1}]
  %4 = xla_tuple %s2, %s3
  %s5 = sld [smem:[#allocation0]]
  $region49: #{residual_block.3} parent=0
    _
  %s7 = ssub.s32 1, %s5
  %s8 = scalar_select 0, %s7, %s5
  loop: start=0, step=1, limit=4
  $region2: #{residual_block.3} parent=0 // loop_pre_header
    _
  $region3: #{residual_block.3} parent=0 // loop_header
    %s10 = sphi 0, %s14
    %p11 = scmp.ge.s32.totalorder %s10, 4
    %s20 = sphi 0, %s22
    %s23 = sphi 0, %s20
    %s24 = sphi 0, %s23
    %s40 = sphi 0, %s24
    %s44 = sphi 0, %s44
    %s46 = sphi 0, %s44
    %s47 = sphi 0, %s46
    %s61 = sphi 0, %s47
    %s67 = sphi 0, %s69
    %s70 = sphi 0, %s67
    %s71 = sphi 0, %s70
    %s87 = sphi 0, %s71
    %s93 = sphi 0, %s95
    %s96 = sphi 0, %s93
    %s97 = sphi 0, %s96
    %s113 = sphi 0, %s97
  $region4: #{residual_block.3} parent=0 // loop_header_branch
    %13 = sbr.rel (%p11) target = $region8
  $region5: #{residual_block.3} parent=0 // loop_body
    %s15 = ssub.s32 %s10, 1
    %s16 = ssub.s32 %s10, 2
    %s17 = sadd.s32 %s10, 1
    %s18 = ssub.s32 %s10, %s17
    %p19 = scmp.eq.s32.totalorder %s18, 0
    %s21 = sadd.s32 %s20, 1
    %s22 = scalar_select %p19, %s20, %s21
    %p25 = pneg %p19
    %p26 = scmp.eq.s32.totalorder %s10, 1
    %p27 = por %p25, %p26
    %p28 = scmp.ne.s32.totalorder %s20, %s23
    %p29 = scmp.eq.s32.totalorder %s10, 0
    %p30 = por %p28, %p29
    %p31 = scmp.ne.s32.totalorder %s20, %s23
    %p32 = scmp.eq.s32.totalorder %s15, 1
    %p33 = por %p31, %p32
    %p34 = scmp.ne.s32.totalorder %s23, %s24
    %p35 = scmp.eq.s32.totalorder %s15, 0
    %p36 = por %p34, %p35
    %p37 = scmp.ne.s32.totalorder %s23, %s24
    %p38 = scmp.eq.s32.totalorder %s16, 1
    %p39 = por %p37, %p38
    %p41 = scmp.ne.s32.totalorder %s24, %s40
    %p42 = scmp.eq.s32.totalorder %s16, 0
    %p43 = por %p41, %p42
    %s45 = sadd.s32 %s44, 1
    %p48 = scmp.eq.s32.totalorder %s10, 1
    %p49 = scmp.ne.s32.totalorder %s44, %s46
    %p50 = scmp.eq.s32.totalorder %s10, 0
    %p51 = por %p49, %p50
    %p52 = scmp.ne.s32.totalorder %s44, %s46
    %p53 = scmp.eq.s32.totalorder %s15, 1
    %p54 = por %p52, %p53
    %p55 = scmp.ne.s32.totalorder %s46, %s47
    %p56 = scmp.eq.s32.totalorder %s15, 0
    %p57 = por %p55, %p56
    %p58 = scmp.ne.s32.totalorder %s46, %s47
    %p59 = scmp.eq.s32.totalorder %s16, 1
    %p60 = por %p58, %p59
    %p62 = scmp.ne.s32.totalorder %s47, %s61
    %p63 = scmp.eq.s32.totalorder %s16, 0
    %p64 = por %p62, %p63
    %s65 = ssub.s32 %s10, %s17
    %p66 = scmp.eq.s32.totalorder %s65, 0
    %s68 = sadd.s32 %s67, 1
    %s69 = scalar_select %p66, %s67, %s68
    %p72 = pneg %p66
    %p73 = scmp.eq.s32.totalorder %s10, 1
    %p74 = por %p72, %p73
    %p75 = scmp.ne.s32.totalorder %s67, %s70
    %p76 = scmp.eq.s32.totalorder %s10, 0
    %p77 = por %p75, %p76
    %p78 = scmp.ne.s32.totalorder %s67, %s70
    %p79 = scmp.eq.s32.totalorder %s15, 1
    %p80 = por %p78, %p79
    %p81 = scmp.ne.s32.totalorder %s70, %s71
    %p82 = scmp.eq.s32.totalorder %s15, 0
    %p83 = por %p81, %p82
    %p84 = scmp.ne.s32.totalorder %s70, %s71
    %p85 = scmp.eq.s32.totalorder %s16, 1
    %p86 = por %p84, %p85
    %p88 = scmp.ne.s32.totalorder %s71, %s87
    %p89 = scmp.eq.s32.totalorder %s16, 0
    %p90 = por %p88, %p89
    %s91 = ssub.s32 %s10, %s17
    %p92 = scmp.eq.s32.totalorder %s91, 0
    %s94 = sadd.s32 %s93, 1
    %s95 = scalar_select %p92, %s93, %s94
    %p98 = pneg %p92
    %p99 = scmp.eq.s32.totalorder %s10, 1
    %p100 = por %p98, %p99
    %p101 = scmp.ne.s32.totalorder %s93, %s96
    %p102 = scmp.eq.s32.totalorder %s10, 0
    %p103 = por %p101, %p102
    %p104 = scmp.ne.s32.totalorder %s93, %s96
    %p105 = scmp.eq.s32.totalorder %s15, 1
    %p106 = por %p104, %p105
    %p107 = scmp.ne.s32.totalorder %s96, %s97
    %p108 = scmp.eq.s32.totalorder %s15, 0
    %p109 = por %p107, %p108
    %p110 = scmp.ne.s32.totalorder %s96, %s97
    %p111 = scmp.eq.s32.totalorder %s16, 1
    %p112 = por %p110, %p111
    %p114 = scmp.ne.s32.totalorder %s97, %s113
    %p115 = scmp.eq.s32.totalorder %s16, 0
    %p116 = por %p114, %p115
    %p117 = scmp.le.s32.totalorder 1, %s10
    %p118 = scmp.lt.s32.totalorder %s10, 3
    %p119 = pnand %p117, %p118
    %p120 = pneg %p119
    // Predicated region
    $region9: #{residual_block.3} parent=5 // pred_check
      _
    $region10: #{residual_block.3} parent=5 // pred_check_branch
      %122 = sbr.rel (%p119) target = $region12
    $region11: #{residual_block.3} parent=5 // pred_region
      %s123 = ssub.s32 %s10, 1
      // Predicated region
      $region13: #{residual_block.3} parent=11 // pred_check
        %p124 = pneg %p57
      $region14: #{residual_block.3} parent=11 // pred_check_branch
        %126 = sbr.rel (%p124) target = $region16
      $region15: #{residual_block.3} parent=11 // pred_region
        _
      $region16: #{residual_block.3} parent=11 // pred_fallthru
        _
    $region12: #{residual_block.3} parent=5 // pred_fallthru
      _
    %p127 = scmp.lt.s32.totalorder %s10, 2
    // Predicated region
    $region17: #{residual_block.3} parent=5 // pred_check
      %p128 = pneg %p127
    $region18: #{residual_block.3} parent=5 // pred_check_branch
      %130 = sbr.rel (%p128) target = $region20
    $region19: #{residual_block.3} parent=5 // pred_region
      // Predicated region
      $region21: #{residual_block.3} parent=19 // pred_check
        %p131 = pneg %p30
      $region22: #{residual_block.3} parent=19 // pred_check_branch
        %133 = sbr.rel (%p131) target = $region24
      $region23: #{residual_block.3} parent=19 // pred_region
        %p134 = scmp.lt.s32.totalorder %s10, 1
        %s135 = scalar_select %p134, %s10, 1
        %s136 = smul.addr %s135, 32
        %s137 = smul.addr %s136, 8
        %s138 = scalar_lea.vmem %s0, %s137
      $region24: #{residual_block.3} parent=19 // pred_fallthru
        _
    $region20: #{residual_block.3} parent=5 // pred_fallthru
      _
    %p139 = scmp.le.s32.totalorder 1, %s10
    %p140 = scmp.lt.s32.totalorder %s10, 3
    %p141 = pnand %p139, %p140
    %p142 = pneg %p141
    // Predicated region
    $region25: #{residual_block.3} parent=5 // pred_check
      _
    $region26: #{residual_block.3} parent=5 // pred_check_branch
      %144 = sbr.rel (%p141) target = $region28
    $region27: #{residual_block.3} parent=5 // pred_region
      %s145 = ssub.s32 %s10, 1
      %p146 = scmp.lt.s32.totalorder %s15, 1
      %s147 = scalar_select %p146, %s15, 1
      %s148 = smul.addr %s147, 32
      %s149 = smul.addr %s148, 8
      %s150 = scalar_lea.vmem %s0, %s149
      %p151 = pneg %p36
      %p152 = pneg %p33
      %p153 = pneg %p57
      %p154 = pneg %p54
      %p155 = pneg %p83
      %p156 = pneg %p80
      %p157 = scmp.lt.s32.totalorder %s15, 1
      %s158 = scalar_select %p157, %s15, 1
      %s159 = smul.addr %s158, 32
      %s160 = smul.addr %s159, 8
      %s161 = scalar_lea.vmem %s2, %s160
      %p162 = pneg %p109
      %p163 = pneg %p106
      %p164 = scmp.lt.s32.totalorder %s15, 1
      %s165 = scalar_select %p164, %s15, 1
      %s166 = smul.addr %s165, 2
      %s167 = scalar_lea.vmem %s3, %s166
      %p168 = scmp.lt.s32.totalorder %s15, 1
      %s169 = scalar_select %p168, %s15, 1
      %s170 = smul.addr %s169, 32
      %s171 = smul.addr %s170, 8
      %s172 = scalar_lea.vmem %s0, %s171
      %p173 = scmp.lt.s32.totalorder %s15, 1
      %s174 = scalar_select %p173, %s15, 1
      %s175 = smul.addr %s174, 32
      %s176 = smul.addr %s175, 8
      %s177 = scalar_lea.vmem %s2, %s176
      %p178 = scmp.lt.s32.totalorder %s15, 1
      %s179 = scalar_select %p178, %s15, 1
      %s180 = smul.addr %s179, 2
      %s181 = scalar_lea.vmem %s3, %s180
      %v183 = vld [vmem:[%s172] sm:$0xff]
      %v184 = vld [vmem:[%s172 + $0x8] sm:$0xff]
      %v185 = vld [vmem:[%s172 + $0x10] sm:$0xff]
      %v186 = vld [vmem:[%s172 + $0x18] sm:$0xff]
      %v187 = vld [vmem:[%s172 + $0x20] sm:$0xff]
      %v188 = vld [vmem:[%s172 + $0x28] sm:$0xff]
      %v189 = vld [vmem:[%s172 + $0x30] sm:$0xff]
      %v190 = vld [vmem:[%s172 + $0x38] sm:$0xff]
      %v191 = vld [vmem:[%s172 + $0x40] sm:$0xff]
      %v192 = vld [vmem:[%s172 + $0x48] sm:$0xff]
      %v193 = vld [vmem:[%s172 + $0x50] sm:$0xff]
      %v194 = vld [vmem:[%s172 + $0x58] sm:$0xff]
      %v195 = vld [vmem:[%s172 + $0x60] sm:$0xff]
      %v196 = vld [vmem:[%s172 + $0x68] sm:$0xff]
      %v197 = vld [vmem:[%s172 + $0x70] sm:$0xff]
      %v198 = vld [vmem:[%s172 + $0x78] sm:$0xff]
      %v199 = vld [vmem:[%s172 + $0x80] sm:$0xff]
      %v200 = vld [vmem:[%s172 + $0x88] sm:$0xff]
      %v201 = vld [vmem:[%s172 + $0x90] sm:$0xff]
      %v202 = vld [vmem:[%s172 + $0x98] sm:$0xff]
      %v203 = vld [vmem:[%s172 + $0xa0] sm:$0xff]
      %v204 = vld [vmem:[%s172 + $0xa8] sm:$0xff]
      %v205 = vld [vmem:[%s172 + $0xb0] sm:$0xff]
      %v206 = vld [vmem:[%s172 + $0xb8] sm:$0xff]
      %v207 = vld [vmem:[%s172 + $0xc0] sm:$0xff]
      %v208 = vld [vmem:[%s172 + $0xc8] sm:$0xff]
      %v209 = vld [vmem:[%s172 + $0xd0] sm:$0xff]
      %v210 = vld [vmem:[%s172 + $0xd8] sm:$0xff]
      %v211 = vld [vmem:[%s172 + $0xe0] sm:$0xff]
      %v212 = vld [vmem:[%s172 + $0xe8] sm:$0xff]
      %v213 = vld [vmem:[%s172 + $0xf0] sm:$0xff]
      %v214 = vld [vmem:[%s172 + $0xf8] sm:$0xff]
      %vm215 = vcmask 60416
      %216 = vst.msk [vmem:[#allocation2] sm:$0xf] %vm215, 0
      %217 = vst.msk [vmem:[#allocation2 + $0x4] sm:$0xf] %vm215, 0
      %vm218 = vcmask 57344
      %219 = vst.msk [vmem:[#allocation2 + $0x8] sm:$0x1] %vm218, 0
      %s220 = scalar_lea.vmem [#allocation2], 204
      %221 = vst.msk [vmem:[%s220] sm:$0xf] %vm215, 0
      %222 = vst.msk [vmem:[%s220 + $0x4] sm:$0xf] %vm215, 0
      %223 = vst.msk [vmem:[%s220 + $0x8] sm:$0x1] %vm218, 0
      %s224 = scalar_lea.vmem [#allocation2], 12
      %vm225 = vcmask 57344
      %vm226 = vsmask.f32 256
      %vm227 = vmand %vm225, %vm226
      %v228 = vld [vmem:[%s224] sm:$0x1]
      %v229 = vsel %vm227, 0, %v228
      %230 = vst [vmem:[%s224] sm:$0x1] %v229
      %v231 = vld [vmem:[%s224 + $0xc] sm:$0x1]
      %v232 = vsel %vm227, 0, %v231
      %233 = vst [vmem:[%s224 + $0xc] sm:$0x1] %v232
      %v234 = vld [vmem:[%s224 + $0x18] sm:$0x1]
      %v235 = vsel %vm227, 0, %v234
      %236 = vst [vmem:[%s224 + $0x18] sm:$0x1] %v235
      %v237 = vld [vmem:[%s224 + $0x24] sm:$0x1]
      %v238 = vsel %vm227, 0, %v237
      %239 = vst [vmem:[%s224 + $0x24] sm:$0x1] %v238
      %v240 = vld [vmem:[%s224 + $0x30] sm:$0x1]
      %v241 = vsel %vm227, 0, %v240
      %242 = vst [vmem:[%s224 + $0x30] sm:$0x1] %v241
      %v243 = vld [vmem:[%s224 + $0x3c] sm:$0x1]
      %v244 = vsel %vm227, 0, %v243
      %245 = vst [vmem:[%s224 + $0x3c] sm:$0x1] %v244
      %v246 = vld [vmem:[%s224 + $0x48] sm:$0x1]
      %v247 = vsel %vm227, 0, %v246
      %248 = vst [vmem:[%s224 + $0x48] sm:$0x1] %v247
      %v249 = vld [vmem:[%s224 + $0x54] sm:$0x1]
      %v250 = vsel %vm227, 0, %v249
      %251 = vst [vmem:[%s224 + $0x54] sm:$0x1] %v250
      %v252 = vld [vmem:[%s224 + $0x60] sm:$0x1]
      %v253 = vsel %vm227, 0, %v252
      %254 = vst [vmem:[%s224 + $0x60] sm:$0x1] %v253
      %v255 = vld [vmem:[%s224 + $0x6c] sm:$0x1]
      %v256 = vsel %vm227, 0, %v255
      %257 = vst [vmem:[%s224 + $0x6c] sm:$0x1] %v256
      %v258 = vld [vmem:[%s224 + $0x78] sm:$0x1]
      %v259 = vsel %vm227, 0, %v258
      %260 = vst [vmem:[%s224 + $0x78] sm:$0x1] %v259
      %v261 = vld [vmem:[%s224 + $0x84] sm:$0x1]
      %v262 = vsel %vm227, 0, %v261
      %263 = vst [vmem:[%s224 + $0x84] sm:$0x1] %v262
      %v264 = vld [vmem:[%s224 + $0x90] sm:$0x1]
      %v265 = vsel %vm227, 0, %v264
      %266 = vst [vmem:[%s224 + $0x90] sm:$0x1] %v265
      %v267 = vld [vmem:[%s224 + $0x9c] sm:$0x1]
      %v268 = vsel %vm227, 0, %v267
      %269 = vst [vmem:[%s224 + $0x9c] sm:$0x1] %v268
      %v270 = vld [vmem:[%s224 + $0xa8] sm:$0x1]
      %v271 = vsel %vm227, 0, %v270
      %272 = vst [vmem:[%s224 + $0xa8] sm:$0x1] %v271
      %v273 = vld [vmem:[%s224 + $0xb4] sm:$0x1]
      %v274 = vsel %vm227, 0, %v273
      %275 = vst [vmem:[%s224 + $0xb4] sm:$0x1] %v274
      %vm276 = vsmask.f32 7938
      %vm277 = vmand %vm225, %vm276
      %v278 = vld [vmem:[%s224 + $0x8] sm:$0x1]
      %v279 = vsel %vm277, 0, %v278
      %280 = vst [vmem:[%s224 + $0x8] sm:$0x1] %v279
      %v281 = vld [vmem:[%s224 + $0x14] sm:$0x1]
      %v282 = vsel %vm277, 0, %v281
      %283 = vst [vmem:[%s224 + $0x14] sm:$0x1] %v282
      %v284 = vld [vmem:[%s224 + $0x20] sm:$0x1]
      %v285 = vsel %vm277, 0, %v284
      %286 = vst [vmem:[%s224 + $0x20] sm:$0x1] %v285
      %v287 = vld [vmem:[%s224 + $0x2c] sm:$0x1]
      %v288 = vsel %vm277, 0, %v287
      %289 = vst [vmem:[%s224 + $0x2c] sm:$0x1] %v288
      %v290 = vld [vmem:[%s224 + $0x38] sm:$0x1]
      %v291 = vsel %vm277, 0, %v290
      %292 = vst [vmem:[%s224 + $0x38] sm:$0x1] %v291
      %v293 = vld [vmem:[%s224 + $0x44] sm:$0x1]
      %v294 = vsel %vm277, 0, %v293
      %295 = vst [vmem:[%s224 + $0x44] sm:$0x1] %v294
      %v296 = vld [vmem:[%s224 + $0x50] sm:$0x1]
      %v297 = vsel %vm277, 0, %v296
      %298 = vst [vmem:[%s224 + $0x50] sm:$0x1] %v297
      %v299 = vld [vmem:[%s224 + $0x5c] sm:$0x1]
      %v300 = vsel %vm277, 0, %v299
      %301 = vst [vmem:[%s224 + $0x5c] sm:$0x1] %v300
      %v302 = vld [vmem:[%s224 + $0x68] sm:$0x1]
      %v303 = vsel %vm277, 0, %v302
      %304 = vst [vmem:[%s224 + $0x68] sm:$0x1] %v303
      %v305 = vld [vmem:[%s224 + $0x74] sm:$0x1]
      %v306 = vsel %vm277, 0, %v305
      %307 = vst [vmem:[%s224 + $0x74] sm:$0x1] %v306
      %v308 = vld [vmem:[%s224 + $0x80] sm:$0x1]
      %v309 = vsel %vm277, 0, %v308
      %310 = vst [vmem:[%s224 + $0x80] sm:$0x1] %v309
      %v311 = vld [vmem:[%s224 + $0x8c] sm:$0x1]
      %v312 = vsel %vm277, 0, %v311
      %313 = vst [vmem:[%s224 + $0x8c] sm:$0x1] %v312
      %v314 = vld [vmem:[%s224 + $0x98] sm:$0x1]
      %v315 = vsel %vm277, 0, %v314
      %316 = vst [vmem:[%s224 + $0x98] sm:$0x1] %v315
      %v317 = vld [vmem:[%s224 + $0xa4] sm:$0x1]
      %v318 = vsel %vm277, 0, %v317
      %319 = vst [vmem:[%s224 + $0xa4] sm:$0x1] %v318
      %v320 = vld [vmem:[%s224 + $0xb0] sm:$0x1]
      %v321 = vsel %vm277, 0, %v320
      %322 = vst [vmem:[%s224 + $0xb0] sm:$0x1] %v321
      %v323 = vld [vmem:[%s224 + $0xbc] sm:$0x1]
      %v324 = vsel %vm277, 0, %v323
      %325 = vst [vmem:[%s224 + $0xbc] sm:$0x1] %v324
      %v326 = vpack.c.bf16 %v183, %v183
      %v327 = vpack.c.bf16 %v184, %v184
      %v328 = vpack.c.bf16 %v185, %v185
      %v329 = vpack.c.bf16 %v186, %v186
      %v330 = vpack.c.bf16 %v187, %v187
      %v331 = vpack.c.bf16 %v188, %v188
      %v332 = vpack.c.bf16 %v189, %v189
      %v333 = vpack.c.bf16 %v190, %v190
      %v334 = vpack.c.bf16 %v191, %v191
      %v335 = vpack.c.bf16 %v192, %v192
      %v336 = vpack.c.bf16 %v193, %v193
      %v337 = vpack.c.bf16 %v194, %v194
      %v338 = vpack.c.bf16 %v195, %v195
      %v339 = vpack.c.bf16 %v196, %v196
      %v340 = vpack.c.bf16 %v197, %v197
      %v341 = vpack.c.bf16 %v198, %v198
      %v342 = vpack.c.bf16 %v199, %v199
      %v343 = vpack.c.bf16 %v200, %v200
      %v344 = vpack.c.bf16 %v201, %v201
      %v345 = vpack.c.bf16 %v202, %v202
      %v346 = vpack.c.bf16 %v203, %v203
      %v347 = vpack.c.bf16 %v204, %v204
      %v348 = vpack.c.bf16 %v205, %v205
      %v349 = vpack.c.bf16 %v206, %v206
      %v350 = vpack.c.bf16 %v207, %v207
      %v351 = vpack.c.bf16 %v208, %v208
      %v352 = vpack.c.bf16 %v209, %v209
      %v353 = vpack.c.bf16 %v210, %v210
      %v354 = vpack.c.bf16 %v211, %v211
      %v355 = vpack.c.bf16 %v212, %v212
      %v356 = vpack.c.bf16 %v213, %v213
      %v357 = vpack.c.bf16 %v214, %v214
      %vm358 = vsmask.f32 4368
      %vm359 = vmor %vm226, %vm358
      %v361 = vshrl.u32 %v326, 16
      %v363 = vrot.slane %v361, 7
      %v364 = vshll.u32 %v326, 16
      %v366 = vor.u32 %v363, %v364
      %v367 = vrot.slane %v363, 4
      %v369 = vshrl.u32 %v327, 16
      %v371 = vrot.slane %v369, 7
      %v372 = vshll.u32 %v327, 16
      %v374 = vor.u32 %v371, %v372
      %v375 = vsel %vm359, %v367, %v374
      %v376 = vrot.slane %v371, 4
      %v378 = vshrl.u32 %v328, 16
      %v380 = vrot.slane %v378, 7
      %v381 = vshll.u32 %v328, 16
      %v383 = vor.u32 %v380, %v381
      %v384 = vrot.slane %v380, 4
      %v386 = vshrl.u32 %v329, 16
      %v388 = vrot.slane %v386, 7
      %v389 = vshll.u32 %v329, 16
      %v391 = vor.u32 %v388, %v389
      %v392 = vsel %vm359, %v384, %v391
      %v393 = vrot.slane %v388, 4
      %v395 = vshrl.u32 %v330, 16
      %v397 = vrot.slane %v395, 7
      %v398 = vshll.u32 %v330, 16
      %v400 = vor.u32 %v397, %v398
      %v401 = vrot.slane %v397, 4
      %v403 = vshrl.u32 %v331, 16
      %v405 = vrot.slane %v403, 7
      %v406 = vshll.u32 %v331, 16
      %v408 = vor.u32 %v405, %v406
      %v409 = vsel %vm359, %v401, %v408
      %v410 = vrot.slane %v405, 4
      %v412 = vshrl.u32 %v332, 16
      %v414 = vrot.slane %v412, 7
      %v415 = vshll.u32 %v332, 16
      %v417 = vor.u32 %v414, %v415
      %v418 = vrot.slane %v414, 4
      %v420 = vshrl.u32 %v333, 16
      %v422 = vrot.slane %v420, 7
      %v423 = vshll.u32 %v333, 16
      %v425 = vor.u32 %v422, %v423
      %v426 = vsel %vm359, %v418, %v425
      %v427 = vrot.slane %v422, 4
      %v429 = vshrl.u32 %v334, 16
      %v431 = vrot.slane %v429, 7
      %v432 = vshll.u32 %v334, 16
      %v434 = vor.u32 %v431, %v432
      %v435 = vrot.slane %v431, 4
      %v437 = vshrl.u32 %v335, 16
      %v439 = vrot.slane %v437, 7
      %v440 = vshll.u32 %v335, 16
      %v442 = vor.u32 %v439, %v440
      %v443 = vsel %vm359, %v435, %v442
      %v444 = vrot.slane %v439, 4
      %v446 = vshrl.u32 %v336, 16
      %v448 = vrot.slane %v446, 7
      %v449 = vshll.u32 %v336, 16
      %v451 = vor.u32 %v448, %v449
      %v452 = vrot.slane %v448, 4
      %v454 = vshrl.u32 %v337, 16
      %v456 = vrot.slane %v454, 7
      %v457 = vshll.u32 %v337, 16
      %v459 = vor.u32 %v456, %v457
      %v460 = vsel %vm359, %v452, %v459
      %v461 = vrot.slane %v456, 4
      %v463 = vshrl.u32 %v338, 16
      %v465 = vrot.slane %v463, 7
      %v466 = vshll.u32 %v338, 16
      %v468 = vor.u32 %v465, %v466
      %v469 = vrot.slane %v465, 4
      %v471 = vshrl.u32 %v339, 16
      %v473 = vrot.slane %v471, 7
      %v474 = vshll.u32 %v339, 16
      %v476 = vor.u32 %v473, %v474
      %v477 = vsel %vm359, %v469, %v476
      %v478 = vrot.slane %v473, 4
      %v480 = vshrl.u32 %v340, 16
      %v482 = vrot.slane %v480, 7
      %v483 = vshll.u32 %v340, 16
      %v485 = vor.u32 %v482, %v483
      %v486 = vrot.slane %v482, 4
      %v488 = vshrl.u32 %v341, 16
      %v490 = vrot.slane %v488, 7
      %v491 = vshll.u32 %v341, 16
      %v493 = vor.u32 %v490, %v491
      %v494 = vsel %vm359, %v486, %v493
      %v495 = vrot.slane %v490, 4
      %v497 = vshrl.u32 %v342, 16
      %v499 = vrot.slane %v497, 7
      %v500 = vshll.u32 %v342, 16
      %v502 = vor.u32 %v499, %v500
      %v503 = vrot.slane %v499, 4
      %v505 = vshrl.u32 %v343, 16
      %v507 = vrot.slane %v505, 7
      %v508 = vshll.u32 %v343, 16
      %v510 = vor.u32 %v507, %v508
      %v511 = vsel %vm359, %v503, %v510
      %v512 = vrot.slane %v507, 4
      %v514 = vshrl.u32 %v344, 16
      %v516 = vrot.slane %v514, 7
      %v517 = vshll.u32 %v344, 16
      %v519 = vor.u32 %v516, %v517
      %v520 = vrot.slane %v516, 4
      %v522 = vshrl.u32 %v345, 16
      %v524 = vrot.slane %v522, 7
      %v525 = vshll.u32 %v345, 16
      %v527 = vor.u32 %v524, %v525
      %v528 = vsel %vm359, %v520, %v527
      %v529 = vrot.slane %v524, 4
      %v531 = vshrl.u32 %v346, 16
      %v533 = vrot.slane %v531, 7
      %v534 = vshll.u32 %v346, 16
      %v536 = vor.u32 %v533, %v534
      %v537 = vrot.slane %v533, 4
      %v539 = vshrl.u32 %v347, 16
      %v541 = vrot.slane %v539, 7
      %v542 = vshll.u32 %v347, 16
      %v544 = vor.u32 %v541, %v542
      %v545 = vsel %vm359, %v537, %v544
      %v546 = vrot.slane %v541, 4
      %v548 = vshrl.u32 %v348, 16
      %v550 = vrot.slane %v548, 7
      %v551 = vshll.u32 %v348, 16
      %v553 = vor.u32 %v550, %v551
      %v554 = vrot.slane %v550, 4
      %v556 = vshrl.u32 %v349, 16
      %v558 = vrot.slane %v556, 7
      %v559 = vshll.u32 %v349, 16
      %v561 = vor.u32 %v558, %v559
      %v562 = vsel %vm359, %v554, %v561
      %v563 = vrot.slane %v558, 4
      %v565 = vshrl.u32 %v350, 16
      %v567 = vrot.slane %v565, 7
      %v568 = vshll.u32 %v350, 16
      %v570 = vor.u32 %v567, %v568
      %v571 = vrot.slane %v567, 4
      %v573 = vshrl.u32 %v351, 16
      %v575 = vrot.slane %v573, 7
      %v576 = vshll.u32 %v351, 16
      %v578 = vor.u32 %v575, %v576
      %v579 = vsel %vm359, %v571, %v578
      %v580 = vrot.slane %v575, 4
      %v582 = vshrl.u32 %v352, 16
      %v584 = vrot.slane %v582, 7
      %v585 = vshll.u32 %v352, 16
      %v587 = vor.u32 %v584, %v585
      %v588 = vrot.slane %v584, 4
      %v590 = vshrl.u32 %v353, 16
      %v592 = vrot.slane %v590, 7
      %v593 = vshll.u32 %v353, 16
      %v595 = vor.u32 %v592, %v593
      %v596 = vsel %vm359, %v588, %v595
      %v597 = vrot.slane %v592, 4
      %v599 = vshrl.u32 %v354, 16
      %v601 = vrot.slane %v599, 7
      %v602 = vshll.u32 %v354, 16
      %v604 = vor.u32 %v601, %v602
      %v605 = vrot.slane %v601, 4
      %v607 = vshrl.u32 %v355, 16
      %v609 = vrot.slane %v607, 7
      %v610 = vshll.u32 %v355, 16
      %v612 = vor.u32 %v609, %v610
      %v613 = vsel %vm359, %v605, %v612
      %v614 = vrot.slane %v609, 4
      %v616 = vshrl.u32 %v356, 16
      %v618 = vrot.slane %v616, 7
      %v619 = vshll.u32 %v356, 16
      %v621 = vor.u32 %v618, %v619
      %v622 = vrot.slane %v618, 4
      %v624 = vshrl.u32 %v357, 16
      %v626 = vrot.slane %v624, 7
      %v627 = vshll.u32 %v357, 16
      %v629 = vor.u32 %v626, %v627
      %v630 = vsel %vm359, %v622, %v629
      %v631 = vrot.slane %v626, 4
      %vm680 = vcmask 60416
      %vm681 = vmand %vm680, %vm276
      %v682 = vld [vmem:[%s224] sm:$0xf]
      %v683 = vsel %vm681, %v366, %v682
      %684 = vst [vmem:[%s224] sm:$0xf] %v683
      %685 = vst.msk [vmem:[%s224 + $0x4] sm:$0xf] %vm215, %v375
      %v686 = vld [vmem:[%s224 + $0x8] sm:$0x1]
      %v687 = vsel %vm227, %v376, %v686
      %688 = vst [vmem:[%s224 + $0x8] sm:$0x1] %v687
      %v689 = vld [vmem:[%s224 + $0xc] sm:$0xf]
      %v690 = vsel %vm681, %v383, %v689
      %691 = vst [vmem:[%s224 + $0xc] sm:$0xf] %v690
      %692 = vst.msk [vmem:[%s224 + $0x10] sm:$0xf] %vm215, %v392
      %v693 = vld [vmem:[%s224 + $0x14] sm:$0x1]
      %v694 = vsel %vm227, %v393, %v693
      %695 = vst [vmem:[%s224 + $0x14] sm:$0x1] %v694
      %v696 = vld [vmem:[%s224 + $0x18] sm:$0xf]
      %v697 = vsel %vm681, %v400, %v696
      %698 = vst [vmem:[%s224 + $0x18] sm:$0xf] %v697
      %699 = vst.msk [vmem:[%s224 + $0x1c] sm:$0xf] %vm215, %v409
      %v700 = vld [vmem:[%s224 + $0x20] sm:$0x1]
      %v701 = vsel %vm227, %v410, %v700
      %702 = vst [vmem:[%s224 + $0x20] sm:$0x1] %v701
      %v703 = vld [vmem:[%s224 + $0x24] sm:$0xf]
      %v704 = vsel %vm681, %v417, %v703
      %705 = vst [vmem:[%s224 + $0x24] sm:$0xf] %v704
      %706 = vst.msk [vmem:[%s224 + $0x28] sm:$0xf] %vm215, %v426
      %v707 = vld [vmem:[%s224 + $0x2c] sm:$0x1]
      %v708 = vsel %vm227, %v427, %v707
      %709 = vst [vmem:[%s224 + $0x2c] sm:$0x1] %v708
      %v710 = vld [vmem:[%s224 + $0x30] sm:$0xf]
      %v711 = vsel %vm681, %v434, %v710
      %712 = vst [vmem:[%s224 + $0x30] sm:$0xf] %v711
      %713 = vst.msk [vmem:[%s224 + $0x34] sm:$0xf] %vm215, %v443
      %v714 = vld [vmem:[%s224 + $0x38] sm:$0x1]
      %v715 = vsel %vm227, %v444, %v714
      %716 = vst [vmem:[%s224 + $0x38] sm:$0x1] %v715
      %v717 = vld [vmem:[%s224 + $0x3c] sm:$0xf]
      %v718 = vsel %vm681, %v451, %v717
      %719 = vst [vmem:[%s224 + $0x3c] sm:$0xf] %v718
      %720 = vst.msk [vmem:[%s224 + $0x40] sm:$0xf] %vm215, %v460
      %v721 = vld [vmem:[%s224 + $0x44] sm:$0x1]
      %v722 = vsel %vm227, %v461, %v721
      %723 = vst [vmem:[%s224 + $0x44] sm:$0x1] %v722
      %v724 = vld [vmem:[%s224 + $0x48] sm:$0xf]
      %v725 = vsel %vm681, %v468, %v724
      %726 = vst [vmem:[%s224 + $0x48] sm:$0xf] %v725
      %727 = vst.msk [vmem:[%s224 + $0x4c] sm:$0xf] %vm215, %v477
      %v728 = vld [vmem:[%s224 + $0x50] sm:$0x1]
      %v729 = vsel %vm227, %v478, %v728
      %730 = vst [vmem:[%s224 + $0x50] sm:$0x1] %v729
      %v731 = vld [vmem:[%s224 + $0x54] sm:$0xf]
      %v732 = vsel %vm681, %v485, %v731
      %733 = vst [vmem:[%s224 + $0x54] sm:$0xf] %v732
      %734 = vst.msk [vmem:[%s224 + $0x58] sm:$0xf] %vm215, %v494
      %v735 = vld [vmem:[%s224 + $0x5c] sm:$0x1]
      %v736 = vsel %vm227, %v495, %v735
      %737 = vst [vmem:[%s224 + $0x5c] sm:$0x1] %v736
      %v738 = vld [vmem:[%s224 + $0x60] sm:$0xf]
      %v739 = vsel %vm681, %v502, %v738
      %740 = vst [vmem:[%s224 + $0x60] sm:$0xf] %v739
      %741 = vst.msk [vmem:[%s224 + $0x64] sm:$0xf] %vm215, %v511
      %v742 = vld [vmem:[%s224 + $0x68] sm:$0x1]
      %v743 = vsel %vm227, %v512, %v742
      %744 = vst [vmem:[%s224 + $0x68] sm:$0x1] %v743
      %v745 = vld [vmem:[%s224 + $0x6c] sm:$0xf]
      %v746 = vsel %vm681, %v519, %v745
      %747 = vst [vmem:[%s224 + $0x6c] sm:$0xf] %v746
      %748 = vst.msk [vmem:[%s224 + $0x70] sm:$0xf] %vm215, %v528
      %v749 = vld [vmem:[%s224 + $0x74] sm:$0x1]
      %v750 = vsel %vm227, %v529, %v749
      %751 = vst [vmem:[%s224 + $0x74] sm:$0x1] %v750
      %v752 = vld [vmem:[%s224 + $0x78] sm:$0xf]
      %v753 = vsel %vm681, %v536, %v752
      %754 = vst [vmem:[%s224 + $0x78] sm:$0xf] %v753
      %755 = vst.msk [vmem:[%s224 + $0x7c] sm:$0xf] %vm215, %v545
      %v756 = vld [vmem:[%s224 + $0x80] sm:$0x1]
      %v757 = vsel %vm227, %v546, %v756
      %758 = vst [vmem:[%s224 + $0x80] sm:$0x1] %v757
      %v759 = vld [vmem:[%s224 + $0x84] sm:$0xf]
      %v760 = vsel %vm681, %v553, %v759
      %761 = vst [vmem:[%s224 + $0x84] sm:$0xf] %v760
      %762 = vst.msk [vmem:[%s224 + $0x88] sm:$0xf] %vm215, %v562
      %v763 = vld [vmem:[%s224 + $0x8c] sm:$0x1]
      %v764 = vsel %vm227, %v563, %v763
      %765 = vst [vmem:[%s224 + $0x8c] sm:$0x1] %v764
      %v766 = vld [vmem:[%s224 + $0x90] sm:$0xf]
      %v767 = vsel %vm681, %v570, %v766
      %768 = vst [vmem:[%s224 + $0x90] sm:$0xf] %v767
      %769 = vst.msk [vmem:[%s224 + $0x94] sm:$0xf] %vm215, %v579
      %v770 = vld [vmem:[%s224 + $0x98] sm:$0x1]
      %v771 = vsel %vm227, %v580, %v770
      %772 = vst [vmem:[%s224 + $0x98] sm:$0x1] %v771
      %v773 = vld [vmem:[%s224 + $0x9c] sm:$0xf]
      %v774 = vsel %vm681, %v587, %v773
      %775 = vst [vmem:[%s224 + $0x9c] sm:$0xf] %v774
      %776 = vst.msk [vmem:[%s224 + $0xa0] sm:$0xf] %vm215, %v596
      %v777 = vld [vmem:[%s224 + $0xa4] sm:$0x1]
      %v778 = vsel %vm227, %v597, %v777
      %779 = vst [vmem:[%s224 + $0xa4] sm:$0x1] %v778
      %v780 = vld [vmem:[%s224 + $0xa8] sm:$0xf]
      %v781 = vsel %vm681, %v604, %v780
      %782 = vst [vmem:[%s224 + $0xa8] sm:$0xf] %v781
      %783 = vst.msk [vmem:[%s224 + $0xac] sm:$0xf] %vm215, %v613
      %v784 = vld [vmem:[%s224 + $0xb0] sm:$0x1]
      %v785 = vsel %vm227, %v614, %v784
      %786 = vst [vmem:[%s224 + $0xb0] sm:$0x1] %v785
      %v787 = vld [vmem:[%s224 + $0xb4] sm:$0xf]
      %v788 = vsel %vm681, %v621, %v787
      %789 = vst [vmem:[%s224 + $0xb4] sm:$0xf] %v788
      %790 = vst.msk [vmem:[%s224 + $0xb8] sm:$0xf] %vm215, %v630
      %v791 = vld [vmem:[%s224 + $0xbc] sm:$0x1]
      %v792 = vsel %vm227, %v631, %v791
      %793 = vst [vmem:[%s224 + $0xbc] sm:$0x1] %v792
      %vm794 = vcmask 1044032
      %795 = vst.msk [vmem:[#allocation3] sm:$0xf] %vm794, 0
      %796 = vst.msk [vmem:[#allocation3 + $0x4] sm:$0xf] %vm794, 0
      %797 = vst.msk [vmem:[#allocation3 + $0x8] sm:$0xf] %vm794, 0
      %798 = vst.msk [vmem:[#allocation3 + $0xc] sm:$0xf] %vm794, 0
      %799 = vst.msk [vmem:[#allocation3 + $0x10] sm:$0xf] %vm794, 0
      %800 = vst.msk [vmem:[#allocation3 + $0x14] sm:$0xf] %vm794, 0
      %801 = vst.msk [vmem:[#allocation3 + $0x18] sm:$0xf] %vm794, 0
      %802 = vst.msk [vmem:[#allocation3 + $0x1c] sm:$0xf] %vm794, 0
      %803 = vst.msk [vmem:[#allocation3 + $0x20] sm:$0xf] %vm794, 0
      %804 = vst.msk [vmem:[#allocation3 + $0x24] sm:$0xf] %vm794, 0
      %805 = vst.msk [vmem:[#allocation3 + $0x28] sm:$0xf] %vm794, 0
      %806 = vst.msk [vmem:[#allocation3 + $0x2c] sm:$0xf] %vm794, 0
      %807 = vst.msk [vmem:[#allocation3 + $0x30] sm:$0xf] %vm794, 0
      %808 = vst.msk [vmem:[#allocation3 + $0x34] sm:$0xf] %vm794, 0
      %809 = vst.msk [vmem:[#allocation3 + $0x38] sm:$0xf] %vm794, 0
      %810 = vst.msk [vmem:[#allocation3 + $0x3c] sm:$0xf] %vm794, 0
      %811 = vst.msk [vmem:[#allocation3 + $0x40] sm:$0xf] %vm794, 0
      %812 = vst.msk [vmem:[#allocation3 + $0x44] sm:$0xf] %vm794, 0
      %813 = vst.msk [vmem:[#allocation3 + $0x48] sm:$0xf] %vm794, 0
      %814 = vst.msk [vmem:[#allocation3 + $0x4c] sm:$0xf] %vm794, 0
      %815 = vst.msk [vmem:[#allocation3 + $0x50] sm:$0xf] %vm794, 0
      %816 = vst.msk [vmem:[#allocation3 + $0x54] sm:$0xf] %vm794, 0
      %817 = vst.msk [vmem:[#allocation3 + $0x58] sm:$0xf] %vm794, 0
      %818 = vst.msk [vmem:[#allocation3 + $0x5c] sm:$0xf] %vm794, 0
      %819 = vst.msk [vmem:[#allocation3 + $0x60] sm:$0xf] %vm794, 0
      %820 = vst.msk [vmem:[#allocation3 + $0x64] sm:$0xf] %vm794, 0
      %821 = vst.msk [vmem:[#allocation3 + $0x68] sm:$0xf] %vm794, 0
      %822 = vst.msk [vmem:[#allocation3 + $0x6c] sm:$0xf] %vm794, 0
      %823 = vst.msk [vmem:[#allocation3 + $0x70] sm:$0xf] %vm794, 0
      %824 = vst.msk [vmem:[#allocation3 + $0x74] sm:$0xf] %vm794, 0
      %825 = vst.msk [vmem:[#allocation3 + $0x78] sm:$0xf] %vm794, 0
      %826 = vst.msk [vmem:[#allocation3 + $0x7c] sm:$0xf] %vm794, 0
      %v827 = vld [vmem:[#allocation2] sm:$0xf]
      %v828 = vld [vmem:[#allocation2 + $0x4] sm:$0xf]
      %v829 = vld [vmem:[#allocation2 + $0xc] sm:$0xf]
      %v830 = vld [vmem:[#allocation2 + $0x10] sm:$0xf]
      %v831 = vld [vmem:[#allocation2 + $0x18] sm:$0xf]
      %v832 = vld [vmem:[#allocation2 + $0x1c] sm:$0xf]
      %v833 = vld [vmem:[#allocation2 + $0x24] sm:$0xf]
      %v834 = vld [vmem:[#allocation2 + $0x28] sm:$0xf]
      %v835 = vld [vmem:[#allocation2 + $0x30] sm:$0xf]
      %v836 = vld [vmem:[#allocation2 + $0x34] sm:$0xf]
      %v837 = vld [vmem:[#allocation2 + $0x3c] sm:$0xf]
      %v838 = vld [vmem:[#allocation2 + $0x40] sm:$0xf]
      %v839 = vld [vmem:[#allocation2 + $0x48] sm:$0xf]
      %v840 = vld [vmem:[#allocation2 + $0x4c] sm:$0xf]
      %v841 = vld [vmem:[#allocation2 + $0x54] sm:$0xf]
      %v842 = vld [vmem:[#allocation2 + $0x58] sm:$0xf]
      %v843 = vld [vmem:[#allocation2 + $0x60] sm:$0xf]
      %v844 = vld [vmem:[#allocation2 + $0x64] sm:$0xf]
      %v845 = vld [vmem:[#allocation2 + $0x6c] sm:$0xf]
      %v846 = vld [vmem:[#allocation2 + $0x70] sm:$0xf]
      %v847 = vld [vmem:[#allocation2 + $0x78] sm:$0xf]
      %v848 = vld [vmem:[#allocation2 + $0x7c] sm:$0xf]
      %v849 = vld [vmem:[#allocation2 + $0x84] sm:$0xf]
      %v850 = vld [vmem:[#allocation2 + $0x88] sm:$0xf]
      %v851 = vld [vmem:[#allocation2 + $0x90] sm:$0xf]
      %v852 = vld [vmem:[#allocation2 + $0x94] sm:$0xf]
      %v853 = vld [vmem:[#allocation2 + $0x9c] sm:$0xf]
      %v854 = vld [vmem:[#allocation2 + $0xa0] sm:$0xf]
      %v855 = vld [vmem:[#allocation2 + $0xa8] sm:$0xf]
      %v856 = vld [vmem:[#allocation2 + $0xac] sm:$0xf]
      %v857 = vld [vmem:[#allocation2 + $0xb4] sm:$0xf]
      %v858 = vld [vmem:[#allocation2 + $0xb8] sm:$0xf]
      %859 = vst.msk [vmem:[#allocation3] sm:$0xf] %vm215, %v827
      %860 = vst.msk [vmem:[#allocation3 + $0x4] sm:$0xf] %vm215, %v828
      %861 = vst.msk [vmem:[#allocation3 + $0x8] sm:$0xf] %vm215, %v829
      %862 = vst.msk [vmem:[#allocation3 + $0xc] sm:$0xf] %vm215, %v830
      %863 = vst.msk [vmem:[#allocation3 + $0x10] sm:$0xf] %vm215, %v831
      %864 = vst.msk [vmem:[#allocation3 + $0x14] sm:$0xf] %vm215, %v832
      %865 = vst.msk [vmem:[#allocation3 + $0x18] sm:$0xf] %vm215, %v833
      %866 = vst.msk [vmem:[#allocation3 + $0x1c] sm:$0xf] %vm215, %v834
      %867 = vst.msk [vmem:[#allocation3 + $0x20] sm:$0xf] %vm215, %v835
      %868 = vst.msk [vmem:[#allocation3 + $0x24] sm:$0xf] %vm215, %v836
      %869 = vst.msk [vmem:[#allocation3 + $0x28] sm:$0xf] %vm215, %v837
      %870 = vst.msk [vmem:[#allocation3 + $0x2c] sm:$0xf] %vm215, %v838
      %871 = vst.msk [vmem:[#allocation3 + $0x30] sm:$0xf] %vm215, %v839
      %872 = vst.msk [vmem:[#allocation3 + $0x34] sm:$0xf] %vm215, %v840
      %873 = vst.msk [vmem:[#allocation3 + $0x38] sm:$0xf] %vm215, %v841
      %874 = vst.msk [vmem:[#allocation3 + $0x3c] sm:$0xf] %vm215, %v842
      %875 = vst.msk [vmem:[#allocation3 + $0x40] sm:$0xf] %vm215, %v843
      %876 = vst.msk [vmem:[#allocation3 + $0x44] sm:$0xf] %vm215, %v844
      %877 = vst.msk [vmem:[#allocation3 + $0x48] sm:$0xf] %vm215, %v845
      %878 = vst.msk [vmem:[#allocation3 + $0x4c] sm:$0xf] %vm215, %v846
      %879 = vst.msk [vmem:[#allocation3 + $0x50] sm:$0xf] %vm215, %v847
      %880 = vst.msk [vmem:[#allocation3 + $0x54] sm:$0xf] %vm215, %v848
      %881 = vst.msk [vmem:[#allocation3 + $0x58] sm:$0xf] %vm215, %v849
      %882 = vst.msk [vmem:[#allocation3 + $0x5c] sm:$0xf] %vm215, %v850
      %883 = vst.msk [vmem:[#allocation3 + $0x60] sm:$0xf] %vm215, %v851
      %884 = vst.msk [vmem:[#allocation3 + $0x64] sm:$0xf] %vm215, %v852
      %885 = vst.msk [vmem:[#allocation3 + $0x68] sm:$0xf] %vm215, %v853
      %886 = vst.msk [vmem:[#allocation3 + $0x6c] sm:$0xf] %vm215, %v854
      %887 = vst.msk [vmem:[#allocation3 + $0x70] sm:$0xf] %vm215, %v855
      %888 = vst.msk [vmem:[#allocation3 + $0x74] sm:$0xf] %vm215, %v856
      %889 = vst.msk [vmem:[#allocation3 + $0x78] sm:$0xf] %vm215, %v857
      %890 = vst.msk [vmem:[#allocation3 + $0x7c] sm:$0xf] %vm215, %v858
      %v891 = vld [vmem:[#allocation2] sm:$0xf]
      %v892 = vld [vmem:[#allocation2 + $0x4] sm:$0xf]
      %v893 = vld [vmem:[#allocation2 + $0x8] sm:$0x1]
      %v894 = vld [vmem:[#allocation2 + $0xc] sm:$0xf]
      %v895 = vld [vmem:[#allocation2 + $0x10] sm:$0xf]
      %v896 = vld [vmem:[#allocation2 + $0x14] sm:$0x1]
      %v897 = vld [vmem:[#allocation2 + $0x18] sm:$0xf]
      %v898 = vld [vmem:[#allocation2 + $0x1c] sm:$0xf]
      %v899 = vld [vmem:[#allocation2 + $0x20] sm:$0x1]
      %v900 = vld [vmem:[#allocation2 + $0x24] sm:$0xf]
      %v901 = vld [vmem:[#allocation2 + $0x28] sm:$0xf]
      %v902 = vld [vmem:[#allocation2 + $0x2c] sm:$0x1]
      %v903 = vld [vmem:[#allocation2 + $0x30] sm:$0xf]
      %v904 = vld [vmem:[#allocation2 + $0x34] sm:$0xf]
      %v905 = vld [vmem:[#allocation2 + $0x38] sm:$0x1]
      %v906 = vld [vmem:[#allocation2 + $0x3c] sm:$0xf]
      %v907 = vld [vmem:[#allocation2 + $0x40] sm:$0xf]
      %v908 = vld [vmem:[#allocation2 + $0x44] sm:$0x1]
      %v909 = vld [vmem:[#allocation2 + $0x48] sm:$0xf]
      %v910 = vld [vmem:[#allocation2 + $0x4c] sm:$0xf]
      %v911 = vld [vmem:[#allocation2 + $0x50] sm:$0x1]
      %v912 = vld [vmem:[#allocation2 + $0x54] sm:$0xf]
      %v913 = vld [vmem:[#allocation2 + $0x58] sm:$0xf]
      %v914 = vld [vmem:[#allocation2 + $0x5c] sm:$0x1]
      %v915 = vld [vmem:[#allocation2 + $0x60] sm:$0xf]
      %v916 = vld [vmem:[#allocation2 + $0x64] sm:$0xf]
      %v917 = vld [vmem:[#allocation2 + $0x68] sm:$0x1]
      %v918 = vld [vmem:[#allocation2 + $0x6c] sm:$0xf]
      %v919 = vld [vmem:[#allocation2 + $0x70] sm:$0xf]
      %v920 = vld [vmem:[#allocation2 + $0x74] sm:$0x1]
      %v921 = vld [vmem:[#allocation2 + $0x78] sm:$0xf]
      %v922 = vld [vmem:[#allocation2 + $0x7c] sm:$0xf]
      %v923 = vld [vmem:[#allocation2 + $0x80] sm:$0x1]
      %v924 = vld [vmem:[#allocation2 + $0x84] sm:$0xf]
      %v925 = vld [vmem:[#allocation2 + $0x88] sm:$0xf]
      %v926 = vld [vmem:[#allocation2 + $0x8c] sm:$0x1]
      %v927 = vld [vmem:[#allocation2 + $0x90] sm:$0xf]
      %v928 = vld [vmem:[#allocation2 + $0x94] sm:$0xf]
      %v929 = vld [vmem:[#allocation2 + $0x98] sm:$0x1]
      %v930 = vld [vmem:[#allocation2 + $0x9c] sm:$0xf]
      %v931 = vld [vmem:[#allocation2 + $0xa0] sm:$0xf]
      %v932 = vld [vmem:[#allocation2 + $0xa4] sm:$0x1]
      %v933 = vld [vmem:[#allocation2 + $0xa8] sm:$0xf]
      %v934 = vld [vmem:[#allocation2 + $0xac] sm:$0xf]
      %v935 = vld [vmem:[#allocation2 + $0xb0] sm:$0x1]
      %v936 = vld [vmem:[#allocation2 + $0xb4] sm:$0xf]
      %v937 = vld [vmem:[#allocation2 + $0xb8] sm:$0xf]
      %v938 = vld [vmem:[#allocation2 + $0xbc] sm:$0x1]
      %vm939 = vsmask.f32 3328
      %vm940 = vsmask.f32 7440
      %vm941 = vmor %vm939, %vm940
      %v943 = vshrl.u32 %v891, 16
      %v945 = vrot.slane %v943, 4
      %v946 = vshll.u32 %v891, 16
      %v948 = vrot.slane %v946, 5
      %v949 = vor.u32 %v945, %v948
      %v950 = vrot.slane %v949, 4
      %v952 = vshll.u32 %v892, 16
      %v954 = vrot.slane %v952, 5
      %v955 = vsel %vm941, %v950, %v954
      %v956 = vshrl.u32 %v892, 16
      %v958 = vrot.slane %v956, 4
      %v959 = vor.u32 %v958, %v954
      %v960 = vrot.slane %v959, 4
      %v962 = vshll.u32 %v893, 16
      %v964 = vrot.slane %v962, 5
      %v965 = vsel %vm941, %v960, %v964
      %v967 = vshrl.u32 %v894, 16
      %v969 = vrot.slane %v967, 4
      %v970 = vshll.u32 %v894, 16
      %v972 = vrot.slane %v970, 5
      %v973 = vor.u32 %v969, %v972
      %v974 = vrot.slane %v973, 4
      %v976 = vshll.u32 %v895, 16
      %v978 = vrot.slane %v976, 5
      %v979 = vsel %vm941, %v974, %v978
      %v980 = vshrl.u32 %v895, 16
      %v982 = vrot.slane %v980, 4
      %v983 = vor.u32 %v982, %v978
      %v984 = vrot.slane %v983, 4
      %v986 = vshll.u32 %v896, 16
      %v988 = vrot.slane %v986, 5
      %v989 = vsel %vm941, %v984, %v988
      %v991 = vshrl.u32 %v897, 16
      %v993 = vrot.slane %v991, 4
      %v994 = vshll.u32 %v897, 16
      %v996 = vrot.slane %v994, 5
      %v997 = vor.u32 %v993, %v996
      %v998 = vrot.slane %v997, 4
      %v1000 = vshll.u32 %v898, 16
      %v1002 = vrot.slane %v1000, 5
      %v1003 = vsel %vm941, %v998, %v1002
      %v1004 = vshrl.u32 %v898, 16
      %v1006 = vrot.slane %v1004, 4
      %v1007 = vor.u32 %v1006, %v1002
      %v1008 = vrot.slane %v1007, 4
      %v1010 = vshll.u32 %v899, 16
      %v1012 = vrot.slane %v1010, 5
      %v1013 = vsel %vm941, %v1008, %v1012
      %v1015 = vshrl.u32 %v900, 16
      %v1017 = vrot.slane %v1015, 4
      %v1018 = vshll.u32 %v900, 16
      %v1020 = vrot.slane %v1018, 5
      %v1021 = vor.u32 %v1017, %v1020
      %v1022 = vrot.slane %v1021, 4
      %v1024 = vshll.u32 %v901, 16
      %v1026 = vrot.slane %v1024, 5
      %v1027 = vsel %vm941, %v1022, %v1026
      %v1028 = vshrl.u32 %v901, 16
      %v1030 = vrot.slane %v1028, 4
      %v1031 = vor.u32 %v1030, %v1026
      %v1032 = vrot.slane %v1031, 4
      %v1034 = vshll.u32 %v902, 16
      %v1036 = vrot.slane %v1034, 5
      %v1037 = vsel %vm941, %v1032, %v1036
      %v1039 = vshrl.u32 %v903, 16
      %v1041 = vrot.slane %v1039, 4
      %v1042 = vshll.u32 %v903, 16
      %v1044 = vrot.slane %v1042, 5
      %v1045 = vor.u32 %v1041, %v1044
      %v1046 = vrot.slane %v1045, 4
      %v1048 = vshll.u32 %v904, 16
      %v1050 = vrot.slane %v1048, 5
      %v1051 = vsel %vm941, %v1046, %v1050
      %v1052 = vshrl.u32 %v904, 16
      %v1054 = vrot.slane %v1052, 4
      %v1055 = vor.u32 %v1054, %v1050
      %v1056 = vrot.slane %v1055, 4
      %v1058 = vshll.u32 %v905, 16
      %v1060 = vrot.slane %v1058, 5
      %v1061 = vsel %vm941, %v1056, %v1060
      %v1063 = vshrl.u32 %v906, 16
      %v1065 = vrot.slane %v1063, 4
      %v1066 = vshll.u32 %v906, 16
      %v1068 = vrot.slane %v1066, 5
      %v1069 = vor.u32 %v1065, %v1068
      %v1070 = vrot.slane %v1069, 4
      %v1072 = vshll.u32 %v907, 16
      %v1074 = vrot.slane %v1072, 5
      %v1075 = vsel %vm941, %v1070, %v1074
      %v1076 = vshrl.u32 %v907, 16
      %v1078 = vrot.slane %v1076, 4
      %v1079 = vor.u32 %v1078, %v1074
      %v1080 = vrot.slane %v1079, 4
      %v1082 = vshll.u32 %v908, 16
      %v1084 = vrot.slane %v1082, 5
      %v1085 = vsel %vm941, %v1080, %v1084
      %v1087 = vshrl.u32 %v909, 16
      %v1089 = vrot.slane %v1087, 4
      %v1090 = vshll.u32 %v909, 16
      %v1092 = vrot.slane %v1090, 5
      %v1093 = vor.u32 %v1089, %v1092
      %v1094 = vrot.slane %v1093, 4
      %v1096 = vshll.u32 %v910, 16
      %v1098 = vrot.slane %v1096, 5
      %v1099 = vsel %vm941, %v1094, %v1098
      %v1100 = vshrl.u32 %v910, 16
      %v1102 = vrot.slane %v1100, 4
      %v1103 = vor.u32 %v1102, %v1098
      %v1104 = vrot.slane %v1103, 4
      %v1106 = vshll.u32 %v911, 16
      %v1108 = vrot.slane %v1106, 5
      %v1109 = vsel %vm941, %v1104, %v1108
      %v1111 = vshrl.u32 %v912, 16
      %v1113 = vrot.slane %v1111, 4
      %v1114 = vshll.u32 %v912, 16
      %v1116 = vrot.slane %v1114, 5
      %v1117 = vor.u32 %v1113, %v1116
      %v1118 = vrot.slane %v1117, 4
      %v1120 = vshll.u32 %v913, 16
      %v1122 = vrot.slane %v1120, 5
      %v1123 = vsel %vm941, %v1118, %v1122
      %v1124 = vshrl.u32 %v913, 16
      %v1126 = vrot.slane %v1124, 4
      %v1127 = vor.u32 %v1126, %v1122
      %v1128 = vrot.slane %v1127, 4
      %v1130 = vshll.u32 %v914, 16
      %v1132 = vrot.slane %v1130, 5
      %v1133 = vsel %vm941, %v1128, %v1132
      %v1135 = vshrl.u32 %v915, 16
      %v1137 = vrot.slane %v1135, 4
      %v1138 = vshll.u32 %v915, 16
      %v1140 = vrot.slane %v1138, 5
      %v1141 = vor.u32 %v1137, %v1140
      %v1142 = vrot.slane %v1141, 4
      %v1144 = vshll.u32 %v916, 16
      %v1146 = vrot.slane %v1144, 5
      %v1147 = vsel %vm941, %v1142, %v1146
      %v1148 = vshrl.u32 %v916, 16
      %v1150 = vrot.slane %v1148, 4
      %v1151 = vor.u32 %v1150, %v1146
      %v1152 = vrot.slane %v1151, 4
      %v1154 = vshll.u32 %v917, 16
      %v1156 = vrot.slane %v1154, 5
      %v1157 = vsel %vm941, %v1152, %v1156
      %v1159 = vshrl.u32 %v918, 16
      %v1161 = vrot.slane %v1159, 4
      %v1162 = vshll.u32 %v918, 16
      %v1164 = vrot.slane %v1162, 5
      %v1165 = vor.u32 %v1161, %v1164
      %v1166 = vrot.slane %v1165, 4
      %v1168 = vshll.u32 %v919, 16
      %v1170 = vrot.slane %v1168, 5
      %v1171 = vsel %vm941, %v1166, %v1170
      %v1172 = vshrl.u32 %v919, 16
      %v1174 = vrot.slane %v1172, 4
      %v1175 = vor.u32 %v1174, %v1170
      %v1176 = vrot.slane %v1175, 4
      %v1178 = vshll.u32 %v920, 16
      %v1180 = vrot.slane %v1178, 5
      %v1181 = vsel %vm941, %v1176, %v1180
      %v1183 = vshrl.u32 %v921, 16
      %v1185 = vrot.slane %v1183, 4
      %v1186 = vshll.u32 %v921, 16
      %v1188 = vrot.slane %v1186, 5
      %v1189 = vor.u32 %v1185, %v1188
      %v1190 = vrot.slane %v1189, 4
      %v1192 = vshll.u32 %v922, 16
      %v1194 = vrot.slane %v1192, 5
      %v1195 = vsel %vm941, %v1190, %v1194
      %v1196 = vshrl.u32 %v922, 16
      %v1198 = vrot.slane %v1196, 4
      %v1199 = vor.u32 %v1198, %v1194
      %v1200 = vrot.slane %v1199, 4
      %v1202 = vshll.u32 %v923, 16
      %v1204 = vrot.slane %v1202, 5
      %v1205 = vsel %vm941, %v1200, %v1204
      %v1207 = vshrl.u32 %v924, 16
      %v1209 = vrot.slane %v1207, 4
      %v1210 = vshll.u32 %v924, 16
      %v1212 = vrot.slane %v1210, 5
      %v1213 = vor.u32 %v1209, %v1212
      %v1214 = vrot.slane %v1213, 4
      %v1216 = vshll.u32 %v925, 16
      %v1218 = vrot.slane %v1216, 5
      %v1219 = vsel %vm941, %v1214, %v1218
      %v1220 = vshrl.u32 %v925, 16
      %v1222 = vrot.slane %v1220, 4
      %v1223 = vor.u32 %v1222, %v1218
      %v1224 = vrot.slane %v1223, 4
      %v1226 = vshll.u32 %v926, 16
      %v1228 = vrot.slane %v1226, 5
      %v1229 = vsel %vm941, %v1224, %v1228
      %v1231 = vshrl.u32 %v927, 16
      %v1233 = vrot.slane %v1231, 4
      %v1234 = vshll.u32 %v927, 16
      %v1236 = vrot.slane %v1234, 5
      %v1237 = vor.u32 %v1233, %v1236
      %v1238 = vrot.slane %v1237, 4
      %v1240 = vshll.u32 %v928, 16
      %v1242 = vrot.slane %v1240, 5
      %v1243 = vsel %vm941, %v1238, %v1242
      %v1244 = vshrl.u32 %v928, 16
      %v1246 = vrot.slane %v1244, 4
      %v1247 = vor.u32 %v1246, %v1242
      %v1248 = vrot.slane %v1247, 4
      %v1250 = vshll.u32 %v929, 16
      %v1252 = vrot.slane %v1250, 5
      %v1253 = vsel %vm941, %v1248, %v1252
      %v1255 = vshrl.u32 %v930, 16
      %v1257 = vrot.slane %v1255, 4
      %v1258 = vshll.u32 %v930, 16
      %v1260 = vrot.slane %v1258, 5
      %v1261 = vor.u32 %v1257, %v1260
      %v1262 = vrot.slane %v1261, 4
      %v1264 = vshll.u32 %v931, 16
      %v1266 = vrot.slane %v1264, 5
      %v1267 = vsel %vm941, %v1262, %v1266
      %v1268 = vshrl.u32 %v931, 16
      %v1270 = vrot.slane %v1268, 4
      %v1271 = vor.u32 %v1270, %v1266
      %v1272 = vrot.slane %v1271, 4
      %v1274 = vshll.u32 %v932, 16
      %v1276 = vrot.slane %v1274, 5
      %v1277 = vsel %vm941, %v1272, %v1276
      %v1279 = vshrl.u32 %v933, 16
      %v1281 = vrot.slane %v1279, 4
      %v1282 = vshll.u32 %v933, 16
      %v1284 = vrot.slane %v1282, 5
      %v1285 = vor.u32 %v1281, %v1284
      %v1286 = vrot.slane %v1285, 4
      %v1288 = vshll.u32 %v934, 16
      %v1290 = vrot.slane %v1288, 5
      %v1291 = vsel %vm941, %v1286, %v1290
      %v1292 = vshrl.u32 %v934, 16
      %v1294 = vrot.slane %v1292, 4
      %v1295 = vor.u32 %v1294, %v1290
      %v1296 = vrot.slane %v1295, 4
      %v1298 = vshll.u32 %v935, 16
      %v1300 = vrot.slane %v1298, 5
      %v1301 = vsel %vm941, %v1296, %v1300
      %v1303 = vshrl.u32 %v936, 16
      %v1305 = vrot.slane %v1303, 4
      %v1306 = vshll.u32 %v936, 16
      %v1308 = vrot.slane %v1306, 5
      %v1309 = vor.u32 %v1305, %v1308
      %v1310 = vrot.slane %v1309, 4
      %v1312 = vshll.u32 %v937, 16
      %v1314 = vrot.slane %v1312, 5
      %v1315 = vsel %vm941, %v1310, %v1314
      %v1316 = vshrl.u32 %v937, 16
      %v1318 = vrot.slane %v1316, 4
      %v1319 = vor.u32 %v1318, %v1314
      %v1320 = vrot.slane %v1319, 4
      %v1322 = vshll.u32 %v938, 16
      %v1324 = vrot.slane %v1322, 5
      %v1325 = vsel %vm941, %v1320, %v1324
      %1326 = vrot.lane.b32.xlu0 %v955, 8
      %v1327 = vpop.permute.xlu0 %1326
      %1328 = vrot.lane.b32.xlu0 %v965, 8
      %v1329 = vpop.permute.xlu0 %1328
      %1330 = vrot.lane.b32.xlu0 %v979, 8
      %v1331 = vpop.permute.xlu0 %1330
      %1332 = vrot.lane.b32.xlu0 %v989, 8
      %v1333 = vpop.permute.xlu0 %1332
      %1334 = vrot.lane.b32.xlu0 %v1003, 8
      %v1335 = vpop.permute.xlu0 %1334
      %1336 = vrot.lane.b32.xlu0 %v1013, 8
      %v1337 = vpop.permute.xlu0 %1336
      %1338 = vrot.lane.b32.xlu0 %v1027, 8
      %v1339 = vpop.permute.xlu0 %1338
      %1340 = vrot.lane.b32.xlu0 %v1037, 8
      %v1341 = vpop.permute.xlu0 %1340
      %1342 = vrot.lane.b32.xlu0 %v1051, 8
      %v1343 = vpop.permute.xlu0 %1342
      %1344 = vrot.lane.b32.xlu0 %v1061, 8
      %v1345 = vpop.permute.xlu0 %1344
      %1346 = vrot.lane.b32.xlu0 %v1075, 8
      %v1347 = vpop.permute.xlu0 %1346
      %1348 = vrot.lane.b32.xlu0 %v1085, 8
      %v1349 = vpop.permute.xlu0 %1348
      %1350 = vrot.lane.b32.xlu0 %v1099, 8
      %v1351 = vpop.permute.xlu0 %1350
      %1352 = vrot.lane.b32.xlu0 %v1109, 8
      %v1353 = vpop.permute.xlu0 %1352
      %1354 = vrot.lane.b32.xlu0 %v1123, 8
      %v1355 = vpop.permute.xlu0 %1354
      %1356 = vrot.lane.b32.xlu0 %v1133, 8
      %v1357 = vpop.permute.xlu0 %1356
      %1358 = vrot.lane.b32.xlu0 %v1147, 8
      %v1359 = vpop.permute.xlu0 %1358
      %1360 = vrot.lane.b32.xlu0 %v1157, 8
      %v1361 = vpop.permute.xlu0 %1360
      %1362 = vrot.lane.b32.xlu0 %v1171, 8
      %v1363 = vpop.permute.xlu0 %1362
      %1364 = vrot.lane.b32.xlu0 %v1181, 8
      %v1365 = vpop.permute.xlu0 %1364
      %1366 = vrot.lane.b32.xlu0 %v1195, 8
      %v1367 = vpop.permute.xlu0 %1366
      %1368 = vrot.lane.b32.xlu0 %v1205, 8
      %v1369 = vpop.permute.xlu0 %1368
      %1370 = vrot.lane.b32.xlu0 %v1219, 8
      %v1371 = vpop.permute.xlu0 %1370
      %1372 = vrot.lane.b32.xlu0 %v1229, 8
      %v1373 = vpop.permute.xlu0 %1372
      %1374 = vrot.lane.b32.xlu0 %v1243, 8
      %v1375 = vpop.permute.xlu0 %1374
      %1376 = vrot.lane.b32.xlu0 %v1253, 8
      %v1377 = vpop.permute.xlu0 %1376
      %1378 = vrot.lane.b32.xlu0 %v1267, 8
      %v1379 = vpop.permute.xlu0 %1378
      %1380 = vrot.lane.b32.xlu0 %v1277, 8
      %v1381 = vpop.permute.xlu0 %1380
      %1382 = vrot.lane.b32.xlu0 %v1291, 8
      %v1383 = vpop.permute.xlu0 %1382
      %1384 = vrot.lane.b32.xlu0 %v1301, 8
      %v1385 = vpop.permute.xlu0 %1384
      %1386 = vrot.lane.b32.xlu0 %v1315, 8
      %v1387 = vpop.permute.xlu0 %1386
      %1388 = vrot.lane.b32.xlu0 %v1325, 8
      %v1389 = vpop.permute.xlu0 %1388
      %vm1422 = vcmask 126016
      %1423 = vst.msk [vmem:[#allocation3] sm:$0xf] %vm1422, %v1327
      %1424 = vst.msk [vmem:[#allocation3 + $0x4] sm:$0xf] %vm1422, %v1329
      %1425 = vst.msk [vmem:[#allocation3 + $0x8] sm:$0xf] %vm1422, %v1331
      %1426 = vst.msk [vmem:[#allocation3 + $0xc] sm:$0xf] %vm1422, %v1333
      %1427 = vst.msk [vmem:[#allocation3 + $0x10] sm:$0xf] %vm1422, %v1335
      %1428 = vst.msk [vmem:[#allocation3 + $0x14] sm:$0xf] %vm1422, %v1337
      %1429 = vst.msk [vmem:[#allocation3 + $0x18] sm:$0xf] %vm1422, %v1339
      %1430 = vst.msk [vmem:[#allocation3 + $0x1c] sm:$0xf] %vm1422, %v1341
      %1431 = vst.msk [vmem:[#allocation3 + $0x20] sm:$0xf] %vm1422, %v1343
      %1432 = vst.msk [vmem:[#allocation3 + $0x24] sm:$0xf] %vm1422, %v1345
      %1433 = vst.msk [vmem:[#allocation3 + $0x28] sm:$0xf] %vm1422, %v1347
      %1434 = vst.msk [vmem:[#allocation3 + $0x2c] sm:$0xf] %vm1422, %v1349
      %1435 = vst.msk [vmem:[#allocation3 + $0x30] sm:$0xf] %vm1422, %v1351
      %1436 = vst.msk [vmem:[#allocation3 + $0x34] sm:$0xf] %vm1422, %v1353
      %1437 = vst.msk [vmem:[#allocation3 + $0x38] sm:$0xf] %vm1422, %v1355
      %1438 = vst.msk [vmem:[#allocation3 + $0x3c] sm:$0xf] %vm1422, %v1357
      %1439 = vst.msk [vmem:[#allocation3 + $0x40] sm:$0xf] %vm1422, %v1359
      %1440 = vst.msk [vmem:[#allocation3 + $0x44] sm:$0xf] %vm1422, %v1361
      %1441 = vst.msk [vmem:[#allocation3 + $0x48] sm:$0xf] %vm1422, %v1363
      %1442 = vst.msk [vmem:[#allocation3 + $0x4c] sm:$0xf] %vm1422, %v1365
      %1443 = vst.msk [vmem:[#allocation3 + $0x50] sm:$0xf] %vm1422, %v1367
      %1444 = vst.msk [vmem:[#allocation3 + $0x54] sm:$0xf] %vm1422, %v1369
      %1445 = vst.msk [vmem:[#allocation3 + $0x58] sm:$0xf] %vm1422, %v1371
      %1446 = vst.msk [vmem:[#allocation3 + $0x5c] sm:$0xf] %vm1422, %v1373
      %1447 = vst.msk [vmem:[#allocation3 + $0x60] sm:$0xf] %vm1422, %v1375
      %1448 = vst.msk [vmem:[#allocation3 + $0x64] sm:$0xf] %vm1422, %v1377
      %1449 = vst.msk [vmem:[#allocation3 + $0x68] sm:$0xf] %vm1422, %v1379
      %1450 = vst.msk [vmem:[#allocation3 + $0x6c] sm:$0xf] %vm1422, %v1381
      %1451 = vst.msk [vmem:[#allocation3 + $0x70] sm:$0xf] %vm1422, %v1383
      %1452 = vst.msk [vmem:[#allocation3 + $0x74] sm:$0xf] %vm1422, %v1385
      %1453 = vst.msk [vmem:[#allocation3 + $0x78] sm:$0xf] %vm1422, %v1387
      %1454 = vst.msk [vmem:[#allocation3 + $0x7c] sm:$0xf] %vm1422, %v1389
      %v1455 = vld [vmem:[#allocation2] sm:$0xe]
      %v1456 = vld [vmem:[#allocation2 + $0x4] sm:$0xf]
      %v1457 = vld [vmem:[#allocation2 + $0x8] sm:$0x1]
      %v1458 = vld [vmem:[#allocation2 + $0xc] sm:$0xe]
      %v1459 = vld [vmem:[#allocation2 + $0x10] sm:$0xf]
      %v1460 = vld [vmem:[#allocation2 + $0x14] sm:$0x1]
      %v1461 = vld [vmem:[#allocation2 + $0x18] sm:$0xe]
      %v1462 = vld [vmem:[#allocation2 + $0x1c] sm:$0xf]
      %v1463 = vld [vmem:[#allocation2 + $0x20] sm:$0x1]
      %v1464 = vld [vmem:[#allocation2 + $0x24] sm:$0xe]
      %v1465 = vld [vmem:[#allocation2 + $0x28] sm:$0xf]
      %v1466 = vld [vmem:[#allocation2 + $0x2c] sm:$0x1]
      %v1467 = vld [vmem:[#allocation2 + $0x30] sm:$0xe]
      %v1468 = vld [vmem:[#allocation2 + $0x34] sm:$0xf]
      %v1469 = vld [vmem:[#allocation2 + $0x38] sm:$0x1]
      %v1470 = vld [vmem:[#allocation2 + $0x3c] sm:$0xe]
      %v1471 = vld [vmem:[#allocation2 + $0x40] sm:$0xf]
      %v1472 = vld [vmem:[#allocation2 + $0x44] sm:$0x1]
      %v1473 = vld [vmem:[#allocation2 + $0x48] sm:$0xe]
      %v1474 = vld [vmem:[#allocation2 + $0x4c] sm:$0xf]
      %v1475 = vld [vmem:[#allocation2 + $0x50] sm:$0x1]
      %v1476 = vld [vmem:[#allocation2 + $0x54] sm:$0xe]
      %v1477 = vld [vmem:[#allocation2 + $0x58] sm:$0xf]
      %v1478 = vld [vmem:[#allocation2 + $0x5c] sm:$0x1]
      %v1479 = vld [vmem:[#allocation2 + $0x60] sm:$0xe]
      %v1480 = vld [vmem:[#allocation2 + $0x64] sm:$0xf]
      %v1481 = vld [vmem:[#allocation2 + $0x68] sm:$0x1]
      %v1482 = vld [vmem:[#allocation2 + $0x6c] sm:$0xe]
      %v1483 = vld [vmem:[#allocation2 + $0x70] sm:$0xf]
      %v1484 = vld [vmem:[#allocation2 + $0x74] sm:$0x1]
      %v1485 = vld [vmem:[#allocation2 + $0x78] sm:$0xe]
      %v1486 = vld [vmem:[#allocation2 + $0x7c] sm:$0xf]
      %v1487 = vld [vmem:[#allocation2 + $0x80] sm:$0x1]
      %v1488 = vld [vmem:[#allocation2 + $0x84] sm:$0xe]
      %v1489 = vld [vmem:[#allocation2 + $0x88] sm:$0xf]
      %v1490 = vld [vmem:[#allocation2 + $0x8c] sm:$0x1]
      %v1491 = vld [vmem:[#allocation2 + $0x90] sm:$0xe]
      %v1492 = vld [vmem:[#allocation2 + $0x94] sm:$0xf]
      %v1493 = vld [vmem:[#allocation2 + $0x98] sm:$0x1]
      %v1494 = vld [vmem:[#allocation2 + $0x9c] sm:$0xe]
      %v1495 = vld [vmem:[#allocation2 + $0xa0] sm:$0xf]
      %v1496 = vld [vmem:[#allocation2 + $0xa4] sm:$0x1]
      %v1497 = vld [vmem:[#allocation2 + $0xa8] sm:$0xe]
      %v1498 = vld [vmem:[#allocation2 + $0xac] sm:$0xf]
      %v1499 = vld [vmem:[#allocation2 + $0xb0] sm:$0x1]
      %v1500 = vld [vmem:[#allocation2 + $0xb4] sm:$0xe]
      %v1501 = vld [vmem:[#allocation2 + $0xb8] sm:$0xf]
      %v1502 = vld [vmem:[#allocation2 + $0xbc] sm:$0x1]
      %vm1551 = vcmask 1042432
      %vm1552 = vcmask 1046532
      %vm1553 = vmor %vm1551, %vm1552
      %v1554 = vrot.slane %v1455, 5
      %v1555 = vrot.slane %v1554, 4
      %v1556 = vrot.slane %v1456, 5
      %v1557 = vsel %vm1553, %v1555, %v1556
      %v1558 = vrot.slane %v1556, 4
      %v1559 = vrot.slane %v1457, 5
      %v1560 = vsel %vm1553, %v1558, %v1559
      %v1561 = vrot.slane %v1458, 5
      %v1562 = vrot.slane %v1561, 4
      %v1563 = vrot.slane %v1459, 5
      %v1564 = vsel %vm1553, %v1562, %v1563
      %v1565 = vrot.slane %v1563, 4
      %v1566 = vrot.slane %v1460, 5
      %v1567 = vsel %vm1553, %v1565, %v1566
      %v1568 = vrot.slane %v1461, 5
      %v1569 = vrot.slane %v1568, 4
      %v1570 = vrot.slane %v1462, 5
      %v1571 = vsel %vm1553, %v1569, %v1570
      %v1572 = vrot.slane %v1570, 4
      %v1573 = vrot.slane %v1463, 5
      %v1574 = vsel %vm1553, %v1572, %v1573
      %v1575 = vrot.slane %v1464, 5
      %v1576 = vrot.slane %v1575, 4
      %v1577 = vrot.slane %v1465, 5
      %v1578 = vsel %vm1553, %v1576, %v1577
      %v1579 = vrot.slane %v1577, 4
      %v1580 = vrot.slane %v1466, 5
      %v1581 = vsel %vm1553, %v1579, %v1580
      %v1582 = vrot.slane %v1467, 5
      %v1583 = vrot.slane %v1582, 4
      %v1584 = vrot.slane %v1468, 5
      %v1585 = vsel %vm1553, %v1583, %v1584
      %v1586 = vrot.slane %v1584, 4
      %v1587 = vrot.slane %v1469, 5
      %v1588 = vsel %vm1553, %v1586, %v1587
      %v1589 = vrot.slane %v1470, 5
      %v1590 = vrot.slane %v1589, 4
      %v1591 = vrot.slane %v1471, 5
      %v1592 = vsel %vm1553, %v1590, %v1591
      %v1593 = vrot.slane %v1591, 4
      %v1594 = vrot.slane %v1472, 5
      %v1595 = vsel %vm1553, %v1593, %v1594
      %v1596 = vrot.slane %v1473, 5
      %v1597 = vrot.slane %v1596, 4
      %v1598 = vrot.slane %v1474, 5
      %v1599 = vsel %vm1553, %v1597, %v1598
      %v1600 = vrot.slane %v1598, 4
      %v1601 = vrot.slane %v1475, 5
      %v1602 = vsel %vm1553, %v1600, %v1601
      %v1603 = vrot.slane %v1476, 5
      %v1604 = vrot.slane %v1603, 4
      %v1605 = vrot.slane %v1477, 5
      %v1606 = vsel %vm1553, %v1604, %v1605
      %v1607 = vrot.slane %v1605, 4
      %v1608 = vrot.slane %v1478, 5
      %v1609 = vsel %vm1553, %v1607, %v1608
      %v1610 = vrot.slane %v1479, 5
      %v1611 = vrot.slane %v1610, 4
      %v1612 = vrot.slane %v1480, 5
      %v1613 = vsel %vm1553, %v1611, %v1612
      %v1614 = vrot.slane %v1612, 4
      %v1615 = vrot.slane %v1481, 5
      %v1616 = vsel %vm1553, %v1614, %v1615
      %v1617 = vrot.slane %v1482, 5
      %v1618 = vrot.slane %v1617, 4
      %v1619 = vrot.slane %v1483, 5
      %v1620 = vsel %vm1553, %v1618, %v1619
      %v1621 = vrot.slane %v1619, 4
      %v1622 = vrot.slane %v1484, 5
      %v1623 = vsel %vm1553, %v1621, %v1622
      %v1624 = vrot.slane %v1485, 5
      %v1625 = vrot.slane %v1624, 4
      %v1626 = vrot.slane %v1486, 5
      %v1627 = vsel %vm1553, %v1625, %v1626
      %v1628 = vrot.slane %v1626, 4
      %v1629 = vrot.slane %v1487, 5
      %v1630 = vsel %vm1553, %v1628, %v1629
      %v1631 = vrot.slane %v1488, 5
      %v1632 = vrot.slane %v1631, 4
      %v1633 = vrot.slane %v1489, 5
      %v1634 = vsel %vm1553, %v1632, %v1633
      %v1635 = vrot.slane %v1633, 4
      %v1636 = vrot.slane %v1490, 5
      %v1637 = vsel %vm1553, %v1635, %v1636
      %v1638 = vrot.slane %v1491, 5
      %v1639 = vrot.slane %v1638, 4
      %v1640 = vrot.slane %v1492, 5
      %v1641 = vsel %vm1553, %v1639, %v1640
      %v1642 = vrot.slane %v1640, 4
      %v1643 = vrot.slane %v1493, 5
      %v1644 = vsel %vm1553, %v1642, %v1643
      %v1645 = vrot.slane %v1494, 5
      %v1646 = vrot.slane %v1645, 4
      %v1647 = vrot.slane %v1495, 5
      %v1648 = vsel %vm1553, %v1646, %v1647
      %v1649 = vrot.slane %v1647, 4
      %v1650 = vrot.slane %v1496, 5
      %v1651 = vsel %vm1553, %v1649, %v1650
      %v1652 = vrot.slane %v1497, 5
      %v1653 = vrot.slane %v1652, 4
      %v1654 = vrot.slane %v1498, 5
      %v1655 = vsel %vm1553, %v1653, %v1654
      %v1656 = vrot.slane %v1654, 4
      %v1657 = vrot.slane %v1499, 5
      %v1658 = vsel %vm1553, %v1656, %v1657
      %v1659 = vrot.slane %v1500, 5
      %v1660 = vrot.slane %v1659, 4
      %v1661 = vrot.slane %v1501, 5
      %v1662 = vsel %vm1553, %v1660, %v1661
      %v1663 = vrot.slane %v1661, 4
      %v1664 = vrot.slane %v1502, 5
      %v1665 = vsel %vm1553, %v1663, %v1664
      %1666 = vrot.lane.b32.xlu0 %v1557, 16
      %v1667 = vpop.permute.xlu0 %1666
      %1668 = vrot.lane.b32.xlu0 %v1560, 16
      %v1669 = vpop.permute.xlu0 %1668
      %1670 = vrot.lane.b32.xlu0 %v1564, 16
      %v1671 = vpop.permute.xlu0 %1670
      %1672 = vrot.lane.b32.xlu0 %v1567, 16
      %v1673 = vpop.permute.xlu0 %1672
      %1674 = vrot.lane.b32.xlu0 %v1571, 16
      %v1675 = vpop.permute.xlu0 %1674
      %1676 = vrot.lane.b32.xlu0 %v1574, 16
      %v1677 = vpop.permute.xlu0 %1676
      %1678 = vrot.lane.b32.xlu0 %v1578, 16
      %v1679 = vpop.permute.xlu0 %1678
      %1680 = vrot.lane.b32.xlu0 %v1581, 16
      %v1681 = vpop.permute.xlu0 %1680
      %1682 = vrot.lane.b32.xlu0 %v1585, 16
      %v1683 = vpop.permute.xlu0 %1682
      %1684 = vrot.lane.b32.xlu0 %v1588, 16
      %v1685 = vpop.permute.xlu0 %1684
      %1686 = vrot.lane.b32.xlu0 %v1592, 16
      %v1687 = vpop.permute.xlu0 %1686
      %1688 = vrot.lane.b32.xlu0 %v1595, 16
      %v1689 = vpop.permute.xlu0 %1688
      %1690 = vrot.lane.b32.xlu0 %v1599, 16
      %v1691 = vpop.permute.xlu0 %1690
      %1692 = vrot.lane.b32.xlu0 %v1602, 16
      %v1693 = vpop.permute.xlu0 %1692
      %1694 = vrot.lane.b32.xlu0 %v1606, 16
      %v1695 = vpop.permute.xlu0 %1694
      %1696 = vrot.lane.b32.xlu0 %v1609, 16
      %v1697 = vpop.permute.xlu0 %1696
      %1698 = vrot.lane.b32.xlu0 %v1613, 16
      %v1699 = vpop.permute.xlu0 %1698
      %1700 = vrot.lane.b32.xlu0 %v1616, 16
      %v1701 = vpop.permute.xlu0 %1700
      %1702 = vrot.lane.b32.xlu0 %v1620, 16
      %v1703 = vpop.permute.xlu0 %1702
      %1704 = vrot.lane.b32.xlu0 %v1623, 16
      %v1705 = vpop.permute.xlu0 %1704
      %1706 = vrot.lane.b32.xlu0 %v1627, 16
      %v1707 = vpop.permute.xlu0 %1706
      %1708 = vrot.lane.b32.xlu0 %v1630, 16
      %v1709 = vpop.permute.xlu0 %1708
      %1710 = vrot.lane.b32.xlu0 %v1634, 16
      %v1711 = vpop.permute.xlu0 %1710
      %1712 = vrot.lane.b32.xlu0 %v1637, 16
      %v1713 = vpop.permute.xlu0 %1712
      %1714 = vrot.lane.b32.xlu0 %v1641, 16
      %v1715 = vpop.permute.xlu0 %1714
      %1716 = vrot.lane.b32.xlu0 %v1644, 16
      %v1717 = vpop.permute.xlu0 %1716
      %1718 = vrot.lane.b32.xlu0 %v1648, 16
      %v1719 = vpop.permute.xlu0 %1718
      %1720 = vrot.lane.b32.xlu0 %v1651, 16
      %v1721 = vpop.permute.xlu0 %1720
      %1722 = vrot.lane.b32.xlu0 %v1655, 16
      %v1723 = vpop.permute.xlu0 %1722
      %1724 = vrot.lane.b32.xlu0 %v1658, 16
      %v1725 = vpop.permute.xlu0 %1724
      %1726 = vrot.lane.b32.xlu0 %v1662, 16
      %v1727 = vpop.permute.xlu0 %1726
      %1728 = vrot.lane.b32.xlu0 %v1665, 16
      %v1729 = vpop.permute.xlu0 %1728
      %vm1762 = vcmask 191616
      %1763 = vst.msk [vmem:[#allocation3] sm:$0xf] %vm1762, %v1667
      %1764 = vst.msk [vmem:[#allocation3 + $0x4] sm:$0xf] %vm1762, %v1669
      %1765 = vst.msk [vmem:[#allocation3 + $0x8] sm:$0xf] %vm1762, %v1671
      %1766 = vst.msk [vmem:[#allocation3 + $0xc] sm:$0xf] %vm1762, %v1673
      %1767 = vst.msk [vmem:[#allocation3 + $0x10] sm:$0xf] %vm1762, %v1675
      %1768 = vst.msk [vmem:[#allocation3 + $0x14] sm:$0xf] %vm1762, %v1677
      %1769 = vst.msk [vmem:[#allocation3 + $0x18] sm:$0xf] %vm1762, %v1679
      %1770 = vst.msk [vmem:[#allocation3 + $0x1c] sm:$0xf] %vm1762, %v1681
      %1771 = vst.msk [vmem:[#allocation3 + $0x20] sm:$0xf] %vm1762, %v1683
      %1772 = vst.msk [vmem:[#allocation3 + $0x24] sm:$0xf] %vm1762, %v1685
      %1773 = vst.msk [vmem:[#allocation3 + $0x28] sm:$0xf] %vm1762, %v1687
      %1774 = vst.msk [vmem:[#allocation3 + $0x2c] sm:$0xf] %vm1762, %v1689
      %1775 = vst.msk [vmem:[#allocation3 + $0x30] sm:$0xf] %vm1762, %v1691
      %1776 = vst.msk [vmem:[#allocation3 + $0x34] sm:$0xf] %vm1762, %v1693
      %1777 = vst.msk [vmem:[#allocation3 + $0x38] sm:$0xf] %vm1762, %v1695
      %1778 = vst.msk [vmem:[#allocation3 + $0x3c] sm:$0xf] %vm1762, %v1697
      %1779 = vst.msk [vmem:[#allocation3 + $0x40] sm:$0xf] %vm1762, %v1699
      %1780 = vst.msk [vmem:[#allocation3 + $0x44] sm:$0xf] %vm1762, %v1701
      %1781 = vst.msk [vmem:[#allocation3 + $0x48] sm:$0xf] %vm1762, %v1703
      %1782 = vst.msk [vmem:[#allocation3 + $0x4c] sm:$0xf] %vm1762, %v1705
      %1783 = vst.msk [vmem:[#allocation3 + $0x50] sm:$0xf] %vm1762, %v1707
      %1784 = vst.msk [vmem:[#allocation3 + $0x54] sm:$0xf] %vm1762, %v1709
      %1785 = vst.msk [vmem:[#allocation3 + $0x58] sm:$0xf] %vm1762, %v1711
      %1786 = vst.msk [vmem:[#allocation3 + $0x5c] sm:$0xf] %vm1762, %v1713
      %1787 = vst.msk [vmem:[#allocation3 + $0x60] sm:$0xf] %vm1762, %v1715
      %1788 = vst.msk [vmem:[#allocation3 + $0x64] sm:$0xf] %vm1762, %v1717
      %1789 = vst.msk [vmem:[#allocation3 + $0x68] sm:$0xf] %vm1762, %v1719
      %1790 = vst.msk [vmem:[#allocation3 + $0x6c] sm:$0xf] %vm1762, %v1721
      %1791 = vst.msk [vmem:[#allocation3 + $0x70] sm:$0xf] %vm1762, %v1723
      %1792 = vst.msk [vmem:[#allocation3 + $0x74] sm:$0xf] %vm1762, %v1725
      %1793 = vst.msk [vmem:[#allocation3 + $0x78] sm:$0xf] %vm1762, %v1727
      %1794 = vst.msk [vmem:[#allocation3 + $0x7c] sm:$0xf] %vm1762, %v1729
      %v1795 = vld [vmem:[%s224] sm:$0xf]
      %v1796 = vld [vmem:[%s224 + $0x4] sm:$0xf]
      %v1797 = vld [vmem:[%s224 + $0xc] sm:$0xf]
      %v1798 = vld [vmem:[%s224 + $0x10] sm:$0xf]
      %v1799 = vld [vmem:[%s224 + $0x18] sm:$0xf]
      %v1800 = vld [vmem:[%s224 + $0x1c] sm:$0xf]
      %v1801 = vld [vmem:[%s224 + $0x24] sm:$0xf]
      %v1802 = vld [vmem:[%s224 + $0x28] sm:$0xf]
      %v1803 = vld [vmem:[%s224 + $0x30] sm:$0xf]
      %v1804 = vld [vmem:[%s224 + $0x34] sm:$0xf]
      %v1805 = vld [vmem:[%s224 + $0x3c] sm:$0xf]
      %v1806 = vld [vmem:[%s224 + $0x40] sm:$0xf]
      %v1807 = vld [vmem:[%s224 + $0x48] sm:$0xf]
      %v1808 = vld [vmem:[%s224 + $0x4c] sm:$0xf]
      %v1809 = vld [vmem:[%s224 + $0x54] sm:$0xf]
      %v1810 = vld [vmem:[%s224 + $0x58] sm:$0xf]
      %v1811 = vld [vmem:[%s224 + $0x60] sm:$0xf]
      %v1812 = vld [vmem:[%s224 + $0x64] sm:$0xf]
      %v1813 = vld [vmem:[%s224 + $0x6c] sm:$0xf]
      %v1814 = vld [vmem:[%s224 + $0x70] sm:$0xf]
      %v1815 = vld [vmem:[%s224 + $0x78] sm:$0xf]
      %v1816 = vld [vmem:[%s224 + $0x7c] sm:$0xf]
      %v1817 = vld [vmem:[%s224 + $0x84] sm:$0xf]
      %v1818 = vld [vmem:[%s224 + $0x88] sm:$0xf]
      %v1819 = vld [vmem:[%s224 + $0x90] sm:$0xf]
      %v1820 = vld [vmem:[%s224 + $0x94] sm:$0xf]
      %v1821 = vld [vmem:[%s224 + $0x9c] sm:$0xf]
      %v1822 = vld [vmem:[%s224 + $0xa0] sm:$0xf]
      %v1823 = vld [vmem:[%s224 + $0xa8] sm:$0xf]
      %v1824 = vld [vmem:[%s224 + $0xac] sm:$0xf]
      %v1825 = vld [vmem:[%s224 + $0xb4] sm:$0xf]
      %v1826 = vld [vmem:[%s224 + $0xb8] sm:$0xf]
      %1859 = vrot.lane.b32.xlu0 %v1795, 24
      %v1860 = vpop.permute.xlu0 %1859
      %1861 = vrot.lane.b32.xlu0 %v1796, 24
      %v1862 = vpop.permute.xlu0 %1861
      %1863 = vrot.lane.b32.xlu0 %v1797, 24
      %v1864 = vpop.permute.xlu0 %1863
      %1865 = vrot.lane.b32.xlu0 %v1798, 24
      %v1866 = vpop.permute.xlu0 %1865
      %1867 = vrot.lane.b32.xlu0 %v1799, 24
      %v1868 = vpop.permute.xlu0 %1867
      %1869 = vrot.lane.b32.xlu0 %v1800, 24
      %v1870 = vpop.permute.xlu0 %1869
      %1871 = vrot.lane.b32.xlu0 %v1801, 24
      %v1872 = vpop.permute.xlu0 %1871
      %1873 = vrot.lane.b32.xlu0 %v1802, 24
      %v1874 = vpop.permute.xlu0 %1873
      %1875 = vrot.lane.b32.xlu0 %v1803, 24
      %v1876 = vpop.permute.xlu0 %1875
      %1877 = vrot.lane.b32.xlu0 %v1804, 24
      %v1878 = vpop.permute.xlu0 %1877
      %1879 = vrot.lane.b32.xlu0 %v1805, 24
      %v1880 = vpop.permute.xlu0 %1879
      %1881 = vrot.lane.b32.xlu0 %v1806, 24
      %v1882 = vpop.permute.xlu0 %1881
      %1883 = vrot.lane.b32.xlu0 %v1807, 24
      %v1884 = vpop.permute.xlu0 %1883
      %1885 = vrot.lane.b32.xlu0 %v1808, 24
      %v1886 = vpop.permute.xlu0 %1885
      %1887 = vrot.lane.b32.xlu0 %v1809, 24
      %v1888 = vpop.permute.xlu0 %1887
      %1889 = vrot.lane.b32.xlu0 %v1810, 24
      %v1890 = vpop.permute.xlu0 %1889
      %1891 = vrot.lane.b32.xlu0 %v1811, 24
      %v1892 = vpop.permute.xlu0 %1891
      %1893 = vrot.lane.b32.xlu0 %v1812, 24
      %v1894 = vpop.permute.xlu0 %1893
      %1895 = vrot.lane.b32.xlu0 %v1813, 24
      %v1896 = vpop.permute.xlu0 %1895
      %1897 = vrot.lane.b32.xlu0 %v1814, 24
      %v1898 = vpop.permute.xlu0 %1897
      %1899 = vrot.lane.b32.xlu0 %v1815, 24
      %v1900 = vpop.permute.xlu0 %1899
      %1901 = vrot.lane.b32.xlu0 %v1816, 24
      %v1902 = vpop.permute.xlu0 %1901
      %1903 = vrot.lane.b32.xlu0 %v1817, 24
      %v1904 = vpop.permute.xlu0 %1903
      %1905 = vrot.lane.b32.xlu0 %v1818, 24
      %v1906 = vpop.permute.xlu0 %1905
      %1907 = vrot.lane.b32.xlu0 %v1819, 24
      %v1908 = vpop.permute.xlu0 %1907
      %1909 = vrot.lane.b32.xlu0 %v1820, 24
      %v1910 = vpop.permute.xlu0 %1909
      %1911 = vrot.lane.b32.xlu0 %v1821, 24
      %v1912 = vpop.permute.xlu0 %1911
      %1913 = vrot.lane.b32.xlu0 %v1822, 24
      %v1914 = vpop.permute.xlu0 %1913
      %1915 = vrot.lane.b32.xlu0 %v1823, 24
      %v1916 = vpop.permute.xlu0 %1915
      %1917 = vrot.lane.b32.xlu0 %v1824, 24
      %v1918 = vpop.permute.xlu0 %1917
      %1919 = vrot.lane.b32.xlu0 %v1825, 24
      %v1920 = vpop.permute.xlu0 %1919
      %1921 = vrot.lane.b32.xlu0 %v1826, 24
      %v1922 = vpop.permute.xlu0 %1921
      %vm1955 = vcmask 257216
      %1956 = vst.msk [vmem:[#allocation3] sm:$0xf] %vm1955, %v1860
      %1957 = vst.msk [vmem:[#allocation3 + $0x4] sm:$0xf] %vm1955, %v1862
      %1958 = vst.msk [vmem:[#allocation3 + $0x8] sm:$0xf] %vm1955, %v1864
      %1959 = vst.msk [vmem:[#allocation3 + $0xc] sm:$0xf] %vm1955, %v1866
      %1960 = vst.msk [vmem:[#allocation3 + $0x10] sm:$0xf] %vm1955, %v1868
      %1961 = vst.msk [vmem:[#allocation3 + $0x14] sm:$0xf] %vm1955, %v1870
      %1962 = vst.msk [vmem:[#allocation3 + $0x18] sm:$0xf] %vm1955, %v1872
      %1963 = vst.msk [vmem:[#allocation3 + $0x1c] sm:$0xf] %vm1955, %v1874
      %1964 = vst.msk [vmem:[#allocation3 + $0x20] sm:$0xf] %vm1955, %v1876
      %1965 = vst.msk [vmem:[#allocation3 + $0x24] sm:$0xf] %vm1955, %v1878
      %1966 = vst.msk [vmem:[#allocation3 + $0x28] sm:$0xf] %vm1955, %v1880
      %1967 = vst.msk [vmem:[#allocation3 + $0x2c] sm:$0xf] %vm1955, %v1882
      %1968 = vst.msk [vmem:[#allocation3 + $0x30] sm:$0xf] %vm1955, %v1884
      %1969 = vst.msk [vmem:[#allocation3 + $0x34] sm:$0xf] %vm1955, %v1886
      %1970 = vst.msk [vmem:[#allocation3 + $0x38] sm:$0xf] %vm1955, %v1888
      %1971 = vst.msk [vmem:[#allocation3 + $0x3c] sm:$0xf] %vm1955, %v1890
      %1972 = vst.msk [vmem:[#allocation3 + $0x40] sm:$0xf] %vm1955, %v1892
      %1973 = vst.msk [vmem:[#allocation3 + $0x44] sm:$0xf] %vm1955, %v1894
      %1974 = vst.msk [vmem:[#allocation3 + $0x48] sm:$0xf] %vm1955, %v1896
      %1975 = vst.msk [vmem:[#allocation3 + $0x4c] sm:$0xf] %vm1955, %v1898
      %1976 = vst.msk [vmem:[#allocation3 + $0x50] sm:$0xf] %vm1955, %v1900
      %1977 = vst.msk [vmem:[#allocation3 + $0x54] sm:$0xf] %vm1955, %v1902
      %1978 = vst.msk [vmem:[#allocation3 + $0x58] sm:$0xf] %vm1955, %v1904
      %1979 = vst.msk [vmem:[#allocation3 + $0x5c] sm:$0xf] %vm1955, %v1906
      %1980 = vst.msk [vmem:[#allocation3 + $0x60] sm:$0xf] %vm1955, %v1908
      %1981 = vst.msk [vmem:[#allocation3 + $0x64] sm:$0xf] %vm1955, %v1910
      %1982 = vst.msk [vmem:[#allocation3 + $0x68] sm:$0xf] %vm1955, %v1912
      %1983 = vst.msk [vmem:[#allocation3 + $0x6c] sm:$0xf] %vm1955, %v1914
      %1984 = vst.msk [vmem:[#allocation3 + $0x70] sm:$0xf] %vm1955, %v1916
      %1985 = vst.msk [vmem:[#allocation3 + $0x74] sm:$0xf] %vm1955, %v1918
      %1986 = vst.msk [vmem:[#allocation3 + $0x78] sm:$0xf] %vm1955, %v1920
      %1987 = vst.msk [vmem:[#allocation3 + $0x7c] sm:$0xf] %vm1955, %v1922
      %v1988 = vld [vmem:[%s224] sm:$0xf]
      %v1989 = vld [vmem:[%s224 + $0x4] sm:$0xf]
      %v1990 = vld [vmem:[%s224 + $0x8] sm:$0x1]
      %v1991 = vld [vmem:[%s224 + $0xc] sm:$0xf]
      %v1992 = vld [vmem:[%s224 + $0x10] sm:$0xf]
      %v1993 = vld [vmem:[%s224 + $0x14] sm:$0x1]
      %v1994 = vld [vmem:[%s224 + $0x18] sm:$0xf]
      %v1995 = vld [vmem:[%s224 + $0x1c] sm:$0xf]
      %v1996 = vld [vmem:[%s224 + $0x20] sm:$0x1]
      %v1997 = vld [vmem:[%s224 + $0x24] sm:$0xf]
      %v1998 = vld [vmem:[%s224 + $0x28] sm:$0xf]
      %v1999 = vld [vmem:[%s224 + $0x2c] sm:$0x1]
      %v2000 = vld [vmem:[%s224 + $0x30] sm:$0xf]
      %v2001 = vld [vmem:[%s224 + $0x34] sm:$0xf]
      %v2002 = vld [vmem:[%s224 + $0x38] sm:$0x1]
      %v2003 = vld [vmem:[%s224 + $0x3c] sm:$0xf]
      %v2004 = vld [vmem:[%s224 + $0x40] sm:$0xf]
      %v2005 = vld [vmem:[%s224 + $0x44] sm:$0x1]
      %v2006 = vld [vmem:[%s224 + $0x48] sm:$0xf]
      %v2007 = vld [vmem:[%s224 + $0x4c] sm:$0xf]
      %v2008 = vld [vmem:[%s224 + $0x50] sm:$0x1]
      %v2009 = vld [vmem:[%s224 + $0x54] sm:$0xf]
      %v2010 = vld [vmem:[%s224 + $0x58] sm:$0xf]
      %v2011 = vld [vmem:[%s224 + $0x5c] sm:$0x1]
      %v2012 = vld [vmem:[%s224 + $0x60] sm:$0xf]
      %v2013 = vld [vmem:[%s224 + $0x64] sm:$0xf]
      %v2014 = vld [vmem:[%s224 + $0x68] sm:$0x1]
      %v2015 = vld [vmem:[%s224 + $0x6c] sm:$0xf]
      %v2016 = vld [vmem:[%s224 + $0x70] sm:$0xf]
      %v2017 = vld [vmem:[%s224 + $0x74] sm:$0x1]
      %v2018 = vld [vmem:[%s224 + $0x78] sm:$0xf]
      %v2019 = vld [vmem:[%s224 + $0x7c] sm:$0xf]
      %v2020 = vld [vmem:[%s224 + $0x80] sm:$0x1]
      %v2021 = vld [vmem:[%s224 + $0x84] sm:$0xf]
      %v2022 = vld [vmem:[%s224 + $0x88] sm:$0xf]
      %v2023 = vld [vmem:[%s224 + $0x8c] sm:$0x1]
      %v2024 = vld [vmem:[%s224 + $0x90] sm:$0xf]
      %v2025 = vld [vmem:[%s224 + $0x94] sm:$0xf]
      %v2026 = vld [vmem:[%s224 + $0x98] sm:$0x1]
      %v2027 = vld [vmem:[%s224 + $0x9c] sm:$0xf]
      %v2028 = vld [vmem:[%s224 + $0xa0] sm:$0xf]
      %v2029 = vld [vmem:[%s224 + $0xa4] sm:$0x1]
      %v2030 = vld [vmem:[%s224 + $0xa8] sm:$0xf]
      %v2031 = vld [vmem:[%s224 + $0xac] sm:$0xf]
      %v2032 = vld [vmem:[%s224 + $0xb0] sm:$0x1]
      %v2033 = vld [vmem:[%s224 + $0xb4] sm:$0xf]
      %v2034 = vld [vmem:[%s224 + $0xb8] sm:$0xf]
      %v2035 = vld [vmem:[%s224 + $0xbc] sm:$0x1]
      %v2037 = vshrl.u32 %v1988, 16
      %v2039 = vrot.slane %v2037, 4
      %v2040 = vshll.u32 %v1988, 16
      %v2042 = vrot.slane %v2040, 5
      %v2043 = vor.u32 %v2039, %v2042
      %v2044 = vrot.slane %v2043, 4
      %v2046 = vshll.u32 %v1989, 16
      %v2048 = vrot.slane %v2046, 5
      %v2049 = vsel %vm941, %v2044, %v2048
      %v2050 = vshrl.u32 %v1989, 16
      %v2052 = vrot.slane %v2050, 4
      %v2053 = vor.u32 %v2052, %v2048
      %v2054 = vrot.slane %v2053, 4
      %v2056 = vshll.u32 %v1990, 16
      %v2058 = vrot.slane %v2056, 5
      %v2059 = vsel %vm941, %v2054, %v2058
      %v2061 = vshrl.u32 %v1991, 16
      %v2063 = vrot.slane %v2061, 4
      %v2064 = vshll.u32 %v1991, 16
      %v2066 = vrot.slane %v2064, 5
      %v2067 = vor.u32 %v2063, %v2066
      %v2068 = vrot.slane %v2067, 4
      %v2070 = vshll.u32 %v1992, 16
      %v2072 = vrot.slane %v2070, 5
      %v2073 = vsel %vm941, %v2068, %v2072
      %v2074 = vshrl.u32 %v1992, 16
      %v2076 = vrot.slane %v2074, 4
      %v2077 = vor.u32 %v2076, %v2072
      %v2078 = vrot.slane %v2077, 4
      %v2080 = vshll.u32 %v1993, 16
      %v2082 = vrot.slane %v2080, 5
      %v2083 = vsel %vm941, %v2078, %v2082
      %v2085 = vshrl.u32 %v1994, 16
      %v2087 = vrot.slane %v2085, 4
      %v2088 = vshll.u32 %v1994, 16
      %v2090 = vrot.slane %v2088, 5
      %v2091 = vor.u32 %v2087, %v2090
      %v2092 = vrot.slane %v2091, 4
      %v2094 = vshll.u32 %v1995, 16
      %v2096 = vrot.slane %v2094, 5
      %v2097 = vsel %vm941, %v2092, %v2096
      %v2098 = vshrl.u32 %v1995, 16
      %v2100 = vrot.slane %v2098, 4
      %v2101 = vor.u32 %v2100, %v2096
      %v2102 = vrot.slane %v2101, 4
      %v2104 = vshll.u32 %v1996, 16
      %v2106 = vrot.slane %v2104, 5
      %v2107 = vsel %vm941, %v2102, %v2106
      %v2109 = vshrl.u32 %v1997, 16
      %v2111 = vrot.slane %v2109, 4
      %v2112 = vshll.u32 %v1997, 16
      %v2114 = vrot.slane %v2112, 5
      %v2115 = vor.u32 %v2111, %v2114
      %v2116 = vrot.slane %v2115, 4
      %v2118 = vshll.u32 %v1998, 16
      %v2120 = vrot.slane %v2118, 5
      %v2121 = vsel %vm941, %v2116, %v2120
      %v2122 = vshrl.u32 %v1998, 16
      %v2124 = vrot.slane %v2122, 4
      %v2125 = vor.u32 %v2124, %v2120
      %v2126 = vrot.slane %v2125, 4
      %v2128 = vshll.u32 %v1999, 16
      %v2130 = vrot.slane %v2128, 5
      %v2131 = vsel %vm941, %v2126, %v2130
      %v2133 = vshrl.u32 %v2000, 16
      %v2135 = vrot.slane %v2133, 4
      %v2136 = vshll.u32 %v2000, 16
      %v2138 = vrot.slane %v2136, 5
      %v2139 = vor.u32 %v2135, %v2138
      %v2140 = vrot.slane %v2139, 4
      %v2142 = vshll.u32 %v2001, 16
      %v2144 = vrot.slane %v2142, 5
      %v2145 = vsel %vm941, %v2140, %v2144
      %v2146 = vshrl.u32 %v2001, 16
      %v2148 = vrot.slane %v2146, 4
      %v2149 = vor.u32 %v2148, %v2144
      %v2150 = vrot.slane %v2149, 4
      %v2152 = vshll.u32 %v2002, 16
      %v2154 = vrot.slane %v2152, 5
      %v2155 = vsel %vm941, %v2150, %v2154
      %v2157 = vshrl.u32 %v2003, 16
      %v2159 = vrot.slane %v2157, 4
      %v2160 = vshll.u32 %v2003, 16
      %v2162 = vrot.slane %v2160, 5
      %v2163 = vor.u32 %v2159, %v2162
      %v2164 = vrot.slane %v2163, 4
      %v2166 = vshll.u32 %v2004, 16
      %v2168 = vrot.slane %v2166, 5
      %v2169 = vsel %vm941, %v2164, %v2168
      %v2170 = vshrl.u32 %v2004, 16
      %v2172 = vrot.slane %v2170, 4
      %v2173 = vor.u32 %v2172, %v2168
      %v2174 = vrot.slane %v2173, 4
      %v2176 = vshll.u32 %v2005, 16
      %v2178 = vrot.slane %v2176, 5
      %v2179 = vsel %vm941, %v2174, %v2178
      %v2181 = vshrl.u32 %v2006, 16
      %v2183 = vrot.slane %v2181, 4
      %v2184 = vshll.u32 %v2006, 16
      %v2186 = vrot.slane %v2184, 5
      %v2187 = vor.u32 %v2183, %v2186
      %v2188 = vrot.slane %v2187, 4
      %v2190 = vshll.u32 %v2007, 16
      %v2192 = vrot.slane %v2190, 5
      %v2193 = vsel %vm941, %v2188, %v2192
      %v2194 = vshrl.u32 %v2007, 16
      %v2196 = vrot.slane %v2194, 4
      %v2197 = vor.u32 %v2196, %v2192
      %v2198 = vrot.slane %v2197, 4
      %v2200 = vshll.u32 %v2008, 16
      %v2202 = vrot.slane %v2200, 5
      %v2203 = vsel %vm941, %v2198, %v2202
      %v2205 = vshrl.u32 %v2009, 16
      %v2207 = vrot.slane %v2205, 4
      %v2208 = vshll.u32 %v2009, 16
      %v2210 = vrot.slane %v2208, 5
      %v2211 = vor.u32 %v2207, %v2210
      %v2212 = vrot.slane %v2211, 4
      %v2214 = vshll.u32 %v2010, 16
      %v2216 = vrot.slane %v2214, 5
      %v2217 = vsel %vm941, %v2212, %v2216
      %v2218 = vshrl.u32 %v2010, 16
      %v2220 = vrot.slane %v2218, 4
      %v2221 = vor.u32 %v2220, %v2216
      %v2222 = vrot.slane %v2221, 4
      %v2224 = vshll.u32 %v2011, 16
      %v2226 = vrot.slane %v2224, 5
      %v2227 = vsel %vm941, %v2222, %v2226
      %v2229 = vshrl.u32 %v2012, 16
      %v2231 = vrot.slane %v2229, 4
      %v2232 = vshll.u32 %v2012, 16
      %v2234 = vrot.slane %v2232, 5
      %v2235 = vor.u32 %v2231, %v2234
      %v2236 = vrot.slane %v2235, 4
      %v2238 = vshll.u32 %v2013, 16
      %v2240 = vrot.slane %v2238, 5
      %v2241 = vsel %vm941, %v2236, %v2240
      %v2242 = vshrl.u32 %v2013, 16
      %v2244 = vrot.slane %v2242, 4
      %v2245 = vor.u32 %v2244, %v2240
      %v2246 = vrot.slane %v2245, 4
      %v2248 = vshll.u32 %v2014, 16
      %v2250 = vrot.slane %v2248, 5
      %v2251 = vsel %vm941, %v2246, %v2250
      %v2253 = vshrl.u32 %v2015, 16
      %v2255 = vrot.slane %v2253, 4
      %v2256 = vshll.u32 %v2015, 16
      %v2258 = vrot.slane %v2256, 5
      %v2259 = vor.u32 %v2255, %v2258
      %v2260 = vrot.slane %v2259, 4
      %v2262 = vshll.u32 %v2016, 16
      %v2264 = vrot.slane %v2262, 5
      %v2265 = vsel %vm941, %v2260, %v2264
      %v2266 = vshrl.u32 %v2016, 16
      %v2268 = vrot.slane %v2266, 4
      %v2269 = vor.u32 %v2268, %v2264
      %v2270 = vrot.slane %v2269, 4
      %v2272 = vshll.u32 %v2017, 16
      %v2274 = vrot.slane %v2272, 5
      %v2275 = vsel %vm941, %v2270, %v2274
      %v2277 = vshrl.u32 %v2018, 16
      %v2279 = vrot.slane %v2277, 4
      %v2280 = vshll.u32 %v2018, 16
      %v2282 = vrot.slane %v2280, 5
      %v2283 = vor.u32 %v2279, %v2282
      %v2284 = vrot.slane %v2283, 4
      %v2286 = vshll.u32 %v2019, 16
      %v2288 = vrot.slane %v2286, 5
      %v2289 = vsel %vm941, %v2284, %v2288
      %v2290 = vshrl.u32 %v2019, 16
      %v2292 = vrot.slane %v2290, 4
      %v2293 = vor.u32 %v2292, %v2288
      %v2294 = vrot.slane %v2293, 4
      %v2296 = vshll.u32 %v2020, 16
      %v2298 = vrot.slane %v2296, 5
      %v2299 = vsel %vm941, %v2294, %v2298
      %v2301 = vshrl.u32 %v2021, 16
      %v2303 = vrot.slane %v2301, 4
      %v2304 = vshll.u32 %v2021, 16
      %v2306 = vrot.slane %v2304, 5
      %v2307 = vor.u32 %v2303, %v2306
      %v2308 = vrot.slane %v2307, 4
      %v2310 = vshll.u32 %v2022, 16
      %v2312 = vrot.slane %v2310, 5
      %v2313 = vsel %vm941, %v2308, %v2312
      %v2314 = vshrl.u32 %v2022, 16
      %v2316 = vrot.slane %v2314, 4
      %v2317 = vor.u32 %v2316, %v2312
      %v2318 = vrot.slane %v2317, 4
      %v2320 = vshll.u32 %v2023, 16
      %v2322 = vrot.slane %v2320, 5
      %v2323 = vsel %vm941, %v2318, %v2322
      %v2325 = vshrl.u32 %v2024, 16
      %v2327 = vrot.slane %v2325, 4
      %v2328 = vshll.u32 %v2024, 16
      %v2330 = vrot.slane %v2328, 5
      %v2331 = vor.u32 %v2327, %v2330
      %v2332 = vrot.slane %v2331, 4
      %v2334 = vshll.u32 %v2025, 16
      %v2336 = vrot.slane %v2334, 5
      %v2337 = vsel %vm941, %v2332, %v2336
      %v2338 = vshrl.u32 %v2025, 16
      %v2340 = vrot.slane %v2338, 4
      %v2341 = vor.u32 %v2340, %v2336
      %v2342 = vrot.slane %v2341, 4
      %v2344 = vshll.u32 %v2026, 16
      %v2346 = vrot.slane %v2344, 5
      %v2347 = vsel %vm941, %v2342, %v2346
      %v2349 = vshrl.u32 %v2027, 16
      %v2351 = vrot.slane %v2349, 4
      %v2352 = vshll.u32 %v2027, 16
      %v2354 = vrot.slane %v2352, 5
      %v2355 = vor.u32 %v2351, %v2354
      %v2356 = vrot.slane %v2355, 4
      %v2358 = vshll.u32 %v2028, 16
      %v2360 = vrot.slane %v2358, 5
      %v2361 = vsel %vm941, %v2356, %v2360
      %v2362 = vshrl.u32 %v2028, 16
      %v2364 = vrot.slane %v2362, 4
      %v2365 = vor.u32 %v2364, %v2360
      %v2366 = vrot.slane %v2365, 4
      %v2368 = vshll.u32 %v2029, 16
      %v2370 = vrot.slane %v2368, 5
      %v2371 = vsel %vm941, %v2366, %v2370
      %v2373 = vshrl.u32 %v2030, 16
      %v2375 = vrot.slane %v2373, 4
      %v2376 = vshll.u32 %v2030, 16
      %v2378 = vrot.slane %v2376, 5
      %v2379 = vor.u32 %v2375, %v2378
      %v2380 = vrot.slane %v2379, 4
      %v2382 = vshll.u32 %v2031, 16
      %v2384 = vrot.slane %v2382, 5
      %v2385 = vsel %vm941, %v2380, %v2384
      %v2386 = vshrl.u32 %v2031, 16
      %v2388 = vrot.slane %v2386, 4
      %v2389 = vor.u32 %v2388, %v2384
      %v2390 = vrot.slane %v2389, 4
      %v2392 = vshll.u32 %v2032, 16
      %v2394 = vrot.slane %v2392, 5
      %v2395 = vsel %vm941, %v2390, %v2394
      %v2397 = vshrl.u32 %v2033, 16
      %v2399 = vrot.slane %v2397, 4
      %v2400 = vshll.u32 %v2033, 16
      %v2402 = vrot.slane %v2400, 5
      %v2403 = vor.u32 %v2399, %v2402
      %v2404 = vrot.slane %v2403, 4
      %v2406 = vshll.u32 %v2034, 16
      %v2408 = vrot.slane %v2406, 5
      %v2409 = vsel %vm941, %v2404, %v2408
      %v2410 = vshrl.u32 %v2034, 16
      %v2412 = vrot.slane %v2410, 4
      %v2413 = vor.u32 %v2412, %v2408
      %v2414 = vrot.slane %v2413, 4
      %v2416 = vshll.u32 %v2035, 16
      %v2418 = vrot.slane %v2416, 5
      %v2419 = vsel %vm941, %v2414, %v2418
      %2420 = vrot.lane.b32.xlu0 %v2049, 32
      %v2421 = vpop.permute.xlu0 %2420
      %2422 = vrot.lane.b32.xlu0 %v2059, 32
      %v2423 = vpop.permute.xlu0 %2422
      %2424 = vrot.lane.b32.xlu0 %v2073, 32
      %v2425 = vpop.permute.xlu0 %2424
      %2426 = vrot.lane.b32.xlu0 %v2083, 32
      %v2427 = vpop.permute.xlu0 %2426
      %2428 = vrot.lane.b32.xlu0 %v2097, 32
      %v2429 = vpop.permute.xlu0 %2428
      %2430 = vrot.lane.b32.xlu0 %v2107, 32
      %v2431 = vpop.permute.xlu0 %2430
      %2432 = vrot.lane.b32.xlu0 %v2121, 32
      %v2433 = vpop.permute.xlu0 %2432
      %2434 = vrot.lane.b32.xlu0 %v2131, 32
      %v2435 = vpop.permute.xlu0 %2434
      %2436 = vrot.lane.b32.xlu0 %v2145, 32
      %v2437 = vpop.permute.xlu0 %2436
      %2438 = vrot.lane.b32.xlu0 %v2155, 32
      %v2439 = vpop.permute.xlu0 %2438
      %2440 = vrot.lane.b32.xlu0 %v2169, 32
      %v2441 = vpop.permute.xlu0 %2440
      %2442 = vrot.lane.b32.xlu0 %v2179, 32
      %v2443 = vpop.permute.xlu0 %2442
      %2444 = vrot.lane.b32.xlu0 %v2193, 32
      %v2445 = vpop.permute.xlu0 %2444
      %2446 = vrot.lane.b32.xlu0 %v2203, 32
      %v2447 = vpop.permute.xlu0 %2446
      %2448 = vrot.lane.b32.xlu0 %v2217, 32
      %v2449 = vpop.permute.xlu0 %2448
      %2450 = vrot.lane.b32.xlu0 %v2227, 32
      %v2451 = vpop.permute.xlu0 %2450
      %2452 = vrot.lane.b32.xlu0 %v2241, 32
      %v2453 = vpop.permute.xlu0 %2452
      %2454 = vrot.lane.b32.xlu0 %v2251, 32
      %v2455 = vpop.permute.xlu0 %2454
      %2456 = vrot.lane.b32.xlu0 %v2265, 32
      %v2457 = vpop.permute.xlu0 %2456
      %2458 = vrot.lane.b32.xlu0 %v2275, 32
      %v2459 = vpop.permute.xlu0 %2458
      %2460 = vrot.lane.b32.xlu0 %v2289, 32
      %v2461 = vpop.permute.xlu0 %2460
      %2462 = vrot.lane.b32.xlu0 %v2299, 32
      %v2463 = vpop.permute.xlu0 %2462
      %2464 = vrot.lane.b32.xlu0 %v2313, 32
      %v2465 = vpop.permute.xlu0 %2464
      %2466 = vrot.lane.b32.xlu0 %v2323, 32
      %v2467 = vpop.permute.xlu0 %2466
      %2468 = vrot.lane.b32.xlu0 %v2337, 32
      %v2469 = vpop.permute.xlu0 %2468
      %2470 = vrot.lane.b32.xlu0 %v2347, 32
      %v2471 = vpop.permute.xlu0 %2470
      %2472 = vrot.lane.b32.xlu0 %v2361, 32
      %v2473 = vpop.permute.xlu0 %2472
      %2474 = vrot.lane.b32.xlu0 %v2371, 32
      %v2475 = vpop.permute.xlu0 %2474
      %2476 = vrot.lane.b32.xlu0 %v2385, 32
      %v2477 = vpop.permute.xlu0 %2476
      %2478 = vrot.lane.b32.xlu0 %v2395, 32
      %v2479 = vpop.permute.xlu0 %2478
      %2480 = vrot.lane.b32.xlu0 %v2409, 32
      %v2481 = vpop.permute.xlu0 %2480
      %2482 = vrot.lane.b32.xlu0 %v2419, 32
      %v2483 = vpop.permute.xlu0 %2482
      %vm2516 = vcmask 322816
      %2517 = vst.msk [vmem:[#allocation3] sm:$0xf] %vm2516, %v2421
      %2518 = vst.msk [vmem:[#allocation3 + $0x4] sm:$0xf] %vm2516, %v2423
      %2519 = vst.msk [vmem:[#allocation3 + $0x8] sm:$0xf] %vm2516, %v2425
      %2520 = vst.msk [vmem:[#allocation3 + $0xc] sm:$0xf] %vm2516, %v2427
      %2521 = vst.msk [vmem:[#allocation3 + $0x10] sm:$0xf] %vm2516, %v2429
      %2522 = vst.msk [vmem:[#allocation3 + $0x14] sm:$0xf] %vm2516, %v2431
      %2523 = vst.msk [vmem:[#allocation3 + $0x18] sm:$0xf] %vm2516, %v2433
      %2524 = vst.msk [vmem:[#allocation3 + $0x1c] sm:$0xf] %vm2516, %v2435
      %2525 = vst.msk [vmem:[#allocation3 + $0x20] sm:$0xf] %vm2516, %v2437
      %2526 = vst.msk [vmem:[#allocation3 + $0x24] sm:$0xf] %vm2516, %v2439
      %2527 = vst.msk [vmem:[#allocation3 + $0x28] sm:$0xf] %vm2516, %v2441
      %2528 = vst.msk [vmem:[#allocation3 + $0x2c] sm:$0xf] %vm2516, %v2443
      %2529 = vst.msk [vmem:[#allocation3 + $0x30] sm:$0xf] %vm2516, %v2445
      %2530 = vst.msk [vmem:[#allocation3 + $0x34] sm:$0xf] %vm2516, %v2447
      %2531 = vst.msk [vmem:[#allocation3 + $0x38] sm:$0xf] %vm2516, %v2449
      %2532 = vst.msk [vmem:[#allocation3 + $0x3c] sm:$0xf] %vm2516, %v2451
      %2533 = vst.msk [vmem:[#allocation3 + $0x40] sm:$0xf] %vm2516, %v2453
      %2534 = vst.msk [vmem:[#allocation3 + $0x44] sm:$0xf] %vm2516, %v2455
      %2535 = vst.msk [vmem:[#allocation3 + $0x48] sm:$0xf] %vm2516, %v2457
      %2536 = vst.msk [vmem:[#allocation3 + $0x4c] sm:$0xf] %vm2516, %v2459
      %2537 = vst.msk [vmem:[#allocation3 + $0x50] sm:$0xf] %vm2516, %v2461
      %2538 = vst.msk [vmem:[#allocation3 + $0x54] sm:$0xf] %vm2516, %v2463
      %2539 = vst.msk [vmem:[#allocation3 + $0x58] sm:$0xf] %vm2516, %v2465
      %2540 = vst.msk [vmem:[#allocation3 + $0x5c] sm:$0xf] %vm2516, %v2467
      %2541 = vst.msk [vmem:[#allocation3 + $0x60] sm:$0xf] %vm2516, %v2469
      %2542 = vst.msk [vmem:[#allocation3 + $0x64] sm:$0xf] %vm2516, %v2471
      %2543 = vst.msk [vmem:[#allocation3 + $0x68] sm:$0xf] %vm2516, %v2473
      %2544 = vst.msk [vmem:[#allocation3 + $0x6c] sm:$0xf] %vm2516, %v2475
      %2545 = vst.msk [vmem:[#allocation3 + $0x70] sm:$0xf] %vm2516, %v2477
      %2546 = vst.msk [vmem:[#allocation3 + $0x74] sm:$0xf] %vm2516, %v2479
      %2547 = vst.msk [vmem:[#allocation3 + $0x78] sm:$0xf] %vm2516, %v2481
      %2548 = vst.msk [vmem:[#allocation3 + $0x7c] sm:$0xf] %vm2516, %v2483
      %v2549 = vld [vmem:[%s224] sm:$0xe]
      %v2550 = vld [vmem:[%s224 + $0x4] sm:$0xf]
      %v2551 = vld [vmem:[%s224 + $0x8] sm:$0x1]
      %v2552 = vld [vmem:[%s224 + $0xc] sm:$0xe]
      %v2553 = vld [vmem:[%s224 + $0x10] sm:$0xf]
      %v2554 = vld [vmem:[%s224 + $0x14] sm:$0x1]
      %v2555 = vld [vmem:[%s224 + $0x18] sm:$0xe]
      %v2556 = vld [vmem:[%s224 + $0x1c] sm:$0xf]
      %v2557 = vld [vmem:[%s224 + $0x20] sm:$0x1]
      %v2558 = vld [vmem:[%s224 + $0x24] sm:$0xe]
      %v2559 = vld [vmem:[%s224 + $0x28] sm:$0xf]
      %v2560 = vld [vmem:[%s224 + $0x2c] sm:$0x1]
      %v2561 = vld [vmem:[%s224 + $0x30] sm:$0xe]
      %v2562 = vld [vmem:[%s224 + $0x34] sm:$0xf]
      %v2563 = vld [vmem:[%s224 + $0x38] sm:$0x1]
      %v2564 = vld [vmem:[%s224 + $0x3c] sm:$0xe]
      %v2565 = vld [vmem:[%s224 + $0x40] sm:$0xf]
      %v2566 = vld [vmem:[%s224 + $0x44] sm:$0x1]
      %v2567 = vld [vmem:[%s224 + $0x48] sm:$0xe]
      %v2568 = vld [vmem:[%s224 + $0x4c] sm:$0xf]
      %v2569 = vld [vmem:[%s224 + $0x50] sm:$0x1]
      %v2570 = vld [vmem:[%s224 + $0x54] sm:$0xe]
      %v2571 = vld [vmem:[%s224 + $0x58] sm:$0xf]
      %v2572 = vld [vmem:[%s224 + $0x5c] sm:$0x1]
      %v2573 = vld [vmem:[%s224 + $0x60] sm:$0xe]
      %v2574 = vld [vmem:[%s224 + $0x64] sm:$0xf]
      %v2575 = vld [vmem:[%s224 + $0x68] sm:$0x1]
      %v2576 = vld [vmem:[%s224 + $0x6c] sm:$0xe]
      %v2577 = vld [vmem:[%s224 + $0x70] sm:$0xf]
      %v2578 = vld [vmem:[%s224 + $0x74] sm:$0x1]
      %v2579 = vld [vmem:[%s224 + $0x78] sm:$0xe]
      %v2580 = vld [vmem:[%s224 + $0x7c] sm:$0xf]
      %v2581 = vld [vmem:[%s224 + $0x80] sm:$0x1]
      %v2582 = vld [vmem:[%s224 + $0x84] sm:$0xe]
      %v2583 = vld [vmem:[%s224 + $0x88] sm:$0xf]
      %v2584 = vld [vmem:[%s224 + $0x8c] sm:$0x1]
      %v2585 = vld [vmem:[%s224 + $0x90] sm:$0xe]
      %v2586 = vld [vmem:[%s224 + $0x94] sm:$0xf]
      %v2587 = vld [vmem:[%s224 + $0x98] sm:$0x1]
      %v2588 = vld [vmem:[%s224 + $0x9c] sm:$0xe]
      %v2589 = vld [vmem:[%s224 + $0xa0] sm:$0xf]
      %v2590 = vld [vmem:[%s224 + $0xa4] sm:$0x1]
      %v2591 = vld [vmem:[%s224 + $0xa8] sm:$0xe]
      %v2592 = vld [vmem:[%s224 + $0xac] sm:$0xf]
      %v2593 = vld [vmem:[%s224 + $0xb0] sm:$0x1]
      %v2594 = vld [vmem:[%s224 + $0xb4] sm:$0xe]
      %v2595 = vld [vmem:[%s224 + $0xb8] sm:$0xf]
      %v2596 = vld [vmem:[%s224 + $0xbc] sm:$0x1]
      %v2645 = vrot.slane %v2549, 5
      %v2646 = vrot.slane %v2645, 4
      %v2647 = vrot.slane %v2550, 5
      %v2648 = vsel %vm1553, %v2646, %v2647
      %v2649 = vrot.slane %v2647, 4
      %v2650 = vrot.slane %v2551, 5
      %v2651 = vsel %vm1553, %v2649, %v2650
      %v2652 = vrot.slane %v2552, 5
      %v2653 = vrot.slane %v2652, 4
      %v2654 = vrot.slane %v2553, 5
      %v2655 = vsel %vm1553, %v2653, %v2654
      %v2656 = vrot.slane %v2654, 4
      %v2657 = vrot.slane %v2554, 5
      %v2658 = vsel %vm1553, %v2656, %v2657
      %v2659 = vrot.slane %v2555, 5
      %v2660 = vrot.slane %v2659, 4
      %v2661 = vrot.slane %v2556, 5
      %v2662 = vsel %vm1553, %v2660, %v2661
      %v2663 = vrot.slane %v2661, 4
      %v2664 = vrot.slane %v2557, 5
      %v2665 = vsel %vm1553, %v2663, %v2664
      %v2666 = vrot.slane %v2558, 5
      %v2667 = vrot.slane %v2666, 4
      %v2668 = vrot.slane %v2559, 5
      %v2669 = vsel %vm1553, %v2667, %v2668
      %v2670 = vrot.slane %v2668, 4
      %v2671 = vrot.slane %v2560, 5
      %v2672 = vsel %vm1553, %v2670, %v2671
      %v2673 = vrot.slane %v2561, 5
      %v2674 = vrot.slane %v2673, 4
      %v2675 = vrot.slane %v2562, 5
      %v2676 = vsel %vm1553, %v2674, %v2675
      %v2677 = vrot.slane %v2675, 4
      %v2678 = vrot.slane %v2563, 5
      %v2679 = vsel %vm1553, %v2677, %v2678
      %v2680 = vrot.slane %v2564, 5
      %v2681 = vrot.slane %v2680, 4
      %v2682 = vrot.slane %v2565, 5
      %v2683 = vsel %vm1553, %v2681, %v2682
      %v2684 = vrot.slane %v2682, 4
      %v2685 = vrot.slane %v2566, 5
      %v2686 = vsel %vm1553, %v2684, %v2685
      %v2687 = vrot.slane %v2567, 5
      %v2688 = vrot.slane %v2687, 4
      %v2689 = vrot.slane %v2568, 5
      %v2690 = vsel %vm1553, %v2688, %v2689
      %v2691 = vrot.slane %v2689, 4
      %v2692 = vrot.slane %v2569, 5
      %v2693 = vsel %vm1553, %v2691, %v2692
      %v2694 = vrot.slane %v2570, 5
      %v2695 = vrot.slane %v2694, 4
      %v2696 = vrot.slane %v2571, 5
      %v2697 = vsel %vm1553, %v2695, %v2696
      %v2698 = vrot.slane %v2696, 4
      %v2699 = vrot.slane %v2572, 5
      %v2700 = vsel %vm1553, %v2698, %v2699
      %v2701 = vrot.slane %v2573, 5
      %v2702 = vrot.slane %v2701, 4
      %v2703 = vrot.slane %v2574, 5
      %v2704 = vsel %vm1553, %v2702, %v2703
      %v2705 = vrot.slane %v2703, 4
      %v2706 = vrot.slane %v2575, 5
      %v2707 = vsel %vm1553, %v2705, %v2706
      %v2708 = vrot.slane %v2576, 5
      %v2709 = vrot.slane %v2708, 4
      %v2710 = vrot.slane %v2577, 5
      %v2711 = vsel %vm1553, %v2709, %v2710
      %v2712 = vrot.slane %v2710, 4
      %v2713 = vrot.slane %v2578, 5
      %v2714 = vsel %vm1553, %v2712, %v2713
      %v2715 = vrot.slane %v2579, 5
      %v2716 = vrot.slane %v2715, 4
      %v2717 = vrot.slane %v2580, 5
      %v2718 = vsel %vm1553, %v2716, %v2717
      %v2719 = vrot.slane %v2717, 4
      %v2720 = vrot.slane %v2581, 5
      %v2721 = vsel %vm1553, %v2719, %v2720
      %v2722 = vrot.slane %v2582, 5
      %v2723 = vrot.slane %v2722, 4
      %v2724 = vrot.slane %v2583, 5
      %v2725 = vsel %vm1553, %v2723, %v2724
      %v2726 = vrot.slane %v2724, 4
      %v2727 = vrot.slane %v2584, 5
      %v2728 = vsel %vm1553, %v2726, %v2727
      %v2729 = vrot.slane %v2585, 5
      %v2730 = vrot.slane %v2729, 4
      %v2731 = vrot.slane %v2586, 5
      %v2732 = vsel %vm1553, %v2730, %v2731
      %v2733 = vrot.slane %v2731, 4
      %v2734 = vrot.slane %v2587, 5
      %v2735 = vsel %vm1553, %v2733, %v2734
      %v2736 = vrot.slane %v2588, 5
      %v2737 = vrot.slane %v2736, 4
      %v2738 = vrot.slane %v2589, 5
      %v2739 = vsel %vm1553, %v2737, %v2738
      %v2740 = vrot.slane %v2738, 4
      %v2741 = vrot.slane %v2590, 5
      %v2742 = vsel %vm1553, %v2740, %v2741
      %v2743 = vrot.slane %v2591, 5
      %v2744 = vrot.slane %v2743, 4
      %v2745 = vrot.slane %v2592, 5
      %v2746 = vsel %vm1553, %v2744, %v2745
      %v2747 = vrot.slane %v2745, 4
      %v2748 = vrot.slane %v2593, 5
      %v2749 = vsel %vm1553, %v2747, %v2748
      %v2750 = vrot.slane %v2594, 5
      %v2751 = vrot.slane %v2750, 4
      %v2752 = vrot.slane %v2595, 5
      %v2753 = vsel %vm1553, %v2751, %v2752
      %v2754 = vrot.slane %v2752, 4
      %v2755 = vrot.slane %v2596, 5
      %v2756 = vsel %vm1553, %v2754, %v2755
      %2757 = vrot.lane.b32.xlu0 %v2648, 40
      %v2758 = vpop.permute.xlu0 %2757
      %2759 = vrot.lane.b32.xlu0 %v2651, 40
      %v2760 = vpop.permute.xlu0 %2759
      %2761 = vrot.lane.b32.xlu0 %v2655, 40
      %v2762 = vpop.permute.xlu0 %2761
      %2763 = vrot.lane.b32.xlu0 %v2658, 40
      %v2764 = vpop.permute.xlu0 %2763
      %2765 = vrot.lane.b32.xlu0 %v2662, 40
      %v2766 = vpop.permute.xlu0 %2765
      %2767 = vrot.lane.b32.xlu0 %v2665, 40
      %v2768 = vpop.permute.xlu0 %2767
      %2769 = vrot.lane.b32.xlu0 %v2669, 40
      %v2770 = vpop.permute.xlu0 %2769
      %2771 = vrot.lane.b32.xlu0 %v2672, 40
      %v2772 = vpop.permute.xlu0 %2771
      %2773 = vrot.lane.b32.xlu0 %v2676, 40
      %v2774 = vpop.permute.xlu0 %2773
      %2775 = vrot.lane.b32.xlu0 %v2679, 40
      %v2776 = vpop.permute.xlu0 %2775
      %2777 = vrot.lane.b32.xlu0 %v2683, 40
      %v2778 = vpop.permute.xlu0 %2777
      %2779 = vrot.lane.b32.xlu0 %v2686, 40
      %v2780 = vpop.permute.xlu0 %2779
      %2781 = vrot.lane.b32.xlu0 %v2690, 40
      %v2782 = vpop.permute.xlu0 %2781
      %2783 = vrot.lane.b32.xlu0 %v2693, 40
      %v2784 = vpop.permute.xlu0 %2783
      %2785 = vrot.lane.b32.xlu0 %v2697, 40
      %v2786 = vpop.permute.xlu0 %2785
      %2787 = vrot.lane.b32.xlu0 %v2700, 40
      %v2788 = vpop.permute.xlu0 %2787
      %2789 = vrot.lane.b32.xlu0 %v2704, 40
      %v2790 = vpop.permute.xlu0 %2789
      %2791 = vrot.lane.b32.xlu0 %v2707, 40
      %v2792 = vpop.permute.xlu0 %2791
      %2793 = vrot.lane.b32.xlu0 %v2711, 40
      %v2794 = vpop.permute.xlu0 %2793
      %2795 = vrot.lane.b32.xlu0 %v2714, 40
      %v2796 = vpop.permute.xlu0 %2795
      %2797 = vrot.lane.b32.xlu0 %v2718, 40
      %v2798 = vpop.permute.xlu0 %2797
      %2799 = vrot.lane.b32.xlu0 %v2721, 40
      %v2800 = vpop.permute.xlu0 %2799
      %2801 = vrot.lane.b32.xlu0 %v2725, 40
      %v2802 = vpop.permute.xlu0 %2801
      %2803 = vrot.lane.b32.xlu0 %v2728, 40
      %v2804 = vpop.permute.xlu0 %2803
      %2805 = vrot.lane.b32.xlu0 %v2732, 40
      %v2806 = vpop.permute.xlu0 %2805
      %2807 = vrot.lane.b32.xlu0 %v2735, 40
      %v2808 = vpop.permute.xlu0 %2807
      %2809 = vrot.lane.b32.xlu0 %v2739, 40
      %v2810 = vpop.permute.xlu0 %2809
      %2811 = vrot.lane.b32.xlu0 %v2742, 40
      %v2812 = vpop.permute.xlu0 %2811
      %2813 = vrot.lane.b32.xlu0 %v2746, 40
      %v2814 = vpop.permute.xlu0 %2813
      %2815 = vrot.lane.b32.xlu0 %v2749, 40
      %v2816 = vpop.permute.xlu0 %2815
      %2817 = vrot.lane.b32.xlu0 %v2753, 40
      %v2818 = vpop.permute.xlu0 %2817
      %2819 = vrot.lane.b32.xlu0 %v2756, 40
      %v2820 = vpop.permute.xlu0 %2819
      %vm2853 = vcmask 388416
      %2854 = vst.msk [vmem:[#allocation3] sm:$0xf] %vm2853, %v2758
      %2855 = vst.msk [vmem:[#allocation3 + $0x4] sm:$0xf] %vm2853, %v2760
      %2856 = vst.msk [vmem:[#allocation3 + $0x8] sm:$0xf] %vm2853, %v2762
      %2857 = vst.msk [vmem:[#allocation3 + $0xc] sm:$0xf] %vm2853, %v2764
      %2858 = vst.msk [vmem:[#allocation3 + $0x10] sm:$0xf] %vm2853, %v2766
      %2859 = vst.msk [vmem:[#allocation3 + $0x14] sm:$0xf] %vm2853, %v2768
      %2860 = vst.msk [vmem:[#allocation3 + $0x18] sm:$0xf] %vm2853, %v2770
      %2861 = vst.msk [vmem:[#allocation3 + $0x1c] sm:$0xf] %vm2853, %v2772
      %2862 = vst.msk [vmem:[#allocation3 + $0x20] sm:$0xf] %vm2853, %v2774
      %2863 = vst.msk [vmem:[#allocation3 + $0x24] sm:$0xf] %vm2853, %v2776
      %2864 = vst.msk [vmem:[#allocation3 + $0x28] sm:$0xf] %vm2853, %v2778
      %2865 = vst.msk [vmem:[#allocation3 + $0x2c] sm:$0xf] %vm2853, %v2780
      %2866 = vst.msk [vmem:[#allocation3 + $0x30] sm:$0xf] %vm2853, %v2782
      %2867 = vst.msk [vmem:[#allocation3 + $0x34] sm:$0xf] %vm2853, %v2784
      %2868 = vst.msk [vmem:[#allocation3 + $0x38] sm:$0xf] %vm2853, %v2786
      %2869 = vst.msk [vmem:[#allocation3 + $0x3c] sm:$0xf] %vm2853, %v2788
      %2870 = vst.msk [vmem:[#allocation3 + $0x40] sm:$0xf] %vm2853, %v2790
      %2871 = vst.msk [vmem:[#allocation3 + $0x44] sm:$0xf] %vm2853, %v2792
      %2872 = vst.msk [vmem:[#allocation3 + $0x48] sm:$0xf] %vm2853, %v2794
      %2873 = vst.msk [vmem:[#allocation3 + $0x4c] sm:$0xf] %vm2853, %v2796
      %2874 = vst.msk [vmem:[#allocation3 + $0x50] sm:$0xf] %vm2853, %v2798
      %2875 = vst.msk [vmem:[#allocation3 + $0x54] sm:$0xf] %vm2853, %v2800
      %2876 = vst.msk [vmem:[#allocation3 + $0x58] sm:$0xf] %vm2853, %v2802
      %2877 = vst.msk [vmem:[#allocation3 + $0x5c] sm:$0xf] %vm2853, %v2804
      %2878 = vst.msk [vmem:[#allocation3 + $0x60] sm:$0xf] %vm2853, %v2806
      %2879 = vst.msk [vmem:[#allocation3 + $0x64] sm:$0xf] %vm2853, %v2808
      %2880 = vst.msk [vmem:[#allocation3 + $0x68] sm:$0xf] %vm2853, %v2810
      %2881 = vst.msk [vmem:[#allocation3 + $0x6c] sm:$0xf] %vm2853, %v2812
      %2882 = vst.msk [vmem:[#allocation3 + $0x70] sm:$0xf] %vm2853, %v2814
      %2883 = vst.msk [vmem:[#allocation3 + $0x74] sm:$0xf] %vm2853, %v2816
      %2884 = vst.msk [vmem:[#allocation3 + $0x78] sm:$0xf] %vm2853, %v2818
      %2885 = vst.msk [vmem:[#allocation3 + $0x7c] sm:$0xf] %vm2853, %v2820
      %s2886 = scalar_lea.vmem [#allocation2], 24
      %v2887 = vld [vmem:[%s2886] sm:$0xf]
      %v2888 = vld [vmem:[%s2886 + $0x4] sm:$0xf]
      %v2889 = vld [vmem:[%s2886 + $0xc] sm:$0xf]
      %v2890 = vld [vmem:[%s2886 + $0x10] sm:$0xf]
      %v2891 = vld [vmem:[%s2886 + $0x18] sm:$0xf]
      %v2892 = vld [vmem:[%s2886 + $0x1c] sm:$0xf]
      %v2893 = vld [vmem:[%s2886 + $0x24] sm:$0xf]
      %v2894 = vld [vmem:[%s2886 + $0x28] sm:$0xf]
      %v2895 = vld [vmem:[%s2886 + $0x30] sm:$0xf]
      %v2896 = vld [vmem:[%s2886 + $0x34] sm:$0xf]
      %v2897 = vld [vmem:[%s2886 + $0x3c] sm:$0xf]
      %v2898 = vld [vmem:[%s2886 + $0x40] sm:$0xf]
      %v2899 = vld [vmem:[%s2886 + $0x48] sm:$0xf]
      %v2900 = vld [vmem:[%s2886 + $0x4c] sm:$0xf]
      %v2901 = vld [vmem:[%s2886 + $0x54] sm:$0xf]
      %v2902 = vld [vmem:[%s2886 + $0x58] sm:$0xf]
      %v2903 = vld [vmem:[%s2886 + $0x60] sm:$0xf]
      %v2904 = vld [vmem:[%s2886 + $0x64] sm:$0xf]
      %v2905 = vld [vmem:[%s2886 + $0x6c] sm:$0xf]
      %v2906 = vld [vmem:[%s2886 + $0x70] sm:$0xf]
      %v2907 = vld [vmem:[%s2886 + $0x78] sm:$0xf]
      %v2908 = vld [vmem:[%s2886 + $0x7c] sm:$0xf]
      %v2909 = vld [vmem:[%s2886 + $0x84] sm:$0xf]
      %v2910 = vld [vmem:[%s2886 + $0x88] sm:$0xf]
      %v2911 = vld [vmem:[%s2886 + $0x90] sm:$0xf]
      %v2912 = vld [vmem:[%s2886 + $0x94] sm:$0xf]
      %v2913 = vld [vmem:[%s2886 + $0x9c] sm:$0xf]
      %v2914 = vld [vmem:[%s2886 + $0xa0] sm:$0xf]
      %v2915 = vld [vmem:[%s2886 + $0xa8] sm:$0xf]
      %v2916 = vld [vmem:[%s2886 + $0xac] sm:$0xf]
      %v2917 = vld [vmem:[%s2886 + $0xb4] sm:$0xf]
      %v2918 = vld [vmem:[%s2886 + $0xb8] sm:$0xf]
      %2951 = vrot.lane.b32.xlu0 %v2887, 48
      %v2952 = vpop.permute.xlu0 %2951
      %2953 = vrot.lane.b32.xlu0 %v2888, 48
      %v2954 = vpop.permute.xlu0 %2953
      %2955 = vrot.lane.b32.xlu0 %v2889, 48
      %v2956 = vpop.permute.xlu0 %2955
      %2957 = vrot.lane.b32.xlu0 %v2890, 48
      %v2958 = vpop.permute.xlu0 %2957
      %2959 = vrot.lane.b32.xlu0 %v2891, 48
      %v2960 = vpop.permute.xlu0 %2959
      %2961 = vrot.lane.b32.xlu0 %v2892, 48
      %v2962 = vpop.permute.xlu0 %2961
      %2963 = vrot.lane.b32.xlu0 %v2893, 48
      %v2964 = vpop.permute.xlu0 %2963
      %2965 = vrot.lane.b32.xlu0 %v2894, 48
      %v2966 = vpop.permute.xlu0 %2965
      %2967 = vrot.lane.b32.xlu0 %v2895, 48
      %v2968 = vpop.permute.xlu0 %2967
      %2969 = vrot.lane.b32.xlu0 %v2896, 48
      %v2970 = vpop.permute.xlu0 %2969
      %2971 = vrot.lane.b32.xlu0 %v2897, 48
      %v2972 = vpop.permute.xlu0 %2971
      %2973 = vrot.lane.b32.xlu0 %v2898, 48
      %v2974 = vpop.permute.xlu0 %2973
      %2975 = vrot.lane.b32.xlu0 %v2899, 48
      %v2976 = vpop.permute.xlu0 %2975
      %2977 = vrot.lane.b32.xlu0 %v2900, 48
      %v2978 = vpop.permute.xlu0 %2977
      %2979 = vrot.lane.b32.xlu0 %v2901, 48
      %v2980 = vpop.permute.xlu0 %2979
      %2981 = vrot.lane.b32.xlu0 %v2902, 48
      %v2982 = vpop.permute.xlu0 %2981
      %2983 = vrot.lane.b32.xlu0 %v2903, 48
      %v2984 = vpop.permute.xlu0 %2983
      %2985 = vrot.lane.b32.xlu0 %v2904, 48
      %v2986 = vpop.permute.xlu0 %2985
      %2987 = vrot.lane.b32.xlu0 %v2905, 48
      %v2988 = vpop.permute.xlu0 %2987
      %2989 = vrot.lane.b32.xlu0 %v2906, 48
      %v2990 = vpop.permute.xlu0 %2989
      %2991 = vrot.lane.b32.xlu0 %v2907, 48
      %v2992 = vpop.permute.xlu0 %2991
      %2993 = vrot.lane.b32.xlu0 %v2908, 48
      %v2994 = vpop.permute.xlu0 %2993
      %2995 = vrot.lane.b32.xlu0 %v2909, 48
      %v2996 = vpop.permute.xlu0 %2995
      %2997 = vrot.lane.b32.xlu0 %v2910, 48
      %v2998 = vpop.permute.xlu0 %2997
      %2999 = vrot.lane.b32.xlu0 %v2911, 48
      %v3000 = vpop.permute.xlu0 %2999
      %3001 = vrot.lane.b32.xlu0 %v2912, 48
      %v3002 = vpop.permute.xlu0 %3001
      %3003 = vrot.lane.b32.xlu0 %v2913, 48
      %v3004 = vpop.permute.xlu0 %3003
      %3005 = vrot.lane.b32.xlu0 %v2914, 48
      %v3006 = vpop.permute.xlu0 %3005
      %3007 = vrot.lane.b32.xlu0 %v2915, 48
      %v3008 = vpop.permute.xlu0 %3007
      %3009 = vrot.lane.b32.xlu0 %v2916, 48
      %v3010 = vpop.permute.xlu0 %3009
      %3011 = vrot.lane.b32.xlu0 %v2917, 48
      %v3012 = vpop.permute.xlu0 %3011
      %3013 = vrot.lane.b32.xlu0 %v2918, 48
      %v3014 = vpop.permute.xlu0 %3013
      %vm3047 = vcmask 454016
      %3048 = vst.msk [vmem:[#allocation3] sm:$0xf] %vm3047, %v2952
      %3049 = vst.msk [vmem:[#allocation3 + $0x4] sm:$0xf] %vm3047, %v2954
      %3050 = vst.msk [vmem:[#allocation3 + $0x8] sm:$0xf] %vm3047, %v2956
      %3051 = vst.msk [vmem:[#allocation3 + $0xc] sm:$0xf] %vm3047, %v2958
      %3052 = vst.msk [vmem:[#allocation3 + $0x10] sm:$0xf] %vm3047, %v2960
      %3053 = vst.msk [vmem:[#allocation3 + $0x14] sm:$0xf] %vm3047, %v2962
      %3054 = vst.msk [vmem:[#allocation3 + $0x18] sm:$0xf] %vm3047, %v2964
      %3055 = vst.msk [vmem:[#allocation3 + $0x1c] sm:$0xf] %vm3047, %v2966
      %3056 = vst.msk [vmem:[#allocation3 + $0x20] sm:$0xf] %vm3047, %v2968
      %3057 = vst.msk [vmem:[#allocation3 + $0x24] sm:$0xf] %vm3047, %v2970
      %3058 = vst.msk [vmem:[#allocation3 + $0x28] sm:$0xf] %vm3047, %v2972
      %3059 = vst.msk [vmem:[#allocation3 + $0x2c] sm:$0xf] %vm3047, %v2974
      %3060 = vst.msk [vmem:[#allocation3 + $0x30] sm:$0xf] %vm3047, %v2976
      %3061 = vst.msk [vmem:[#allocation3 + $0x34] sm:$0xf] %vm3047, %v2978
      %3062 = vst.msk [vmem:[#allocation3 + $0x38] sm:$0xf] %vm3047, %v2980
      %3063 = vst.msk [vmem:[#allocation3 + $0x3c] sm:$0xf] %vm3047, %v2982
      %3064 = vst.msk [vmem:[#allocation3 + $0x40] sm:$0xf] %vm3047, %v2984
      %3065 = vst.msk [vmem:[#allocation3 + $0x44] sm:$0xf] %vm3047, %v2986
      %3066 = vst.msk [vmem:[#allocation3 + $0x48] sm:$0xf] %vm3047, %v2988
      %3067 = vst.msk [vmem:[#allocation3 + $0x4c] sm:$0xf] %vm3047, %v2990
      %3068 = vst.msk [vmem:[#allocation3 + $0x50] sm:$0xf] %vm3047, %v2992
      %3069 = vst.msk [vmem:[#allocation3 + $0x54] sm:$0xf] %vm3047, %v2994
      %3070 = vst.msk [vmem:[#allocation3 + $0x58] sm:$0xf] %vm3047, %v2996
      %3071 = vst.msk [vmem:[#allocation3 + $0x5c] sm:$0xf] %vm3047, %v2998
      %3072 = vst.msk [vmem:[#allocation3 + $0x60] sm:$0xf] %vm3047, %v3000
      %3073 = vst.msk [vmem:[#allocation3 + $0x64] sm:$0xf] %vm3047, %v3002
      %3074 = vst.msk [vmem:[#allocation3 + $0x68] sm:$0xf] %vm3047, %v3004
      %3075 = vst.msk [vmem:[#allocation3 + $0x6c] sm:$0xf] %vm3047, %v3006
      %3076 = vst.msk [vmem:[#allocation3 + $0x70] sm:$0xf] %vm3047, %v3008
      %3077 = vst.msk [vmem:[#allocation3 + $0x74] sm:$0xf] %vm3047, %v3010
      %3078 = vst.msk [vmem:[#allocation3 + $0x78] sm:$0xf] %vm3047, %v3012
      %3079 = vst.msk [vmem:[#allocation3 + $0x7c] sm:$0xf] %vm3047, %v3014
      %v3080 = vld [vmem:[%s2886] sm:$0xf]
      %v3081 = vld [vmem:[%s2886 + $0x4] sm:$0xf]
      %v3082 = vld [vmem:[%s2886 + $0x8] sm:$0x1]
      %v3083 = vld [vmem:[%s2886 + $0xc] sm:$0xf]
      %v3084 = vld [vmem:[%s2886 + $0x10] sm:$0xf]
      %v3085 = vld [vmem:[%s2886 + $0x14] sm:$0x1]
      %v3086 = vld [vmem:[%s2886 + $0x18] sm:$0xf]
      %v3087 = vld [vmem:[%s2886 + $0x1c] sm:$0xf]
      %v3088 = vld [vmem:[%s2886 + $0x20] sm:$0x1]
      %v3089 = vld [vmem:[%s2886 + $0x24] sm:$0xf]
      %v3090 = vld [vmem:[%s2886 + $0x28] sm:$0xf]
      %v3091 = vld [vmem:[%s2886 + $0x2c] sm:$0x1]
      %v3092 = vld [vmem:[%s2886 + $0x30] sm:$0xf]
      %v3093 = vld [vmem:[%s2886 + $0x34] sm:$0xf]
      %v3094 = vld [vmem:[%s2886 + $0x38] sm:$0x1]
      %v3095 = vld [vmem:[%s2886 + $0x3c] sm:$0xf]
      %v3096 = vld [vmem:[%s2886 + $0x40] sm:$0xf]
      %v3097 = vld [vmem:[%s2886 + $0x44] sm:$0x1]
      %v3098 = vld [vmem:[%s2886 + $0x48] sm:$0xf]
      %v3099 = vld [vmem:[%s2886 + $0x4c] sm:$0xf]
      %v3100 = vld [vmem:[%s2886 + $0x50] sm:$0x1]
      %v3101 = vld [vmem:[%s2886 + $0x54] sm:$0xf]
      %v3102 = vld [vmem:[%s2886 + $0x58] sm:$0xf]
      %v3103 = vld [vmem:[%s2886 + $0x5c] sm:$0x1]
      %v3104 = vld [vmem:[%s2886 + $0x60] sm:$0xf]
      %v3105 = vld [vmem:[%s2886 + $0x64] sm:$0xf]
      %v3106 = vld [vmem:[%s2886 + $0x68] sm:$0x1]
      %v3107 = vld [vmem:[%s2886 + $0x6c] sm:$0xf]
      %v3108 = vld [vmem:[%s2886 + $0x70] sm:$0xf]
      %v3109 = vld [vmem:[%s2886 + $0x74] sm:$0x1]
      %v3110 = vld [vmem:[%s2886 + $0x78] sm:$0xf]
      %v3111 = vld [vmem:[%s2886 + $0x7c] sm:$0xf]
      %v3112 = vld [vmem:[%s2886 + $0x80] sm:$0x1]
      %v3113 = vld [vmem:[%s2886 + $0x84] sm:$0xf]
      %v3114 = vld [vmem:[%s2886 + $0x88] sm:$0xf]
      %v3115 = vld [vmem:[%s2886 + $0x8c] sm:$0x1]
      %v3116 = vld [vmem:[%s2886 + $0x90] sm:$0xf]
      %v3117 = vld [vmem:[%s2886 + $0x94] sm:$0xf]
      %v3118 = vld [vmem:[%s2886 + $0x98] sm:$0x1]
      %v3119 = vld [vmem:[%s2886 + $0x9c] sm:$0xf]
      %v3120 = vld [vmem:[%s2886 + $0xa0] sm:$0xf]
      %v3121 = vld [vmem:[%s2886 + $0xa4] sm:$0x1]
      %v3122 = vld [vmem:[%s2886 + $0xa8] sm:$0xf]
      %v3123 = vld [vmem:[%s2886 + $0xac] sm:$0xf]
      %v3124 = vld [vmem:[%s2886 + $0xb0] sm:$0x1]
      %v3125 = vld [vmem:[%s2886 + $0xb4] sm:$0xf]
      %v3126 = vld [vmem:[%s2886 + $0xb8] sm:$0xf]
      %v3127 = vld [vmem:[%s2886 + $0xbc] sm:$0x1]
      %v3129 = vshrl.u32 %v3080, 16
      %v3131 = vrot.slane %v3129, 4
      %v3132 = vshll.u32 %v3080, 16
      %v3134 = vrot.slane %v3132, 5
      %v3135 = vor.u32 %v3131, %v3134
      %v3136 = vrot.slane %v3135, 4
      %v3138 = vshll.u32 %v3081, 16
      %v3140 = vrot.slane %v3138, 5
      %v3141 = vsel %vm941, %v3136, %v3140
      %v3142 = vshrl.u32 %v3081, 16
      %v3144 = vrot.slane %v3142, 4
      %v3145 = vor.u32 %v3144, %v3140
      %v3146 = vrot.slane %v3145, 4
      %v3148 = vshll.u32 %v3082, 16
      %v3150 = vrot.slane %v3148, 5
      %v3151 = vsel %vm941, %v3146, %v3150
      %v3153 = vshrl.u32 %v3083, 16
      %v3155 = vrot.slane %v3153, 4
      %v3156 = vshll.u32 %v3083, 16
      %v3158 = vrot.slane %v3156, 5
      %v3159 = vor.u32 %v3155, %v3158
      %v3160 = vrot.slane %v3159, 4
      %v3162 = vshll.u32 %v3084, 16
      %v3164 = vrot.slane %v3162, 5
      %v3165 = vsel %vm941, %v3160, %v3164
      %v3166 = vshrl.u32 %v3084, 16
      %v3168 = vrot.slane %v3166, 4
      %v3169 = vor.u32 %v3168, %v3164
      %v3170 = vrot.slane %v3169, 4
      %v3172 = vshll.u32 %v3085, 16
      %v3174 = vrot.slane %v3172, 5
      %v3175 = vsel %vm941, %v3170, %v3174
      %v3177 = vshrl.u32 %v3086, 16
      %v3179 = vrot.slane %v3177, 4
      %v3180 = vshll.u32 %v3086, 16
      %v3182 = vrot.slane %v3180, 5
      %v3183 = vor.u32 %v3179, %v3182
      %v3184 = vrot.slane %v3183, 4
      %v3186 = vshll.u32 %v3087, 16
      %v3188 = vrot.slane %v3186, 5
      %v3189 = vsel %vm941, %v3184, %v3188
      %v3190 = vshrl.u32 %v3087, 16
      %v3192 = vrot.slane %v3190, 4
      %v3193 = vor.u32 %v3192, %v3188
      %v3194 = vrot.slane %v3193, 4
      %v3196 = vshll.u32 %v3088, 16
      %v3198 = vrot.slane %v3196, 5
      %v3199 = vsel %vm941, %v3194, %v3198
      %v3201 = vshrl.u32 %v3089, 16
      %v3203 = vrot.slane %v3201, 4
      %v3204 = vshll.u32 %v3089, 16
      %v3206 = vrot.slane %v3204, 5
      %v3207 = vor.u32 %v3203, %v3206
      %v3208 = vrot.slane %v3207, 4
      %v3210 = vshll.u32 %v3090, 16
      %v3212 = vrot.slane %v3210, 5
      %v3213 = vsel %vm941, %v3208, %v3212
      %v3214 = vshrl.u32 %v3090, 16
      %v3216 = vrot.slane %v3214, 4
      %v3217 = vor.u32 %v3216, %v3212
      %v3218 = vrot.slane %v3217, 4
      %v3220 = vshll.u32 %v3091, 16
      %v3222 = vrot.slane %v3220, 5
      %v3223 = vsel %vm941, %v3218, %v3222
      %v3225 = vshrl.u32 %v3092, 16
      %v3227 = vrot.slane %v3225, 4
      %v3228 = vshll.u32 %v3092, 16
      %v3230 = vrot.slane %v3228, 5
      %v3231 = vor.u32 %v3227, %v3230
      %v3232 = vrot.slane %v3231, 4
      %v3234 = vshll.u32 %v3093, 16
      %v3236 = vrot.slane %v3234, 5
      %v3237 = vsel %vm941, %v3232, %v3236
      %v3238 = vshrl.u32 %v3093, 16
      %v3240 = vrot.slane %v3238, 4
      %v3241 = vor.u32 %v3240, %v3236
      %v3242 = vrot.slane %v3241, 4
      %v3244 = vshll.u32 %v3094, 16
      %v3246 = vrot.slane %v3244, 5
      %v3247 = vsel %vm941, %v3242, %v3246
      %v3249 = vshrl.u32 %v3095, 16
      %v3251 = vrot.slane %v3249, 4
      %v3252 = vshll.u32 %v3095, 16
      %v3254 = vrot.slane %v3252, 5
      %v3255 = vor.u32 %v3251, %v3254
      %v3256 = vrot.slane %v3255, 4
      %v3258 = vshll.u32 %v3096, 16
      %v3260 = vrot.slane %v3258, 5
      %v3261 = vsel %vm941, %v3256, %v3260
      %v3262 = vshrl.u32 %v3096, 16
      %v3264 = vrot.slane %v3262, 4
      %v3265 = vor.u32 %v3264, %v3260
      %v3266 = vrot.slane %v3265, 4
      %v3268 = vshll.u32 %v3097, 16
      %v3270 = vrot.slane %v3268, 5
      %v3271 = vsel %vm941, %v3266, %v3270
      %v3273 = vshrl.u32 %v3098, 16
      %v3275 = vrot.slane %v3273, 4
      %v3276 = vshll.u32 %v3098, 16
      %v3278 = vrot.slane %v3276, 5
      %v3279 = vor.u32 %v3275, %v3278
      %v3280 = vrot.slane %v3279, 4
      %v3282 = vshll.u32 %v3099, 16
      %v3284 = vrot.slane %v3282, 5
      %v3285 = vsel %vm941, %v3280, %v3284
      %v3286 = vshrl.u32 %v3099, 16
      %v3288 = vrot.slane %v3286, 4
      %v3289 = vor.u32 %v3288, %v3284
      %v3290 = vrot.slane %v3289, 4
      %v3292 = vshll.u32 %v3100, 16
      %v3294 = vrot.slane %v3292, 5
      %v3295 = vsel %vm941, %v3290, %v3294
      %v3297 = vshrl.u32 %v3101, 16
      %v3299 = vrot.slane %v3297, 4
      %v3300 = vshll.u32 %v3101, 16
      %v3302 = vrot.slane %v3300, 5
      %v3303 = vor.u32 %v3299, %v3302
      %v3304 = vrot.slane %v3303, 4
      %v3306 = vshll.u32 %v3102, 16
      %v3308 = vrot.slane %v3306, 5
      %v3309 = vsel %vm941, %v3304, %v3308
      %v3310 = vshrl.u32 %v3102, 16
      %v3312 = vrot.slane %v3310, 4
      %v3313 = vor.u32 %v3312, %v3308
      %v3314 = vrot.slane %v3313, 4
      %v3316 = vshll.u32 %v3103, 16
      %v3318 = vrot.slane %v3316, 5
      %v3319 = vsel %vm941, %v3314, %v3318
      %v3321 = vshrl.u32 %v3104, 16
      %v3323 = vrot.slane %v3321, 4
      %v3324 = vshll.u32 %v3104, 16
      %v3326 = vrot.slane %v3324, 5
      %v3327 = vor.u32 %v3323, %v3326
      %v3328 = vrot.slane %v3327, 4
      %v3330 = vshll.u32 %v3105, 16
      %v3332 = vrot.slane %v3330, 5
      %v3333 = vsel %vm941, %v3328, %v3332
      %v3334 = vshrl.u32 %v3105, 16
      %v3336 = vrot.slane %v3334, 4
      %v3337 = vor.u32 %v3336, %v3332
      %v3338 = vrot.slane %v3337, 4
      %v3340 = vshll.u32 %v3106, 16
      %v3342 = vrot.slane %v3340, 5
      %v3343 = vsel %vm941, %v3338, %v3342
      %v3345 = vshrl.u32 %v3107, 16
      %v3347 = vrot.slane %v3345, 4
      %v3348 = vshll.u32 %v3107, 16
      %v3350 = vrot.slane %v3348, 5
      %v3351 = vor.u32 %v3347, %v3350
      %v3352 = vrot.slane %v3351, 4
      %v3354 = vshll.u32 %v3108, 16
      %v3356 = vrot.slane %v3354, 5
      %v3357 = vsel %vm941, %v3352, %v3356
      %v3358 = vshrl.u32 %v3108, 16
      %v3360 = vrot.slane %v3358, 4
      %v3361 = vor.u32 %v3360, %v3356
      %v3362 = vrot.slane %v3361, 4
      %v3364 = vshll.u32 %v3109, 16
      %v3366 = vrot.slane %v3364, 5
      %v3367 = vsel %vm941, %v3362, %v3366
      %v3369 = vshrl.u32 %v3110, 16
      %v3371 = vrot.slane %v3369, 4
      %v3372 = vshll.u32 %v3110, 16
      %v3374 = vrot.slane %v3372, 5
      %v3375 = vor.u32 %v3371, %v3374
      %v3376 = vrot.slane %v3375, 4
      %v3378 = vshll.u32 %v3111, 16
      %v3380 = vrot.slane %v3378, 5
      %v3381 = vsel %vm941, %v3376, %v3380
      %v3382 = vshrl.u32 %v3111, 16
      %v3384 = vrot.slane %v3382, 4
      %v3385 = vor.u32 %v3384, %v3380
      %v3386 = vrot.slane %v3385, 4
      %v3388 = vshll.u32 %v3112, 16
      %v3390 = vrot.slane %v3388, 5
      %v3391 = vsel %vm941, %v3386, %v3390
      %v3393 = vshrl.u32 %v3113, 16
      %v3395 = vrot.slane %v3393, 4
      %v3396 = vshll.u32 %v3113, 16
      %v3398 = vrot.slane %v3396, 5
      %v3399 = vor.u32 %v3395, %v3398
      %v3400 = vrot.slane %v3399, 4
      %v3402 = vshll.u32 %v3114, 16
      %v3404 = vrot.slane %v3402, 5
      %v3405 = vsel %vm941, %v3400, %v3404
      %v3406 = vshrl.u32 %v3114, 16
      %v3408 = vrot.slane %v3406, 4
      %v3409 = vor.u32 %v3408, %v3404
      %v3410 = vrot.slane %v3409, 4
      %v3412 = vshll.u32 %v3115, 16
      %v3414 = vrot.slane %v3412, 5
      %v3415 = vsel %vm941, %v3410, %v3414
      %v3417 = vshrl.u32 %v3116, 16
      %v3419 = vrot.slane %v3417, 4
      %v3420 = vshll.u32 %v3116, 16
      %v3422 = vrot.slane %v3420, 5
      %v3423 = vor.u32 %v3419, %v3422
      %v3424 = vrot.slane %v3423, 4
      %v3426 = vshll.u32 %v3117, 16
      %v3428 = vrot.slane %v3426, 5
      %v3429 = vsel %vm941, %v3424, %v3428
      %v3430 = vshrl.u32 %v3117, 16
      %v3432 = vrot.slane %v3430, 4
      %v3433 = vor.u32 %v3432, %v3428
      %v3434 = vrot.slane %v3433, 4
      %v3436 = vshll.u32 %v3118, 16
      %v3438 = vrot.slane %v3436, 5
      %v3439 = vsel %vm941, %v3434, %v3438
      %v3441 = vshrl.u32 %v3119, 16
      %v3443 = vrot.slane %v3441, 4
      %v3444 = vshll.u32 %v3119, 16
      %v3446 = vrot.slane %v3444, 5
      %v3447 = vor.u32 %v3443, %v3446
      %v3448 = vrot.slane %v3447, 4
      %v3450 = vshll.u32 %v3120, 16
      %v3452 = vrot.slane %v3450, 5
      %v3453 = vsel %vm941, %v3448, %v3452
      %v3454 = vshrl.u32 %v3120, 16
      %v3456 = vrot.slane %v3454, 4
      %v3457 = vor.u32 %v3456, %v3452
      %v3458 = vrot.slane %v3457, 4
      %v3460 = vshll.u32 %v3121, 16
      %v3462 = vrot.slane %v3460, 5
      %v3463 = vsel %vm941, %v3458, %v3462
      %v3465 = vshrl.u32 %v3122, 16
      %v3467 = vrot.slane %v3465, 4
      %v3468 = vshll.u32 %v3122, 16
      %v3470 = vrot.slane %v3468, 5
      %v3471 = vor.u32 %v3467, %v3470
      %v3472 = vrot.slane %v3471, 4
      %v3474 = vshll.u32 %v3123, 16
      %v3476 = vrot.slane %v3474, 5
      %v3477 = vsel %vm941, %v3472, %v3476
      %v3478 = vshrl.u32 %v3123, 16
      %v3480 = vrot.slane %v3478, 4
      %v3481 = vor.u32 %v3480, %v3476
      %v3482 = vrot.slane %v3481, 4
      %v3484 = vshll.u32 %v3124, 16
      %v3486 = vrot.slane %v3484, 5
      %v3487 = vsel %vm941, %v3482, %v3486
      %v3489 = vshrl.u32 %v3125, 16
      %v3491 = vrot.slane %v3489, 4
      %v3492 = vshll.u32 %v3125, 16
      %v3494 = vrot.slane %v3492, 5
      %v3495 = vor.u32 %v3491, %v3494
      %v3496 = vrot.slane %v3495, 4
      %v3498 = vshll.u32 %v3126, 16
      %v3500 = vrot.slane %v3498, 5
      %v3501 = vsel %vm941, %v3496, %v3500
      %v3502 = vshrl.u32 %v3126, 16
      %v3504 = vrot.slane %v3502, 4
      %v3505 = vor.u32 %v3504, %v3500
      %v3506 = vrot.slane %v3505, 4
      %v3508 = vshll.u32 %v3127, 16
      %v3510 = vrot.slane %v3508, 5
      %v3511 = vsel %vm941, %v3506, %v3510
      %3512 = vrot.lane.b32.xlu0 %v3141, 56
      %v3513 = vpop.permute.xlu0 %3512
      %3514 = vrot.lane.b32.xlu0 %v3151, 56
      %v3515 = vpop.permute.xlu0 %3514
      %3516 = vrot.lane.b32.xlu0 %v3165, 56
      %v3517 = vpop.permute.xlu0 %3516
      %3518 = vrot.lane.b32.xlu0 %v3175, 56
      %v3519 = vpop.permute.xlu0 %3518
      %3520 = vrot.lane.b32.xlu0 %v3189, 56
      %v3521 = vpop.permute.xlu0 %3520
      %3522 = vrot.lane.b32.xlu0 %v3199, 56
      %v3523 = vpop.permute.xlu0 %3522
      %3524 = vrot.lane.b32.xlu0 %v3213, 56
      %v3525 = vpop.permute.xlu0 %3524
      %3526 = vrot.lane.b32.xlu0 %v3223, 56
      %v3527 = vpop.permute.xlu0 %3526
      %3528 = vrot.lane.b32.xlu0 %v3237, 56
      %v3529 = vpop.permute.xlu0 %3528
      %3530 = vrot.lane.b32.xlu0 %v3247, 56
      %v3531 = vpop.permute.xlu0 %3530
      %3532 = vrot.lane.b32.xlu0 %v3261, 56
      %v3533 = vpop.permute.xlu0 %3532
      %3534 = vrot.lane.b32.xlu0 %v3271, 56
      %v3535 = vpop.permute.xlu0 %3534
      %3536 = vrot.lane.b32.xlu0 %v3285, 56
      %v3537 = vpop.permute.xlu0 %3536
      %3538 = vrot.lane.b32.xlu0 %v3295, 56
      %v3539 = vpop.permute.xlu0 %3538
      %3540 = vrot.lane.b32.xlu0 %v3309, 56
      %v3541 = vpop.permute.xlu0 %3540
      %3542 = vrot.lane.b32.xlu0 %v3319, 56
      %v3543 = vpop.permute.xlu0 %3542
      %3544 = vrot.lane.b32.xlu0 %v3333, 56
      %v3545 = vpop.permute.xlu0 %3544
      %3546 = vrot.lane.b32.xlu0 %v3343, 56
      %v3547 = vpop.permute.xlu0 %3546
      %3548 = vrot.lane.b32.xlu0 %v3357, 56
      %v3549 = vpop.permute.xlu0 %3548
      %3550 = vrot.lane.b32.xlu0 %v3367, 56
      %v3551 = vpop.permute.xlu0 %3550
      %3552 = vrot.lane.b32.xlu0 %v3381, 56
      %v3553 = vpop.permute.xlu0 %3552
      %3554 = vrot.lane.b32.xlu0 %v3391, 56
      %v3555 = vpop.permute.xlu0 %3554
      %3556 = vrot.lane.b32.xlu0 %v3405, 56
      %v3557 = vpop.permute.xlu0 %3556
      %3558 = vrot.lane.b32.xlu0 %v3415, 56
      %v3559 = vpop.permute.xlu0 %3558
      %3560 = vrot.lane.b32.xlu0 %v3429, 56
      %v3561 = vpop.permute.xlu0 %3560
      %3562 = vrot.lane.b32.xlu0 %v3439, 56
      %v3563 = vpop.permute.xlu0 %3562
      %3564 = vrot.lane.b32.xlu0 %v3453, 56
      %v3565 = vpop.permute.xlu0 %3564
      %3566 = vrot.lane.b32.xlu0 %v3463, 56
      %v3567 = vpop.permute.xlu0 %3566
      %3568 = vrot.lane.b32.xlu0 %v3477, 56
      %v3569 = vpop.permute.xlu0 %3568
      %3570 = vrot.lane.b32.xlu0 %v3487, 56
      %v3571 = vpop.permute.xlu0 %3570
      %3572 = vrot.lane.b32.xlu0 %v3501, 56
      %v3573 = vpop.permute.xlu0 %3572
      %3574 = vrot.lane.b32.xlu0 %v3511, 56
      %v3575 = vpop.permute.xlu0 %3574
      %vm3608 = vcmask 519616
      %3609 = vst.msk [vmem:[#allocation3] sm:$0xf] %vm3608, %v3513
      %3610 = vst.msk [vmem:[#allocation3 + $0x4] sm:$0xf] %vm3608, %v3515
      %3611 = vst.msk [vmem:[#allocation3 + $0x8] sm:$0xf] %vm3608, %v3517
      %3612 = vst.msk [vmem:[#allocation3 + $0xc] sm:$0xf] %vm3608, %v3519
      %3613 = vst.msk [vmem:[#allocation3 + $0x10] sm:$0xf] %vm3608, %v3521
      %3614 = vst.msk [vmem:[#allocation3 + $0x14] sm:$0xf] %vm3608, %v3523
      %3615 = vst.msk [vmem:[#allocation3 + $0x18] sm:$0xf] %vm3608, %v3525
      %3616 = vst.msk [vmem:[#allocation3 + $0x1c] sm:$0xf] %vm3608, %v3527
      %3617 = vst.msk [vmem:[#allocation3 + $0x20] sm:$0xf] %vm3608, %v3529
      %3618 = vst.msk [vmem:[#allocation3 + $0x24] sm:$0xf] %vm3608, %v3531
      %3619 = vst.msk [vmem:[#allocation3 + $0x28] sm:$0xf] %vm3608, %v3533
      %3620 = vst.msk [vmem:[#allocation3 + $0x2c] sm:$0xf] %vm3608, %v3535
      %3621 = vst.msk [vmem:[#allocation3 + $0x30] sm:$0xf] %vm3608, %v3537
      %3622 = vst.msk [vmem:[#allocation3 + $0x34] sm:$0xf] %vm3608, %v3539
      %3623 = vst.msk [vmem:[#allocation3 + $0x38] sm:$0xf] %vm3608, %v3541
      %3624 = vst.msk [vmem:[#allocation3 + $0x3c] sm:$0xf] %vm3608, %v3543
      %3625 = vst.msk [vmem:[#allocation3 + $0x40] sm:$0xf] %vm3608, %v3545
      %3626 = vst.msk [vmem:[#allocation3 + $0x44] sm:$0xf] %vm3608, %v3547
      %3627 = vst.msk [vmem:[#allocation3 + $0x48] sm:$0xf] %vm3608, %v3549
      %3628 = vst.msk [vmem:[#allocation3 + $0x4c] sm:$0xf] %vm3608, %v3551
      %3629 = vst.msk [vmem:[#allocation3 + $0x50] sm:$0xf] %vm3608, %v3553
      %3630 = vst.msk [vmem:[#allocation3 + $0x54] sm:$0xf] %vm3608, %v3555
      %3631 = vst.msk [vmem:[#allocation3 + $0x58] sm:$0xf] %vm3608, %v3557
      %3632 = vst.msk [vmem:[#allocation3 + $0x5c] sm:$0xf] %vm3608, %v3559
      %3633 = vst.msk [vmem:[#allocation3 + $0x60] sm:$0xf] %vm3608, %v3561
      %3634 = vst.msk [vmem:[#allocation3 + $0x64] sm:$0xf] %vm3608, %v3563
      %3635 = vst.msk [vmem:[#allocation3 + $0x68] sm:$0xf] %vm3608, %v3565
      %3636 = vst.msk [vmem:[#allocation3 + $0x6c] sm:$0xf] %vm3608, %v3567
      %3637 = vst.msk [vmem:[#allocation3 + $0x70] sm:$0xf] %vm3608, %v3569
      %3638 = vst.msk [vmem:[#allocation3 + $0x74] sm:$0xf] %vm3608, %v3571
      %3639 = vst.msk [vmem:[#allocation3 + $0x78] sm:$0xf] %vm3608, %v3573
      %3640 = vst.msk [vmem:[#allocation3 + $0x7c] sm:$0xf] %vm3608, %v3575
      %v3641 = vld [vmem:[%s2886] sm:$0xe]
      %v3642 = vld [vmem:[%s2886 + $0x4] sm:$0xf]
      %v3643 = vld [vmem:[%s2886 + $0x8] sm:$0x1]
      %v3644 = vld [vmem:[%s2886 + $0xc] sm:$0xe]
      %v3645 = vld [vmem:[%s2886 + $0x10] sm:$0xf]
      %v3646 = vld [vmem:[%s2886 + $0x14] sm:$0x1]
      %v3647 = vld [vmem:[%s2886 + $0x18] sm:$0xe]
      %v3648 = vld [vmem:[%s2886 + $0x1c] sm:$0xf]
      %v3649 = vld [vmem:[%s2886 + $0x20] sm:$0x1]
      %v3650 = vld [vmem:[%s2886 + $0x24] sm:$0xe]
      %v3651 = vld [vmem:[%s2886 + $0x28] sm:$0xf]
      %v3652 = vld [vmem:[%s2886 + $0x2c] sm:$0x1]
      %v3653 = vld [vmem:[%s2886 + $0x30] sm:$0xe]
      %v3654 = vld [vmem:[%s2886 + $0x34] sm:$0xf]
      %v3655 = vld [vmem:[%s2886 + $0x38] sm:$0x1]
      %v3656 = vld [vmem:[%s2886 + $0x3c] sm:$0xe]
      %v3657 = vld [vmem:[%s2886 + $0x40] sm:$0xf]
      %v3658 = vld [vmem:[%s2886 + $0x44] sm:$0x1]
      %v3659 = vld [vmem:[%s2886 + $0x48] sm:$0xe]
      %v3660 = vld [vmem:[%s2886 + $0x4c] sm:$0xf]
      %v3661 = vld [vmem:[%s2886 + $0x50] sm:$0x1]
      %v3662 = vld [vmem:[%s2886 + $0x54] sm:$0xe]
      %v3663 = vld [vmem:[%s2886 + $0x58] sm:$0xf]
      %v3664 = vld [vmem:[%s2886 + $0x5c] sm:$0x1]
      %v3665 = vld [vmem:[%s2886 + $0x60] sm:$0xe]
      %v3666 = vld [vmem:[%s2886 + $0x64] sm:$0xf]
      %v3667 = vld [vmem:[%s2886 + $0x68] sm:$0x1]
      %v3668 = vld [vmem:[%s2886 + $0x6c] sm:$0xe]
      %v3669 = vld [vmem:[%s2886 + $0x70] sm:$0xf]
      %v3670 = vld [vmem:[%s2886 + $0x74] sm:$0x1]
      %v3671 = vld [vmem:[%s2886 + $0x78] sm:$0xe]
      %v3672 = vld [vmem:[%s2886 + $0x7c] sm:$0xf]
      %v3673 = vld [vmem:[%s2886 + $0x80] sm:$0x1]
      %v3674 = vld [vmem:[%s2886 + $0x84] sm:$0xe]
      %v3675 = vld [vmem:[%s2886 + $0x88] sm:$0xf]
      %v3676 = vld [vmem:[%s2886 + $0x8c] sm:$0x1]
      %v3677 = vld [vmem:[%s2886 + $0x90] sm:$0xe]
      %v3678 = vld [vmem:[%s2886 + $0x94] sm:$0xf]
      %v3679 = vld [vmem:[%s2886 + $0x98] sm:$0x1]
      %v3680 = vld [vmem:[%s2886 + $0x9c] sm:$0xe]
      %v3681 = vld [vmem:[%s2886 + $0xa0] sm:$0xf]
      %v3682 = vld [vmem:[%s2886 + $0xa4] sm:$0x1]
      %v3683 = vld [vmem:[%s2886 + $0xa8] sm:$0xe]
      %v3684 = vld [vmem:[%s2886 + $0xac] sm:$0xf]
      %v3685 = vld [vmem:[%s2886 + $0xb0] sm:$0x1]
      %v3686 = vld [vmem:[%s2886 + $0xb4] sm:$0xe]
      %v3687 = vld [vmem:[%s2886 + $0xb8] sm:$0xf]
      %v3688 = vld [vmem:[%s2886 + $0xbc] sm:$0x1]
      %v3737 = vrot.slane %v3641, 5
      %v3738 = vrot.slane %v3737, 4
      %v3739 = vrot.slane %v3642, 5
      %v3740 = vsel %vm1553, %v3738, %v3739
      %v3741 = vrot.slane %v3739, 4
      %v3742 = vrot.slane %v3643, 5
      %v3743 = vsel %vm1553, %v3741, %v3742
      %v3744 = vrot.slane %v3644, 5
      %v3745 = vrot.slane %v3744, 4
      %v3746 = vrot.slane %v3645, 5
      %v3747 = vsel %vm1553, %v3745, %v3746
      %v3748 = vrot.slane %v3746, 4
      %v3749 = vrot.slane %v3646, 5
      %v3750 = vsel %vm1553, %v3748, %v3749
      %v3751 = vrot.slane %v3647, 5
      %v3752 = vrot.slane %v3751, 4
      %v3753 = vrot.slane %v3648, 5
      %v3754 = vsel %vm1553, %v3752, %v3753
      %v3755 = vrot.slane %v3753, 4
      %v3756 = vrot.slane %v3649, 5
      %v3757 = vsel %vm1553, %v3755, %v3756
      %v3758 = vrot.slane %v3650, 5
      %v3759 = vrot.slane %v3758, 4
      %v3760 = vrot.slane %v3651, 5
      %v3761 = vsel %vm1553, %v3759, %v3760
      %v3762 = vrot.slane %v3760, 4
      %v3763 = vrot.slane %v3652, 5
      %v3764 = vsel %vm1553, %v3762, %v3763
      %v3765 = vrot.slane %v3653, 5
      %v3766 = vrot.slane %v3765, 4
      %v3767 = vrot.slane %v3654, 5
      %v3768 = vsel %vm1553, %v3766, %v3767
      %v3769 = vrot.slane %v3767, 4
      %v3770 = vrot.slane %v3655, 5
      %v3771 = vsel %vm1553, %v3769, %v3770
      %v3772 = vrot.slane %v3656, 5
      %v3773 = vrot.slane %v3772, 4
      %v3774 = vrot.slane %v3657, 5
      %v3775 = vsel %vm1553, %v3773, %v3774
      %v3776 = vrot.slane %v3774, 4
      %v3777 = vrot.slane %v3658, 5
      %v3778 = vsel %vm1553, %v3776, %v3777
      %v3779 = vrot.slane %v3659, 5
      %v3780 = vrot.slane %v3779, 4
      %v3781 = vrot.slane %v3660, 5
      %v3782 = vsel %vm1553, %v3780, %v3781
      %v3783 = vrot.slane %v3781, 4
      %v3784 = vrot.slane %v3661, 5
      %v3785 = vsel %vm1553, %v3783, %v3784
      %v3786 = vrot.slane %v3662, 5
      %v3787 = vrot.slane %v3786, 4
      %v3788 = vrot.slane %v3663, 5
      %v3789 = vsel %vm1553, %v3787, %v3788
      %v3790 = vrot.slane %v3788, 4
      %v3791 = vrot.slane %v3664, 5
      %v3792 = vsel %vm1553, %v3790, %v3791
      %v3793 = vrot.slane %v3665, 5
      %v3794 = vrot.slane %v3793, 4
      %v3795 = vrot.slane %v3666, 5
      %v3796 = vsel %vm1553, %v3794, %v3795
      %v3797 = vrot.slane %v3795, 4
      %v3798 = vrot.slane %v3667, 5
      %v3799 = vsel %vm1553, %v3797, %v3798
      %v3800 = vrot.slane %v3668, 5
      %v3801 = vrot.slane %v3800, 4
      %v3802 = vrot.slane %v3669, 5
      %v3803 = vsel %vm1553, %v3801, %v3802
      %v3804 = vrot.slane %v3802, 4
      %v3805 = vrot.slane %v3670, 5
      %v3806 = vsel %vm1553, %v3804, %v3805
      %v3807 = vrot.slane %v3671, 5
      %v3808 = vrot.slane %v3807, 4
      %v3809 = vrot.slane %v3672, 5
      %v3810 = vsel %vm1553, %v3808, %v3809
      %v3811 = vrot.slane %v3809, 4
      %v3812 = vrot.slane %v3673, 5
      %v3813 = vsel %vm1553, %v3811, %v3812
      %v3814 = vrot.slane %v3674, 5
      %v3815 = vrot.slane %v3814, 4
      %v3816 = vrot.slane %v3675, 5
      %v3817 = vsel %vm1553, %v3815, %v3816
      %v3818 = vrot.slane %v3816, 4
      %v3819 = vrot.slane %v3676, 5
      %v3820 = vsel %vm1553, %v3818, %v3819
      %v3821 = vrot.slane %v3677, 5
      %v3822 = vrot.slane %v3821, 4
      %v3823 = vrot.slane %v3678, 5
      %v3824 = vsel %vm1553, %v3822, %v3823
      %v3825 = vrot.slane %v3823, 4
      %v3826 = vrot.slane %v3679, 5
      %v3827 = vsel %vm1553, %v3825, %v3826
      %v3828 = vrot.slane %v3680, 5
      %v3829 = vrot.slane %v3828, 4
      %v3830 = vrot.slane %v3681, 5
      %v3831 = vsel %vm1553, %v3829, %v3830
      %v3832 = vrot.slane %v3830, 4
      %v3833 = vrot.slane %v3682, 5
      %v3834 = vsel %vm1553, %v3832, %v3833
      %v3835 = vrot.slane %v3683, 5
      %v3836 = vrot.slane %v3835, 4
      %v3837 = vrot.slane %v3684, 5
      %v3838 = vsel %vm1553, %v3836, %v3837
      %v3839 = vrot.slane %v3837, 4
      %v3840 = vrot.slane %v3685, 5
      %v3841 = vsel %vm1553, %v3839, %v3840
      %v3842 = vrot.slane %v3686, 5
      %v3843 = vrot.slane %v3842, 4
      %v3844 = vrot.slane %v3687, 5
      %v3845 = vsel %vm1553, %v3843, %v3844
      %v3846 = vrot.slane %v3844, 4
      %v3847 = vrot.slane %v3688, 5
      %v3848 = vsel %vm1553, %v3846, %v3847
      %3849 = vrot.lane.b32.xlu0 %v3740, 64
      %v3850 = vpop.permute.xlu0 %3849
      %3851 = vrot.lane.b32.xlu0 %v3743, 64
      %v3852 = vpop.permute.xlu0 %3851
      %3853 = vrot.lane.b32.xlu0 %v3747, 64
      %v3854 = vpop.permute.xlu0 %3853
      %3855 = vrot.lane.b32.xlu0 %v3750, 64
      %v3856 = vpop.permute.xlu0 %3855
      %3857 = vrot.lane.b32.xlu0 %v3754, 64
      %v3858 = vpop.permute.xlu0 %3857
      %3859 = vrot.lane.b32.xlu0 %v3757, 64
      %v3860 = vpop.permute.xlu0 %3859
      %3861 = vrot.lane.b32.xlu0 %v3761, 64
      %v3862 = vpop.permute.xlu0 %3861
      %3863 = vrot.lane.b32.xlu0 %v3764, 64
      %v3864 = vpop.permute.xlu0 %3863
      %3865 = vrot.lane.b32.xlu0 %v3768, 64
      %v3866 = vpop.permute.xlu0 %3865
      %3867 = vrot.lane.b32.xlu0 %v3771, 64
      %v3868 = vpop.permute.xlu0 %3867
      %3869 = vrot.lane.b32.xlu0 %v3775, 64
      %v3870 = vpop.permute.xlu0 %3869
      %3871 = vrot.lane.b32.xlu0 %v3778, 64
      %v3872 = vpop.permute.xlu0 %3871
      %3873 = vrot.lane.b32.xlu0 %v3782, 64
      %v3874 = vpop.permute.xlu0 %3873
      %3875 = vrot.lane.b32.xlu0 %v3785, 64
      %v3876 = vpop.permute.xlu0 %3875
      %3877 = vrot.lane.b32.xlu0 %v3789, 64
      %v3878 = vpop.permute.xlu0 %3877
      %3879 = vrot.lane.b32.xlu0 %v3792, 64
      %v3880 = vpop.permute.xlu0 %3879
      %3881 = vrot.lane.b32.xlu0 %v3796, 64
      %v3882 = vpop.permute.xlu0 %3881
      %3883 = vrot.lane.b32.xlu0 %v3799, 64
      %v3884 = vpop.permute.xlu0 %3883
      %3885 = vrot.lane.b32.xlu0 %v3803, 64
      %v3886 = vpop.permute.xlu0 %3885
      %3887 = vrot.lane.b32.xlu0 %v3806, 64
      %v3888 = vpop.permute.xlu0 %3887
      %3889 = vrot.lane.b32.xlu0 %v3810, 64
      %v3890 = vpop.permute.xlu0 %3889
      %3891 = vrot.lane.b32.xlu0 %v3813, 64
      %v3892 = vpop.permute.xlu0 %3891
      %3893 = vrot.lane.b32.xlu0 %v3817, 64
      %v3894 = vpop.permute.xlu0 %3893
      %3895 = vrot.lane.b32.xlu0 %v3820, 64
      %v3896 = vpop.permute.xlu0 %3895
      %3897 = vrot.lane.b32.xlu0 %v3824, 64
      %v3898 = vpop.permute.xlu0 %3897
      %3899 = vrot.lane.b32.xlu0 %v3827, 64
      %v3900 = vpop.permute.xlu0 %3899
      %3901 = vrot.lane.b32.xlu0 %v3831, 64
      %v3902 = vpop.permute.xlu0 %3901
      %3903 = vrot.lane.b32.xlu0 %v3834, 64
      %v3904 = vpop.permute.xlu0 %3903
      %3905 = vrot.lane.b32.xlu0 %v3838, 64
      %v3906 = vpop.permute.xlu0 %3905
      %3907 = vrot.lane.b32.xlu0 %v3841, 64
      %v3908 = vpop.permute.xlu0 %3907
      %3909 = vrot.lane.b32.xlu0 %v3845, 64
      %v3910 = vpop.permute.xlu0 %3909
      %3911 = vrot.lane.b32.xlu0 %v3848, 64
      %v3912 = vpop.permute.xlu0 %3911
      %vm3945 = vcmask 585216
      %3946 = vst.msk [vmem:[#allocation3] sm:$0xf] %vm3945, %v3850
      %3947 = vst.msk [vmem:[#allocation3 + $0x4] sm:$0xf] %vm3945, %v3852
      %3948 = vst.msk [vmem:[#allocation3 + $0x8] sm:$0xf] %vm3945, %v3854
      %3949 = vst.msk [vmem:[#allocation3 + $0xc] sm:$0xf] %vm3945, %v3856
      %3950 = vst.msk [vmem:[#allocation3 + $0x10] sm:$0xf] %vm3945, %v3858
      %3951 = vst.msk [vmem:[#allocation3 + $0x14] sm:$0xf] %vm3945, %v3860
      %3952 = vst.msk [vmem:[#allocation3 + $0x18] sm:$0xf] %vm3945, %v3862
      %3953 = vst.msk [vmem:[#allocation3 + $0x1c] sm:$0xf] %vm3945, %v3864
      %3954 = vst.msk [vmem:[#allocation3 + $0x20] sm:$0xf] %vm3945, %v3866
      %3955 = vst.msk [vmem:[#allocation3 + $0x24] sm:$0xf] %vm3945, %v3868
      %3956 = vst.msk [vmem:[#allocation3 + $0x28] sm:$0xf] %vm3945, %v3870
      %3957 = vst.msk [vmem:[#allocation3 + $0x2c] sm:$0xf] %vm3945, %v3872
      %3958 = vst.msk [vmem:[#allocation3 + $0x30] sm:$0xf] %vm3945, %v3874
      %3959 = vst.msk [vmem:[#allocation3 + $0x34] sm:$0xf] %vm3945, %v3876
      %3960 = vst.msk [vmem:[#allocation3 + $0x38] sm:$0xf] %vm3945, %v3878
      %3961 = vst.msk [vmem:[#allocation3 + $0x3c] sm:$0xf] %vm3945, %v3880
      %3962 = vst.msk [vmem:[#allocation3 + $0x40] sm:$0xf] %vm3945, %v3882
      %3963 = vst.msk [vmem:[#allocation3 + $0x44] sm:$0xf] %vm3945, %v3884
      %3964 = vst.msk [vmem:[#allocation3 + $0x48] sm:$0xf] %vm3945, %v3886
      %3965 = vst.msk [vmem:[#allocation3 + $0x4c] sm:$0xf] %vm3945, %v3888
      %3966 = vst.msk [vmem:[#allocation3 + $0x50] sm:$0xf] %vm3945, %v3890
      %3967 = vst.msk [vmem:[#allocation3 + $0x54] sm:$0xf] %vm3945, %v3892
      %3968 = vst.msk [vmem:[#allocation3 + $0x58] sm:$0xf] %vm3945, %v3894
      %3969 = vst.msk [vmem:[#allocation3 + $0x5c] sm:$0xf] %vm3945, %v3896
      %3970 = vst.msk [vmem:[#allocation3 + $0x60] sm:$0xf] %vm3945, %v3898
      %3971 = vst.msk [vmem:[#allocation3 + $0x64] sm:$0xf] %vm3945, %v3900
      %3972 = vst.msk [vmem:[#allocation3 + $0x68] sm:$0xf] %vm3945, %v3902
      %3973 = vst.msk [vmem:[#allocation3 + $0x6c] sm:$0xf] %vm3945, %v3904
      %3974 = vst.msk [vmem:[#allocation3 + $0x70] sm:$0xf] %vm3945, %v3906
      %3975 = vst.msk [vmem:[#allocation3 + $0x74] sm:$0xf] %vm3945, %v3908
      %3976 = vst.msk [vmem:[#allocation3 + $0x78] sm:$0xf] %vm3945, %v3910
      %3977 = vst.msk [vmem:[#allocation3 + $0x7c] sm:$0xf] %vm3945, %v3912
      %v3978 = vld [vmem:[#allocation3] sm:$0xf]
      %v3979 = vld [vmem:[#allocation3 + $0x4] sm:$0xf]
      %v3980 = vld [vmem:[#allocation3 + $0x8] sm:$0xf]
      %v3981 = vld [vmem:[#allocation3 + $0xc] sm:$0xf]
      %v3982 = vld [vmem:[#allocation3 + $0x10] sm:$0xf]
      %v3983 = vld [vmem:[#allocation3 + $0x14] sm:$0xf]
      %v3984 = vld [vmem:[#allocation3 + $0x18] sm:$0xf]
      %v3985 = vld [vmem:[#allocation3 + $0x1c] sm:$0xf]
      %v3986 = vld [vmem:[#allocation3 + $0x20] sm:$0xf]
      %v3987 = vld [vmem:[#allocation3 + $0x24] sm:$0xf]
      %v3988 = vld [vmem:[#allocation3 + $0x28] sm:$0xf]
      %v3989 = vld [vmem:[#allocation3 + $0x2c] sm:$0xf]
      %v3990 = vld [vmem:[#allocation3 + $0x30] sm:$0xf]
      %v3991 = vld [vmem:[#allocation3 + $0x34] sm:$0xf]
      %v3992 = vld [vmem:[#allocation3 + $0x38] sm:$0xf]
      %v3993 = vld [vmem:[#allocation3 + $0x3c] sm:$0xf]
      %v3994 = vld [vmem:[#allocation3 + $0x40] sm:$0xf]
      %v3995 = vld [vmem:[#allocation3 + $0x44] sm:$0xf]
      %v3996 = vld [vmem:[#allocation3 + $0x48] sm:$0xf]
      %v3997 = vld [vmem:[#allocation3 + $0x4c] sm:$0xf]
      %v3998 = vld [vmem:[#allocation3 + $0x50] sm:$0xf]
      %v3999 = vld [vmem:[#allocation3 + $0x54] sm:$0xf]
      %v4000 = vld [vmem:[#allocation3 + $0x58] sm:$0xf]
      %v4001 = vld [vmem:[#allocation3 + $0x5c] sm:$0xf]
      %v4002 = vld [vmem:[#allocation3 + $0x60] sm:$0xf]
      %v4003 = vld [vmem:[#allocation3 + $0x64] sm:$0xf]
      %v4004 = vld [vmem:[#allocation3 + $0x68] sm:$0xf]
      %v4005 = vld [vmem:[#allocation3 + $0x6c] sm:$0xf]
      %v4006 = vld [vmem:[#allocation3 + $0x70] sm:$0xf]
      %v4007 = vld [vmem:[#allocation3 + $0x74] sm:$0xf]
      %v4008 = vld [vmem:[#allocation3 + $0x78] sm:$0xf]
      %v4009 = vld [vmem:[#allocation3 + $0x7c] sm:$0xf]
      %v4010 = vld [vmem:[%s1] sm:$0xf]
      %v4011 = vld [vmem:[%s1 + $0x4] sm:$0xf]
      %v4012 = vld [vmem:[%s1 + $0x8] sm:$0xf]
      %v4013 = vld [vmem:[%s1 + $0xc] sm:$0xf]
      %v4014 = vld [vmem:[%s1 + $0x10] sm:$0xf]
      %v4015 = vld [vmem:[%s1 + $0x14] sm:$0xf]
      %v4016 = vld [vmem:[%s1 + $0x18] sm:$0xf]
      %v4017 = vld [vmem:[%s1 + $0x1c] sm:$0xf]
      %v4018 = vld [vmem:[%s1 + $0x20] sm:$0xf]
      %v4019 = vld [vmem:[%s1 + $0x24] sm:$0xf]
      %v4020 = vld [vmem:[%s1 + $0x28] sm:$0xf]
      %v4021 = vld [vmem:[%s1 + $0x2c] sm:$0xf]
      %v4022 = vld [vmem:[%s1 + $0x30] sm:$0xf]
      %v4023 = vld [vmem:[%s1 + $0x34] sm:$0xf]
      %v4024 = vld [vmem:[%s1 + $0x38] sm:$0xf]
      %v4025 = vld [vmem:[%s1 + $0x3c] sm:$0xf]
      %v4058 = vunpack.c.l.b16 %v3978
      %v4059 = vunpack.c.l.b16 %v3979
      %v4060 = vunpack.c.l.b16 %v3980
      %v4061 = vunpack.c.l.b16 %v3981
      %v4062 = vunpack.c.l.b16 %v3982
      %v4063 = vunpack.c.l.b16 %v3983
      %v4064 = vunpack.c.l.b16 %v3984
      %v4065 = vunpack.c.l.b16 %v3985
      %v4066 = vunpack.c.l.b16 %v3986
      %v4067 = vunpack.c.l.b16 %v3987
      %v4068 = vunpack.c.l.b16 %v3988
      %v4069 = vunpack.c.l.b16 %v3989
      %v4070 = vunpack.c.l.b16 %v3990
      %v4071 = vunpack.c.l.b16 %v3991
      %v4072 = vunpack.c.l.b16 %v3992
      %v4073 = vunpack.c.l.b16 %v3993
      %v4074 = vunpack.c.l.b16 %v3994
      %v4075 = vunpack.c.l.b16 %v3995
      %v4076 = vunpack.c.l.b16 %v3996
      %v4077 = vunpack.c.l.b16 %v3997
      %v4078 = vunpack.c.l.b16 %v3998
      %v4079 = vunpack.c.l.b16 %v3999
      %v4080 = vunpack.c.l.b16 %v4000
      %v4081 = vunpack.c.l.b16 %v4001
      %v4082 = vunpack.c.l.b16 %v4002
      %v4083 = vunpack.c.l.b16 %v4003
      %v4084 = vunpack.c.l.b16 %v4004
      %v4085 = vunpack.c.l.b16 %v4005
      %v4086 = vunpack.c.l.b16 %v4006
      %v4087 = vunpack.c.l.b16 %v4007
      %v4088 = vunpack.c.l.b16 %v4008
      %v4089 = vunpack.c.l.b16 %v4009
      %v4090 = vpack.c.b16 %v4059, %v4058
      %v4091 = vpack.c.b16 %v4061, %v4060
      %v4092 = vpack.c.b16 %v4063, %v4062
      %v4093 = vpack.c.b16 %v4065, %v4064
      %v4094 = vpack.c.b16 %v4067, %v4066
      %v4095 = vpack.c.b16 %v4069, %v4068
      %v4096 = vpack.c.b16 %v4071, %v4070
      %v4097 = vpack.c.b16 %v4073, %v4072
      %v4098 = vpack.c.b16 %v4075, %v4074
      %v4099 = vpack.c.b16 %v4077, %v4076
      %v4100 = vpack.c.b16 %v4079, %v4078
      %v4101 = vpack.c.b16 %v4081, %v4080
      %v4102 = vpack.c.b16 %v4083, %v4082
      %v4103 = vpack.c.b16 %v4085, %v4084
      %v4104 = vpack.c.b16 %v4087, %v4086
      %v4105 = vpack.c.b16 %v4089, %v4088
      %v4138 = vunpack.c.l.b16 %v4010
      %v4139 = vunpack.c.l.b16 %v4011
      %v4140 = vunpack.c.l.b16 %v4012
      %v4141 = vunpack.c.l.b16 %v4013
      %v4142 = vunpack.c.l.b16 %v4014
      %v4143 = vunpack.c.l.b16 %v4015
      %v4144 = vunpack.c.l.b16 %v4016
      %v4145 = vunpack.c.l.b16 %v4017
      %v4146 = vunpack.c.l.b16 %v4018
      %v4147 = vunpack.c.l.b16 %v4019
      %v4148 = vunpack.c.l.b16 %v4020
      %v4149 = vunpack.c.l.b16 %v4021
      %v4150 = vunpack.c.l.b16 %v4022
      %v4151 = vunpack.c.l.b16 %v4023
      %v4152 = vunpack.c.l.b16 %v4024
      %v4153 = vunpack.c.l.b16 %v4025
      %v4154 = vpack.c.b16 %v4139, %v4138
      %v4155 = vpack.c.b16 %v4141, %v4140
      %v4156 = vpack.c.b16 %v4143, %v4142
      %v4157 = vpack.c.b16 %v4145, %v4144
      %v4158 = vpack.c.b16 %v4147, %v4146
      %v4159 = vpack.c.b16 %v4149, %v4148
      %v4160 = vpack.c.b16 %v4151, %v4150
      %v4161 = vpack.c.b16 %v4153, %v4152
      %4170 = vmatpush.bf16.msra.mxu0 %v4161
      %4171 = vmatpush.bf16.msra.mxu0 %v4160
      %4172 = vmatpush.bf16.msra.mxu0 %v4159
      %4173 = vmatpush.bf16.msra.mxu0 %v4158
      %4174 = vmatpush.bf16.msra.mxu0 %v4157
      %4175 = vmatpush.bf16.msra.mxu0 %v4156
      %4176 = vmatpush.bf16.msra.mxu0 %v4155
      %4177 = vmatpush.bf16.msra.mxu0 %v4154
      %4178 = vmatmul.bf16.gmra.mxu0 %v4090
      %v4179 = vpop.f32.mrf.mxu0
      %v4180 = vadd.f32 0.0, %v4179
      %v4181 = vpop.f32.mrf.mxu0
      %v4182 = vadd.f32 0.0, %v4181
      %4183 = vmatmul.bf16.gmra.mxu0 %v4091
      %v4184 = vpop.f32.mrf.mxu0
      %v4185 = vadd.f32 0.0, %v4184
      %v4186 = vpop.f32.mrf.mxu0
      %v4187 = vadd.f32 0.0, %v4186
      %4188 = vmatmul.bf16.gmra.mxu0 %v4092
      %v4189 = vpop.f32.mrf.mxu0
      %v4190 = vadd.f32 0.0, %v4189
      %v4191 = vpop.f32.mrf.mxu0
      %v4192 = vadd.f32 0.0, %v4191
      %4193 = vmatmul.bf16.gmra.mxu0 %v4093
      %v4194 = vpop.f32.mrf.mxu0
      %v4195 = vadd.f32 0.0, %v4194
      %v4196 = vpop.f32.mrf.mxu0
      %v4197 = vadd.f32 0.0, %v4196
      %4198 = vmatmul.bf16.gmra.mxu0 %v4094
      %v4199 = vpop.f32.mrf.mxu0
      %v4200 = vadd.f32 0.0, %v4199
      %v4201 = vpop.f32.mrf.mxu0
      %v4202 = vadd.f32 0.0, %v4201
      %4203 = vmatmul.bf16.gmra.mxu0 %v4095
      %v4204 = vpop.f32.mrf.mxu0
      %v4205 = vadd.f32 0.0, %v4204
      %v4206 = vpop.f32.mrf.mxu0
      %v4207 = vadd.f32 0.0, %v4206
      %4208 = vmatmul.bf16.gmra.mxu0 %v4096
      %v4209 = vpop.f32.mrf.mxu0
      %v4210 = vadd.f32 0.0, %v4209
      %v4211 = vpop.f32.mrf.mxu0
      %v4212 = vadd.f32 0.0, %v4211
      %4213 = vmatmul.bf16.gmra.mxu0 %v4097
      %v4214 = vpop.f32.mrf.mxu0
      %v4215 = vadd.f32 0.0, %v4214
      %v4216 = vpop.f32.mrf.mxu0
      %v4217 = vadd.f32 0.0, %v4216
      %4218 = vmatmul.bf16.gmra.mxu0 %v4098
      %v4219 = vpop.f32.mrf.mxu0
      %v4220 = vadd.f32 0.0, %v4219
      %v4221 = vpop.f32.mrf.mxu0
      %v4222 = vadd.f32 0.0, %v4221
      %4223 = vmatmul.bf16.gmra.mxu0 %v4099
      %v4224 = vpop.f32.mrf.mxu0
      %v4225 = vadd.f32 0.0, %v4224
      %v4226 = vpop.f32.mrf.mxu0
      %v4227 = vadd.f32 0.0, %v4226
      %4228 = vmatmul.bf16.gmra.mxu0 %v4100
      %v4229 = vpop.f32.mrf.mxu0
      %v4230 = vadd.f32 0.0, %v4229
      %v4231 = vpop.f32.mrf.mxu0
      %v4232 = vadd.f32 0.0, %v4231
      %4233 = vmatmul.bf16.gmra.mxu0 %v4101
      %v4234 = vpop.f32.mrf.mxu0
      %v4235 = vadd.f32 0.0, %v4234
      %v4236 = vpop.f32.mrf.mxu0
      %v4237 = vadd.f32 0.0, %v4236
      %4238 = vmatmul.bf16.gmra.mxu0 %v4102
      %v4239 = vpop.f32.mrf.mxu0
      %v4240 = vadd.f32 0.0, %v4239
      %v4241 = vpop.f32.mrf.mxu0
      %v4242 = vadd.f32 0.0, %v4241
      %4243 = vmatmul.bf16.gmra.mxu0 %v4103
      %v4244 = vpop.f32.mrf.mxu0
      %v4245 = vadd.f32 0.0, %v4244
      %v4246 = vpop.f32.mrf.mxu0
      %v4247 = vadd.f32 0.0, %v4246
      %4248 = vmatmul.bf16.gmra.mxu0 %v4104
      %v4249 = vpop.f32.mrf.mxu0
      %v4250 = vadd.f32 0.0, %v4249
      %v4251 = vpop.f32.mrf.mxu0
      %v4252 = vadd.f32 0.0, %v4251
      %4253 = vmatmul.bf16.gmra.mxu0 %v4105
      %v4254 = vpop.f32.mrf.mxu0
      %v4255 = vadd.f32 0.0, %v4254
      %v4256 = vpop.f32.mrf.mxu0
      %v4257 = vadd.f32 0.0, %v4256
      %4258 = vdwg.mxu0
      %4259 = vst [vmem:[%s177] sm:$0xff] %v4180
      %4260 = vst [vmem:[%s177 + $0x8] sm:$0xff] %v4182
      %4261 = vst [vmem:[%s177 + $0x10] sm:$0xff] %v4185
      %4262 = vst [vmem:[%s177 + $0x18] sm:$0xff] %v4187
      %4263 = vst [vmem:[%s177 + $0x20] sm:$0xff] %v4190
      %4264 = vst [vmem:[%s177 + $0x28] sm:$0xff] %v4192
      %4265 = vst [vmem:[%s177 + $0x30] sm:$0xff] %v4195
      %4266 = vst [vmem:[%s177 + $0x38] sm:$0xff] %v4197
      %4267 = vst [vmem:[%s177 + $0x40] sm:$0xff] %v4200
      %4268 = vst [vmem:[%s177 + $0x48] sm:$0xff] %v4202
      %4269 = vst [vmem:[%s177 + $0x50] sm:$0xff] %v4205
      %4270 = vst [vmem:[%s177 + $0x58] sm:$0xff] %v4207
      %4271 = vst [vmem:[%s177 + $0x60] sm:$0xff] %v4210
      %4272 = vst [vmem:[%s177 + $0x68] sm:$0xff] %v4212
      %4273 = vst [vmem:[%s177 + $0x70] sm:$0xff] %v4215
      %4274 = vst [vmem:[%s177 + $0x78] sm:$0xff] %v4217
      %4275 = vst [vmem:[%s177 + $0x80] sm:$0xff] %v4220
      %4276 = vst [vmem:[%s177 + $0x88] sm:$0xff] %v4222
      %4277 = vst [vmem:[%s177 + $0x90] sm:$0xff] %v4225
      %4278 = vst [vmem:[%s177 + $0x98] sm:$0xff] %v4227
      %4279 = vst [vmem:[%s177 + $0xa0] sm:$0xff] %v4230
      %4280 = vst [vmem:[%s177 + $0xa8] sm:$0xff] %v4232
      %4281 = vst [vmem:[%s177 + $0xb0] sm:$0xff] %v4235
      %4282 = vst [vmem:[%s177 + $0xb8] sm:$0xff] %v4237
      %4283 = vst [vmem:[%s177 + $0xc0] sm:$0xff] %v4240
      %4284 = vst [vmem:[%s177 + $0xc8] sm:$0xff] %v4242
      %4285 = vst [vmem:[%s177 + $0xd0] sm:$0xff] %v4245
      %4286 = vst [vmem:[%s177 + $0xd8] sm:$0xff] %v4247
      %4287 = vst [vmem:[%s177 + $0xe0] sm:$0xff] %v4250
      %4288 = vst [vmem:[%s177 + $0xe8] sm:$0xff] %v4252
      %4289 = vst [vmem:[%s177 + $0xf0] sm:$0xff] %v4255
      %4290 = vst [vmem:[%s177 + $0xf8] sm:$0xff] %v4257
      %v4291 = vadd.f32 %v4180, %v4182
      %v4292 = vadd.f32 %v4291, %v4185
      %v4293 = vadd.f32 %v4292, %v4187
      %v4294 = vadd.f32 %v4293, %v4190
      %v4295 = vadd.f32 %v4294, %v4192
      %v4296 = vadd.f32 %v4295, %v4195
      %v4297 = vadd.f32 %v4296, %v4197
      %v4298 = vadd.f32 %v4297, %v4200
      %v4299 = vadd.f32 %v4298, %v4202
      %v4300 = vadd.f32 %v4299, %v4205
      %v4301 = vadd.f32 %v4300, %v4207
      %v4302 = vadd.f32 %v4301, %v4210
      %v4303 = vadd.f32 %v4302, %v4212
      %v4304 = vadd.f32 %v4303, %v4215
      %v4305 = vadd.f32 %v4304, %v4217
      %v4306 = vadd.f32 %v4305, %v4220
      %v4307 = vadd.f32 %v4306, %v4222
      %v4308 = vadd.f32 %v4307, %v4225
      %v4309 = vadd.f32 %v4308, %v4227
      %v4310 = vadd.f32 %v4309, %v4230
      %v4311 = vadd.f32 %v4310, %v4232
      %v4312 = vadd.f32 %v4311, %v4235
      %v4313 = vadd.f32 %v4312, %v4237
      %v4314 = vadd.f32 %v4313, %v4240
      %v4315 = vadd.f32 %v4314, %v4242
      %v4316 = vadd.f32 %v4315, %v4245
      %v4317 = vadd.f32 %v4316, %v4247
      %v4318 = vadd.f32 %v4317, %v4250
      %v4319 = vadd.f32 %v4318, %v4252
      %v4320 = vadd.f32 %v4319, %v4255
      %v4321 = vadd.f32 %v4320, %v4257
      %v4322 = vrot.slane %v4321, 4
      %v4323 = vadd.f32 %v4321, %v4322
      %v4324 = vrot.slane %v4323, 2
      %v4325 = vadd.f32 %v4323, %v4324
      %v4326 = vrot.slane %v4325, 1
      %v4327 = vadd.f32 %v4325, %v4326
      %4328 = vst [vmem:[%s181] sm:$0x1] %v4327
      %v4329 = vmul.f32 %v4180, %v4180
      %v4330 = vmul.f32 %v4182, %v4182
      %v4331 = vmul.f32 %v4185, %v4185
      %v4332 = vmul.f32 %v4187, %v4187
      %v4333 = vmul.f32 %v4190, %v4190
      %v4334 = vmul.f32 %v4192, %v4192
      %v4335 = vmul.f32 %v4195, %v4195
      %v4336 = vmul.f32 %v4197, %v4197
      %v4337 = vmul.f32 %v4200, %v4200
      %v4338 = vmul.f32 %v4202, %v4202
      %v4339 = vmul.f32 %v4205, %v4205
      %v4340 = vmul.f32 %v4207, %v4207
      %v4341 = vmul.f32 %v4210, %v4210
      %v4342 = vmul.f32 %v4212, %v4212
      %v4343 = vmul.f32 %v4215, %v4215
      %v4344 = vmul.f32 %v4217, %v4217
      %v4345 = vmul.f32 %v4220, %v4220
      %v4346 = vmul.f32 %v4222, %v4222
      %v4347 = vmul.f32 %v4225, %v4225
      %v4348 = vmul.f32 %v4227, %v4227
      %v4349 = vmul.f32 %v4230, %v4230
      %v4350 = vmul.f32 %v4232, %v4232
      %v4351 = vmul.f32 %v4235, %v4235
      %v4352 = vmul.f32 %v4237, %v4237
      %v4353 = vmul.f32 %v4240, %v4240
      %v4354 = vmul.f32 %v4242, %v4242
      %v4355 = vmul.f32 %v4245, %v4245
      %v4356 = vmul.f32 %v4247, %v4247
      %v4357 = vmul.f32 %v4250, %v4250
      %v4358 = vmul.f32 %v4252, %v4252
      %v4359 = vmul.f32 %v4255, %v4255
      %v4360 = vmul.f32 %v4257, %v4257
      %v4361 = vadd.f32 %v4329, %v4330
      %v4362 = vadd.f32 %v4361, %v4331
      %v4363 = vadd.f32 %v4362, %v4332
      %v4364 = vadd.f32 %v4363, %v4333
      %v4365 = vadd.f32 %v4364, %v4334
      %v4366 = vadd.f32 %v4365, %v4335
      %v4367 = vadd.f32 %v4366, %v4336
      %v4368 = vadd.f32 %v4367, %v4337
      %v4369 = vadd.f32 %v4368, %v4338
      %v4370 = vadd.f32 %v4369, %v4339
      %v4371 = vadd.f32 %v4370, %v4340
      %v4372 = vadd.f32 %v4371, %v4341
      %v4373 = vadd.f32 %v4372, %v4342
      %v4374 = vadd.f32 %v4373, %v4343
      %v4375 = vadd.f32 %v4374, %v4344
      %v4376 = vadd.f32 %v4375, %v4345
      %v4377 = vadd.f32 %v4376, %v4346
      %v4378 = vadd.f32 %v4377, %v4347
      %v4379 = vadd.f32 %v4378, %v4348
      %v4380 = vadd.f32 %v4379, %v4349
      %v4381 = vadd.f32 %v4380, %v4350
      %v4382 = vadd.f32 %v4381, %v4351
      %v4383 = vadd.f32 %v4382, %v4352
      %v4384 = vadd.f32 %v4383, %v4353
      %v4385 = vadd.f32 %v4384, %v4354
      %v4386 = vadd.f32 %v4385, %v4355
      %v4387 = vadd.f32 %v4386, %v4356
      %v4388 = vadd.f32 %v4387, %v4357
      %v4389 = vadd.f32 %v4388, %v4358
      %v4390 = vadd.f32 %v4389, %v4359
      %v4391 = vadd.f32 %v4390, %v4360
      %v4392 = vrot.slane %v4391, 4
      %v4393 = vadd.f32 %v4391, %v4392
      %v4394 = vrot.slane %v4393, 2
      %v4395 = vadd.f32 %v4393, %v4394
      %v4396 = vrot.slane %v4395, 1
      %v4397 = vadd.f32 %v4395, %v4396
      %4398 = vst [vmem:[%s181 + $0x1] sm:$0x1] %v4397
      %p4399 = scmp.lt.s32.totalorder %s15, 1
      %s4400 = scalar_select %p4399, %s15, 1
      %s4401 = smul.addr %s4400, 32
      %s4402 = smul.addr %s4401, 8
      %s4403 = scalar_lea.vmem %s2, %s4402
      %p4404 = scmp.lt.s32.totalorder %s15, 1
      %s4405 = scalar_select %p4404, %s15, 1
      %s4406 = smul.addr %s4405, 2
      %s4407 = scalar_lea.vmem %s3, %s4406
      // Predicated region
      $region29: #{residual_block.3} parent=27 // pred_check
        %p4408 = pneg %p80
      $region30: #{residual_block.3} parent=27 // pred_check_branch
        %4410 = sbr.rel (%p4408) target = $region32
      $region31: #{residual_block.3} parent=27 // pred_region
        _
      $region32: #{residual_block.3} parent=27 // pred_fallthru
        _
      // Predicated region
      $region33: #{residual_block.3} parent=27 // pred_check
        %p4411 = pneg %p106
      $region34: #{residual_block.3} parent=27 // pred_check_branch
        %4413 = sbr.rel (%p4411) target = $region36
      $region35: #{residual_block.3} parent=27 // pred_region
        _
      $region36: #{residual_block.3} parent=27 // pred_fallthru
        _
    $region28: #{residual_block.3} parent=5 // pred_fallthru
      _
    %p4414 = scmp.le.s32.totalorder 2, %s10
    // Predicated region
    $region37: #{residual_block.3} parent=5 // pred_check
      %p4415 = pneg %p4414
    $region38: #{residual_block.3} parent=5 // pred_check_branch
      %4417 = sbr.rel (%p4415) target = $region40
    $region39: #{residual_block.3} parent=5 // pred_region
      %s4418 = ssub.s32 %s10, 2
      // Predicated region
      $region41: #{residual_block.3} parent=39 // pred_check
        %p4419 = pneg %p86
      $region42: #{residual_block.3} parent=39 // pred_check_branch
        %4421 = sbr.rel (%p4419) target = $region44
      $region43: #{residual_block.3} parent=39 // pred_region
        %p4422 = scmp.lt.s32.totalorder %s16, 1
        %s4423 = scalar_select %p4422, %s16, 1
        %s4424 = smul.addr %s4423, 32
        %s4425 = smul.addr %s4424, 8
        %s4426 = scalar_lea.vmem %s2, %s4425
      $region44: #{residual_block.3} parent=39 // pred_fallthru
        _
      // Predicated region
      $region45: #{residual_block.3} parent=39 // pred_check
        %p4427 = pneg %p112
      $region46: #{residual_block.3} parent=39 // pred_check_branch
        %4429 = sbr.rel (%p4427) target = $region48
      $region47: #{residual_block.3} parent=39 // pred_region
        %p4430 = scmp.lt.s32.totalorder %s16, 1
        %s4431 = scalar_select %p4430, %s16, 1
        %s4432 = smul.addr %s4431, 2
        %s4433 = scalar_lea.vmem %s3, %s4432
      $region48: #{residual_block.3} parent=39 // pred_fallthru
        _
    $region40: #{residual_block.3} parent=5 // pred_fallthru
      _
  $region6: #{residual_block.3} parent=0 // loop_footer
    %s14 = sadd.s32 1, %s10
  $region7: #{residual_block.3} parent=0 // loop_footer_branch
    %9 = sbr.rel target = $region3
  $region8: #{residual_block.3} parent=0 // loop_exit
    _

// kernel: residual_block.4
$region0: #{residual_block.4}
  #allocation0 [shape = 'u32[]', space=smem, size = 0x4, offset = 0x4, fixed_abs, tag = 'smem constant byte address 0x4 - core index']
  #allocation1 [shape = 'u32[72,128]{1,0:T(1,128)}', space=vmem, size = 0x9000, scoped, tag = 'internal scratch']
  #allocation2 [shape = 'bf16[18,18,8]{2,1,0:T(8,128)(2,1)}', space=vmem, size = 0x1b000, scoped, tag = 'scratch operand']
  #allocation3 [shape = 'bf16[256,128]{1,0:T(8,128)(2,1)}', space=vmem, size = 0x10000, scoped, tag = 'scratch operand']
  %s0 = inlined_call_operand.vmem [shape: f32[2,256,128], index: 0, kind: input, shape index: {}]
  %s1 = inlined_call_operand.vmem [shape: f32[1,128], index: 1, kind: input, shape index: {}]
  %s2 = inlined_call_operand.vmem [shape: f32[1,128], index: 2, kind: input, shape index: {}]
  %s3 = inlined_call_operand.vmem [shape: bf16[128,128], index: 3, kind: input, shape index: {}]
  %s4 = inlined_call_operand.vmem [shape: f32[2,256,128], index: 4, kind: output, shape index: {0}]
  %s5 = inlined_call_operand.vmem [shape: f32[2,2,128], index: 5, kind: output, shape index: {1}]
  %6 = xla_tuple %s4, %s5
  %s7 = sld [smem:[#allocation0]]
  $region57: #{residual_block.4} parent=0
    _
  %s9 = ssub.s32 1, %s7
  %s10 = scalar_select 0, %s9, %s7
  loop: start=0, step=1, limit=4
  $region2: #{residual_block.4} parent=0 // loop_pre_header
    _
  $region3: #{residual_block.4} parent=0 // loop_header
    %s12 = sphi 0, %s16
    %p13 = scmp.ge.s32.totalorder %s12, 4
    %s22 = sphi 0, %s24
    %s25 = sphi 0, %s22
    %s26 = sphi 0, %s25
    %s42 = sphi 0, %s26
    %s46 = sphi 0, %s46
    %s48 = sphi 0, %s46
    %s49 = sphi 0, %s48
    %s63 = sphi 0, %s49
    %s67 = sphi 0, %s67
    %s69 = sphi 0, %s67
    %s70 = sphi 0, %s69
    %s84 = sphi 0, %s70
    %s88 = sphi 0, %s88
    %s90 = sphi 0, %s88
    %s91 = sphi 0, %s90
    %s105 = sphi 0, %s91
    %s111 = sphi 0, %s113
    %s114 = sphi 0, %s111
    %s115 = sphi 0, %s114
    %s131 = sphi 0, %s115
    %s137 = sphi 0, %s139
    %s140 = sphi 0, %s137
    %s141 = sphi 0, %s140
    %s157 = sphi 0, %s141
  $region4: #{residual_block.4} parent=0 // loop_header_branch
    %15 = sbr.rel (%p13) target = $region8
  $region5: #{residual_block.4} parent=0 // loop_body
    %s17 = ssub.s32 %s12, 1
    %s18 = ssub.s32 %s12, 2
    %s19 = sadd.s32 %s12, 1
    %s20 = ssub.s32 %s12, %s19
    %p21 = scmp.eq.s32.totalorder %s20, 0
    %s23 = sadd.s32 %s22, 1
    %s24 = scalar_select %p21, %s22, %s23
    %p27 = pneg %p21
    %p28 = scmp.eq.s32.totalorder %s12, 1
    %p29 = por %p27, %p28
    %p30 = scmp.ne.s32.totalorder %s22, %s25
    %p31 = scmp.eq.s32.totalorder %s12, 0
    %p32 = por %p30, %p31
    %p33 = scmp.ne.s32.totalorder %s22, %s25
    %p34 = scmp.eq.s32.totalorder %s17, 1
    %p35 = por %p33, %p34
    %p36 = scmp.ne.s32.totalorder %s25, %s26
    %p37 = scmp.eq.s32.totalorder %s17, 0
    %p38 = por %p36, %p37
    %p39 = scmp.ne.s32.totalorder %s25, %s26
    %p40 = scmp.eq.s32.totalorder %s18, 1
    %p41 = por %p39, %p40
    %p43 = scmp.ne.s32.totalorder %s26, %s42
    %p44 = scmp.eq.s32.totalorder %s18, 0
    %p45 = por %p43, %p44
    %s47 = sadd.s32 %s46, 1
    %p50 = scmp.eq.s32.totalorder %s12, 1
    %p51 = scmp.ne.s32.totalorder %s46, %s48
    %p52 = scmp.eq.s32.totalorder %s12, 0
    %p53 = por %p51, %p52
    %p54 = scmp.ne.s32.totalorder %s46, %s48
    %p55 = scmp.eq.s32.totalorder %s17, 1
    %p56 = por %p54, %p55
    %p57 = scmp.ne.s32.totalorder %s48, %s49
    %p58 = scmp.eq.s32.totalorder %s17, 0
    %p59 = por %p57, %p58
    %p60 = scmp.ne.s32.totalorder %s48, %s49
    %p61 = scmp.eq.s32.totalorder %s18, 1
    %p62 = por %p60, %p61
    %p64 = scmp.ne.s32.totalorder %s49, %s63
    %p65 = scmp.eq.s32.totalorder %s18, 0
    %p66 = por %p64, %p65
    %s68 = sadd.s32 %s67, 1
    %p71 = scmp.eq.s32.totalorder %s12, 1
    %p72 = scmp.ne.s32.totalorder %s67, %s69
    %p73 = scmp.eq.s32.totalorder %s12, 0
    %p74 = por %p72, %p73
    %p75 = scmp.ne.s32.totalorder %s67, %s69
    %p76 = scmp.eq.s32.totalorder %s17, 1
    %p77 = por %p75, %p76
    %p78 = scmp.ne.s32.totalorder %s69, %s70
    %p79 = scmp.eq.s32.totalorder %s17, 0
    %p80 = por %p78, %p79
    %p81 = scmp.ne.s32.totalorder %s69, %s70
    %p82 = scmp.eq.s32.totalorder %s18, 1
    %p83 = por %p81, %p82
    %p85 = scmp.ne.s32.totalorder %s70, %s84
    %p86 = scmp.eq.s32.totalorder %s18, 0
    %p87 = por %p85, %p86
    %s89 = sadd.s32 %s88, 1
    %p92 = scmp.eq.s32.totalorder %s12, 1
    %p93 = scmp.ne.s32.totalorder %s88, %s90
    %p94 = scmp.eq.s32.totalorder %s12, 0
    %p95 = por %p93, %p94
    %p96 = scmp.ne.s32.totalorder %s88, %s90
    %p97 = scmp.eq.s32.totalorder %s17, 1
    %p98 = por %p96, %p97
    %p99 = scmp.ne.s32.totalorder %s90, %s91
    %p100 = scmp.eq.s32.totalorder %s17, 0
    %p101 = por %p99, %p100
    %p102 = scmp.ne.s32.totalorder %s90, %s91
    %p103 = scmp.eq.s32.totalorder %s18, 1
    %p104 = por %p102, %p103
    %p106 = scmp.ne.s32.totalorder %s91, %s105
    %p107 = scmp.eq.s32.totalorder %s18, 0
    %p108 = por %p106, %p107
    %s109 = ssub.s32 %s12, %s19
    %p110 = scmp.eq.s32.totalorder %s109, 0
    %s112 = sadd.s32 %s111, 1
    %s113 = scalar_select %p110, %s111, %s112
    %p116 = pneg %p110
    %p117 = scmp.eq.s32.totalorder %s12, 1
    %p118 = por %p116, %p117
    %p119 = scmp.ne.s32.totalorder %s111, %s114
    %p120 = scmp.eq.s32.totalorder %s12, 0
    %p121 = por %p119, %p120
    %p122 = scmp.ne.s32.totalorder %s111, %s114
    %p123 = scmp.eq.s32.totalorder %s17, 1
    %p124 = por %p122, %p123
    %p125 = scmp.ne.s32.totalorder %s114, %s115
    %p126 = scmp.eq.s32.totalorder %s17, 0
    %p127 = por %p125, %p126
    %p128 = scmp.ne.s32.totalorder %s114, %s115
    %p129 = scmp.eq.s32.totalorder %s18, 1
    %p130 = por %p128, %p129
    %p132 = scmp.ne.s32.totalorder %s115, %s131
    %p133 = scmp.eq.s32.totalorder %s18, 0
    %p134 = por %p132, %p133
    %s135 = ssub.s32 %s12, %s19
    %p136 = scmp.eq.s32.totalorder %s135, 0
    %s138 = sadd.s32 %s137, 1
    %s139 = scalar_select %p136, %s137, %s138
    %p142 = pneg %p136
    %p143 = scmp.eq.s32.totalorder %s12, 1
    %p144 = por %p142, %p143
    %p145 = scmp.ne.s32.totalorder %s137, %s140
    %p146 = scmp.eq.s32.totalorder %s12, 0
    %p147 = por %p145, %p146
    %p148 = scmp.ne.s32.totalorder %s137, %s140
    %p149 = scmp.eq.s32.totalorder %s17, 1
    %p150 = por %p148, %p149
    %p151 = scmp.ne.s32.totalorder %s140, %s141
    %p152 = scmp.eq.s32.totalorder %s17, 0
    %p153 = por %p151, %p152
    %p154 = scmp.ne.s32.totalorder %s140, %s141
    %p155 = scmp.eq.s32.totalorder %s18, 1
    %p156 = por %p154, %p155
    %p158 = scmp.ne.s32.totalorder %s141, %s157
    %p159 = scmp.eq.s32.totalorder %s18, 0
    %p160 = por %p158, %p159
    %p161 = scmp.le.s32.totalorder 1, %s12
    %p162 = scmp.lt.s32.totalorder %s12, 3
    %p163 = pnand %p161, %p162
    %p164 = pneg %p163
    // Predicated region
    $region9: #{residual_block.4} parent=5 // pred_check
      _
    $region10: #{residual_block.4} parent=5 // pred_check_branch
      %166 = sbr.rel (%p163) target = $region12
    $region11: #{residual_block.4} parent=5 // pred_region
      %s167 = ssub.s32 %s12, 1
      // Predicated region
      $region13: #{residual_block.4} parent=11 // pred_check
        %p168 = pneg %p59
      $region14: #{residual_block.4} parent=11 // pred_check_branch
        %170 = sbr.rel (%p168) target = $region16
      $region15: #{residual_block.4} parent=11 // pred_region
        _
      $region16: #{residual_block.4} parent=11 // pred_fallthru
        _
      // Predicated region
      $region17: #{residual_block.4} parent=11 // pred_check
        %p171 = pneg %p80
      $region18: #{residual_block.4} parent=11 // pred_check_branch
        %173 = sbr.rel (%p171) target = $region20
      $region19: #{residual_block.4} parent=11 // pred_region
        _
      $region20: #{residual_block.4} parent=11 // pred_fallthru
        _
      // Predicated region
      $region21: #{residual_block.4} parent=11 // pred_check
        %p174 = pneg %p101
      $region22: #{residual_block.4} parent=11 // pred_check_branch
        %176 = sbr.rel (%p174) target = $region24
      $region23: #{residual_block.4} parent=11 // pred_region
        _
      $region24: #{residual_block.4} parent=11 // pred_fallthru
        _
    $region12: #{residual_block.4} parent=5 // pred_fallthru
      _
    %p177 = scmp.lt.s32.totalorder %s12, 2
    // Predicated region
    $region25: #{residual_block.4} parent=5 // pred_check
      %p178 = pneg %p177
    $region26: #{residual_block.4} parent=5 // pred_check_branch
      %180 = sbr.rel (%p178) target = $region28
    $region27: #{residual_block.4} parent=5 // pred_region
      // Predicated region
      $region29: #{residual_block.4} parent=27 // pred_check
        %p181 = pneg %p32
      $region30: #{residual_block.4} parent=27 // pred_check_branch
        %183 = sbr.rel (%p181) target = $region32
      $region31: #{residual_block.4} parent=27 // pred_region
        %p184 = scmp.lt.s32.totalorder %s12, 1
        %s185 = scalar_select %p184, %s12, 1
        %s186 = smul.addr %s185, 32
        %s187 = smul.addr %s186, 8
        %s188 = scalar_lea.vmem %s0, %s187
      $region32: #{residual_block.4} parent=27 // pred_fallthru
        _
    $region28: #{residual_block.4} parent=5 // pred_fallthru
      _
    %p189 = scmp.le.s32.totalorder 1, %s12
    %p190 = scmp.lt.s32.totalorder %s12, 3
    %p191 = pnand %p189, %p190
    %p192 = pneg %p191
    // Predicated region
    $region33: #{residual_block.4} parent=5 // pred_check
      _
    $region34: #{residual_block.4} parent=5 // pred_check_branch
      %194 = sbr.rel (%p191) target = $region36
    $region35: #{residual_block.4} parent=5 // pred_region
      %s195 = ssub.s32 %s12, 1
      %p196 = scmp.lt.s32.totalorder %s17, 1
      %s197 = scalar_select %p196, %s17, 1
      %s198 = smul.addr %s197, 32
      %s199 = smul.addr %s198, 8
      %s200 = scalar_lea.vmem %s0, %s199
      %p201 = pneg %p38
      %p202 = pneg %p35
      %p203 = pneg %p59
      %p204 = pneg %p56
      %p205 = pneg %p80
      %p206 = pneg %p77
      %p207 = pneg %p101
      %p208 = pneg %p98
      %p209 = pneg %p127
      %p210 = pneg %p124
      %p211 = scmp.lt.s32.totalorder %s17, 1
      %s212 = scalar_select %p211, %s17, 1
      %s213 = smul.addr %s212, 32
      %s214 = smul.addr %s213, 8
      %s215 = scalar_lea.vmem %s4, %s214
      %p216 = pneg %p153
      %p217 = pneg %p150
      %p218 = scmp.lt.s32.totalorder %s17, 1
      %s219 = scalar_select %p218, %s17, 1
      %s220 = smul.addr %s219, 2
      %s221 = scalar_lea.vmem %s5, %s220
      %p222 = scmp.lt.s32.totalorder %s17, 1
      %s223 = scalar_select %p222, %s17, 1
      %s224 = smul.addr %s223, 32
      %s225 = smul.addr %s224, 8
      %s226 = scalar_lea.vmem %s0, %s225
      %p227 = scmp.lt.s32.totalorder %s17, 1
      %s228 = scalar_select %p227, %s17, 1
      %s229 = smul.addr %s228, 32
      %s230 = smul.addr %s229, 8
      %s231 = scalar_lea.vmem %s4, %s230
      %p232 = scmp.lt.s32.totalorder %s17, 1
      %s233 = scalar_select %p232, %s17, 1
      %s234 = smul.addr %s233, 2
      %s235 = scalar_lea.vmem %s5, %s234
      %v237 = vld [vmem:[%s226] sm:$0xff]
      %v238 = vld [vmem:[%s226 + $0x8] sm:$0xff]
      %v239 = vld [vmem:[%s226 + $0x10] sm:$0xff]
      %v240 = vld [vmem:[%s226 + $0x18] sm:$0xff]
      %v241 = vld [vmem:[%s226 + $0x20] sm:$0xff]
      %v242 = vld [vmem:[%s226 + $0x28] sm:$0xff]
      %v243 = vld [vmem:[%s226 + $0x30] sm:$0xff]
      %v244 = vld [vmem:[%s226 + $0x38] sm:$0xff]
      %v245 = vld [vmem:[%s226 + $0x40] sm:$0xff]
      %v246 = vld [vmem:[%s226 + $0x48] sm:$0xff]
      %v247 = vld [vmem:[%s226 + $0x50] sm:$0xff]
      %v248 = vld [vmem:[%s226 + $0x58] sm:$0xff]
      %v249 = vld [vmem:[%s226 + $0x60] sm:$0xff]
      %v250 = vld [vmem:[%s226 + $0x68] sm:$0xff]
      %v251 = vld [vmem:[%s226 + $0x70] sm:$0xff]
      %v252 = vld [vmem:[%s226 + $0x78] sm:$0xff]
      %v253 = vld [vmem:[%s226 + $0x80] sm:$0xff]
      %v254 = vld [vmem:[%s226 + $0x88] sm:$0xff]
      %v255 = vld [vmem:[%s226 + $0x90] sm:$0xff]
      %v256 = vld [vmem:[%s226 + $0x98] sm:$0xff]
      %v257 = vld [vmem:[%s226 + $0xa0] sm:$0xff]
      %v258 = vld [vmem:[%s226 + $0xa8] sm:$0xff]
      %v259 = vld [vmem:[%s226 + $0xb0] sm:$0xff]
      %v260 = vld [vmem:[%s226 + $0xb8] sm:$0xff]
      %v261 = vld [vmem:[%s226 + $0xc0] sm:$0xff]
      %v262 = vld [vmem:[%s226 + $0xc8] sm:$0xff]
      %v263 = vld [vmem:[%s226 + $0xd0] sm:$0xff]
      %v264 = vld [vmem:[%s226 + $0xd8] sm:$0xff]
      %v265 = vld [vmem:[%s226 + $0xe0] sm:$0xff]
      %v266 = vld [vmem:[%s226 + $0xe8] sm:$0xff]
      %v267 = vld [vmem:[%s226 + $0xf0] sm:$0xff]
      %v268 = vld [vmem:[%s226 + $0xf8] sm:$0xff]
      %v269 = vld [vmem:[%s1] sm:$0x1]
      %v271 = vperm.slane %v269, 0
      %v273 = vmul.f32 %v237, %v271
      %v274 = vmul.f32 %v238, %v271
      %v275 = vmul.f32 %v239, %v271
      %v276 = vmul.f32 %v240, %v271
      %v277 = vmul.f32 %v241, %v271
      %v278 = vmul.f32 %v242, %v271
      %v279 = vmul.f32 %v243, %v271
      %v280 = vmul.f32 %v244, %v271
      %v281 = vmul.f32 %v245, %v271
      %v282 = vmul.f32 %v246, %v271
      %v283 = vmul.f32 %v247, %v271
      %v284 = vmul.f32 %v248, %v271
      %v285 = vmul.f32 %v249, %v271
      %v286 = vmul.f32 %v250, %v271
      %v287 = vmul.f32 %v251, %v271
      %v288 = vmul.f32 %v252, %v271
      %v289 = vmul.f32 %v253, %v271
      %v290 = vmul.f32 %v254, %v271
      %v291 = vmul.f32 %v255, %v271
      %v292 = vmul.f32 %v256, %v271
      %v293 = vmul.f32 %v257, %v271
      %v294 = vmul.f32 %v258, %v271
      %v295 = vmul.f32 %v259, %v271
      %v296 = vmul.f32 %v260, %v271
      %v297 = vmul.f32 %v261, %v271
      %v298 = vmul.f32 %v262, %v271
      %v299 = vmul.f32 %v263, %v271
      %v300 = vmul.f32 %v264, %v271
      %v301 = vmul.f32 %v265, %v271
      %v302 = vmul.f32 %v266, %v271
      %v303 = vmul.f32 %v267, %v271
      %v304 = vmul.f32 %v268, %v271
      %v305 = vld [vmem:[%s2] sm:$0x1]
      %v307 = vperm.slane %v305, 0
      %v309 = vadd.f32 %v273, %v307
      %v310 = vadd.f32 %v274, %v307
      %v311 = vadd.f32 %v275, %v307
      %v312 = vadd.f32 %v276, %v307
      %v313 = vadd.f32 %v277, %v307
      %v314 = vadd.f32 %v278, %v307
      %v315 = vadd.f32 %v279, %v307
      %v316 = vadd.f32 %v280, %v307
      %v317 = vadd.f32 %v281, %v307
      %v318 = vadd.f32 %v282, %v307
      %v319 = vadd.f32 %v283, %v307
      %v320 = vadd.f32 %v284, %v307
      %v321 = vadd.f32 %v285, %v307
      %v322 = vadd.f32 %v286, %v307
      %v323 = vadd.f32 %v287, %v307
      %v324 = vadd.f32 %v288, %v307
      %v325 = vadd.f32 %v289, %v307
      %v326 = vadd.f32 %v290, %v307
      %v327 = vadd.f32 %v291, %v307
      %v328 = vadd.f32 %v292, %v307
      %v329 = vadd.f32 %v293, %v307
      %v330 = vadd.f32 %v294, %v307
      %v331 = vadd.f32 %v295, %v307
      %v332 = vadd.f32 %v296, %v307
      %v333 = vadd.f32 %v297, %v307
      %v334 = vadd.f32 %v298, %v307
      %v335 = vadd.f32 %v299, %v307
      %v336 = vadd.f32 %v300, %v307
      %v337 = vadd.f32 %v301, %v307
      %v338 = vadd.f32 %v302, %v307
      %v339 = vadd.f32 %v303, %v307
      %v340 = vadd.f32 %v304, %v307
      %v341 = vmax.f32 %v309, 0.0
      %v342 = vmax.f32 %v310, 0.0
      %v343 = vmax.f32 %v311, 0.0
      %v344 = vmax.f32 %v312, 0.0
      %v345 = vmax.f32 %v313, 0.0
      %v346 = vmax.f32 %v314, 0.0
      %v347 = vmax.f32 %v315, 0.0
      %v348 = vmax.f32 %v316, 0.0
      %v349 = vmax.f32 %v317, 0.0
      %v350 = vmax.f32 %v318, 0.0
      %v351 = vmax.f32 %v319, 0.0
      %v352 = vmax.f32 %v320, 0.0
      %v353 = vmax.f32 %v321, 0.0
      %v354 = vmax.f32 %v322, 0.0
      %v355 = vmax.f32 %v323, 0.0
      %v356 = vmax.f32 %v324, 0.0
      %v357 = vmax.f32 %v325, 0.0
      %v358 = vmax.f32 %v326, 0.0
      %v359 = vmax.f32 %v327, 0.0
      %v360 = vmax.f32 %v328, 0.0
      %v361 = vmax.f32 %v329, 0.0
      %v362 = vmax.f32 %v330, 0.0
      %v363 = vmax.f32 %v331, 0.0
      %v364 = vmax.f32 %v332, 0.0
      %v365 = vmax.f32 %v333, 0.0
      %v366 = vmax.f32 %v334, 0.0
      %v367 = vmax.f32 %v335, 0.0
      %v368 = vmax.f32 %v336, 0.0
      %v369 = vmax.f32 %v337, 0.0
      %v370 = vmax.f32 %v338, 0.0
      %v371 = vmax.f32 %v339, 0.0
      %v372 = vmax.f32 %v340, 0.0
      %vm373 = vcmask 60416
      %374 = vst.msk [vmem:[#allocation2] sm:$0xf] %vm373, 0
      %375 = vst.msk [vmem:[#allocation2 + $0x4] sm:$0xf] %vm373, 0
      %vm376 = vcmask 57344
      %377 = vst.msk [vmem:[#allocation2 + $0x8] sm:$0x1] %vm376, 0
      %s378 = scalar_lea.vmem [#allocation2], 204
      %379 = vst.msk [vmem:[%s378] sm:$0xf] %vm373, 0
      %380 = vst.msk [vmem:[%s378 + $0x4] sm:$0xf] %vm373, 0
      %381 = vst.msk [vmem:[%s378 + $0x8] sm:$0x1] %vm376, 0
      %s382 = scalar_lea.vmem [#allocation2], 12
      %vm383 = vcmask 57344
      %vm384 = vsmask.f32 256
      %vm385 = vmand %vm383, %vm384
      %v386 = vld [vmem:[%s382] sm:$0x1]
      %v387 = vsel %vm385, 0, %v386
      %388 = vst [vmem:[%s382] sm:$0x1] %v387
      %v389 = vld [vmem:[%s382 + $0xc] sm:$0x1]
      %v390 = vsel %vm385, 0, %v389
      %391 = vst [vmem:[%s382 + $0xc] sm:$0x1] %v390
      %v392 = vld [vmem:[%s382 + $0x18] sm:$0x1]
      %v393 = vsel %vm385, 0, %v392
      %394 = vst [vmem:[%s382 + $0x18] sm:$0x1] %v393
      %v395 = vld [vmem:[%s382 + $0x24] sm:$0x1]
      %v396 = vsel %vm385, 0, %v395
      %397 = vst [vmem:[%s382 + $0x24] sm:$0x1] %v396
      %v398 = vld [vmem:[%s382 + $0x30] sm:$0x1]
      %v399 = vsel %vm385, 0, %v398
      %400 = vst [vmem:[%s382 + $0x30] sm:$0x1] %v399
      %v401 = vld [vmem:[%s382 + $0x3c] sm:$0x1]
      %v402 = vsel %vm385, 0, %v401
      %403 = vst [vmem:[%s382 + $0x3c] sm:$0x1] %v402
      %v404 = vld [vmem:[%s382 + $0x48] sm:$0x1]
      %v405 = vsel %vm385, 0, %v404
      %406 = vst [vmem:[%s382 + $0x48] sm:$0x1] %v405
      %v407 = vld [vmem:[%s382 + $0x54] sm:$0x1]
      %v408 = vsel %vm385, 0, %v407
      %409 = vst [vmem:[%s382 + $0x54] sm:$0x1] %v408
      %v410 = vld [vmem:[%s382 + $0x60] sm:$0x1]
      %v411 = vsel %vm385, 0, %v410
      %412 = vst [vmem:[%s382 + $0x60] sm:$0x1] %v411
      %v413 = vld [vmem:[%s382 + $0x6c] sm:$0x1]
      %v414 = vsel %vm385, 0, %v413
      %415 = vst [vmem:[%s382 + $0x6c] sm:$0x1] %v414
      %v416 = vld [vmem:[%s382 + $0x78] sm:$0x1]
      %v417 = vsel %vm385, 0, %v416
      %418 = vst [vmem:[%s382 + $0x78] sm:$0x1] %v417
      %v419 = vld [vmem:[%s382 + $0x84] sm:$0x1]
      %v420 = vsel %vm385, 0, %v419
      %421 = vst [vmem:[%s382 + $0x84] sm:$0x1] %v420
      %v422 = vld [vmem:[%s382 + $0x90] sm:$0x1]
      %v423 = vsel %vm385, 0, %v422
      %424 = vst [vmem:[%s382 + $0x90] sm:$0x1] %v423
      %v425 = vld [vmem:[%s382 + $0x9c] sm:$0x1]
      %v426 = vsel %vm385, 0, %v425
      %427 = vst [vmem:[%s382 + $0x9c] sm:$0x1] %v426
      %v428 = vld [vmem:[%s382 + $0xa8] sm:$0x1]
      %v429 = vsel %vm385, 0, %v428
      %430 = vst [vmem:[%s382 + $0xa8] sm:$0x1] %v429
      %v431 = vld [vmem:[%s382 + $0xb4] sm:$0x1]
      %v432 = vsel %vm385, 0, %v431
      %433 = vst [vmem:[%s382 + $0xb4] sm:$0x1] %v432
      %vm434 = vsmask.f32 7938
      %vm435 = vmand %vm383, %vm434
      %v436 = vld [vmem:[%s382 + $0x8] sm:$0x1]
      %v437 = vsel %vm435, 0, %v436
      %438 = vst [vmem:[%s382 + $0x8] sm:$0x1] %v437
      %v439 = vld [vmem:[%s382 + $0x14] sm:$0x1]
      %v440 = vsel %vm435, 0, %v439
      %441 = vst [vmem:[%s382 + $0x14] sm:$0x1] %v440
      %v442 = vld [vmem:[%s382 + $0x20] sm:$0x1]
      %v443 = vsel %vm435, 0, %v442
      %444 = vst [vmem:[%s382 + $0x20] sm:$0x1] %v443
      %v445 = vld [vmem:[%s382 + $0x2c] sm:$0x1]
      %v446 = vsel %vm435, 0, %v445
      %447 = vst [vmem:[%s382 + $0x2c] sm:$0x1] %v446
      %v448 = vld [vmem:[%s382 + $0x38] sm:$0x1]
      %v449 = vsel %vm435, 0, %v448
      %450 = vst [vmem:[%s382 + $0x38] sm:$0x1] %v449
      %v451 = vld [vmem:[%s382 + $0x44] sm:$0x1]
      %v452 = vsel %vm435, 0, %v451
      %453 = vst [vmem:[%s382 + $0x44] sm:$0x1] %v452
      %v454 = vld [vmem:[%s382 + $0x50] sm:$0x1]
      %v455 = vsel %vm435, 0, %v454
      %456 = vst [vmem:[%s382 + $0x50] sm:$0x1] %v455
      %v457 = vld [vmem:[%s382 + $0x5c] sm:$0x1]
      %v458 = vsel %vm435, 0, %v457
      %459 = vst [vmem:[%s382 + $0x5c] sm:$0x1] %v458
      %v460 = vld [vmem:[%s382 + $0x68] sm:$0x1]
      %v461 = vsel %vm435, 0, %v460
      %462 = vst [vmem:[%s382 + $0x68] sm:$0x1] %v461
      %v463 = vld [vmem:[%s382 + $0x74] sm:$0x1]
      %v464 = vsel %vm435, 0, %v463
      %465 = vst [vmem:[%s382 + $0x74] sm:$0x1] %v464
      %v466 = vld [vmem:[%s382 + $0x80] sm:$0x1]
      %v467 = vsel %vm435, 0, %v466
      %468 = vst [vmem:[%s382 + $0x80] sm:$0x1] %v467
      %v469 = vld [vmem:[%s382 + $0x8c] sm:$0x1]
      %v470 = vsel %vm435, 0, %v469
      %471 = vst [vmem:[%s382 + $0x8c] sm:$0x1] %v470
      %v472 = vld [vmem:[%s382 + $0x98] sm:$0x1]
      %v473 = vsel %vm435, 0, %v472
      %474 = vst [vmem:[%s382 + $0x98] sm:$0x1] %v473
      %v475 = vld [vmem:[%s382 + $0xa4] sm:$0x1]
      %v476 = vsel %vm435, 0, %v475
      %477 = vst [vmem:[%s382 + $0xa4] sm:$0x1] %v476
      %v478 = vld [vmem:[%s382 + $0xb0] sm:$0x1]
      %v479 = vsel %vm435, 0, %v478
      %480 = vst [vmem:[%s382 + $0xb0] sm:$0x1] %v479
      %v481 = vld [vmem:[%s382 + $0xbc] sm:$0x1]
      %v482 = vsel %vm435, 0, %v481
      %483 = vst [vmem:[%s382 + $0xbc] sm:$0x1] %v482
      %v484 = vpack.c.bf16 %v341, %v341
      %v485 = vpack.c.bf16 %v342, %v342
      %v486 = vpack.c.bf16 %v343, %v343
      %v487 = vpack.c.bf16 %v344, %v344
      %v488 = vpack.c.bf16 %v345, %v345
      %v489 = vpack.c.bf16 %v346, %v346
      %v490 = vpack.c.bf16 %v347, %v347
      %v491 = vpack.c.bf16 %v348, %v348
      %v492 = vpack.c.bf16 %v349, %v349
      %v493 = vpack.c.bf16 %v350, %v350
      %v494 = vpack.c.bf16 %v351, %v351
      %v495 = vpack.c.bf16 %v352, %v352
      %v496 = vpack.c.bf16 %v353, %v353
      %v497 = vpack.c.bf16 %v354, %v354
      %v498 = vpack.c.bf16 %v355, %v355
      %v499 = vpack.c.bf16 %v356, %v356
      %v500 = vpack.c.bf16 %v357, %v357
      %v501 = vpack.c.bf16 %v358, %v358
      %v502 = vpack.c.bf16 %v359, %v359
      %v503 = vpack.c.bf16 %v360, %v360
      %v504 = vpack.c.bf16 %v361, %v361
      %v505 = vpack.c.bf16 %v362, %v362
      %v506 = vpack.c.bf16 %v363, %v363
      %v507 = vpack.c.bf16 %v364, %v364
      %v508 = vpack.c.bf16 %v365, %v365
      %v509 = vpack.c.bf16 %v366, %v366
      %v510 = vpack.c.bf16 %v367, %v367
      %v511 = vpack.c.bf16 %v368, %v368
      %v512 = vpack.c.bf16 %v369, %v369
      %v513 = vpack.c.bf16 %v370, %v370
      %v514 = vpack.c.bf16 %v371, %v371
      %v515 = vpack.c.bf16 %v372, %v372
      %vm516 = vsmask.f32 4368
      %vm517 = vmor %vm384, %vm516
      %v519 = vshrl.u32 %v484, 16
      %v521 = vrot.slane %v519, 7
      %v522 = vshll.u32 %v484, 16
      %v524 = vor.u32 %v521, %v522
      %v525 = vrot.slane %v521, 4
      %v527 = vshrl.u32 %v485, 16
      %v529 = vrot.slane %v527, 7
      %v530 = vshll.u32 %v485, 16
      %v532 = vor.u32 %v529, %v530
      %v533 = vsel %vm517, %v525, %v532
      %v534 = vrot.slane %v529, 4
      %v536 = vshrl.u32 %v486, 16
      %v538 = vrot.slane %v536, 7
      %v539 = vshll.u32 %v486, 16
      %v541 = vor.u32 %v538, %v539
      %v542 = vrot.slane %v538, 4
      %v544 = vshrl.u32 %v487, 16
      %v546 = vrot.slane %v544, 7
      %v547 = vshll.u32 %v487, 16
      %v549 = vor.u32 %v546, %v547
      %v550 = vsel %vm517, %v542, %v549
      %v551 = vrot.slane %v546, 4
      %v553 = vshrl.u32 %v488, 16
      %v555 = vrot.slane %v553, 7
      %v556 = vshll.u32 %v488, 16
      %v558 = vor.u32 %v555, %v556
      %v559 = vrot.slane %v555, 4
      %v561 = vshrl.u32 %v489, 16
      %v563 = vrot.slane %v561, 7
      %v564 = vshll.u32 %v489, 16
      %v566 = vor.u32 %v563, %v564
      %v567 = vsel %vm517, %v559, %v566
      %v568 = vrot.slane %v563, 4
      %v570 = vshrl.u32 %v490, 16
      %v572 = vrot.slane %v570, 7
      %v573 = vshll.u32 %v490, 16
      %v575 = vor.u32 %v572, %v573
      %v576 = vrot.slane %v572, 4
      %v578 = vshrl.u32 %v491, 16
      %v580 = vrot.slane %v578, 7
      %v581 = vshll.u32 %v491, 16
      %v583 = vor.u32 %v580, %v581
      %v584 = vsel %vm517, %v576, %v583
      %v585 = vrot.slane %v580, 4
      %v587 = vshrl.u32 %v492, 16
      %v589 = vrot.slane %v587, 7
      %v590 = vshll.u32 %v492, 16
      %v592 = vor.u32 %v589, %v590
      %v593 = vrot.slane %v589, 4
      %v595 = vshrl.u32 %v493, 16
      %v597 = vrot.slane %v595, 7
      %v598 = vshll.u32 %v493, 16
      %v600 = vor.u32 %v597, %v598
      %v601 = vsel %vm517, %v593, %v600
      %v602 = vrot.slane %v597, 4
      %v604 = vshrl.u32 %v494, 16
      %v606 = vrot.slane %v604, 7
      %v607 = vshll.u32 %v494, 16
      %v609 = vor.u32 %v606, %v607
      %v610 = vrot.slane %v606, 4
      %v612 = vshrl.u32 %v495, 16
      %v614 = vrot.slane %v612, 7
      %v615 = vshll.u32 %v495, 16
      %v617 = vor.u32 %v614, %v615
      %v618 = vsel %vm517, %v610, %v617
      %v619 = vrot.slane %v614, 4
      %v621 = vshrl.u32 %v496, 16
      %v623 = vrot.slane %v621, 7
      %v624 = vshll.u32 %v496, 16
      %v626 = vor.u32 %v623, %v624
      %v627 = vrot.slane %v623, 4
      %v629 = vshrl.u32 %v497, 16
      %v631 = vrot.slane %v629, 7
      %v632 = vshll.u32 %v497, 16
      %v634 = vor.u32 %v631, %v632
      %v635 = vsel %vm517, %v627, %v634
      %v636 = vrot.slane %v631, 4
      %v638 = vshrl.u32 %v498, 16
      %v640 = vrot.slane %v638, 7
      %v641 = vshll.u32 %v498, 16
      %v643 = vor.u32 %v640, %v641
      %v644 = vrot.slane %v640, 4
      %v646 = vshrl.u32 %v499, 16
      %v648 = vrot.slane %v646, 7
      %v649 = vshll.u32 %v499, 16
      %v651 = vor.u32 %v648, %v649
      %v652 = vsel %vm517, %v644, %v651
      %v653 = vrot.slane %v648, 4
      %v655 = vshrl.u32 %v500, 16
      %v657 = vrot.slane %v655, 7
      %v658 = vshll.u32 %v500, 16
      %v660 = vor.u32 %v657, %v658
      %v661 = vrot.slane %v657, 4
      %v663 = vshrl.u32 %v501, 16
      %v665 = vrot.slane %v663, 7
      %v666 = vshll.u32 %v501, 16
      %v668 = vor.u32 %v665, %v666
      %v669 = vsel %vm517, %v661, %v668
      %v670 = vrot.slane %v665, 4
      %v672 = vshrl.u32 %v502, 16
      %v674 = vrot.slane %v672, 7
      %v675 = vshll.u32 %v502, 16
      %v677 = vor.u32 %v674, %v675
      %v678 = vrot.slane %v674, 4
      %v680 = vshrl.u32 %v503, 16
      %v682 = vrot.slane %v680, 7
      %v683 = vshll.u32 %v503, 16
      %v685 = vor.u32 %v682, %v683
      %v686 = vsel %vm517, %v678, %v685
      %v687 = vrot.slane %v682, 4
      %v689 = vshrl.u32 %v504, 16
      %v691 = vrot.slane %v689, 7
      %v692 = vshll.u32 %v504, 16
      %v694 = vor.u32 %v691, %v692
      %v695 = vrot.slane %v691, 4
      %v697 = vshrl.u32 %v505, 16
      %v699 = vrot.slane %v697, 7
      %v700 = vshll.u32 %v505, 16
      %v702 = vor.u32 %v699, %v700
      %v703 = vsel %vm517, %v695, %v702
      %v704 = vrot.slane %v699, 4
      %v706 = vshrl.u32 %v506, 16
      %v708 = vrot.slane %v706, 7
      %v709 = vshll.u32 %v506, 16
      %v711 = vor.u32 %v708, %v709
      %v712 = vrot.slane %v708, 4
      %v714 = vshrl.u32 %v507, 16
      %v716 = vrot.slane %v714, 7
      %v717 = vshll.u32 %v507, 16
      %v719 = vor.u32 %v716, %v717
      %v720 = vsel %vm517, %v712, %v719
      %v721 = vrot.slane %v716, 4
      %v723 = vshrl.u32 %v508, 16
      %v725 = vrot.slane %v723, 7
      %v726 = vshll.u32 %v508, 16
      %v728 = vor.u32 %v725, %v726
      %v729 = vrot.slane %v725, 4
      %v731 = vshrl.u32 %v509, 16
      %v733 = vrot.slane %v731, 7
      %v734 = vshll.u32 %v509, 16
      %v736 = vor.u32 %v733, %v734
      %v737 = vsel %vm517, %v729, %v736
      %v738 = vrot.slane %v733, 4
      %v740 = vshrl.u32 %v510, 16
      %v742 = vrot.slane %v740, 7
      %v743 = vshll.u32 %v510, 16
      %v745 = vor.u32 %v742, %v743
      %v746 = vrot.slane %v742, 4
      %v748 = vshrl.u32 %v511, 16
      %v750 = vrot.slane %v748, 7
      %v751 = vshll.u32 %v511, 16
      %v753 = vor.u32 %v750, %v751
      %v754 = vsel %vm517, %v746, %v753
      %v755 = vrot.slane %v750, 4
      %v757 = vshrl.u32 %v512, 16
      %v759 = vrot.slane %v757, 7
      %v760 = vshll.u32 %v512, 16
      %v762 = vor.u32 %v759, %v760
      %v763 = vrot.slane %v759, 4
      %v765 = vshrl.u32 %v513, 16
      %v767 = vrot.slane %v765, 7
      %v768 = vshll.u32 %v513, 16
      %v770 = vor.u32 %v767, %v768
      %v771 = vsel %vm517, %v763, %v770
      %v772 = vrot.slane %v767, 4
      %v774 = vshrl.u32 %v514, 16
      %v776 = vrot.slane %v774, 7
      %v777 = vshll.u32 %v514, 16
      %v779 = vor.u32 %v776, %v777
      %v780 = vrot.slane %v776, 4
      %v782 = vshrl.u32 %v515, 16
      %v784 = vrot.slane %v782, 7
      %v785 = vshll.u32 %v515, 16
      %v787 = vor.u32 %v784, %v785
      %v788 = vsel %vm517, %v780, %v787
      %v789 = vrot.slane %v784, 4
      %vm838 = vcmask 60416
      %vm839 = vmand %vm838, %vm434
      %v840 = vld [vmem:[%s382] sm:$0xf]
      %v841 = vsel %vm839, %v524, %v840
      %842 = vst [vmem:[%s382] sm:$0xf] %v841
      %843 = vst.msk [vmem:[%s382 + $0x4] sm:$0xf] %vm373, %v533
      %v844 = vld [vmem:[%s382 + $0x8] sm:$0x1]
      %v845 = vsel %vm385, %v534, %v844
      %846 = vst [vmem:[%s382 + $0x8] sm:$0x1] %v845
      %v847 = vld [vmem:[%s382 + $0xc] sm:$0xf]
      %v848 = vsel %vm839, %v541, %v847
      %849 = vst [vmem:[%s382 + $0xc] sm:$0xf] %v848
      %850 = vst.msk [vmem:[%s382 + $0x10] sm:$0xf] %vm373, %v550
      %v851 = vld [vmem:[%s382 + $0x14] sm:$0x1]
      %v852 = vsel %vm385, %v551, %v851
      %853 = vst [vmem:[%s382 + $0x14] sm:$0x1] %v852
      %v854 = vld [vmem:[%s382 + $0x18] sm:$0xf]
      %v855 = vsel %vm839, %v558, %v854
      %856 = vst [vmem:[%s382 + $0x18] sm:$0xf] %v855
      %857 = vst.msk [vmem:[%s382 + $0x1c] sm:$0xf] %vm373, %v567
      %v858 = vld [vmem:[%s382 + $0x20] sm:$0x1]
      %v859 = vsel %vm385, %v568, %v858
      %860 = vst [vmem:[%s382 + $0x20] sm:$0x1] %v859
      %v861 = vld [vmem:[%s382 + $0x24] sm:$0xf]
      %v862 = vsel %vm839, %v575, %v861
      %863 = vst [vmem:[%s382 + $0x24] sm:$0xf] %v862
      %864 = vst.msk [vmem:[%s382 + $0x28] sm:$0xf] %vm373, %v584
      %v865 = vld [vmem:[%s382 + $0x2c] sm:$0x1]
      %v866 = vsel %vm385, %v585, %v865
      %867 = vst [vmem:[%s382 + $0x2c] sm:$0x1] %v866
      %v868 = vld [vmem:[%s382 + $0x30] sm:$0xf]
      %v869 = vsel %vm839, %v592, %v868
      %870 = vst [vmem:[%s382 + $0x30] sm:$0xf] %v869
      %871 = vst.msk [vmem:[%s382 + $0x34] sm:$0xf] %vm373, %v601
      %v872 = vld [vmem:[%s382 + $0x38] sm:$0x1]
      %v873 = vsel %vm385, %v602, %v872
      %874 = vst [vmem:[%s382 + $0x38] sm:$0x1] %v873
      %v875 = vld [vmem:[%s382 + $0x3c] sm:$0xf]
      %v876 = vsel %vm839, %v609, %v875
      %877 = vst [vmem:[%s382 + $0x3c] sm:$0xf] %v876
      %878 = vst.msk [vmem:[%s382 + $0x40] sm:$0xf] %vm373, %v618
      %v879 = vld [vmem:[%s382 + $0x44] sm:$0x1]
      %v880 = vsel %vm385, %v619, %v879
      %881 = vst [vmem:[%s382 + $0x44] sm:$0x1] %v880
      %v882 = vld [vmem:[%s382 + $0x48] sm:$0xf]
      %v883 = vsel %vm839, %v626, %v882
      %884 = vst [vmem:[%s382 + $0x48] sm:$0xf] %v883
      %885 = vst.msk [vmem:[%s382 + $0x4c] sm:$0xf] %vm373, %v635
      %v886 = vld [vmem:[%s382 + $0x50] sm:$0x1]
      %v887 = vsel %vm385, %v636, %v886
      %888 = vst [vmem:[%s382 + $0x50] sm:$0x1] %v887
      %v889 = vld [vmem:[%s382 + $0x54] sm:$0xf]
      %v890 = vsel %vm839, %v643, %v889
      %891 = vst [vmem:[%s382 + $0x54] sm:$0xf] %v890
      %892 = vst.msk [vmem:[%s382 + $0x58] sm:$0xf] %vm373, %v652
      %v893 = vld [vmem:[%s382 + $0x5c] sm:$0x1]
      %v894 = vsel %vm385, %v653, %v893
      %895 = vst [vmem:[%s382 + $0x5c] sm:$0x1] %v894
      %v896 = vld [vmem:[%s382 + $0x60] sm:$0xf]
      %v897 = vsel %vm839, %v660, %v896
      %898 = vst [vmem:[%s382 + $0x60] sm:$0xf] %v897
      %899 = vst.msk [vmem:[%s382 + $0x64] sm:$0xf] %vm373, %v669
      %v900 = vld [vmem:[%s382 + $0x68] sm:$0x1]
      %v901 = vsel %vm385, %v670, %v900
      %902 = vst [vmem:[%s382 + $0x68] sm:$0x1] %v901
      %v903 = vld [vmem:[%s382 + $0x6c] sm:$0xf]
      %v904 = vsel %vm839, %v677, %v903
      %905 = vst [vmem:[%s382 + $0x6c] sm:$0xf] %v904
      %906 = vst.msk [vmem:[%s382 + $0x70] sm:$0xf] %vm373, %v686
      %v907 = vld [vmem:[%s382 + $0x74] sm:$0x1]
      %v908 = vsel %vm385, %v687, %v907
      %909 = vst [vmem:[%s382 + $0x74] sm:$0x1] %v908
      %v910 = vld [vmem:[%s382 + $0x78] sm:$0xf]
      %v911 = vsel %vm839, %v694, %v910
      %912 = vst [vmem:[%s382 + $0x78] sm:$0xf] %v911
      %913 = vst.msk [vmem:[%s382 + $0x7c] sm:$0xf] %vm373, %v703
      %v914 = vld [vmem:[%s382 + $0x80] sm:$0x1]
      %v915 = vsel %vm385, %v704, %v914
      %916 = vst [vmem:[%s382 + $0x80] sm:$0x1] %v915
      %v917 = vld [vmem:[%s382 + $0x84] sm:$0xf]
      %v918 = vsel %vm839, %v711, %v917
      %919 = vst [vmem:[%s382 + $0x84] sm:$0xf] %v918
      %920 = vst.msk [vmem:[%s382 + $0x88] sm:$0xf] %vm373, %v720
      %v921 = vld [vmem:[%s382 + $0x8c] sm:$0x1]
      %v922 = vsel %vm385, %v721, %v921
      %923 = vst [vmem:[%s382 + $0x8c] sm:$0x1] %v922
      %v924 = vld [vmem:[%s382 + $0x90] sm:$0xf]
      %v925 = vsel %vm839, %v728, %v924
      %926 = vst [vmem:[%s382 + $0x90] sm:$0xf] %v925
      %927 = vst.msk [vmem:[%s382 + $0x94] sm:$0xf] %vm373, %v737
      %v928 = vld [vmem:[%s382 + $0x98] sm:$0x1]
      %v929 = vsel %vm385, %v738, %v928
      %930 = vst [vmem:[%s382 + $0x98] sm:$0x1] %v929
      %v931 = vld [vmem:[%s382 + $0x9c] sm:$0xf]
      %v932 = vsel %vm839, %v745, %v931
      %933 = vst [vmem:[%s382 + $0x9c] sm:$0xf] %v932
      %934 = vst.msk [vmem:[%s382 + $0xa0] sm:$0xf] %vm373, %v754
      %v935 = vld [vmem:[%s382 + $0xa4] sm:$0x1]
      %v936 = vsel %vm385, %v755, %v935
      %937 = vst [vmem:[%s382 + $0xa4] sm:$0x1] %v936
      %v938 = vld [vmem:[%s382 + $0xa8] sm:$0xf]
      %v939 = vsel %vm839, %v762, %v938
      %940 = vst [vmem:[%s382 + $0xa8] sm:$0xf] %v939
      %941 = vst.msk [vmem:[%s382 + $0xac] sm:$0xf] %vm373, %v771
      %v942 = vld [vmem:[%s382 + $0xb0] sm:$0x1]
      %v943 = vsel %vm385, %v772, %v942
      %944 = vst [vmem:[%s382 + $0xb0] sm:$0x1] %v943
      %v945 = vld [vmem:[%s382 + $0xb4] sm:$0xf]
      %v946 = vsel %vm839, %v779, %v945
      %947 = vst [vmem:[%s382 + $0xb4] sm:$0xf] %v946
      %948 = vst.msk [vmem:[%s382 + $0xb8] sm:$0xf] %vm373, %v788
      %v949 = vld [vmem:[%s382 + $0xbc] sm:$0x1]
      %v950 = vsel %vm385, %v789, %v949
      %951 = vst [vmem:[%s382 + $0xbc] sm:$0x1] %v950
      %vm952 = vcmask 1044032
      %953 = vst.msk [vmem:[#allocation3] sm:$0xf] %vm952, 0
      %954 = vst.msk [vmem:[#allocation3 + $0x4] sm:$0xf] %vm952, 0
      %955 = vst.msk [vmem:[#allocation3 + $0x8] sm:$0xf] %vm952, 0
      %956 = vst.msk [vmem:[#allocation3 + $0xc] sm:$0xf] %vm952, 0
      %957 = vst.msk [vmem:[#allocation3 + $0x10] sm:$0xf] %vm952, 0
      %958 = vst.msk [vmem:[#allocation3 + $0x14] sm:$0xf] %vm952, 0
      %959 = vst.msk [vmem:[#allocation3 + $0x18] sm:$0xf] %vm952, 0
      %960 = vst.msk [vmem:[#allocation3 + $0x1c] sm:$0xf] %vm952, 0
      %961 = vst.msk [vmem:[#allocation3 + $0x20] sm:$0xf] %vm952, 0
      %962 = vst.msk [vmem:[#allocation3 + $0x24] sm:$0xf] %vm952, 0
      %963 = vst.msk [vmem:[#allocation3 + $0x28] sm:$0xf] %vm952, 0
      %964 = vst.msk [vmem:[#allocation3 + $0x2c] sm:$0xf] %vm952, 0
      %965 = vst.msk [vmem:[#allocation3 + $0x30] sm:$0xf] %vm952, 0
      %966 = vst.msk [vmem:[#allocation3 + $0x34] sm:$0xf] %vm952, 0
      %967 = vst.msk [vmem:[#allocation3 + $0x38] sm:$0xf] %vm952, 0
      %968 = vst.msk [vmem:[#allocation3 + $0x3c] sm:$0xf] %vm952, 0
      %969 = vst.msk [vmem:[#allocation3 + $0x40] sm:$0xf] %vm952, 0
      %970 = vst.msk [vmem:[#allocation3 + $0x44] sm:$0xf] %vm952, 0
      %971 = vst.msk [vmem:[#allocation3 + $0x48] sm:$0xf] %vm952, 0
      %972 = vst.msk [vmem:[#allocation3 + $0x4c] sm:$0xf] %vm952, 0
      %973 = vst.msk [vmem:[#allocation3 + $0x50] sm:$0xf] %vm952, 0
      %974 = vst.msk [vmem:[#allocation3 + $0x54] sm:$0xf] %vm952, 0
      %975 = vst.msk [vmem:[#allocation3 + $0x58] sm:$0xf] %vm952, 0
      %976 = vst.msk [vmem:[#allocation3 + $0x5c] sm:$0xf] %vm952, 0
      %977 = vst.msk [vmem:[#allocation3 + $0x60] sm:$0xf] %vm952, 0
      %978 = vst.msk [vmem:[#allocation3 + $0x64] sm:$0xf] %vm952, 0
      %979 = vst.msk [vmem:[#allocation3 + $0x68] sm:$0xf] %vm952, 0
      %980 = vst.msk [vmem:[#allocation3 + $0x6c] sm:$0xf] %vm952, 0
      %981 = vst.msk [vmem:[#allocation3 + $0x70] sm:$0xf] %vm952, 0
      %982 = vst.msk [vmem:[#allocation3 + $0x74] sm:$0xf] %vm952, 0
      %983 = vst.msk [vmem:[#allocation3 + $0x78] sm:$0xf] %vm952, 0
      %984 = vst.msk [vmem:[#allocation3 + $0x7c] sm:$0xf] %vm952, 0
      %v985 = vld [vmem:[#allocation2] sm:$0xf]
      %v986 = vld [vmem:[#allocation2 + $0x4] sm:$0xf]
      %v987 = vld [vmem:[#allocation2 + $0xc] sm:$0xf]
      %v988 = vld [vmem:[#allocation2 + $0x10] sm:$0xf]
      %v989 = vld [vmem:[#allocation2 + $0x18] sm:$0xf]
      %v990 = vld [vmem:[#allocation2 + $0x1c] sm:$0xf]
      %v991 = vld [vmem:[#allocation2 + $0x24] sm:$0xf]
      %v992 = vld [vmem:[#allocation2 + $0x28] sm:$0xf]
      %v993 = vld [vmem:[#allocation2 + $0x30] sm:$0xf]
      %v994 = vld [vmem:[#allocation2 + $0x34] sm:$0xf]
      %v995 = vld [vmem:[#allocation2 + $0x3c] sm:$0xf]
      %v996 = vld [vmem:[#allocation2 + $0x40] sm:$0xf]
      %v997 = vld [vmem:[#allocation2 + $0x48] sm:$0xf]
      %v998 = vld [vmem:[#allocation2 + $0x4c] sm:$0xf]
      %v999 = vld [vmem:[#allocation2 + $0x54] sm:$0xf]
      %v1000 = vld [vmem:[#allocation2 + $0x58] sm:$0xf]
      %v1001 = vld [vmem:[#allocation2 + $0x60] sm:$0xf]
      %v1002 = vld [vmem:[#allocation2 + $0x64] sm:$0xf]
      %v1003 = vld [vmem:[#allocation2 + $0x6c] sm:$0xf]
      %v1004 = vld [vmem:[#allocation2 + $0x70] sm:$0xf]
      %v1005 = vld [vmem:[#allocation2 + $0x78] sm:$0xf]
      %v1006 = vld [vmem:[#allocation2 + $0x7c] sm:$0xf]
      %v1007 = vld [vmem:[#allocation2 + $0x84] sm:$0xf]
      %v1008 = vld [vmem:[#allocation2 + $0x88] sm:$0xf]
      %v1009 = vld [vmem:[#allocation2 + $0x90] sm:$0xf]
      %v1010 = vld [vmem:[#allocation2 + $0x94] sm:$0xf]
      %v1011 = vld [vmem:[#allocation2 + $0x9c] sm:$0xf]
      %v1012 = vld [vmem:[#allocation2 + $0xa0] sm:$0xf]
      %v1013 = vld [vmem:[#allocation2 + $0xa8] sm:$0xf]
      %v1014 = vld [vmem:[#allocation2 + $0xac] sm:$0xf]
      %v1015 = vld [vmem:[#allocation2 + $0xb4] sm:$0xf]
      %v1016 = vld [vmem:[#allocation2 + $0xb8] sm:$0xf]
      %1017 = vst.msk [vmem:[#allocation3] sm:$0xf] %vm373, %v985
      %1018 = vst.msk [vmem:[#allocation3 + $0x4] sm:$0xf] %vm373, %v986
      %1019 = vst.msk [vmem:[#allocation3 + $0x8] sm:$0xf] %vm373, %v987
      %1020 = vst.msk [vmem:[#allocation3 + $0xc] sm:$0xf] %vm373, %v988
      %1021 = vst.msk [vmem:[#allocation3 + $0x10] sm:$0xf] %vm373, %v989
      %1022 = vst.msk [vmem:[#allocation3 + $0x14] sm:$0xf] %vm373, %v990
      %1023 = vst.msk [vmem:[#allocation3 + $0x18] sm:$0xf] %vm373, %v991
      %1024 = vst.msk [vmem:[#allocation3 + $0x1c] sm:$0xf] %vm373, %v992
      %1025 = vst.msk [vmem:[#allocation3 + $0x20] sm:$0xf] %vm373, %v993
      %1026 = vst.msk [vmem:[#allocation3 + $0x24] sm:$0xf] %vm373, %v994
      %1027 = vst.msk [vmem:[#allocation3 + $0x28] sm:$0xf] %vm373, %v995
      %1028 = vst.msk [vmem:[#allocation3 + $0x2c] sm:$0xf] %vm373, %v996
      %1029 = vst.msk [vmem:[#allocation3 + $0x30] sm:$0xf] %vm373, %v997
      %1030 = vst.msk [vmem:[#allocation3 + $0x34] sm:$0xf] %vm373, %v998
      %1031 = vst.msk [vmem:[#allocation3 + $0x38] sm:$0xf] %vm373, %v999
      %1032 = vst.msk [vmem:[#allocation3 + $0x3c] sm:$0xf] %vm373, %v1000
      %1033 = vst.msk [vmem:[#allocation3 + $0x40] sm:$0xf] %vm373, %v1001
      %1034 = vst.msk [vmem:[#allocation3 + $0x44] sm:$0xf] %vm373, %v1002
      %1035 = vst.msk [vmem:[#allocation3 + $0x48] sm:$0xf] %vm373, %v1003
      %1036 = vst.msk [vmem:[#allocation3 + $0x4c] sm:$0xf] %vm373, %v1004
      %1037 = vst.msk [vmem:[#allocation3 + $0x50] sm:$0xf] %vm373, %v1005
      %1038 = vst.msk [vmem:[#allocation3 + $0x54] sm:$0xf] %vm373, %v1006
      %1039 = vst.msk [vmem:[#allocation3 + $0x58] sm:$0xf] %vm373, %v1007
      %1040 = vst.msk [vmem:[#allocation3 + $0x5c] sm:$0xf] %vm373, %v1008
      %1041 = vst.msk [vmem:[#allocation3 + $0x60] sm:$0xf] %vm373, %v1009
      %1042 = vst.msk [vmem:[#allocation3 + $0x64] sm:$0xf] %vm373, %v1010
      %1043 = vst.msk [vmem:[#allocation3 + $0x68] sm:$0xf] %vm373, %v1011
      %1044 = vst.msk [vmem:[#allocation3 + $0x6c] sm:$0xf] %vm373, %v1012
      %1045 = vst.msk [vmem:[#allocation3 + $0x70] sm:$0xf] %vm373, %v1013
      %1046 = vst.msk [vmem:[#allocation3 + $0x74] sm:$0xf] %vm373, %v1014
      %1047 = vst.msk [vmem:[#allocation3 + $0x78] sm:$0xf] %vm373, %v1015
      %1048 = vst.msk [vmem:[#allocation3 + $0x7c] sm:$0xf] %vm373, %v1016
      %v1049 = vld [vmem:[#allocation2] sm:$0xf]
      %v1050 = vld [vmem:[#allocation2 + $0x4] sm:$0xf]
      %v1051 = vld [vmem:[#allocation2 + $0x8] sm:$0x1]
      %v1052 = vld [vmem:[#allocation2 + $0xc] sm:$0xf]
      %v1053 = vld [vmem:[#allocation2 + $0x10] sm:$0xf]
      %v1054 = vld [vmem:[#allocation2 + $0x14] sm:$0x1]
      %v1055 = vld [vmem:[#allocation2 + $0x18] sm:$0xf]
      %v1056 = vld [vmem:[#allocation2 + $0x1c] sm:$0xf]
      %v1057 = vld [vmem:[#allocation2 + $0x20] sm:$0x1]
      %v1058 = vld [vmem:[#allocation2 + $0x24] sm:$0xf]
      %v1059 = vld [vmem:[#allocation2 + $0x28] sm:$0xf]
      %v1060 = vld [vmem:[#allocation2 + $0x2c] sm:$0x1]
      %v1061 = vld [vmem:[#allocation2 + $0x30] sm:$0xf]
      %v1062 = vld [vmem:[#allocation2 + $0x34] sm:$0xf]
      %v1063 = vld [vmem:[#allocation2 + $0x38] sm:$0x1]
      %v1064 = vld [vmem:[#allocation2 + $0x3c] sm:$0xf]
      %v1065 = vld [vmem:[#allocation2 + $0x40] sm:$0xf]
      %v1066 = vld [vmem:[#allocation2 + $0x44] sm:$0x1]
      %v1067 = vld [vmem:[#allocation2 + $0x48] sm:$0xf]
      %v1068 = vld [vmem:[#allocation2 + $0x4c] sm:$0xf]
      %v1069 = vld [vmem:[#allocation2 + $0x50] sm:$0x1]
      %v1070 = vld [vmem:[#allocation2 + $0x54] sm:$0xf]
      %v1071 = vld [vmem:[#allocation2 + $0x58] sm:$0xf]
      %v1072 = vld [vmem:[#allocation2 + $0x5c] sm:$0x1]
      %v1073 = vld [vmem:[#allocation2 + $0x60] sm:$0xf]
      %v1074 = vld [vmem:[#allocation2 + $0x64] sm:$0xf]
      %v1075 = vld [vmem:[#allocation2 + $0x68] sm:$0x1]
      %v1076 = vld [vmem:[#allocation2 + $0x6c] sm:$0xf]
      %v1077 = vld [vmem:[#allocation2 + $0x70] sm:$0xf]
      %v1078 = vld [vmem:[#allocation2 + $0x74] sm:$0x1]
      %v1079 = vld [vmem:[#allocation2 + $0x78] sm:$0xf]
      %v1080 = vld [vmem:[#allocation2 + $0x7c] sm:$0xf]
      %v1081 = vld [vmem:[#allocation2 + $0x80] sm:$0x1]
      %v1082 = vld [vmem:[#allocation2 + $0x84] sm:$0xf]
      %v1083 = vld [vmem:[#allocation2 + $0x88] sm:$0xf]
      %v1084 = vld [vmem:[#allocation2 + $0x8c] sm:$0x1]
      %v1085 = vld [vmem:[#allocation2 + $0x90] sm:$0xf]
      %v1086 = vld [vmem:[#allocation2 + $0x94] sm:$0xf]
      %v1087 = vld [vmem:[#allocation2 + $0x98] sm:$0x1]
      %v1088 = vld [vmem:[#allocation2 + $0x9c] sm:$0xf]
      %v1089 = vld [vmem:[#allocation2 + $0xa0] sm:$0xf]
      %v1090 = vld [vmem:[#allocation2 + $0xa4] sm:$0x1]
      %v1091 = vld [vmem:[#allocation2 + $0xa8] sm:$0xf]
      %v1092 = vld [vmem:[#allocation2 + $0xac] sm:$0xf]
      %v1093 = vld [vmem:[#allocation2 + $0xb0] sm:$0x1]
      %v1094 = vld [vmem:[#allocation2 + $0xb4] sm:$0xf]
      %v1095 = vld [vmem:[#allocation2 + $0xb8] sm:$0xf]
      %v1096 = vld [vmem:[#allocation2 + $0xbc] sm:$0x1]
      %vm1097 = vsmask.f32 3328
      %vm1098 = vsmask.f32 7440
      %vm1099 = vmor %vm1097, %vm1098
      %v1101 = vshrl.u32 %v1049, 16
      %v1103 = vrot.slane %v1101, 4
      %v1104 = vshll.u32 %v1049, 16
      %v1106 = vrot.slane %v1104, 5
      %v1107 = vor.u32 %v1103, %v1106
      %v1108 = vrot.slane %v1107, 4
      %v1110 = vshll.u32 %v1050, 16
      %v1112 = vrot.slane %v1110, 5
      %v1113 = vsel %vm1099, %v1108, %v1112
      %v1114 = vshrl.u32 %v1050, 16
      %v1116 = vrot.slane %v1114, 4
      %v1117 = vor.u32 %v1116, %v1112
      %v1118 = vrot.slane %v1117, 4
      %v1120 = vshll.u32 %v1051, 16
      %v1122 = vrot.slane %v1120, 5
      %v1123 = vsel %vm1099, %v1118, %v1122
      %v1125 = vshrl.u32 %v1052, 16
      %v1127 = vrot.slane %v1125, 4
      %v1128 = vshll.u32 %v1052, 16
      %v1130 = vrot.slane %v1128, 5
      %v1131 = vor.u32 %v1127, %v1130
      %v1132 = vrot.slane %v1131, 4
      %v1134 = vshll.u32 %v1053, 16
      %v1136 = vrot.slane %v1134, 5
      %v1137 = vsel %vm1099, %v1132, %v1136
      %v1138 = vshrl.u32 %v1053, 16
      %v1140 = vrot.slane %v1138, 4
      %v1141 = vor.u32 %v1140, %v1136
      %v1142 = vrot.slane %v1141, 4
      %v1144 = vshll.u32 %v1054, 16
      %v1146 = vrot.slane %v1144, 5
      %v1147 = vsel %vm1099, %v1142, %v1146
      %v1149 = vshrl.u32 %v1055, 16
      %v1151 = vrot.slane %v1149, 4
      %v1152 = vshll.u32 %v1055, 16
      %v1154 = vrot.slane %v1152, 5
      %v1155 = vor.u32 %v1151, %v1154
      %v1156 = vrot.slane %v1155, 4
      %v1158 = vshll.u32 %v1056, 16
      %v1160 = vrot.slane %v1158, 5
      %v1161 = vsel %vm1099, %v1156, %v1160
      %v1162 = vshrl.u32 %v1056, 16
      %v1164 = vrot.slane %v1162, 4
      %v1165 = vor.u32 %v1164, %v1160
      %v1166 = vrot.slane %v1165, 4
      %v1168 = vshll.u32 %v1057, 16
      %v1170 = vrot.slane %v1168, 5
      %v1171 = vsel %vm1099, %v1166, %v1170
      %v1173 = vshrl.u32 %v1058, 16
      %v1175 = vrot.slane %v1173, 4
      %v1176 = vshll.u32 %v1058, 16
      %v1178 = vrot.slane %v1176, 5
      %v1179 = vor.u32 %v1175, %v1178
      %v1180 = vrot.slane %v1179, 4
      %v1182 = vshll.u32 %v1059, 16
      %v1184 = vrot.slane %v1182, 5
      %v1185 = vsel %vm1099, %v1180, %v1184
      %v1186 = vshrl.u32 %v1059, 16
      %v1188 = vrot.slane %v1186, 4
      %v1189 = vor.u32 %v1188, %v1184
      %v1190 = vrot.slane %v1189, 4
      %v1192 = vshll.u32 %v1060, 16
      %v1194 = vrot.slane %v1192, 5
      %v1195 = vsel %vm1099, %v1190, %v1194
      %v1197 = vshrl.u32 %v1061, 16
      %v1199 = vrot.slane %v1197, 4
      %v1200 = vshll.u32 %v1061, 16
      %v1202 = vrot.slane %v1200, 5
      %v1203 = vor.u32 %v1199, %v1202
      %v1204 = vrot.slane %v1203, 4
      %v1206 = vshll.u32 %v1062, 16
      %v1208 = vrot.slane %v1206, 5
      %v1209 = vsel %vm1099, %v1204, %v1208
      %v1210 = vshrl.u32 %v1062, 16
      %v1212 = vrot.slane %v1210, 4
      %v1213 = vor.u32 %v1212, %v1208
      %v1214 = vrot.slane %v1213, 4
      %v1216 = vshll.u32 %v1063, 16
      %v1218 = vrot.slane %v1216, 5
      %v1219 = vsel %vm1099, %v1214, %v1218
      %v1221 = vshrl.u32 %v1064, 16
      %v1223 = vrot.slane %v1221, 4
      %v1224 = vshll.u32 %v1064, 16
      %v1226 = vrot.slane %v1224, 5
      %v1227 = vor.u32 %v1223, %v1226
      %v1228 = vrot.slane %v1227, 4
      %v1230 = vshll.u32 %v1065, 16
      %v1232 = vrot.slane %v1230, 5
      %v1233 = vsel %vm1099, %v1228, %v1232
      %v1234 = vshrl.u32 %v1065, 16
      %v1236 = vrot.slane %v1234, 4
      %v1237 = vor.u32 %v1236, %v1232
      %v1238 = vrot.slane %v1237, 4
      %v1240 = vshll.u32 %v1066, 16
      %v1242 = vrot.slane %v1240, 5
      %v1243 = vsel %vm1099, %v1238, %v1242
      %v1245 = vshrl.u32 %v1067, 16
      %v1247 = vrot.slane %v1245, 4
      %v1248 = vshll.u32 %v1067, 16
      %v1250 = vrot.slane %v1248, 5
      %v1251 = vor.u32 %v1247, %v1250
      %v1252 = vrot.slane %v1251, 4
      %v1254 = vshll.u32 %v1068, 16
      %v1256 = vrot.slane %v1254, 5
      %v1257 = vsel %vm1099, %v1252, %v1256
      %v1258 = vshrl.u32 %v1068, 16
      %v1260 = vrot.slane %v1258, 4
      %v1261 = vor.u32 %v1260, %v1256
      %v1262 = vrot.slane %v1261, 4
      %v1264 = vshll.u32 %v1069, 16
      %v1266 = vrot.slane %v1264, 5
      %v1267 = vsel %vm1099, %v1262, %v1266
      %v1269 = vshrl.u32 %v1070, 16
      %v1271 = vrot.slane %v1269, 4
      %v1272 = vshll.u32 %v1070, 16
      %v1274 = vrot.slane %v1272, 5
      %v1275 = vor.u32 %v1271, %v1274
      %v1276 = vrot.slane %v1275, 4
      %v1278 = vshll.u32 %v1071, 16
      %v1280 = vrot.slane %v1278, 5
      %v1281 = vsel %vm1099, %v1276, %v1280
      %v1282 = vshrl.u32 %v1071, 16
      %v1284 = vrot.slane %v1282, 4
      %v1285 = vor.u32 %v1284, %v1280
      %v1286 = vrot.slane %v1285, 4
      %v1288 = vshll.u32 %v1072, 16
      %v1290 = vrot.slane %v1288, 5
      %v1291 = vsel %vm1099, %v1286, %v1290
      %v1293 = vshrl.u32 %v1073, 16
      %v1295 = vrot.slane %v1293, 4
      %v1296 = vshll.u32 %v1073, 16
      %v1298 = vrot.slane %v1296, 5
      %v1299 = vor.u32 %v1295, %v1298
      %v1300 = vrot.slane %v1299, 4
      %v1302 = vshll.u32 %v1074, 16
      %v1304 = vrot.slane %v1302, 5
      %v1305 = vsel %vm1099, %v1300, %v1304
      %v1306 = vshrl.u32 %v1074, 16
      %v1308 = vrot.slane %v1306, 4
      %v1309 = vor.u32 %v1308, %v1304
      %v1310 = vrot.slane %v1309, 4
      %v1312 = vshll.u32 %v1075, 16
      %v1314 = vrot.slane %v1312, 5
      %v1315 = vsel %vm1099, %v1310, %v1314
      %v1317 = vshrl.u32 %v1076, 16
      %v1319 = vrot.slane %v1317, 4
      %v1320 = vshll.u32 %v1076, 16
      %v1322 = vrot.slane %v1320, 5
      %v1323 = vor.u32 %v1319, %v1322
      %v1324 = vrot.slane %v1323, 4
      %v1326 = vshll.u32 %v1077, 16
      %v1328 = vrot.slane %v1326, 5
      %v1329 = vsel %vm1099, %v1324, %v1328
      %v1330 = vshrl.u32 %v1077, 16
      %v1332 = vrot.slane %v1330, 4
      %v1333 = vor.u32 %v1332, %v1328
      %v1334 = vrot.slane %v1333, 4
      %v1336 = vshll.u32 %v1078, 16
      %v1338 = vrot.slane %v1336, 5
      %v1339 = vsel %vm1099, %v1334, %v1338
      %v1341 = vshrl.u32 %v1079, 16
      %v1343 = vrot.slane %v1341, 4
      %v1344 = vshll.u32 %v1079, 16
      %v1346 = vrot.slane %v1344, 5
      %v1347 = vor.u32 %v1343, %v1346
      %v1348 = vrot.slane %v1347, 4
      %v1350 = vshll.u32 %v1080, 16
      %v1352 = vrot.slane %v1350, 5
      %v1353 = vsel %vm1099, %v1348, %v1352
      %v1354 = vshrl.u32 %v1080, 16
      %v1356 = vrot.slane %v1354, 4
      %v1357 = vor.u32 %v1356, %v1352
      %v1358 = vrot.slane %v1357, 4
      %v1360 = vshll.u32 %v1081, 16
      %v1362 = vrot.slane %v1360, 5
      %v1363 = vsel %vm1099, %v1358, %v1362
      %v1365 = vshrl.u32 %v1082, 16
      %v1367 = vrot.slane %v1365, 4
      %v1368 = vshll.u32 %v1082, 16
      %v1370 = vrot.slane %v1368, 5
      %v1371 = vor.u32 %v1367, %v1370
      %v1372 = vrot.slane %v1371, 4
      %v1374 = vshll.u32 %v1083, 16
      %v1376 = vrot.slane %v1374, 5
      %v1377 = vsel %vm1099, %v1372, %v1376
      %v1378 = vshrl.u32 %v1083, 16
      %v1380 = vrot.slane %v1378, 4
      %v1381 = vor.u32 %v1380, %v1376
      %v1382 = vrot.slane %v1381, 4
      %v1384 = vshll.u32 %v1084, 16
      %v1386 = vrot.slane %v1384, 5
      %v1387 = vsel %vm1099, %v1382, %v1386
      %v1389 = vshrl.u32 %v1085, 16
      %v1391 = vrot.slane %v1389, 4
      %v1392 = vshll.u32 %v1085, 16
      %v1394 = vrot.slane %v1392, 5
      %v1395 = vor.u32 %v1391, %v1394
      %v1396 = vrot.slane %v1395, 4
      %v1398 = vshll.u32 %v1086, 16
      %v1400 = vrot.slane %v1398, 5
      %v1401 = vsel %vm1099, %v1396, %v1400
      %v1402 = vshrl.u32 %v1086, 16
      %v1404 = vrot.slane %v1402, 4
      %v1405 = vor.u32 %v1404, %v1400
      %v1406 = vrot.slane %v1405, 4
      %v1408 = vshll.u32 %v1087, 16
      %v1410 = vrot.slane %v1408, 5
      %v1411 = vsel %vm1099, %v1406, %v1410
      %v1413 = vshrl.u32 %v1088, 16
      %v1415 = vrot.slane %v1413, 4
      %v1416 = vshll.u32 %v1088, 16
      %v1418 = vrot.slane %v1416, 5
      %v1419 = vor.u32 %v1415, %v1418
      %v1420 = vrot.slane %v1419, 4
      %v1422 = vshll.u32 %v1089, 16
      %v1424 = vrot.slane %v1422, 5
      %v1425 = vsel %vm1099, %v1420, %v1424
      %v1426 = vshrl.u32 %v1089, 16
      %v1428 = vrot.slane %v1426, 4
      %v1429 = vor.u32 %v1428, %v1424
      %v1430 = vrot.slane %v1429, 4
      %v1432 = vshll.u32 %v1090, 16
      %v1434 = vrot.slane %v1432, 5
      %v1435 = vsel %vm1099, %v1430, %v1434
      %v1437 = vshrl.u32 %v1091, 16
      %v1439 = vrot.slane %v1437, 4
      %v1440 = vshll.u32 %v1091, 16
      %v1442 = vrot.slane %v1440, 5
      %v1443 = vor.u32 %v1439, %v1442
      %v1444 = vrot.slane %v1443, 4
      %v1446 = vshll.u32 %v1092, 16
      %v1448 = vrot.slane %v1446, 5
      %v1449 = vsel %vm1099, %v1444, %v1448
      %v1450 = vshrl.u32 %v1092, 16
      %v1452 = vrot.slane %v1450, 4
      %v1453 = vor.u32 %v1452, %v1448
      %v1454 = vrot.slane %v1453, 4
      %v1456 = vshll.u32 %v1093, 16
      %v1458 = vrot.slane %v1456, 5
      %v1459 = vsel %vm1099, %v1454, %v1458
      %v1461 = vshrl.u32 %v1094, 16
      %v1463 = vrot.slane %v1461, 4
      %v1464 = vshll.u32 %v1094, 16
      %v1466 = vrot.slane %v1464, 5
      %v1467 = vor.u32 %v1463, %v1466
      %v1468 = vrot.slane %v1467, 4
      %v1470 = vshll.u32 %v1095, 16
      %v1472 = vrot.slane %v1470, 5
      %v1473 = vsel %vm1099, %v1468, %v1472
      %v1474 = vshrl.u32 %v1095, 16
      %v1476 = vrot.slane %v1474, 4
      %v1477 = vor.u32 %v1476, %v1472
      %v1478 = vrot.slane %v1477, 4
      %v1480 = vshll.u32 %v1096, 16
      %v1482 = vrot.slane %v1480, 5
      %v1483 = vsel %vm1099, %v1478, %v1482
      %1484 = vrot.lane.b32.xlu0 %v1113, 8
      %v1485 = vpop.permute.xlu0 %1484
      %1486 = vrot.lane.b32.xlu0 %v1123, 8
      %v1487 = vpop.permute.xlu0 %1486
      %1488 = vrot.lane.b32.xlu0 %v1137, 8
      %v1489 = vpop.permute.xlu0 %1488
      %1490 = vrot.lane.b32.xlu0 %v1147, 8
      %v1491 = vpop.permute.xlu0 %1490
      %1492 = vrot.lane.b32.xlu0 %v1161, 8
      %v1493 = vpop.permute.xlu0 %1492
      %1494 = vrot.lane.b32.xlu0 %v1171, 8
      %v1495 = vpop.permute.xlu0 %1494
      %1496 = vrot.lane.b32.xlu0 %v1185, 8
      %v1497 = vpop.permute.xlu0 %1496
      %1498 = vrot.lane.b32.xlu0 %v1195, 8
      %v1499 = vpop.permute.xlu0 %1498
      %1500 = vrot.lane.b32.xlu0 %v1209, 8
      %v1501 = vpop.permute.xlu0 %1500
      %1502 = vrot.lane.b32.xlu0 %v1219, 8
      %v1503 = vpop.permute.xlu0 %1502
      %1504 = vrot.lane.b32.xlu0 %v1233, 8
      %v1505 = vpop.permute.xlu0 %1504
      %1506 = vrot.lane.b32.xlu0 %v1243, 8
      %v1507 = vpop.permute.xlu0 %1506
      %1508 = vrot.lane.b32.xlu0 %v1257, 8
      %v1509 = vpop.permute.xlu0 %1508
      %1510 = vrot.lane.b32.xlu0 %v1267, 8
      %v1511 = vpop.permute.xlu0 %1510
      %1512 = vrot.lane.b32.xlu0 %v1281, 8
      %v1513 = vpop.permute.xlu0 %1512
      %1514 = vrot.lane.b32.xlu0 %v1291, 8
      %v1515 = vpop.permute.xlu0 %1514
      %1516 = vrot.lane.b32.xlu0 %v1305, 8
      %v1517 = vpop.permute.xlu0 %1516
      %1518 = vrot.lane.b32.xlu0 %v1315, 8
      %v1519 = vpop.permute.xlu0 %1518
      %1520 = vrot.lane.b32.xlu0 %v1329, 8
      %v1521 = vpop.permute.xlu0 %1520
      %1522 = vrot.lane.b32.xlu0 %v1339, 8
      %v1523 = vpop.permute.xlu0 %1522
      %1524 = vrot.lane.b32.xlu0 %v1353, 8
      %v1525 = vpop.permute.xlu0 %1524
      %1526 = vrot.lane.b32.xlu0 %v1363, 8
      %v1527 = vpop.permute.xlu0 %1526
      %1528 = vrot.lane.b32.xlu0 %v1377, 8
      %v1529 = vpop.permute.xlu0 %1528
      %1530 = vrot.lane.b32.xlu0 %v1387, 8
      %v1531 = vpop.permute.xlu0 %1530
      %1532 = vrot.lane.b32.xlu0 %v1401, 8
      %v1533 = vpop.permute.xlu0 %1532
      %1534 = vrot.lane.b32.xlu0 %v1411, 8
      %v1535 = vpop.permute.xlu0 %1534
      %1536 = vrot.lane.b32.xlu0 %v1425, 8
      %v1537 = vpop.permute.xlu0 %1536
      %1538 = vrot.lane.b32.xlu0 %v1435, 8
      %v1539 = vpop.permute.xlu0 %1538
      %1540 = vrot.lane.b32.xlu0 %v1449, 8
      %v1541 = vpop.permute.xlu0 %1540
      %1542 = vrot.lane.b32.xlu0 %v1459, 8
      %v1543 = vpop.permute.xlu0 %1542
      %1544 = vrot.lane.b32.xlu0 %v1473, 8
      %v1545 = vpop.permute.xlu0 %1544
      %1546 = vrot.lane.b32.xlu0 %v1483, 8
      %v1547 = vpop.permute.xlu0 %1546
      %vm1580 = vcmask 126016
      %1581 = vst.msk [vmem:[#allocation3] sm:$0xf] %vm1580, %v1485
      %1582 = vst.msk [vmem:[#allocation3 + $0x4] sm:$0xf] %vm1580, %v1487
      %1583 = vst.msk [vmem:[#allocation3 + $0x8] sm:$0xf] %vm1580, %v1489
      %1584 = vst.msk [vmem:[#allocation3 + $0xc] sm:$0xf] %vm1580, %v1491
      %1585 = vst.msk [vmem:[#allocation3 + $0x10] sm:$0xf] %vm1580, %v1493
      %1586 = vst.msk [vmem:[#allocation3 + $0x14] sm:$0xf] %vm1580, %v1495
      %1587 = vst.msk [vmem:[#allocation3 + $0x18] sm:$0xf] %vm1580, %v1497
      %1588 = vst.msk [vmem:[#allocation3 + $0x1c] sm:$0xf] %vm1580, %v1499
      %1589 = vst.msk [vmem:[#allocation3 + $0x20] sm:$0xf] %vm1580, %v1501
      %1590 = vst.msk [vmem:[#allocation3 + $0x24] sm:$0xf] %vm1580, %v1503
      %1591 = vst.msk [vmem:[#allocation3 + $0x28] sm:$0xf] %vm1580, %v1505
      %1592 = vst.msk [vmem:[#allocation3 + $0x2c] sm:$0xf] %vm1580, %v1507
      %1593 = vst.msk [vmem:[#allocation3 + $0x30] sm:$0xf] %vm1580, %v1509
      %1594 = vst.msk [vmem:[#allocation3 + $0x34] sm:$0xf] %vm1580, %v1511
      %1595 = vst.msk [vmem:[#allocation3 + $0x38] sm:$0xf] %vm1580, %v1513
      %1596 = vst.msk [vmem:[#allocation3 + $0x3c] sm:$0xf] %vm1580, %v1515
      %1597 = vst.msk [vmem:[#allocation3 + $0x40] sm:$0xf] %vm1580, %v1517
      %1598 = vst.msk [vmem:[#allocation3 + $0x44] sm:$0xf] %vm1580, %v1519
      %1599 = vst.msk [vmem:[#allocation3 + $0x48] sm:$0xf] %vm1580, %v1521
      %1600 = vst.msk [vmem:[#allocation3 + $0x4c] sm:$0xf] %vm1580, %v1523
      %1601 = vst.msk [vmem:[#allocation3 + $0x50] sm:$0xf] %vm1580, %v1525
      %1602 = vst.msk [vmem:[#allocation3 + $0x54] sm:$0xf] %vm1580, %v1527
      %1603 = vst.msk [vmem:[#allocation3 + $0x58] sm:$0xf] %vm1580, %v1529
      %1604 = vst.msk [vmem:[#allocation3 + $0x5c] sm:$0xf] %vm1580, %v1531
      %1605 = vst.msk [vmem:[#allocation3 + $0x60] sm:$0xf] %vm1580, %v1533
      %1606 = vst.msk [vmem:[#allocation3 + $0x64] sm:$0xf] %vm1580, %v1535
      %1607 = vst.msk [vmem:[#allocation3 + $0x68] sm:$0xf] %vm1580, %v1537
      %1608 = vst.msk [vmem:[#allocation3 + $0x6c] sm:$0xf] %vm1580, %v1539
      %1609 = vst.msk [vmem:[#allocation3 + $0x70] sm:$0xf] %vm1580, %v1541
      %1610 = vst.msk [vmem:[#allocation3 + $0x74] sm:$0xf] %vm1580, %v1543
      %1611 = vst.msk [vmem:[#allocation3 + $0x78] sm:$0xf] %vm1580, %v1545
      %1612 = vst.msk [vmem:[#allocation3 + $0x7c] sm:$0xf] %vm1580, %v1547
      %v1613 = vld [vmem:[#allocation2] sm:$0xe]
      %v1614 = vld [vmem:[#allocation2 + $0x4] sm:$0xf]
      %v1615 = vld [vmem:[#allocation2 + $0x8] sm:$0x1]
      %v1616 = vld [vmem:[#allocation2 + $0xc] sm:$0xe]
      %v1617 = vld [vmem:[#allocation2 + $0x10] sm:$0xf]
      %v1618 = vld [vmem:[#allocation2 + $0x14] sm:$0x1]
      %v1619 = vld [vmem:[#allocation2 + $0x18] sm:$0xe]
      %v1620 = vld [vmem:[#allocation2 + $0x1c] sm:$0xf]
      %v1621 = vld [vmem:[#allocation2 + $0x20] sm:$0x1]
      %v1622 = vld [vmem:[#allocation2 + $0x24] sm:$0xe]
      %v1623 = vld [vmem:[#allocation2 + $0x28] sm:$0xf]
      %v1624 = vld [vmem:[#allocation2 + $0x2c] sm:$0x1]
      %v1625 = vld [vmem:[#allocation2 + $0x30] sm:$0xe]
      %v1626 = vld [vmem:[#allocation2 + $0x34] sm:$0xf]
      %v1627 = vld [vmem:[#allocation2 + $0x38] sm:$0x1]
      %v1628 = vld [vmem:[#allocation2 + $0x3c] sm:$0xe]
      %v1629 = vld [vmem:[#allocation2 + $0x40] sm:$0xf]
      %v1630 = vld [vmem:[#allocation2 + $0x44] sm:$0x1]
      %v1631 = vld [vmem:[#allocation2 + $0x48] sm:$0xe]
      %v1632 = vld [vmem:[#allocation2 + $0x4c] sm:$0xf]
      %v1633 = vld [vmem:[#allocation2 + $0x50] sm:$0x1]
      %v1634 = vld [vmem:[#allocation2 + $0x54] sm:$0xe]
      %v1635 = vld [vmem:[#allocation2 + $0x58] sm:$0xf]
      %v1636 = vld [vmem:[#allocation2 + $0x5c] sm:$0x1]
      %v1637 = vld [vmem:[#allocation2 + $0x60] sm:$0xe]
      %v1638 = vld [vmem:[#allocation2 + $0x64] sm:$0xf]
      %v1639 = vld [vmem:[#allocation2 + $0x68] sm:$0x1]
      %v1640 = vld [vmem:[#allocation2 + $0x6c] sm:$0xe]
      %v1641 = vld [vmem:[#allocation2 + $0x70] sm:$0xf]
      %v1642 = vld [vmem:[#allocation2 + $0x74] sm:$0x1]
      %v1643 = vld [vmem:[#allocation2 + $0x78] sm:$0xe]
      %v1644 = vld [vmem:[#allocation2 + $0x7c] sm:$0xf]
      %v1645 = vld [vmem:[#allocation2 + $0x80] sm:$0x1]
      %v1646 = vld [vmem:[#allocation2 + $0x84] sm:$0xe]
      %v1647 = vld [vmem:[#allocation2 + $0x88] sm:$0xf]
      %v1648 = vld [vmem:[#allocation2 + $0x8c] sm:$0x1]
      %v1649 = vld [vmem:[#allocation2 + $0x90] sm:$0xe]
      %v1650 = vld [vmem:[#allocation2 + $0x94] sm:$0xf]
      %v1651 = vld [vmem:[#allocation2 + $0x98] sm:$0x1]
      %v1652 = vld [vmem:[#allocation2 + $0x9c] sm:$0xe]
      %v1653 = vld [vmem:[#allocation2 + $0xa0] sm:$0xf]
      %v1654 = vld [vmem:[#allocation2 + $0xa4] sm:$0x1]
      %v1655 = vld [vmem:[#allocation2 + $0xa8] sm:$0xe]
      %v1656 = vld [vmem:[#allocation2 + $0xac] sm:$0xf]
      %v1657 = vld [vmem:[#allocation2 + $0xb0] sm:$0x1]
      %v1658 = vld [vmem:[#allocation2 + $0xb4] sm:$0xe]
      %v1659 = vld [vmem:[#allocation2 + $0xb8] sm:$0xf]
      %v1660 = vld [vmem:[#allocation2 + $0xbc] sm:$0x1]
      %vm1709 = vcmask 1042432
      %vm1710 = vcmask 1046532
      %vm1711 = vmor %vm1709, %vm1710
      %v1712 = vrot.slane %v1613, 5
      %v1713 = vrot.slane %v1712, 4
      %v1714 = vrot.slane %v1614, 5
      %v1715 = vsel %vm1711, %v1713, %v1714
      %v1716 = vrot.slane %v1714, 4
      %v1717 = vrot.slane %v1615, 5
      %v1718 = vsel %vm1711, %v1716, %v1717
      %v1719 = vrot.slane %v1616, 5
      %v1720 = vrot.slane %v1719, 4
      %v1721 = vrot.slane %v1617, 5
      %v1722 = vsel %vm1711, %v1720, %v1721
      %v1723 = vrot.slane %v1721, 4
      %v1724 = vrot.slane %v1618, 5
      %v1725 = vsel %vm1711, %v1723, %v1724
      %v1726 = vrot.slane %v1619, 5
      %v1727 = vrot.slane %v1726, 4
      %v1728 = vrot.slane %v1620, 5
      %v1729 = vsel %vm1711, %v1727, %v1728
      %v1730 = vrot.slane %v1728, 4
      %v1731 = vrot.slane %v1621, 5
      %v1732 = vsel %vm1711, %v1730, %v1731
      %v1733 = vrot.slane %v1622, 5
      %v1734 = vrot.slane %v1733, 4
      %v1735 = vrot.slane %v1623, 5
      %v1736 = vsel %vm1711, %v1734, %v1735
      %v1737 = vrot.slane %v1735, 4
      %v1738 = vrot.slane %v1624, 5
      %v1739 = vsel %vm1711, %v1737, %v1738
      %v1740 = vrot.slane %v1625, 5
      %v1741 = vrot.slane %v1740, 4
      %v1742 = vrot.slane %v1626, 5
      %v1743 = vsel %vm1711, %v1741, %v1742
      %v1744 = vrot.slane %v1742, 4
      %v1745 = vrot.slane %v1627, 5
      %v1746 = vsel %vm1711, %v1744, %v1745
      %v1747 = vrot.slane %v1628, 5
      %v1748 = vrot.slane %v1747, 4
      %v1749 = vrot.slane %v1629, 5
      %v1750 = vsel %vm1711, %v1748, %v1749
      %v1751 = vrot.slane %v1749, 4
      %v1752 = vrot.slane %v1630, 5
      %v1753 = vsel %vm1711, %v1751, %v1752
      %v1754 = vrot.slane %v1631, 5
      %v1755 = vrot.slane %v1754, 4
      %v1756 = vrot.slane %v1632, 5
      %v1757 = vsel %vm1711, %v1755, %v1756
      %v1758 = vrot.slane %v1756, 4
      %v1759 = vrot.slane %v1633, 5
      %v1760 = vsel %vm1711, %v1758, %v1759
      %v1761 = vrot.slane %v1634, 5
      %v1762 = vrot.slane %v1761, 4
      %v1763 = vrot.slane %v1635, 5
      %v1764 = vsel %vm1711, %v1762, %v1763
      %v1765 = vrot.slane %v1763, 4
      %v1766 = vrot.slane %v1636, 5
      %v1767 = vsel %vm1711, %v1765, %v1766
      %v1768 = vrot.slane %v1637, 5
      %v1769 = vrot.slane %v1768, 4
      %v1770 = vrot.slane %v1638, 5
      %v1771 = vsel %vm1711, %v1769, %v1770
      %v1772 = vrot.slane %v1770, 4
      %v1773 = vrot.slane %v1639, 5
      %v1774 = vsel %vm1711, %v1772, %v1773
      %v1775 = vrot.slane %v1640, 5
      %v1776 = vrot.slane %v1775, 4
      %v1777 = vrot.slane %v1641, 5
      %v1778 = vsel %vm1711, %v1776, %v1777
      %v1779 = vrot.slane %v1777, 4
      %v1780 = vrot.slane %v1642, 5
      %v1781 = vsel %vm1711, %v1779, %v1780
      %v1782 = vrot.slane %v1643, 5
      %v1783 = vrot.slane %v1782, 4
      %v1784 = vrot.slane %v1644, 5
      %v1785 = vsel %vm1711, %v1783, %v1784
      %v1786 = vrot.slane %v1784, 4
      %v1787 = vrot.slane %v1645, 5
      %v1788 = vsel %vm1711, %v1786, %v1787
      %v1789 = vrot.slane %v1646, 5
      %v1790 = vrot.slane %v1789, 4
      %v1791 = vrot.slane %v1647, 5
      %v1792 = vsel %vm1711, %v1790, %v1791
      %v1793 = vrot.slane %v1791, 4
      %v1794 = vrot.slane %v1648, 5
      %v1795 = vsel %vm1711, %v1793, %v1794
      %v1796 = vrot.slane %v1649, 5
      %v1797 = vrot.slane %v1796, 4
      %v1798 = vrot.slane %v1650, 5
      %v1799 = vsel %vm1711, %v1797, %v1798
      %v1800 = vrot.slane %v1798, 4
      %v1801 = vrot.slane %v1651, 5
      %v1802 = vsel %vm1711, %v1800, %v1801
      %v1803 = vrot.slane %v1652, 5
      %v1804 = vrot.slane %v1803, 4
      %v1805 = vrot.slane %v1653, 5
      %v1806 = vsel %vm1711, %v1804, %v1805
      %v1807 = vrot.slane %v1805, 4
      %v1808 = vrot.slane %v1654, 5
      %v1809 = vsel %vm1711, %v1807, %v1808
      %v1810 = vrot.slane %v1655, 5
      %v1811 = vrot.slane %v1810, 4
      %v1812 = vrot.slane %v1656, 5
      %v1813 = vsel %vm1711, %v1811, %v1812
      %v1814 = vrot.slane %v1812, 4
      %v1815 = vrot.slane %v1657, 5
      %v1816 = vsel %vm1711, %v1814, %v1815
      %v1817 = vrot.slane %v1658, 5
      %v1818 = vrot.slane %v1817, 4
      %v1819 = vrot.slane %v1659, 5
      %v1820 = vsel %vm1711, %v1818, %v1819
      %v1821 = vrot.slane %v1819, 4
      %v1822 = vrot.slane %v1660, 5
      %v1823 = vsel %vm1711, %v1821, %v1822
      %1824 = vrot.lane.b32.xlu0 %v1715, 16
      %v1825 = vpop.permute.xlu0 %1824
      %1826 = vrot.lane.b32.xlu0 %v1718, 16
      %v1827 = vpop.permute.xlu0 %1826
      %1828 = vrot.lane.b32.xlu0 %v1722, 16
      %v1829 = vpop.permute.xlu0 %1828
      %1830 = vrot.lane.b32.xlu0 %v1725, 16
      %v1831 = vpop.permute.xlu0 %1830
      %1832 = vrot.lane.b32.xlu0 %v1729, 16
      %v1833 = vpop.permute.xlu0 %1832
      %1834 = vrot.lane.b32.xlu0 %v1732, 16
      %v1835 = vpop.permute.xlu0 %1834
      %1836 = vrot.lane.b32.xlu0 %v1736, 16
      %v1837 = vpop.permute.xlu0 %1836
      %1838 = vrot.lane.b32.xlu0 %v1739, 16
      %v1839 = vpop.permute.xlu0 %1838
      %1840 = vrot.lane.b32.xlu0 %v1743, 16
      %v1841 = vpop.permute.xlu0 %1840
      %1842 = vrot.lane.b32.xlu0 %v1746, 16
      %v1843 = vpop.permute.xlu0 %1842
      %1844 = vrot.lane.b32.xlu0 %v1750, 16
      %v1845 = vpop.permute.xlu0 %1844
      %1846 = vrot.lane.b32.xlu0 %v1753, 16
      %v1847 = vpop.permute.xlu0 %1846
      %1848 = vrot.lane.b32.xlu0 %v1757, 16
      %v1849 = vpop.permute.xlu0 %1848
      %1850 = vrot.lane.b32.xlu0 %v1760, 16
      %v1851 = vpop.permute.xlu0 %1850
      %1852 = vrot.lane.b32.xlu0 %v1764, 16
      %v1853 = vpop.permute.xlu0 %1852
      %1854 = vrot.lane.b32.xlu0 %v1767, 16
      %v1855 = vpop.permute.xlu0 %1854
      %1856 = vrot.lane.b32.xlu0 %v1771, 16
      %v1857 = vpop.permute.xlu0 %1856
      %1858 = vrot.lane.b32.xlu0 %v1774, 16
      %v1859 = vpop.permute.xlu0 %1858
      %1860 = vrot.lane.b32.xlu0 %v1778, 16
      %v1861 = vpop.permute.xlu0 %1860
      %1862 = vrot.lane.b32.xlu0 %v1781, 16
      %v1863 = vpop.permute.xlu0 %1862
      %1864 = vrot.lane.b32.xlu0 %v1785, 16
      %v1865 = vpop.permute.xlu0 %1864
      %1866 = vrot.lane.b32.xlu0 %v1788, 16
      %v1867 = vpop.permute.xlu0 %1866
      %1868 = vrot.lane.b32.xlu0 %v1792, 16
      %v1869 = vpop.permute.xlu0 %1868
      %1870 = vrot.lane.b32.xlu0 %v1795, 16
      %v1871 = vpop.permute.xlu0 %1870
      %1872 = vrot.lane.b32.xlu0 %v1799, 16
      %v1873 = vpop.permute.xlu0 %1872
      %1874 = vrot.lane.b32.xlu0 %v1802, 16
      %v1875 = vpop.permute.xlu0 %1874
      %1876 = vrot.lane.b32.xlu0 %v1806, 16
      %v1877 = vpop.permute.xlu0 %1876
      %1878 = vrot.lane.b32.xlu0 %v1809, 16
      %v1879 = vpop.permute.xlu0 %1878
      %1880 = vrot.lane.b32.xlu0 %v1813, 16
      %v1881 = vpop.permute.xlu0 %1880
      %1882 = vrot.lane.b32.xlu0 %v1816, 16
      %v1883 = vpop.permute.xlu0 %1882
      %1884 = vrot.lane.b32.xlu0 %v1820, 16
      %v1885 = vpop.permute.xlu0 %1884
      %1886 = vrot.lane.b32.xlu0 %v1823, 16
      %v1887 = vpop.permute.xlu0 %1886
      %vm1920 = vcmask 191616
      %1921 = vst.msk [vmem:[#allocation3] sm:$0xf] %vm1920, %v1825
      %1922 = vst.msk [vmem:[#allocation3 + $0x4] sm:$0xf] %vm1920, %v1827
      %1923 = vst.msk [vmem:[#allocation3 + $0x8] sm:$0xf] %vm1920, %v1829
      %1924 = vst.msk [vmem:[#allocation3 + $0xc] sm:$0xf] %vm1920, %v1831
      %1925 = vst.msk [vmem:[#allocation3 + $0x10] sm:$0xf] %vm1920, %v1833
      %1926 = vst.msk [vmem:[#allocation3 + $0x14] sm:$0xf] %vm1920, %v1835
      %1927 = vst.msk [vmem:[#allocation3 + $0x18] sm:$0xf] %vm1920, %v1837
      %1928 = vst.msk [vmem:[#allocation3 + $0x1c] sm:$0xf] %vm1920, %v1839
      %1929 = vst.msk [vmem:[#allocation3 + $0x20] sm:$0xf] %vm1920, %v1841
      %1930 = vst.msk [vmem:[#allocation3 + $0x24] sm:$0xf] %vm1920, %v1843
      %1931 = vst.msk [vmem:[#allocation3 + $0x28] sm:$0xf] %vm1920, %v1845
      %1932 = vst.msk [vmem:[#allocation3 + $0x2c] sm:$0xf] %vm1920, %v1847
      %1933 = vst.msk [vmem:[#allocation3 + $0x30] sm:$0xf] %vm1920, %v1849
      %1934 = vst.msk [vmem:[#allocation3 + $0x34] sm:$0xf] %vm1920, %v1851
      %1935 = vst.msk [vmem:[#allocation3 + $0x38] sm:$0xf] %vm1920, %v1853
      %1936 = vst.msk [vmem:[#allocation3 + $0x3c] sm:$0xf] %vm1920, %v1855
      %1937 = vst.msk [vmem:[#allocation3 + $0x40] sm:$0xf] %vm1920, %v1857
      %1938 = vst.msk [vmem:[#allocation3 + $0x44] sm:$0xf] %vm1920, %v1859
      %1939 = vst.msk [vmem:[#allocation3 + $0x48] sm:$0xf] %vm1920, %v1861
      %1940 = vst.msk [vmem:[#allocation3 + $0x4c] sm:$0xf] %vm1920, %v1863
      %1941 = vst.msk [vmem:[#allocation3 + $0x50] sm:$0xf] %vm1920, %v1865
      %1942 = vst.msk [vmem:[#allocation3 + $0x54] sm:$0xf] %vm1920, %v1867
      %1943 = vst.msk [vmem:[#allocation3 + $0x58] sm:$0xf] %vm1920, %v1869
      %1944 = vst.msk [vmem:[#allocation3 + $0x5c] sm:$0xf] %vm1920, %v1871
      %1945 = vst.msk [vmem:[#allocation3 + $0x60] sm:$0xf] %vm1920, %v1873
      %1946 = vst.msk [vmem:[#allocation3 + $0x64] sm:$0xf] %vm1920, %v1875
      %1947 = vst.msk [vmem:[#allocation3 + $0x68] sm:$0xf] %vm1920, %v1877
      %1948 = vst.msk [vmem:[#allocation3 + $0x6c] sm:$0xf] %vm1920, %v1879
      %1949 = vst.msk [vmem:[#allocation3 + $0x70] sm:$0xf] %vm1920, %v1881
      %1950 = vst.msk [vmem:[#allocation3 + $0x74] sm:$0xf] %vm1920, %v1883
      %1951 = vst.msk [vmem:[#allocation3 + $0x78] sm:$0xf] %vm1920, %v1885
      %1952 = vst.msk [vmem:[#allocation3 + $0x7c] sm:$0xf] %vm1920, %v1887
      %v1953 = vld [vmem:[%s382] sm:$0xf]
      %v1954 = vld [vmem:[%s382 + $0x4] sm:$0xf]
      %v1955 = vld [vmem:[%s382 + $0xc] sm:$0xf]
      %v1956 = vld [vmem:[%s382 + $0x10] sm:$0xf]
      %v1957 = vld [vmem:[%s382 + $0x18] sm:$0xf]
      %v1958 = vld [vmem:[%s382 + $0x1c] sm:$0xf]
      %v1959 = vld [vmem:[%s382 + $0x24] sm:$0xf]
      %v1960 = vld [vmem:[%s382 + $0x28] sm:$0xf]
      %v1961 = vld [vmem:[%s382 + $0x30] sm:$0xf]
      %v1962 = vld [vmem:[%s382 + $0x34] sm:$0xf]
      %v1963 = vld [vmem:[%s382 + $0x3c] sm:$0xf]
      %v1964 = vld [vmem:[%s382 + $0x40] sm:$0xf]
      %v1965 = vld [vmem:[%s382 + $0x48] sm:$0xf]
      %v1966 = vld [vmem:[%s382 + $0x4c] sm:$0xf]
      %v1967 = vld [vmem:[%s382 + $0x54] sm:$0xf]
      %v1968 = vld [vmem:[%s382 + $0x58] sm:$0xf]
      %v1969 = vld [vmem:[%s382 + $0x60] sm:$0xf]
      %v1970 = vld [vmem:[%s382 + $0x64] sm:$0xf]
      %v1971 = vld [vmem:[%s382 + $0x6c] sm:$0xf]
      %v1972 = vld [vmem:[%s382 + $0x70] sm:$0xf]
      %v1973 = vld [vmem:[%s382 + $0x78] sm:$0xf]
      %v1974 = vld [vmem:[%s382 + $0x7c] sm:$0xf]
      %v1975 = vld [vmem:[%s382 + $0x84] sm:$0xf]
      %v1976 = vld [vmem:[%s382 + $0x88] sm:$0xf]
      %v1977 = vld [vmem:[%s382 + $0x90] sm:$0xf]
      %v1978 = vld [vmem:[%s382 + $0x94] sm:$0xf]
      %v1979 = vld [vmem:[%s382 + $0x9c] sm:$0xf]
      %v1980 = vld [vmem:[%s382 + $0xa0] sm:$0xf]
      %v1981 = vld [vmem:[%s382 + $0xa8] sm:$0xf]
      %v1982 = vld [vmem:[%s382 + $0xac] sm:$0xf]
      %v1983 = vld [vmem:[%s382 + $0xb4] sm:$0xf]
      %v1984 = vld [vmem:[%s382 + $0xb8] sm:$0xf]
      %2017 = vrot.lane.b32.xlu0 %v1953, 24
      %v2018 = vpop.permute.xlu0 %2017
      %2019 = vrot.lane.b32.xlu0 %v1954, 24
      %v2020 = vpop.permute.xlu0 %2019
      %2021 = vrot.lane.b32.xlu0 %v1955, 24
      %v2022 = vpop.permute.xlu0 %2021
      %2023 = vrot.lane.b32.xlu0 %v1956, 24
      %v2024 = vpop.permute.xlu0 %2023
      %2025 = vrot.lane.b32.xlu0 %v1957, 24
      %v2026 = vpop.permute.xlu0 %2025
      %2027 = vrot.lane.b32.xlu0 %v1958, 24
      %v2028 = vpop.permute.xlu0 %2027
      %2029 = vrot.lane.b32.xlu0 %v1959, 24
      %v2030 = vpop.permute.xlu0 %2029
      %2031 = vrot.lane.b32.xlu0 %v1960, 24
      %v2032 = vpop.permute.xlu0 %2031
      %2033 = vrot.lane.b32.xlu0 %v1961, 24
      %v2034 = vpop.permute.xlu0 %2033
      %2035 = vrot.lane.b32.xlu0 %v1962, 24
      %v2036 = vpop.permute.xlu0 %2035
      %2037 = vrot.lane.b32.xlu0 %v1963, 24
      %v2038 = vpop.permute.xlu0 %2037
      %2039 = vrot.lane.b32.xlu0 %v1964, 24
      %v2040 = vpop.permute.xlu0 %2039
      %2041 = vrot.lane.b32.xlu0 %v1965, 24
      %v2042 = vpop.permute.xlu0 %2041
      %2043 = vrot.lane.b32.xlu0 %v1966, 24
      %v2044 = vpop.permute.xlu0 %2043
      %2045 = vrot.lane.b32.xlu0 %v1967, 24
      %v2046 = vpop.permute.xlu0 %2045
      %2047 = vrot.lane.b32.xlu0 %v1968, 24
      %v2048 = vpop.permute.xlu0 %2047
      %2049 = vrot.lane.b32.xlu0 %v1969, 24
      %v2050 = vpop.permute.xlu0 %2049
      %2051 = vrot.lane.b32.xlu0 %v1970, 24
      %v2052 = vpop.permute.xlu0 %2051
      %2053 = vrot.lane.b32.xlu0 %v1971, 24
      %v2054 = vpop.permute.xlu0 %2053
      %2055 = vrot.lane.b32.xlu0 %v1972, 24
      %v2056 = vpop.permute.xlu0 %2055
      %2057 = vrot.lane.b32.xlu0 %v1973, 24
      %v2058 = vpop.permute.xlu0 %2057
      %2059 = vrot.lane.b32.xlu0 %v1974, 24
      %v2060 = vpop.permute.xlu0 %2059
      %2061 = vrot.lane.b32.xlu0 %v1975, 24
      %v2062 = vpop.permute.xlu0 %2061
      %2063 = vrot.lane.b32.xlu0 %v1976, 24
      %v2064 = vpop.permute.xlu0 %2063
      %2065 = vrot.lane.b32.xlu0 %v1977, 24
      %v2066 = vpop.permute.xlu0 %2065
      %2067 = vrot.lane.b32.xlu0 %v1978, 24
      %v2068 = vpop.permute.xlu0 %2067
      %2069 = vrot.lane.b32.xlu0 %v1979, 24
      %v2070 = vpop.permute.xlu0 %2069
      %2071 = vrot.lane.b32.xlu0 %v1980, 24
      %v2072 = vpop.permute.xlu0 %2071
      %2073 = vrot.lane.b32.xlu0 %v1981, 24
      %v2074 = vpop.permute.xlu0 %2073
      %2075 = vrot.lane.b32.xlu0 %v1982, 24
      %v2076 = vpop.permute.xlu0 %2075
      %2077 = vrot.lane.b32.xlu0 %v1983, 24
      %v2078 = vpop.permute.xlu0 %2077
      %2079 = vrot.lane.b32.xlu0 %v1984, 24
      %v2080 = vpop.permute.xlu0 %2079
      %vm2113 = vcmask 257216
      %2114 = vst.msk [vmem:[#allocation3] sm:$0xf] %vm2113, %v2018
      %2115 = vst.msk [vmem:[#allocation3 + $0x4] sm:$0xf] %vm2113, %v2020
      %2116 = vst.msk [vmem:[#allocation3 + $0x8] sm:$0xf] %vm2113, %v2022
      %2117 = vst.msk [vmem:[#allocation3 + $0xc] sm:$0xf] %vm2113, %v2024
      %2118 = vst.msk [vmem:[#allocation3 + $0x10] sm:$0xf] %vm2113, %v2026
      %2119 = vst.msk [vmem:[#allocation3 + $0x14] sm:$0xf] %vm2113, %v2028
      %2120 = vst.msk [vmem:[#allocation3 + $0x18] sm:$0xf] %vm2113, %v2030
      %2121 = vst.msk [vmem:[#allocation3 + $0x1c] sm:$0xf] %vm2113, %v2032
      %2122 = vst.msk [vmem:[#allocation3 + $0x20] sm:$0xf] %vm2113, %v2034
      %2123 = vst.msk [vmem:[#allocation3 + $0x24] sm:$0xf] %vm2113, %v2036
      %2124 = vst.msk [vmem:[#allocation3 + $0x28] sm:$0xf] %vm2113, %v2038
      %2125 = vst.msk [vmem:[#allocation3 + $0x2c] sm:$0xf] %vm2113, %v2040
      %2126 = vst.msk [vmem:[#allocation3 + $0x30] sm:$0xf] %vm2113, %v2042
      %2127 = vst.msk [vmem:[#allocation3 + $0x34] sm:$0xf] %vm2113, %v2044
      %2128 = vst.msk [vmem:[#allocation3 + $0x38] sm:$0xf] %vm2113, %v2046
      %2129 = vst.msk [vmem:[#allocation3 + $0x3c] sm:$0xf] %vm2113, %v2048
      %2130 = vst.msk [vmem:[#allocation3 + $0x40] sm:$0xf] %vm2113, %v2050
      %2131 = vst.msk [vmem:[#allocation3 + $0x44] sm:$0xf] %vm2113, %v2052
      %2132 = vst.msk [vmem:[#allocation3 + $0x48] sm:$0xf] %vm2113, %v2054
      %2133 = vst.msk [vmem:[#allocation3 + $0x4c] sm:$0xf] %vm2113, %v2056
      %2134 = vst.msk [vmem:[#allocation3 + $0x50] sm:$0xf] %vm2113, %v2058
      %2135 = vst.msk [vmem:[#allocation3 + $0x54] sm:$0xf] %vm2113, %v2060
      %2136 = vst.msk [vmem:[#allocation3 + $0x58] sm:$0xf] %vm2113, %v2062
      %2137 = vst.msk [vmem:[#allocation3 + $0x5c] sm:$0xf] %vm2113, %v2064
      %2138 = vst.msk [vmem:[#allocation3 + $0x60] sm:$0xf] %vm2113, %v2066
      %2139 = vst.msk [vmem:[#allocation3 + $0x64] sm:$0xf] %vm2113, %v2068
      %2140 = vst.msk [vmem:[#allocation3 + $0x68] sm:$0xf] %vm2113, %v2070
      %2141 = vst.msk [vmem:[#allocation3 + $0x6c] sm:$0xf] %vm2113, %v2072
      %2142 = vst.msk [vmem:[#allocation3 + $0x70] sm:$0xf] %vm2113, %v2074
      %2143 = vst.msk [vmem:[#allocation3 + $0x74] sm:$0xf] %vm2113, %v2076
      %2144 = vst.msk [vmem:[#allocation3 + $0x78] sm:$0xf] %vm2113, %v2078
      %2145 = vst.msk [vmem:[#allocation3 + $0x7c] sm:$0xf] %vm2113, %v2080
      %v2146 = vld [vmem:[%s382] sm:$0xf]
      %v2147 = vld [vmem:[%s382 + $0x4] sm:$0xf]
      %v2148 = vld [vmem:[%s382 + $0x8] sm:$0x1]
      %v2149 = vld [vmem:[%s382 + $0xc] sm:$0xf]
      %v2150 = vld [vmem:[%s382 + $0x10] sm:$0xf]
      %v2151 = vld [vmem:[%s382 + $0x14] sm:$0x1]
      %v2152 = vld [vmem:[%s382 + $0x18] sm:$0xf]
      %v2153 = vld [vmem:[%s382 + $0x1c] sm:$0xf]
      %v2154 = vld [vmem:[%s382 + $0x20] sm:$0x1]
      %v2155 = vld [vmem:[%s382 + $0x24] sm:$0xf]
      %v2156 = vld [vmem:[%s382 + $0x28] sm:$0xf]
      %v2157 = vld [vmem:[%s382 + $0x2c] sm:$0x1]
      %v2158 = vld [vmem:[%s382 + $0x30] sm:$0xf]
      %v2159 = vld [vmem:[%s382 + $0x34] sm:$0xf]
      %v2160 = vld [vmem:[%s382 + $0x38] sm:$0x1]
      %v2161 = vld [vmem:[%s382 + $0x3c] sm:$0xf]
      %v2162 = vld [vmem:[%s382 + $0x40] sm:$0xf]
      %v2163 = vld [vmem:[%s382 + $0x44] sm:$0x1]
      %v2164 = vld [vmem:[%s382 + $0x48] sm:$0xf]
      %v2165 = vld [vmem:[%s382 + $0x4c] sm:$0xf]
      %v2166 = vld [vmem:[%s382 + $0x50] sm:$0x1]
      %v2167 = vld [vmem:[%s382 + $0x54] sm:$0xf]
      %v2168 = vld [vmem:[%s382 + $0x58] sm:$0xf]
      %v2169 = vld [vmem:[%s382 + $0x5c] sm:$0x1]
      %v2170 = vld [vmem:[%s382 + $0x60] sm:$0xf]
      %v2171 = vld [vmem:[%s382 + $0x64] sm:$0xf]
      %v2172 = vld [vmem:[%s382 + $0x68] sm:$0x1]
      %v2173 = vld [vmem:[%s382 + $0x6c] sm:$0xf]
      %v2174 = vld [vmem:[%s382 + $0x70] sm:$0xf]
      %v2175 = vld [vmem:[%s382 + $0x74] sm:$0x1]
      %v2176 = vld [vmem:[%s382 + $0x78] sm:$0xf]
      %v2177 = vld [vmem:[%s382 + $0x7c] sm:$0xf]
      %v2178 = vld [vmem:[%s382 + $0x80] sm:$0x1]
      %v2179 = vld [vmem:[%s382 + $0x84] sm:$0xf]
      %v2180 = vld [vmem:[%s382 + $0x88] sm:$0xf]
      %v2181 = vld [vmem:[%s382 + $0x8c] sm:$0x1]
      %v2182 = vld [vmem:[%s382 + $0x90] sm:$0xf]
      %v2183 = vld [vmem:[%s382 + $0x94] sm:$0xf]
      %v2184 = vld [vmem:[%s382 + $0x98] sm:$0x1]
      %v2185 = vld [vmem:[%s382 + $0x9c] sm:$0xf]
      %v2186 = vld [vmem:[%s382 + $0xa0] sm:$0xf]
      %v2187 = vld [vmem:[%s382 + $0xa4] sm:$0x1]
      %v2188 = vld [vmem:[%s382 + $0xa8] sm:$0xf]
      %v2189 = vld [vmem:[%s382 + $0xac] sm:$0xf]
      %v2190 = vld [vmem:[%s382 + $0xb0] sm:$0x1]
      %v2191 = vld [vmem:[%s382 + $0xb4] sm:$0xf]
      %v2192 = vld [vmem:[%s382 + $0xb8] sm:$0xf]
      %v2193 = vld [vmem:[%s382 + $0xbc] sm:$0x1]
      %v2195 = vshrl.u32 %v2146, 16
      %v2197 = vrot.slane %v2195, 4
      %v2198 = vshll.u32 %v2146, 16
      %v2200 = vrot.slane %v2198, 5
      %v2201 = vor.u32 %v2197, %v2200
      %v2202 = vrot.slane %v2201, 4
      %v2204 = vshll.u32 %v2147, 16
      %v2206 = vrot.slane %v2204, 5
      %v2207 = vsel %vm1099, %v2202, %v2206
      %v2208 = vshrl.u32 %v2147, 16
      %v2210 = vrot.slane %v2208, 4
      %v2211 = vor.u32 %v2210, %v2206
      %v2212 = vrot.slane %v2211, 4
      %v2214 = vshll.u32 %v2148, 16
      %v2216 = vrot.slane %v2214, 5
      %v2217 = vsel %vm1099, %v2212, %v2216
      %v2219 = vshrl.u32 %v2149, 16
      %v2221 = vrot.slane %v2219, 4
      %v2222 = vshll.u32 %v2149, 16
      %v2224 = vrot.slane %v2222, 5
      %v2225 = vor.u32 %v2221, %v2224
      %v2226 = vrot.slane %v2225, 4
      %v2228 = vshll.u32 %v2150, 16
      %v2230 = vrot.slane %v2228, 5
      %v2231 = vsel %vm1099, %v2226, %v2230
      %v2232 = vshrl.u32 %v2150, 16
      %v2234 = vrot.slane %v2232, 4
      %v2235 = vor.u32 %v2234, %v2230
      %v2236 = vrot.slane %v2235, 4
      %v2238 = vshll.u32 %v2151, 16
      %v2240 = vrot.slane %v2238, 5
      %v2241 = vsel %vm1099, %v2236, %v2240
      %v2243 = vshrl.u32 %v2152, 16
      %v2245 = vrot.slane %v2243, 4
      %v2246 = vshll.u32 %v2152, 16
      %v2248 = vrot.slane %v2246, 5
      %v2249 = vor.u32 %v2245, %v2248
      %v2250 = vrot.slane %v2249, 4
      %v2252 = vshll.u32 %v2153, 16
      %v2254 = vrot.slane %v2252, 5
      %v2255 = vsel %vm1099, %v2250, %v2254
      %v2256 = vshrl.u32 %v2153, 16
      %v2258 = vrot.slane %v2256, 4
      %v2259 = vor.u32 %v2258, %v2254
      %v2260 = vrot.slane %v2259, 4
      %v2262 = vshll.u32 %v2154, 16
      %v2264 = vrot.slane %v2262, 5
      %v2265 = vsel %vm1099, %v2260, %v2264
      %v2267 = vshrl.u32 %v2155, 16
      %v2269 = vrot.slane %v2267, 4
      %v2270 = vshll.u32 %v2155, 16
      %v2272 = vrot.slane %v2270, 5
      %v2273 = vor.u32 %v2269, %v2272
      %v2274 = vrot.slane %v2273, 4
      %v2276 = vshll.u32 %v2156, 16
      %v2278 = vrot.slane %v2276, 5
      %v2279 = vsel %vm1099, %v2274, %v2278
      %v2280 = vshrl.u32 %v2156, 16
      %v2282 = vrot.slane %v2280, 4
      %v2283 = vor.u32 %v2282, %v2278
      %v2284 = vrot.slane %v2283, 4
      %v2286 = vshll.u32 %v2157, 16
      %v2288 = vrot.slane %v2286, 5
      %v2289 = vsel %vm1099, %v2284, %v2288
      %v2291 = vshrl.u32 %v2158, 16
      %v2293 = vrot.slane %v2291, 4
      %v2294 = vshll.u32 %v2158, 16
      %v2296 = vrot.slane %v2294, 5
      %v2297 = vor.u32 %v2293, %v2296
      %v2298 = vrot.slane %v2297, 4
      %v2300 = vshll.u32 %v2159, 16
      %v2302 = vrot.slane %v2300, 5
      %v2303 = vsel %vm1099, %v2298, %v2302
      %v2304 = vshrl.u32 %v2159, 16
      %v2306 = vrot.slane %v2304, 4
      %v2307 = vor.u32 %v2306, %v2302
      %v2308 = vrot.slane %v2307, 4
      %v2310 = vshll.u32 %v2160, 16
      %v2312 = vrot.slane %v2310, 5
      %v2313 = vsel %vm1099, %v2308, %v2312
      %v2315 = vshrl.u32 %v2161, 16
      %v2317 = vrot.slane %v2315, 4
      %v2318 = vshll.u32 %v2161, 16
      %v2320 = vrot.slane %v2318, 5
      %v2321 = vor.u32 %v2317, %v2320
      %v2322 = vrot.slane %v2321, 4
      %v2324 = vshll.u32 %v2162, 16
      %v2326 = vrot.slane %v2324, 5
      %v2327 = vsel %vm1099, %v2322, %v2326
      %v2328 = vshrl.u32 %v2162, 16
      %v2330 = vrot.slane %v2328, 4
      %v2331 = vor.u32 %v2330, %v2326
      %v2332 = vrot.slane %v2331, 4
      %v2334 = vshll.u32 %v2163, 16
      %v2336 = vrot.slane %v2334, 5
      %v2337 = vsel %vm1099, %v2332, %v2336
      %v2339 = vshrl.u32 %v2164, 16
      %v2341 = vrot.slane %v2339, 4
      %v2342 = vshll.u32 %v2164, 16
      %v2344 = vrot.slane %v2342, 5
      %v2345 = vor.u32 %v2341, %v2344
      %v2346 = vrot.slane %v2345, 4
      %v2348 = vshll.u32 %v2165, 16
      %v2350 = vrot.slane %v2348, 5
      %v2351 = vsel %vm1099, %v2346, %v2350
      %v2352 = vshrl.u32 %v2165, 16
      %v2354 = vrot.slane %v2352, 4
      %v2355 = vor.u32 %v2354, %v2350
      %v2356 = vrot.slane %v2355, 4
      %v2358 = vshll.u32 %v2166, 16
      %v2360 = vrot.slane %v2358, 5
      %v2361 = vsel %vm1099, %v2356, %v2360
      %v2363 = vshrl.u32 %v2167, 16
      %v2365 = vrot.slane %v2363, 4
      %v2366 = vshll.u32 %v2167, 16
      %v2368 = vrot.slane %v2366, 5
      %v2369 = vor.u32 %v2365, %v2368
      %v2370 = vrot.slane %v2369, 4
      %v2372 = vshll.u32 %v2168, 16
      %v2374 = vrot.slane %v2372, 5
      %v2375 = vsel %vm1099, %v2370, %v2374
      %v2376 = vshrl.u32 %v2168, 16
      %v2378 = vrot.slane %v2376, 4
      %v2379 = vor.u32 %v2378, %v2374
      %v2380 = vrot.slane %v2379, 4
      %v2382 = vshll.u32 %v2169, 16
      %v2384 = vrot.slane %v2382, 5
      %v2385 = vsel %vm1099, %v2380, %v2384
      %v2387 = vshrl.u32 %v2170, 16
      %v2389 = vrot.slane %v2387, 4
      %v2390 = vshll.u32 %v2170, 16
      %v2392 = vrot.slane %v2390, 5
      %v2393 = vor.u32 %v2389, %v2392
      %v2394 = vrot.slane %v2393, 4
      %v2396 = vshll.u32 %v2171, 16
      %v2398 = vrot.slane %v2396, 5
      %v2399 = vsel %vm1099, %v2394, %v2398
      %v2400 = vshrl.u32 %v2171, 16
      %v2402 = vrot.slane %v2400, 4
      %v2403 = vor.u32 %v2402, %v2398
      %v2404 = vrot.slane %v2403, 4
      %v2406 = vshll.u32 %v2172, 16
      %v2408 = vrot.slane %v2406, 5
      %v2409 = vsel %vm1099, %v2404, %v2408
      %v2411 = vshrl.u32 %v2173, 16
      %v2413 = vrot.slane %v2411, 4
      %v2414 = vshll.u32 %v2173, 16
      %v2416 = vrot.slane %v2414, 5
      %v2417 = vor.u32 %v2413, %v2416
      %v2418 = vrot.slane %v2417, 4
      %v2420 = vshll.u32 %v2174, 16
      %v2422 = vrot.slane %v2420, 5
      %v2423 = vsel %vm1099, %v2418, %v2422
      %v2424 = vshrl.u32 %v2174, 16
      %v2426 = vrot.slane %v2424, 4
      %v2427 = vor.u32 %v2426, %v2422
      %v2428 = vrot.slane %v2427, 4
      %v2430 = vshll.u32 %v2175, 16
      %v2432 = vrot.slane %v2430, 5
      %v2433 = vsel %vm1099, %v2428, %v2432
      %v2435 = vshrl.u32 %v2176, 16
      %v2437 = vrot.slane %v2435, 4
      %v2438 = vshll.u32 %v2176, 16
      %v2440 = vrot.slane %v2438, 5
      %v2441 = vor.u32 %v2437, %v2440
      %v2442 = vrot.slane %v2441, 4
      %v2444 = vshll.u32 %v2177, 16
      %v2446 = vrot.slane %v2444, 5
      %v2447 = vsel %vm1099, %v2442, %v2446
      %v2448 = vshrl.u32 %v2177, 16
      %v2450 = vrot.slane %v2448, 4
      %v2451 = vor.u32 %v2450, %v2446
      %v2452 = vrot.slane %v2451, 4
      %v2454 = vshll.u32 %v2178, 16
      %v2456 = vrot.slane %v2454, 5
      %v2457 = vsel %vm1099, %v2452, %v2456
      %v2459 = vshrl.u32 %v2179, 16
      %v2461 = vrot.slane %v2459, 4
      %v2462 = vshll.u32 %v2179, 16
      %v2464 = vrot.slane %v2462, 5
      %v2465 = vor.u32 %v2461, %v2464
      %v2466 = vrot.slane %v2465, 4
      %v2468 = vshll.u32 %v2180, 16
      %v2470 = vrot.slane %v2468, 5
      %v2471 = vsel %vm1099, %v2466, %v2470
      %v2472 = vshrl.u32 %v2180, 16
      %v2474 = vrot.slane %v2472, 4
      %v2475 = vor.u32 %v2474, %v2470
      %v2476 = vrot.slane %v2475, 4
      %v2478 = vshll.u32 %v2181, 16
      %v2480 = vrot.slane %v2478, 5
      %v2481 = vsel %vm1099, %v2476, %v2480
      %v2483 = vshrl.u32 %v2182, 16
      %v2485 = vrot.slane %v2483, 4
      %v2486 = vshll.u32 %v2182, 16
      %v2488 = vrot.slane %v2486, 5
      %v2489 = vor.u32 %v2485, %v2488
      %v2490 = vrot.slane %v2489, 4
      %v2492 = vshll.u32 %v2183, 16
      %v2494 = vrot.slane %v2492, 5
      %v2495 = vsel %vm1099, %v2490, %v2494
      %v2496 = vshrl.u32 %v2183, 16
      %v2498 = vrot.slane %v2496, 4
      %v2499 = vor.u32 %v2498, %v2494
      %v2500 = vrot.slane %v2499, 4
      %v2502 = vshll.u32 %v2184, 16
      %v2504 = vrot.slane %v2502, 5
      %v2505 = vsel %vm1099, %v2500, %v2504
      %v2507 = vshrl.u32 %v2185, 16
      %v2509 = vrot.slane %v2507, 4
      %v2510 = vshll.u32 %v2185, 16
      %v2512 = vrot.slane %v2510, 5
      %v2513 = vor.u32 %v2509, %v2512
      %v2514 = vrot.slane %v2513, 4
      %v2516 = vshll.u32 %v2186, 16
      %v2518 = vrot.slane %v2516, 5
      %v2519 = vsel %vm1099, %v2514, %v2518
      %v2520 = vshrl.u32 %v2186, 16
      %v2522 = vrot.slane %v2520, 4
      %v2523 = vor.u32 %v2522, %v2518
      %v2524 = vrot.slane %v2523, 4
      %v2526 = vshll.u32 %v2187, 16
      %v2528 = vrot.slane %v2526, 5
      %v2529 = vsel %vm1099, %v2524, %v2528
      %v2531 = vshrl.u32 %v2188, 16
      %v2533 = vrot.slane %v2531, 4
      %v2534 = vshll.u32 %v2188, 16
      %v2536 = vrot.slane %v2534, 5
      %v2537 = vor.u32 %v2533, %v2536
      %v2538 = vrot.slane %v2537, 4
      %v2540 = vshll.u32 %v2189, 16
      %v2542 = vrot.slane %v2540, 5
      %v2543 = vsel %vm1099, %v2538, %v2542
      %v2544 = vshrl.u32 %v2189, 16
      %v2546 = vrot.slane %v2544, 4
      %v2547 = vor.u32 %v2546, %v2542
      %v2548 = vrot.slane %v2547, 4
      %v2550 = vshll.u32 %v2190, 16
      %v2552 = vrot.slane %v2550, 5
      %v2553 = vsel %vm1099, %v2548, %v2552
      %v2555 = vshrl.u32 %v2191, 16
      %v2557 = vrot.slane %v2555, 4
      %v2558 = vshll.u32 %v2191, 16
      %v2560 = vrot.slane %v2558, 5
      %v2561 = vor.u32 %v2557, %v2560
      %v2562 = vrot.slane %v2561, 4
      %v2564 = vshll.u32 %v2192, 16
      %v2566 = vrot.slane %v2564, 5
      %v2567 = vsel %vm1099, %v2562, %v2566
      %v2568 = vshrl.u32 %v2192, 16
      %v2570 = vrot.slane %v2568, 4
      %v2571 = vor.u32 %v2570, %v2566
      %v2572 = vrot.slane %v2571, 4
      %v2574 = vshll.u32 %v2193, 16
      %v2576 = vrot.slane %v2574, 5
      %v2577 = vsel %vm1099, %v2572, %v2576
      %2578 = vrot.lane.b32.xlu0 %v2207, 32
      %v2579 = vpop.permute.xlu0 %2578
      %2580 = vrot.lane.b32.xlu0 %v2217, 32
      %v2581 = vpop.permute.xlu0 %2580
      %2582 = vrot.lane.b32.xlu0 %v2231, 32
      %v2583 = vpop.permute.xlu0 %2582
      %2584 = vrot.lane.b32.xlu0 %v2241, 32
      %v2585 = vpop.permute.xlu0 %2584
      %2586 = vrot.lane.b32.xlu0 %v2255, 32
      %v2587 = vpop.permute.xlu0 %2586
      %2588 = vrot.lane.b32.xlu0 %v2265, 32
      %v2589 = vpop.permute.xlu0 %2588
      %2590 = vrot.lane.b32.xlu0 %v2279, 32
      %v2591 = vpop.permute.xlu0 %2590
      %2592 = vrot.lane.b32.xlu0 %v2289, 32
      %v2593 = vpop.permute.xlu0 %2592
      %2594 = vrot.lane.b32.xlu0 %v2303, 32
      %v2595 = vpop.permute.xlu0 %2594
      %2596 = vrot.lane.b32.xlu0 %v2313, 32
      %v2597 = vpop.permute.xlu0 %2596
      %2598 = vrot.lane.b32.xlu0 %v2327, 32
      %v2599 = vpop.permute.xlu0 %2598
      %2600 = vrot.lane.b32.xlu0 %v2337, 32
      %v2601 = vpop.permute.xlu0 %2600
      %2602 = vrot.lane.b32.xlu0 %v2351, 32
      %v2603 = vpop.permute.xlu0 %2602
      %2604 = vrot.lane.b32.xlu0 %v2361, 32
      %v2605 = vpop.permute.xlu0 %2604
      %2606 = vrot.lane.b32.xlu0 %v2375, 32
      %v2607 = vpop.permute.xlu0 %2606
      %2608 = vrot.lane.b32.xlu0 %v2385, 32
      %v2609 = vpop.permute.xlu0 %2608
      %2610 = vrot.lane.b32.xlu0 %v2399, 32
      %v2611 = vpop.permute.xlu0 %2610
      %2612 = vrot.lane.b32.xlu0 %v2409, 32
      %v2613 = vpop.permute.xlu0 %2612
      %2614 = vrot.lane.b32.xlu0 %v2423, 32
      %v2615 = vpop.permute.xlu0 %2614
      %2616 = vrot.lane.b32.xlu0 %v2433, 32
      %v2617 = vpop.permute.xlu0 %2616
      %2618 = vrot.lane.b32.xlu0 %v2447, 32
      %v2619 = vpop.permute.xlu0 %2618
      %2620 = vrot.lane.b32.xlu0 %v2457, 32
      %v2621 = vpop.permute.xlu0 %2620
      %2622 = vrot.lane.b32.xlu0 %v2471, 32
      %v2623 = vpop.permute.xlu0 %2622
      %2624 = vrot.lane.b32.xlu0 %v2481, 32
      %v2625 = vpop.permute.xlu0 %2624
      %2626 = vrot.lane.b32.xlu0 %v2495, 32
      %v2627 = vpop.permute.xlu0 %2626
      %2628 = vrot.lane.b32.xlu0 %v2505, 32
      %v2629 = vpop.permute.xlu0 %2628
      %2630 = vrot.lane.b32.xlu0 %v2519, 32
      %v2631 = vpop.permute.xlu0 %2630
      %2632 = vrot.lane.b32.xlu0 %v2529, 32
      %v2633 = vpop.permute.xlu0 %2632
      %2634 = vrot.lane.b32.xlu0 %v2543, 32
      %v2635 = vpop.permute.xlu0 %2634
      %2636 = vrot.lane.b32.xlu0 %v2553, 32
      %v2637 = vpop.permute.xlu0 %2636
      %2638 = vrot.lane.b32.xlu0 %v2567, 32
      %v2639 = vpop.permute.xlu0 %2638
      %2640 = vrot.lane.b32.xlu0 %v2577, 32
      %v2641 = vpop.permute.xlu0 %2640
      %vm2674 = vcmask 322816
      %2675 = vst.msk [vmem:[#allocation3] sm:$0xf] %vm2674, %v2579
      %2676 = vst.msk [vmem:[#allocation3 + $0x4] sm:$0xf] %vm2674, %v2581
      %2677 = vst.msk [vmem:[#allocation3 + $0x8] sm:$0xf] %vm2674, %v2583
      %2678 = vst.msk [vmem:[#allocation3 + $0xc] sm:$0xf] %vm2674, %v2585
      %2679 = vst.msk [vmem:[#allocation3 + $0x10] sm:$0xf] %vm2674, %v2587
      %2680 = vst.msk [vmem:[#allocation3 + $0x14] sm:$0xf] %vm2674, %v2589
      %2681 = vst.msk [vmem:[#allocation3 + $0x18] sm:$0xf] %vm2674, %v2591
      %2682 = vst.msk [vmem:[#allocation3 + $0x1c] sm:$0xf] %vm2674, %v2593
      %2683 = vst.msk [vmem:[#allocation3 + $0x20] sm:$0xf] %vm2674, %v2595
      %2684 = vst.msk [vmem:[#allocation3 + $0x24] sm:$0xf] %vm2674, %v2597
      %2685 = vst.msk [vmem:[#allocation3 + $0x28] sm:$0xf] %vm2674, %v2599
      %2686 = vst.msk [vmem:[#allocation3 + $0x2c] sm:$0xf] %vm2674, %v2601
      %2687 = vst.msk [vmem:[#allocation3 + $0x30] sm:$0xf] %vm2674, %v2603
      %2688 = vst.msk [vmem:[#allocation3 + $0x34] sm:$0xf] %vm2674, %v2605
      %2689 = vst.msk [vmem:[#allocation3 + $0x38] sm:$0xf] %vm2674, %v2607
      %2690 = vst.msk [vmem:[#allocation3 + $0x3c] sm:$0xf] %vm2674, %v2609
      %2691 = vst.msk [vmem:[#allocation3 + $0x40] sm:$0xf] %vm2674, %v2611
      %2692 = vst.msk [vmem:[#allocation3 + $0x44] sm:$0xf] %vm2674, %v2613
      %2693 = vst.msk [vmem:[#allocation3 + $0x48] sm:$0xf] %vm2674, %v2615
      %2694 = vst.msk [vmem:[#allocation3 + $0x4c] sm:$0xf] %vm2674, %v2617
      %2695 = vst.msk [vmem:[#allocation3 + $0x50] sm:$0xf] %vm2674, %v2619
      %2696 = vst.msk [vmem:[#allocation3 + $0x54] sm:$0xf] %vm2674, %v2621
      %2697 = vst.msk [vmem:[#allocation3 + $0x58] sm:$0xf] %vm2674, %v2623
      %2698 = vst.msk [vmem:[#allocation3 + $0x5c] sm:$0xf] %vm2674, %v2625
      %2699 = vst.msk [vmem:[#allocation3 + $0x60] sm:$0xf] %vm2674, %v2627
      %2700 = vst.msk [vmem:[#allocation3 + $0x64] sm:$0xf] %vm2674, %v2629
      %2701 = vst.msk [vmem:[#allocation3 + $0x68] sm:$0xf] %vm2674, %v2631
      %2702 = vst.msk [vmem:[#allocation3 + $0x6c] sm:$0xf] %vm2674, %v2633
      %2703 = vst.msk [vmem:[#allocation3 + $0x70] sm:$0xf] %vm2674, %v2635
      %2704 = vst.msk [vmem:[#allocation3 + $0x74] sm:$0xf] %vm2674, %v2637
      %2705 = vst.msk [vmem:[#allocation3 + $0x78] sm:$0xf] %vm2674, %v2639
      %2706 = vst.msk [vmem:[#allocation3 + $0x7c] sm:$0xf] %vm2674, %v2641
      %v2707 = vld [vmem:[%s382] sm:$0xe]
      %v2708 = vld [vmem:[%s382 + $0x4] sm:$0xf]
      %v2709 = vld [vmem:[%s382 + $0x8] sm:$0x1]
      %v2710 = vld [vmem:[%s382 + $0xc] sm:$0xe]
      %v2711 = vld [vmem:[%s382 + $0x10] sm:$0xf]
      %v2712 = vld [vmem:[%s382 + $0x14] sm:$0x1]
      %v2713 = vld [vmem:[%s382 + $0x18] sm:$0xe]
      %v2714 = vld [vmem:[%s382 + $0x1c] sm:$0xf]
      %v2715 = vld [vmem:[%s382 + $0x20] sm:$0x1]
      %v2716 = vld [vmem:[%s382 + $0x24] sm:$0xe]
      %v2717 = vld [vmem:[%s382 + $0x28] sm:$0xf]
      %v2718 = vld [vmem:[%s382 + $0x2c] sm:$0x1]
      %v2719 = vld [vmem:[%s382 + $0x30] sm:$0xe]
      %v2720 = vld [vmem:[%s382 + $0x34] sm:$0xf]
      %v2721 = vld [vmem:[%s382 + $0x38] sm:$0x1]
      %v2722 = vld [vmem:[%s382 + $0x3c] sm:$0xe]
      %v2723 = vld [vmem:[%s382 + $0x40] sm:$0xf]
      %v2724 = vld [vmem:[%s382 + $0x44] sm:$0x1]
      %v2725 = vld [vmem:[%s382 + $0x48] sm:$0xe]
      %v2726 = vld [vmem:[%s382 + $0x4c] sm:$0xf]
      %v2727 = vld [vmem:[%s382 + $0x50] sm:$0x1]
      %v2728 = vld [vmem:[%s382 + $0x54] sm:$0xe]
      %v2729 = vld [vmem:[%s382 + $0x58] sm:$0xf]
      %v2730 = vld [vmem:[%s382 + $0x5c] sm:$0x1]
      %v2731 = vld [vmem:[%s382 + $0x60] sm:$0xe]
      %v2732 = vld [vmem:[%s382 + $0x64] sm:$0xf]
      %v2733 = vld [vmem:[%s382 + $0x68] sm:$0x1]
      %v2734 = vld [vmem:[%s382 + $0x6c] sm:$0xe]
      %v2735 = vld [vmem:[%s382 + $0x70] sm:$0xf]
      %v2736 = vld [vmem:[%s382 + $0x74] sm:$0x1]
      %v2737 = vld [vmem:[%s382 + $0x78] sm:$0xe]
      %v2738 = vld [vmem:[%s382 + $0x7c] sm:$0xf]
      %v2739 = vld [vmem:[%s382 + $0x80] sm:$0x1]
      %v2740 = vld [vmem:[%s382 + $0x84] sm:$0xe]
      %v2741 = vld [vmem:[%s382 + $0x88] sm:$0xf]
      %v2742 = vld [vmem:[%s382 + $0x8c] sm:$0x1]
      %v2743 = vld [vmem:[%s382 + $0x90] sm:$0xe]
      %v2744 = vld [vmem:[%s382 + $0x94] sm:$0xf]
      %v2745 = vld [vmem:[%s382 + $0x98] sm:$0x1]
      %v2746 = vld [vmem:[%s382 + $0x9c] sm:$0xe]
      %v2747 = vld [vmem:[%s382 + $0xa0] sm:$0xf]
      %v2748 = vld [vmem:[%s382 + $0xa4] sm:$0x1]
      %v2749 = vld [vmem:[%s382 + $0xa8] sm:$0xe]
      %v2750 = vld [vmem:[%s382 + $0xac] sm:$0xf]
      %v2751 = vld [vmem:[%s382 + $0xb0] sm:$0x1]
      %v2752 = vld [vmem:[%s382 + $0xb4] sm:$0xe]
      %v2753 = vld [vmem:[%s382 + $0xb8] sm:$0xf]
      %v2754 = vld [vmem:[%s382 + $0xbc] sm:$0x1]
      %v2803 = vrot.slane %v2707, 5
      %v2804 = vrot.slane %v2803, 4
      %v2805 = vrot.slane %v2708, 5
      %v2806 = vsel %vm1711, %v2804, %v2805
      %v2807 = vrot.slane %v2805, 4
      %v2808 = vrot.slane %v2709, 5
      %v2809 = vsel %vm1711, %v2807, %v2808
      %v2810 = vrot.slane %v2710, 5
      %v2811 = vrot.slane %v2810, 4
      %v2812 = vrot.slane %v2711, 5
      %v2813 = vsel %vm1711, %v2811, %v2812
      %v2814 = vrot.slane %v2812, 4
      %v2815 = vrot.slane %v2712, 5
      %v2816 = vsel %vm1711, %v2814, %v2815
      %v2817 = vrot.slane %v2713, 5
      %v2818 = vrot.slane %v2817, 4
      %v2819 = vrot.slane %v2714, 5
      %v2820 = vsel %vm1711, %v2818, %v2819
      %v2821 = vrot.slane %v2819, 4
      %v2822 = vrot.slane %v2715, 5
      %v2823 = vsel %vm1711, %v2821, %v2822
      %v2824 = vrot.slane %v2716, 5
      %v2825 = vrot.slane %v2824, 4
      %v2826 = vrot.slane %v2717, 5
      %v2827 = vsel %vm1711, %v2825, %v2826
      %v2828 = vrot.slane %v2826, 4
      %v2829 = vrot.slane %v2718, 5
      %v2830 = vsel %vm1711, %v2828, %v2829
      %v2831 = vrot.slane %v2719, 5
      %v2832 = vrot.slane %v2831, 4
      %v2833 = vrot.slane %v2720, 5
      %v2834 = vsel %vm1711, %v2832, %v2833
      %v2835 = vrot.slane %v2833, 4
      %v2836 = vrot.slane %v2721, 5
      %v2837 = vsel %vm1711, %v2835, %v2836
      %v2838 = vrot.slane %v2722, 5
      %v2839 = vrot.slane %v2838, 4
      %v2840 = vrot.slane %v2723, 5
      %v2841 = vsel %vm1711, %v2839, %v2840
      %v2842 = vrot.slane %v2840, 4
      %v2843 = vrot.slane %v2724, 5
      %v2844 = vsel %vm1711, %v2842, %v2843
      %v2845 = vrot.slane %v2725, 5
      %v2846 = vrot.slane %v2845, 4
      %v2847 = vrot.slane %v2726, 5
      %v2848 = vsel %vm1711, %v2846, %v2847
      %v2849 = vrot.slane %v2847, 4
      %v2850 = vrot.slane %v2727, 5
      %v2851 = vsel %vm1711, %v2849, %v2850
      %v2852 = vrot.slane %v2728, 5
      %v2853 = vrot.slane %v2852, 4
      %v2854 = vrot.slane %v2729, 5
      %v2855 = vsel %vm1711, %v2853, %v2854
      %v2856 = vrot.slane %v2854, 4
      %v2857 = vrot.slane %v2730, 5
      %v2858 = vsel %vm1711, %v2856, %v2857
      %v2859 = vrot.slane %v2731, 5
      %v2860 = vrot.slane %v2859, 4
      %v2861 = vrot.slane %v2732, 5
      %v2862 = vsel %vm1711, %v2860, %v2861
      %v2863 = vrot.slane %v2861, 4
      %v2864 = vrot.slane %v2733, 5
      %v2865 = vsel %vm1711, %v2863, %v2864
      %v2866 = vrot.slane %v2734, 5
      %v2867 = vrot.slane %v2866, 4
      %v2868 = vrot.slane %v2735, 5
      %v2869 = vsel %vm1711, %v2867, %v2868
      %v2870 = vrot.slane %v2868, 4
      %v2871 = vrot.slane %v2736, 5
      %v2872 = vsel %vm1711, %v2870, %v2871
      %v2873 = vrot.slane %v2737, 5
      %v2874 = vrot.slane %v2873, 4
      %v2875 = vrot.slane %v2738, 5
      %v2876 = vsel %vm1711, %v2874, %v2875
      %v2877 = vrot.slane %v2875, 4
      %v2878 = vrot.slane %v2739, 5
      %v2879 = vsel %vm1711, %v2877, %v2878
      %v2880 = vrot.slane %v2740, 5
      %v2881 = vrot.slane %v2880, 4
      %v2882 = vrot.slane %v2741, 5
      %v2883 = vsel %vm1711, %v2881, %v2882
      %v2884 = vrot.slane %v2882, 4
      %v2885 = vrot.slane %v2742, 5
      %v2886 = vsel %vm1711, %v2884, %v2885
      %v2887 = vrot.slane %v2743, 5
      %v2888 = vrot.slane %v2887, 4
      %v2889 = vrot.slane %v2744, 5
      %v2890 = vsel %vm1711, %v2888, %v2889
      %v2891 = vrot.slane %v2889, 4
      %v2892 = vrot.slane %v2745, 5
      %v2893 = vsel %vm1711, %v2891, %v2892
      %v2894 = vrot.slane %v2746, 5
      %v2895 = vrot.slane %v2894, 4
      %v2896 = vrot.slane %v2747, 5
      %v2897 = vsel %vm1711, %v2895, %v2896
      %v2898 = vrot.slane %v2896, 4
      %v2899 = vrot.slane %v2748, 5
      %v2900 = vsel %vm1711, %v2898, %v2899
      %v2901 = vrot.slane %v2749, 5
      %v2902 = vrot.slane %v2901, 4
      %v2903 = vrot.slane %v2750, 5
      %v2904 = vsel %vm1711, %v2902, %v2903
      %v2905 = vrot.slane %v2903, 4
      %v2906 = vrot.slane %v2751, 5
      %v2907 = vsel %vm1711, %v2905, %v2906
      %v2908 = vrot.slane %v2752, 5
      %v2909 = vrot.slane %v2908, 4
      %v2910 = vrot.slane %v2753, 5
      %v2911 = vsel %vm1711, %v2909, %v2910
      %v2912 = vrot.slane %v2910, 4
      %v2913 = vrot.slane %v2754, 5
      %v2914 = vsel %vm1711, %v2912, %v2913
      %2915 = vrot.lane.b32.xlu0 %v2806, 40
      %v2916 = vpop.permute.xlu0 %2915
      %2917 = vrot.lane.b32.xlu0 %v2809, 40
      %v2918 = vpop.permute.xlu0 %2917
      %2919 = vrot.lane.b32.xlu0 %v2813, 40
      %v2920 = vpop.permute.xlu0 %2919
      %2921 = vrot.lane.b32.xlu0 %v2816, 40
      %v2922 = vpop.permute.xlu0 %2921
      %2923 = vrot.lane.b32.xlu0 %v2820, 40
      %v2924 = vpop.permute.xlu0 %2923
      %2925 = vrot.lane.b32.xlu0 %v2823, 40
      %v2926 = vpop.permute.xlu0 %2925
      %2927 = vrot.lane.b32.xlu0 %v2827, 40
      %v2928 = vpop.permute.xlu0 %2927
      %2929 = vrot.lane.b32.xlu0 %v2830, 40
      %v2930 = vpop.permute.xlu0 %2929
      %2931 = vrot.lane.b32.xlu0 %v2834, 40
      %v2932 = vpop.permute.xlu0 %2931
      %2933 = vrot.lane.b32.xlu0 %v2837, 40
      %v2934 = vpop.permute.xlu0 %2933
      %2935 = vrot.lane.b32.xlu0 %v2841, 40
      %v2936 = vpop.permute.xlu0 %2935
      %2937 = vrot.lane.b32.xlu0 %v2844, 40
      %v2938 = vpop.permute.xlu0 %2937
      %2939 = vrot.lane.b32.xlu0 %v2848, 40
      %v2940 = vpop.permute.xlu0 %2939
      %2941 = vrot.lane.b32.xlu0 %v2851, 40
      %v2942 = vpop.permute.xlu0 %2941
      %2943 = vrot.lane.b32.xlu0 %v2855, 40
      %v2944 = vpop.permute.xlu0 %2943
      %2945 = vrot.lane.b32.xlu0 %v2858, 40
      %v2946 = vpop.permute.xlu0 %2945
      %2947 = vrot.lane.b32.xlu0 %v2862, 40
      %v2948 = vpop.permute.xlu0 %2947
      %2949 = vrot.lane.b32.xlu0 %v2865, 40
      %v2950 = vpop.permute.xlu0 %2949
      %2951 = vrot.lane.b32.xlu0 %v2869, 40
      %v2952 = vpop.permute.xlu0 %2951
      %2953 = vrot.lane.b32.xlu0 %v2872, 40
      %v2954 = vpop.permute.xlu0 %2953
      %2955 = vrot.lane.b32.xlu0 %v2876, 40
      %v2956 = vpop.permute.xlu0 %2955
      %2957 = vrot.lane.b32.xlu0 %v2879, 40
      %v2958 = vpop.permute.xlu0 %2957
      %2959 = vrot.lane.b32.xlu0 %v2883, 40
      %v2960 = vpop.permute.xlu0 %2959
      %2961 = vrot.lane.b32.xlu0 %v2886, 40
      %v2962 = vpop.permute.xlu0 %2961
      %2963 = vrot.lane.b32.xlu0 %v2890, 40
      %v2964 = vpop.permute.xlu0 %2963
      %2965 = vrot.lane.b32.xlu0 %v2893, 40
      %v2966 = vpop.permute.xlu0 %2965
      %2967 = vrot.lane.b32.xlu0 %v2897, 40
      %v2968 = vpop.permute.xlu0 %2967
      %2969 = vrot.lane.b32.xlu0 %v2900, 40
      %v2970 = vpop.permute.xlu0 %2969
      %2971 = vrot.lane.b32.xlu0 %v2904, 40
      %v2972 = vpop.permute.xlu0 %2971
      %2973 = vrot.lane.b32.xlu0 %v2907, 40
      %v2974 = vpop.permute.xlu0 %2973
      %2975 = vrot.lane.b32.xlu0 %v2911, 40
      %v2976 = vpop.permute.xlu0 %2975
      %2977 = vrot.lane.b32.xlu0 %v2914, 40
      %v2978 = vpop.permute.xlu0 %2977
      %vm3011 = vcmask 388416
      %3012 = vst.msk [vmem:[#allocation3] sm:$0xf] %vm3011, %v2916
      %3013 = vst.msk [vmem:[#allocation3 + $0x4] sm:$0xf] %vm3011, %v2918
      %3014 = vst.msk [vmem:[#allocation3 + $0x8] sm:$0xf] %vm3011, %v2920
      %3015 = vst.msk [vmem:[#allocation3 + $0xc] sm:$0xf] %vm3011, %v2922
      %3016 = vst.msk [vmem:[#allocation3 + $0x10] sm:$0xf] %vm3011, %v2924
      %3017 = vst.msk [vmem:[#allocation3 + $0x14] sm:$0xf] %vm3011, %v2926
      %3018 = vst.msk [vmem:[#allocation3 + $0x18] sm:$0xf] %vm3011, %v2928
      %3019 = vst.msk [vmem:[#allocation3 + $0x1c] sm:$0xf] %vm3011, %v2930
      %3020 = vst.msk [vmem:[#allocation3 + $0x20] sm:$0xf] %vm3011, %v2932
      %3021 = vst.msk [vmem:[#allocation3 + $0x24] sm:$0xf] %vm3011, %v2934
      %3022 = vst.msk [vmem:[#allocation3 + $0x28] sm:$0xf] %vm3011, %v2936
      %3023 = vst.msk [vmem:[#allocation3 + $0x2c] sm:$0xf] %vm3011, %v2938
      %3024 = vst.msk [vmem:[#allocation3 + $0x30] sm:$0xf] %vm3011, %v2940
      %3025 = vst.msk [vmem:[#allocation3 + $0x34] sm:$0xf] %vm3011, %v2942
      %3026 = vst.msk [vmem:[#allocation3 + $0x38] sm:$0xf] %vm3011, %v2944
      %3027 = vst.msk [vmem:[#allocation3 + $0x3c] sm:$0xf] %vm3011, %v2946
      %3028 = vst.msk [vmem:[#allocation3 + $0x40] sm:$0xf] %vm3011, %v2948
      %3029 = vst.msk [vmem:[#allocation3 + $0x44] sm:$0xf] %vm3011, %v2950
      %3030 = vst.msk [vmem:[#allocation3 + $0x48] sm:$0xf] %vm3011, %v2952
      %3031 = vst.msk [vmem:[#allocation3 + $0x4c] sm:$0xf] %vm3011, %v2954
      %3032 = vst.msk [vmem:[#allocation3 + $0x50] sm:$0xf] %vm3011, %v2956
      %3033 = vst.msk [vmem:[#allocation3 + $0x54] sm:$0xf] %vm3011, %v2958
      %3034 = vst.msk [vmem:[#allocation3 + $0x58] sm:$0xf] %vm3011, %v2960
      %3035 = vst.msk [vmem:[#allocation3 + $0x5c] sm:$0xf] %vm3011, %v2962
      %3036 = vst.msk [vmem:[#allocation3 + $0x60] sm:$0xf] %vm3011, %v2964
      %3037 = vst.msk [vmem:[#allocation3 + $0x64] sm:$0xf] %vm3011, %v2966
      %3038 = vst.msk [vmem:[#allocation3 + $0x68] sm:$0xf] %vm3011, %v2968
      %3039 = vst.msk [vmem:[#allocation3 + $0x6c] sm:$0xf] %vm3011, %v2970
      %3040 = vst.msk [vmem:[#allocation3 + $0x70] sm:$0xf] %vm3011, %v2972
      %3041 = vst.msk [vmem:[#allocation3 + $0x74] sm:$0xf] %vm3011, %v2974
      %3042 = vst.msk [vmem:[#allocation3 + $0x78] sm:$0xf] %vm3011, %v2976
      %3043 = vst.msk [vmem:[#allocation3 + $0x7c] sm:$0xf] %vm3011, %v2978
      %s3044 = scalar_lea.vmem [#allocation2], 24
      %v3045 = vld [vmem:[%s3044] sm:$0xf]
      %v3046 = vld [vmem:[%s3044 + $0x4] sm:$0xf]
      %v3047 = vld [vmem:[%s3044 + $0xc] sm:$0xf]
      %v3048 = vld [vmem:[%s3044 + $0x10] sm:$0xf]
      %v3049 = vld [vmem:[%s3044 + $0x18] sm:$0xf]
      %v3050 = vld [vmem:[%s3044 + $0x1c] sm:$0xf]
      %v3051 = vld [vmem:[%s3044 + $0x24] sm:$0xf]
      %v3052 = vld [vmem:[%s3044 + $0x28] sm:$0xf]
      %v3053 = vld [vmem:[%s3044 + $0x30] sm:$0xf]
      %v3054 = vld [vmem:[%s3044 + $0x34] sm:$0xf]
      %v3055 = vld [vmem:[%s3044 + $0x3c] sm:$0xf]
      %v3056 = vld [vmem:[%s3044 + $0x40] sm:$0xf]
      %v3057 = vld [vmem:[%s3044 + $0x48] sm:$0xf]
      %v3058 = vld [vmem:[%s3044 + $0x4c] sm:$0xf]
      %v3059 = vld [vmem:[%s3044 + $0x54] sm:$0xf]
      %v3060 = vld [vmem:[%s3044 + $0x58] sm:$0xf]
      %v3061 = vld [vmem:[%s3044 + $0x60] sm:$0xf]
      %v3062 = vld [vmem:[%s3044 + $0x64] sm:$0xf]
      %v3063 = vld [vmem:[%s3044 + $0x6c] sm:$0xf]
      %v3064 = vld [vmem:[%s3044 + $0x70] sm:$0xf]
      %v3065 = vld [vmem:[%s3044 + $0x78] sm:$0xf]
      %v3066 = vld [vmem:[%s3044 + $0x7c] sm:$0xf]
      %v3067 = vld [vmem:[%s3044 + $0x84] sm:$0xf]
      %v3068 = vld [vmem:[%s3044 + $0x88] sm:$0xf]
      %v3069 = vld [vmem:[%s3044 + $0x90] sm:$0xf]
      %v3070 = vld [vmem:[%s3044 + $0x94] sm:$0xf]
      %v3071 = vld [vmem:[%s3044 + $0x9c] sm:$0xf]
      %v3072 = vld [vmem:[%s3044 + $0xa0] sm:$0xf]
      %v3073 = vld [vmem:[%s3044 + $0xa8] sm:$0xf]
      %v3074 = vld [vmem:[%s3044 + $0xac] sm:$0xf]
      %v3075 = vld [vmem:[%s3044 + $0xb4] sm:$0xf]
      %v3076 = vld [vmem:[%s3044 + $0xb8] sm:$0xf]
      %3109 = vrot.lane.b32.xlu0 %v3045, 48
      %v3110 = vpop.permute.xlu0 %3109
      %3111 = vrot.lane.b32.xlu0 %v3046, 48
      %v3112 = vpop.permute.xlu0 %3111
      %3113 = vrot.lane.b32.xlu0 %v3047, 48
      %v3114 = vpop.permute.xlu0 %3113
      %3115 = vrot.lane.b32.xlu0 %v3048, 48
      %v3116 = vpop.permute.xlu0 %3115
      %3117 = vrot.lane.b32.xlu0 %v3049, 48
      %v3118 = vpop.permute.xlu0 %3117
      %3119 = vrot.lane.b32.xlu0 %v3050, 48
      %v3120 = vpop.permute.xlu0 %3119
      %3121 = vrot.lane.b32.xlu0 %v3051, 48
      %v3122 = vpop.permute.xlu0 %3121
      %3123 = vrot.lane.b32.xlu0 %v3052, 48
      %v3124 = vpop.permute.xlu0 %3123
      %3125 = vrot.lane.b32.xlu0 %v3053, 48
      %v3126 = vpop.permute.xlu0 %3125
      %3127 = vrot.lane.b32.xlu0 %v3054, 48
      %v3128 = vpop.permute.xlu0 %3127
      %3129 = vrot.lane.b32.xlu0 %v3055, 48
      %v3130 = vpop.permute.xlu0 %3129
      %3131 = vrot.lane.b32.xlu0 %v3056, 48
      %v3132 = vpop.permute.xlu0 %3131
      %3133 = vrot.lane.b32.xlu0 %v3057, 48
      %v3134 = vpop.permute.xlu0 %3133
      %3135 = vrot.lane.b32.xlu0 %v3058, 48
      %v3136 = vpop.permute.xlu0 %3135
      %3137 = vrot.lane.b32.xlu0 %v3059, 48
      %v3138 = vpop.permute.xlu0 %3137
      %3139 = vrot.lane.b32.xlu0 %v3060, 48
      %v3140 = vpop.permute.xlu0 %3139
      %3141 = vrot.lane.b32.xlu0 %v3061, 48
      %v3142 = vpop.permute.xlu0 %3141
      %3143 = vrot.lane.b32.xlu0 %v3062, 48
      %v3144 = vpop.permute.xlu0 %3143
      %3145 = vrot.lane.b32.xlu0 %v3063, 48
      %v3146 = vpop.permute.xlu0 %3145
      %3147 = vrot.lane.b32.xlu0 %v3064, 48
      %v3148 = vpop.permute.xlu0 %3147
      %3149 = vrot.lane.b32.xlu0 %v3065, 48
      %v3150 = vpop.permute.xlu0 %3149
      %3151 = vrot.lane.b32.xlu0 %v3066, 48
      %v3152 = vpop.permute.xlu0 %3151
      %3153 = vrot.lane.b32.xlu0 %v3067, 48
      %v3154 = vpop.permute.xlu0 %3153
      %3155 = vrot.lane.b32.xlu0 %v3068, 48
      %v3156 = vpop.permute.xlu0 %3155
      %3157 = vrot.lane.b32.xlu0 %v3069, 48
      %v3158 = vpop.permute.xlu0 %3157
      %3159 = vrot.lane.b32.xlu0 %v3070, 48
      %v3160 = vpop.permute.xlu0 %3159
      %3161 = vrot.lane.b32.xlu0 %v3071, 48
      %v3162 = vpop.permute.xlu0 %3161
      %3163 = vrot.lane.b32.xlu0 %v3072, 48
      %v3164 = vpop.permute.xlu0 %3163
      %3165 = vrot.lane.b32.xlu0 %v3073, 48
      %v3166 = vpop.permute.xlu0 %3165
      %3167 = vrot.lane.b32.xlu0 %v3074, 48
      %v3168 = vpop.permute.xlu0 %3167
      %3169 = vrot.lane.b32.xlu0 %v3075, 48
      %v3170 = vpop.permute.xlu0 %3169
      %3171 = vrot.lane.b32.xlu0 %v3076, 48
      %v3172 = vpop.permute.xlu0 %3171
      %vm3205 = vcmask 454016
      %3206 = vst.msk [vmem:[#allocation3] sm:$0xf] %vm3205, %v3110
      %3207 = vst.msk [vmem:[#allocation3 + $0x4] sm:$0xf] %vm3205, %v3112
      %3208 = vst.msk [vmem:[#allocation3 + $0x8] sm:$0xf] %vm3205, %v3114
      %3209 = vst.msk [vmem:[#allocation3 + $0xc] sm:$0xf] %vm3205, %v3116
      %3210 = vst.msk [vmem:[#allocation3 + $0x10] sm:$0xf] %vm3205, %v3118
      %3211 = vst.msk [vmem:[#allocation3 + $0x14] sm:$0xf] %vm3205, %v3120
      %3212 = vst.msk [vmem:[#allocation3 + $0x18] sm:$0xf] %vm3205, %v3122
      %3213 = vst.msk [vmem:[#allocation3 + $0x1c] sm:$0xf] %vm3205, %v3124
      %3214 = vst.msk [vmem:[#allocation3 + $0x20] sm:$0xf] %vm3205, %v3126
      %3215 = vst.msk [vmem:[#allocation3 + $0x24] sm:$0xf] %vm3205, %v3128
      %3216 = vst.msk [vmem:[#allocation3 + $0x28] sm:$0xf] %vm3205, %v3130
      %3217 = vst.msk [vmem:[#allocation3 + $0x2c] sm:$0xf] %vm3205, %v3132
      %3218 = vst.msk [vmem:[#allocation3 + $0x30] sm:$0xf] %vm3205, %v3134
      %3219 = vst.msk [vmem:[#allocation3 + $0x34] sm:$0xf] %vm3205, %v3136
      %3220 = vst.msk [vmem:[#allocation3 + $0x38] sm:$0xf] %vm3205, %v3138
      %3221 = vst.msk [vmem:[#allocation3 + $0x3c] sm:$0xf] %vm3205, %v3140
      %3222 = vst.msk [vmem:[#allocation3 + $0x40] sm:$0xf] %vm3205, %v3142
      %3223 = vst.msk [vmem:[#allocation3 + $0x44] sm:$0xf] %vm3205, %v3144
      %3224 = vst.msk [vmem:[#allocation3 + $0x48] sm:$0xf] %vm3205, %v3146
      %3225 = vst.msk [vmem:[#allocation3 + $0x4c] sm:$0xf] %vm3205, %v3148
      %3226 = vst.msk [vmem:[#allocation3 + $0x50] sm:$0xf] %vm3205, %v3150
      %3227 = vst.msk [vmem:[#allocation3 + $0x54] sm:$0xf] %vm3205, %v3152
      %3228 = vst.msk [vmem:[#allocation3 + $0x58] sm:$0xf] %vm3205, %v3154
      %3229 = vst.msk [vmem:[#allocation3 + $0x5c] sm:$0xf] %vm3205, %v3156
      %3230 = vst.msk [vmem:[#allocation3 + $0x60] sm:$0xf] %vm3205, %v3158
      %3231 = vst.msk [vmem:[#allocation3 + $0x64] sm:$0xf] %vm3205, %v3160
      %3232 = vst.msk [vmem:[#allocation3 + $0x68] sm:$0xf] %vm3205, %v3162
      %3233 = vst.msk [vmem:[#allocation3 + $0x6c] sm:$0xf] %vm3205, %v3164
      %3234 = vst.msk [vmem:[#allocation3 + $0x70] sm:$0xf] %vm3205, %v3166
      %3235 = vst.msk [vmem:[#allocation3 + $0x74] sm:$0xf] %vm3205, %v3168
      %3236 = vst.msk [vmem:[#allocation3 + $0x78] sm:$0xf] %vm3205, %v3170
      %3237 = vst.msk [vmem:[#allocation3 + $0x7c] sm:$0xf] %vm3205, %v3172
      %v3238 = vld [vmem:[%s3044] sm:$0xf]
      %v3239 = vld [vmem:[%s3044 + $0x4] sm:$0xf]
      %v3240 = vld [vmem:[%s3044 + $0x8] sm:$0x1]
      %v3241 = vld [vmem:[%s3044 + $0xc] sm:$0xf]
      %v3242 = vld [vmem:[%s3044 + $0x10] sm:$0xf]
      %v3243 = vld [vmem:[%s3044 + $0x14] sm:$0x1]
      %v3244 = vld [vmem:[%s3044 + $0x18] sm:$0xf]
      %v3245 = vld [vmem:[%s3044 + $0x1c] sm:$0xf]
      %v3246 = vld [vmem:[%s3044 + $0x20] sm:$0x1]
      %v3247 = vld [vmem:[%s3044 + $0x24] sm:$0xf]
      %v3248 = vld [vmem:[%s3044 + $0x28] sm:$0xf]
      %v3249 = vld [vmem:[%s3044 + $0x2c] sm:$0x1]
      %v3250 = vld [vmem:[%s3044 + $0x30] sm:$0xf]
      %v3251 = vld [vmem:[%s3044 + $0x34] sm:$0xf]
      %v3252 = vld [vmem:[%s3044 + $0x38] sm:$0x1]
      %v3253 = vld [vmem:[%s3044 + $0x3c] sm:$0xf]
      %v3254 = vld [vmem:[%s3044 + $0x40] sm:$0xf]
      %v3255 = vld [vmem:[%s3044 + $0x44] sm:$0x1]
      %v3256 = vld [vmem:[%s3044 + $0x48] sm:$0xf]
      %v3257 = vld [vmem:[%s3044 + $0x4c] sm:$0xf]
      %v3258 = vld [vmem:[%s3044 + $0x50] sm:$0x1]
      %v3259 = vld [vmem:[%s3044 + $0x54] sm:$0xf]
      %v3260 = vld [vmem:[%s3044 + $0x58] sm:$0xf]
      %v3261 = vld [vmem:[%s3044 + $0x5c] sm:$0x1]
      %v3262 = vld [vmem:[%s3044 + $0x60] sm:$0xf]
      %v3263 = vld [vmem:[%s3044 + $0x64] sm:$0xf]
      %v3264 = vld [vmem:[%s3044 + $0x68] sm:$0x1]
      %v3265 = vld [vmem:[%s3044 + $0x6c] sm:$0xf]
      %v3266 = vld [vmem:[%s3044 + $0x70] sm:$0xf]
      %v3267 = vld [vmem:[%s3044 + $0x74] sm:$0x1]
      %v3268 = vld [vmem:[%s3044 + $0x78] sm:$0xf]
      %v3269 = vld [vmem:[%s3044 + $0x7c] sm:$0xf]
      %v3270 = vld [vmem:[%s3044 + $0x80] sm:$0x1]
      %v3271 = vld [vmem:[%s3044 + $0x84] sm:$0xf]
      %v3272 = vld [vmem:[%s3044 + $0x88] sm:$0xf]
      %v3273 = vld [vmem:[%s3044 + $0x8c] sm:$0x1]
      %v3274 = vld [vmem:[%s3044 + $0x90] sm:$0xf]
      %v3275 = vld [vmem:[%s3044 + $0x94] sm:$0xf]
      %v3276 = vld [vmem:[%s3044 + $0x98] sm:$0x1]
      %v3277 = vld [vmem:[%s3044 + $0x9c] sm:$0xf]
      %v3278 = vld [vmem:[%s3044 + $0xa0] sm:$0xf]
      %v3279 = vld [vmem:[%s3044 + $0xa4] sm:$0x1]
      %v3280 = vld [vmem:[%s3044 + $0xa8] sm:$0xf]
      %v3281 = vld [vmem:[%s3044 + $0xac] sm:$0xf]
      %v3282 = vld [vmem:[%s3044 + $0xb0] sm:$0x1]
      %v3283 = vld [vmem:[%s3044 + $0xb4] sm:$0xf]
      %v3284 = vld [vmem:[%s3044 + $0xb8] sm:$0xf]
      %v3285 = vld [vmem:[%s3044 + $0xbc] sm:$0x1]
      %v3287 = vshrl.u32 %v3238, 16
      %v3289 = vrot.slane %v3287, 4
      %v3290 = vshll.u32 %v3238, 16
      %v3292 = vrot.slane %v3290, 5
      %v3293 = vor.u32 %v3289, %v3292
      %v3294 = vrot.slane %v3293, 4
      %v3296 = vshll.u32 %v3239, 16
      %v3298 = vrot.slane %v3296, 5
      %v3299 = vsel %vm1099, %v3294, %v3298
      %v3300 = vshrl.u32 %v3239, 16
      %v3302 = vrot.slane %v3300, 4
      %v3303 = vor.u32 %v3302, %v3298
      %v3304 = vrot.slane %v3303, 4
      %v3306 = vshll.u32 %v3240, 16
      %v3308 = vrot.slane %v3306, 5
      %v3309 = vsel %vm1099, %v3304, %v3308
      %v3311 = vshrl.u32 %v3241, 16
      %v3313 = vrot.slane %v3311, 4
      %v3314 = vshll.u32 %v3241, 16
      %v3316 = vrot.slane %v3314, 5
      %v3317 = vor.u32 %v3313, %v3316
      %v3318 = vrot.slane %v3317, 4
      %v3320 = vshll.u32 %v3242, 16
      %v3322 = vrot.slane %v3320, 5
      %v3323 = vsel %vm1099, %v3318, %v3322
      %v3324 = vshrl.u32 %v3242, 16
      %v3326 = vrot.slane %v3324, 4
      %v3327 = vor.u32 %v3326, %v3322
      %v3328 = vrot.slane %v3327, 4
      %v3330 = vshll.u32 %v3243, 16
      %v3332 = vrot.slane %v3330, 5
      %v3333 = vsel %vm1099, %v3328, %v3332
      %v3335 = vshrl.u32 %v3244, 16
      %v3337 = vrot.slane %v3335, 4
      %v3338 = vshll.u32 %v3244, 16
      %v3340 = vrot.slane %v3338, 5
      %v3341 = vor.u32 %v3337, %v3340
      %v3342 = vrot.slane %v3341, 4
      %v3344 = vshll.u32 %v3245, 16
      %v3346 = vrot.slane %v3344, 5
      %v3347 = vsel %vm1099, %v3342, %v3346
      %v3348 = vshrl.u32 %v3245, 16
      %v3350 = vrot.slane %v3348, 4
      %v3351 = vor.u32 %v3350, %v3346
      %v3352 = vrot.slane %v3351, 4
      %v3354 = vshll.u32 %v3246, 16
      %v3356 = vrot.slane %v3354, 5
      %v3357 = vsel %vm1099, %v3352, %v3356
      %v3359 = vshrl.u32 %v3247, 16
      %v3361 = vrot.slane %v3359, 4
      %v3362 = vshll.u32 %v3247, 16
      %v3364 = vrot.slane %v3362, 5
      %v3365 = vor.u32 %v3361, %v3364
      %v3366 = vrot.slane %v3365, 4
      %v3368 = vshll.u32 %v3248, 16
      %v3370 = vrot.slane %v3368, 5
      %v3371 = vsel %vm1099, %v3366, %v3370
      %v3372 = vshrl.u32 %v3248, 16
      %v3374 = vrot.slane %v3372, 4
      %v3375 = vor.u32 %v3374, %v3370
      %v3376 = vrot.slane %v3375, 4
      %v3378 = vshll.u32 %v3249, 16
      %v3380 = vrot.slane %v3378, 5
      %v3381 = vsel %vm1099, %v3376, %v3380
      %v3383 = vshrl.u32 %v3250, 16
      %v3385 = vrot.slane %v3383, 4
      %v3386 = vshll.u32 %v3250, 16
      %v3388 = vrot.slane %v3386, 5
      %v3389 = vor.u32 %v3385, %v3388
      %v3390 = vrot.slane %v3389, 4
      %v3392 = vshll.u32 %v3251, 16
      %v3394 = vrot.slane %v3392, 5
      %v3395 = vsel %vm1099, %v3390, %v3394
      %v3396 = vshrl.u32 %v3251, 16
      %v3398 = vrot.slane %v3396, 4
      %v3399 = vor.u32 %v3398, %v3394
      %v3400 = vrot.slane %v3399, 4
      %v3402 = vshll.u32 %v3252, 16
      %v3404 = vrot.slane %v3402, 5
      %v3405 = vsel %vm1099, %v3400, %v3404
      %v3407 = vshrl.u32 %v3253, 16
      %v3409 = vrot.slane %v3407, 4
      %v3410 = vshll.u32 %v3253, 16
      %v3412 = vrot.slane %v3410, 5
      %v3413 = vor.u32 %v3409, %v3412
      %v3414 = vrot.slane %v3413, 4
      %v3416 = vshll.u32 %v3254, 16
      %v3418 = vrot.slane %v3416, 5
      %v3419 = vsel %vm1099, %v3414, %v3418
      %v3420 = vshrl.u32 %v3254, 16
      %v3422 = vrot.slane %v3420, 4
      %v3423 = vor.u32 %v3422, %v3418
      %v3424 = vrot.slane %v3423, 4
      %v3426 = vshll.u32 %v3255, 16
      %v3428 = vrot.slane %v3426, 5
      %v3429 = vsel %vm1099, %v3424, %v3428
      %v3431 = vshrl.u32 %v3256, 16
      %v3433 = vrot.slane %v3431, 4
      %v3434 = vshll.u32 %v3256, 16
      %v3436 = vrot.slane %v3434, 5
      %v3437 = vor.u32 %v3433, %v3436
      %v3438 = vrot.slane %v3437, 4
      %v3440 = vshll.u32 %v3257, 16
      %v3442 = vrot.slane %v3440, 5
      %v3443 = vsel %vm1099, %v3438, %v3442
      %v3444 = vshrl.u32 %v3257, 16
      %v3446 = vrot.slane %v3444, 4
      %v3447 = vor.u32 %v3446, %v3442
      %v3448 = vrot.slane %v3447, 4
      %v3450 = vshll.u32 %v3258, 16
      %v3452 = vrot.slane %v3450, 5
      %v3453 = vsel %vm1099, %v3448, %v3452
      %v3455 = vshrl.u32 %v3259, 16
      %v3457 = vrot.slane %v3455, 4
      %v3458 = vshll.u32 %v3259, 16
      %v3460 = vrot.slane %v3458, 5
      %v3461 = vor.u32 %v3457, %v3460
      %v3462 = vrot.slane %v3461, 4
      %v3464 = vshll.u32 %v3260, 16
      %v3466 = vrot.slane %v3464, 5
      %v3467 = vsel %vm1099, %v3462, %v3466
      %v3468 = vshrl.u32 %v3260, 16
      %v3470 = vrot.slane %v3468, 4
      %v3471 = vor.u32 %v3470, %v3466
      %v3472 = vrot.slane %v3471, 4
      %v3474 = vshll.u32 %v3261, 16
      %v3476 = vrot.slane %v3474, 5
      %v3477 = vsel %vm1099, %v3472, %v3476
      %v3479 = vshrl.u32 %v3262, 16
      %v3481 = vrot.slane %v3479, 4
      %v3482 = vshll.u32 %v3262, 16
      %v3484 = vrot.slane %v3482, 5
      %v3485 = vor.u32 %v3481, %v3484
      %v3486 = vrot.slane %v3485, 4
      %v3488 = vshll.u32 %v3263, 16
      %v3490 = vrot.slane %v3488, 5
      %v3491 = vsel %vm1099, %v3486, %v3490
      %v3492 = vshrl.u32 %v3263, 16
      %v3494 = vrot.slane %v3492, 4
      %v3495 = vor.u32 %v3494, %v3490
      %v3496 = vrot.slane %v3495, 4
      %v3498 = vshll.u32 %v3264, 16
      %v3500 = vrot.slane %v3498, 5
      %v3501 = vsel %vm1099, %v3496, %v3500
      %v3503 = vshrl.u32 %v3265, 16
      %v3505 = vrot.slane %v3503, 4
      %v3506 = vshll.u32 %v3265, 16
      %v3508 = vrot.slane %v3506, 5
      %v3509 = vor.u32 %v3505, %v3508
      %v3510 = vrot.slane %v3509, 4
      %v3512 = vshll.u32 %v3266, 16
      %v3514 = vrot.slane %v3512, 5
      %v3515 = vsel %vm1099, %v3510, %v3514
      %v3516 = vshrl.u32 %v3266, 16
      %v3518 = vrot.slane %v3516, 4
      %v3519 = vor.u32 %v3518, %v3514
      %v3520 = vrot.slane %v3519, 4
      %v3522 = vshll.u32 %v3267, 16
      %v3524 = vrot.slane %v3522, 5
      %v3525 = vsel %vm1099, %v3520, %v3524
      %v3527 = vshrl.u32 %v3268, 16
      %v3529 = vrot.slane %v3527, 4
      %v3530 = vshll.u32 %v3268, 16
      %v3532 = vrot.slane %v3530, 5
      %v3533 = vor.u32 %v3529, %v3532
      %v3534 = vrot.slane %v3533, 4
      %v3536 = vshll.u32 %v3269, 16
      %v3538 = vrot.slane %v3536, 5
      %v3539 = vsel %vm1099, %v3534, %v3538
      %v3540 = vshrl.u32 %v3269, 16
      %v3542 = vrot.slane %v3540, 4
      %v3543 = vor.u32 %v3542, %v3538
      %v3544 = vrot.slane %v3543, 4
      %v3546 = vshll.u32 %v3270, 16
      %v3548 = vrot.slane %v3546, 5
      %v3549 = vsel %vm1099, %v3544, %v3548
      %v3551 = vshrl.u32 %v3271, 16
      %v3553 = vrot.slane %v3551, 4
      %v3554 = vshll.u32 %v3271, 16
      %v3556 = vrot.slane %v3554, 5
      %v3557 = vor.u32 %v3553, %v3556
      %v3558 = vrot.slane %v3557, 4
      %v3560 = vshll.u32 %v3272, 16
      %v3562 = vrot.slane %v3560, 5
      %v3563 = vsel %vm1099, %v3558, %v3562
      %v3564 = vshrl.u32 %v3272, 16
      %v3566 = vrot.slane %v3564, 4
      %v3567 = vor.u32 %v3566, %v3562
      %v3568 = vrot.slane %v3567, 4
      %v3570 = vshll.u32 %v3273, 16
      %v3572 = vrot.slane %v3570, 5
      %v3573 = vsel %vm1099, %v3568, %v3572
      %v3575 = vshrl.u32 %v3274, 16
      %v3577 = vrot.slane %v3575, 4
      %v3578 = vshll.u32 %v3274, 16
      %v3580 = vrot.slane %v3578, 5
      %v3581 = vor.u32 %v3577, %v3580
      %v3582 = vrot.slane %v3581, 4
      %v3584 = vshll.u32 %v3275, 16
      %v3586 = vrot.slane %v3584, 5
      %v3587 = vsel %vm1099, %v3582, %v3586
      %v3588 = vshrl.u32 %v3275, 16
      %v3590 = vrot.slane %v3588, 4
      %v3591 = vor.u32 %v3590, %v3586
      %v3592 = vrot.slane %v3591, 4
      %v3594 = vshll.u32 %v3276, 16
      %v3596 = vrot.slane %v3594, 5
      %v3597 = vsel %vm1099, %v3592, %v3596
      %v3599 = vshrl.u32 %v3277, 16
      %v3601 = vrot.slane %v3599, 4
      %v3602 = vshll.u32 %v3277, 16
      %v3604 = vrot.slane %v3602, 5
      %v3605 = vor.u32 %v3601, %v3604
      %v3606 = vrot.slane %v3605, 4
      %v3608 = vshll.u32 %v3278, 16
      %v3610 = vrot.slane %v3608, 5
      %v3611 = vsel %vm1099, %v3606, %v3610
      %v3612 = vshrl.u32 %v3278, 16
      %v3614 = vrot.slane %v3612, 4
      %v3615 = vor.u32 %v3614, %v3610
      %v3616 = vrot.slane %v3615, 4
      %v3618 = vshll.u32 %v3279, 16
      %v3620 = vrot.slane %v3618, 5
      %v3621 = vsel %vm1099, %v3616, %v3620
      %v3623 = vshrl.u32 %v3280, 16
      %v3625 = vrot.slane %v3623, 4
      %v3626 = vshll.u32 %v3280, 16
      %v3628 = vrot.slane %v3626, 5
      %v3629 = vor.u32 %v3625, %v3628
      %v3630 = vrot.slane %v3629, 4
      %v3632 = vshll.u32 %v3281, 16
      %v3634 = vrot.slane %v3632, 5
      %v3635 = vsel %vm1099, %v3630, %v3634
      %v3636 = vshrl.u32 %v3281, 16
      %v3638 = vrot.slane %v3636, 4
      %v3639 = vor.u32 %v3638, %v3634
      %v3640 = vrot.slane %v3639, 4
      %v3642 = vshll.u32 %v3282, 16
      %v3644 = vrot.slane %v3642, 5
      %v3645 = vsel %vm1099, %v3640, %v3644
      %v3647 = vshrl.u32 %v3283, 16
      %v3649 = vrot.slane %v3647, 4
      %v3650 = vshll.u32 %v3283, 16
      %v3652 = vrot.slane %v3650, 5
      %v3653 = vor.u32 %v3649, %v3652
      %v3654 = vrot.slane %v3653, 4
      %v3656 = vshll.u32 %v3284, 16
      %v3658 = vrot.slane %v3656, 5
      %v3659 = vsel %vm1099, %v3654, %v3658
      %v3660 = vshrl.u32 %v3284, 16
      %v3662 = vrot.slane %v3660, 4
      %v3663 = vor.u32 %v3662, %v3658
      %v3664 = vrot.slane %v3663, 4
      %v3666 = vshll.u32 %v3285, 16
      %v3668 = vrot.slane %v3666, 5
      %v3669 = vsel %vm1099, %v3664, %v3668
      %3670 = vrot.lane.b32.xlu0 %v3299, 56
      %v3671 = vpop.permute.xlu0 %3670
      %3672 = vrot.lane.b32.xlu0 %v3309, 56
      %v3673 = vpop.permute.xlu0 %3672
      %3674 = vrot.lane.b32.xlu0 %v3323, 56
      %v3675 = vpop.permute.xlu0 %3674
      %3676 = vrot.lane.b32.xlu0 %v3333, 56
      %v3677 = vpop.permute.xlu0 %3676
      %3678 = vrot.lane.b32.xlu0 %v3347, 56
      %v3679 = vpop.permute.xlu0 %3678
      %3680 = vrot.lane.b32.xlu0 %v3357, 56
      %v3681 = vpop.permute.xlu0 %3680
      %3682 = vrot.lane.b32.xlu0 %v3371, 56
      %v3683 = vpop.permute.xlu0 %3682
      %3684 = vrot.lane.b32.xlu0 %v3381, 56
      %v3685 = vpop.permute.xlu0 %3684
      %3686 = vrot.lane.b32.xlu0 %v3395, 56
      %v3687 = vpop.permute.xlu0 %3686
      %3688 = vrot.lane.b32.xlu0 %v3405, 56
      %v3689 = vpop.permute.xlu0 %3688
      %3690 = vrot.lane.b32.xlu0 %v3419, 56
      %v3691 = vpop.permute.xlu0 %3690
      %3692 = vrot.lane.b32.xlu0 %v3429, 56
      %v3693 = vpop.permute.xlu0 %3692
      %3694 = vrot.lane.b32.xlu0 %v3443, 56
      %v3695 = vpop.permute.xlu0 %3694
      %3696 = vrot.lane.b32.xlu0 %v3453, 56
      %v3697 = vpop.permute.xlu0 %3696
      %3698 = vrot.lane.b32.xlu0 %v3467, 56
      %v3699 = vpop.permute.xlu0 %3698
      %3700 = vrot.lane.b32.xlu0 %v3477, 56
      %v3701 = vpop.permute.xlu0 %3700
      %3702 = vrot.lane.b32.xlu0 %v3491, 56
      %v3703 = vpop.permute.xlu0 %3702
      %3704 = vrot.lane.b32.xlu0 %v3501, 56
      %v3705 = vpop.permute.xlu0 %3704
      %3706 = vrot.lane.b32.xlu0 %v3515, 56
      %v3707 = vpop.permute.xlu0 %3706
      %3708 = vrot.lane.b32.xlu0 %v3525, 56
      %v3709 = vpop.permute.xlu0 %3708
      %3710 = vrot.lane.b32.xlu0 %v3539, 56
      %v3711 = vpop.permute.xlu0 %3710
      %3712 = vrot.lane.b32.xlu0 %v3549, 56
      %v3713 = vpop.permute.xlu0 %3712
      %3714 = vrot.lane.b32.xlu0 %v3563, 56
      %v3715 = vpop.permute.xlu0 %3714
      %3716 = vrot.lane.b32.xlu0 %v3573, 56
      %v3717 = vpop.permute.xlu0 %3716
      %3718 = vrot.lane.b32.xlu0 %v3587, 56
      %v3719 = vpop.permute.xlu0 %3718
      %3720 = vrot.lane.b32.xlu0 %v3597, 56
      %v3721 = vpop.permute.xlu0 %3720
      %3722 = vrot.lane.b32.xlu0 %v3611, 56
      %v3723 = vpop.permute.xlu0 %3722
      %3724 = vrot.lane.b32.xlu0 %v3621, 56
      %v3725 = vpop.permute.xlu0 %3724
      %3726 = vrot.lane.b32.xlu0 %v3635, 56
      %v3727 = vpop.permute.xlu0 %3726
      %3728 = vrot.lane.b32.xlu0 %v3645, 56
      %v3729 = vpop.permute.xlu0 %3728
      %3730 = vrot.lane.b32.xlu0 %v3659, 56
      %v3731 = vpop.permute.xlu0 %3730
      %3732 = vrot.lane.b32.xlu0 %v3669, 56
      %v3733 = vpop.permute.xlu0 %3732
      %vm3766 = vcmask 519616
      %3767 = vst.msk [vmem:[#allocation3] sm:$0xf] %vm3766, %v3671
      %3768 = vst.msk [vmem:[#allocation3 + $0x4] sm:$0xf] %vm3766, %v3673
      %3769 = vst.msk [vmem:[#allocation3 + $0x8] sm:$0xf] %vm3766, %v3675
      %3770 = vst.msk [vmem:[#allocation3 + $0xc] sm:$0xf] %vm3766, %v3677
      %3771 = vst.msk [vmem:[#allocation3 + $0x10] sm:$0xf] %vm3766, %v3679
      %3772 = vst.msk [vmem:[#allocation3 + $0x14] sm:$0xf] %vm3766, %v3681
      %3773 = vst.msk [vmem:[#allocation3 + $0x18] sm:$0xf] %vm3766, %v3683
      %3774 = vst.msk [vmem:[#allocation3 + $0x1c] sm:$0xf] %vm3766, %v3685
      %3775 = vst.msk [vmem:[#allocation3 + $0x20] sm:$0xf] %vm3766, %v3687
      %3776 = vst.msk [vmem:[#allocation3 + $0x24] sm:$0xf] %vm3766, %v3689
      %3777 = vst.msk [vmem:[#allocation3 + $0x28] sm:$0xf] %vm3766, %v3691
      %3778 = vst.msk [vmem:[#allocation3 + $0x2c] sm:$0xf] %vm3766, %v3693
      %3779 = vst.msk [vmem:[#allocation3 + $0x30] sm:$0xf] %vm3766, %v3695
      %3780 = vst.msk [vmem:[#allocation3 + $0x34] sm:$0xf] %vm3766, %v3697
      %3781 = vst.msk [vmem:[#allocation3 + $0x38] sm:$0xf] %vm3766, %v3699
      %3782 = vst.msk [vmem:[#allocation3 + $0x3c] sm:$0xf] %vm3766, %v3701
      %3783 = vst.msk [vmem:[#allocation3 + $0x40] sm:$0xf] %vm3766, %v3703
      %3784 = vst.msk [vmem:[#allocation3 + $0x44] sm:$0xf] %vm3766, %v3705
      %3785 = vst.msk [vmem:[#allocation3 + $0x48] sm:$0xf] %vm3766, %v3707
      %3786 = vst.msk [vmem:[#allocation3 + $0x4c] sm:$0xf] %vm3766, %v3709
      %3787 = vst.msk [vmem:[#allocation3 + $0x50] sm:$0xf] %vm3766, %v3711
      %3788 = vst.msk [vmem:[#allocation3 + $0x54] sm:$0xf] %vm3766, %v3713
      %3789 = vst.msk [vmem:[#allocation3 + $0x58] sm:$0xf] %vm3766, %v3715
      %3790 = vst.msk [vmem:[#allocation3 + $0x5c] sm:$0xf] %vm3766, %v3717
      %3791 = vst.msk [vmem:[#allocation3 + $0x60] sm:$0xf] %vm3766, %v3719
      %3792 = vst.msk [vmem:[#allocation3 + $0x64] sm:$0xf] %vm3766, %v3721
      %3793 = vst.msk [vmem:[#allocation3 + $0x68] sm:$0xf] %vm3766, %v3723
      %3794 = vst.msk [vmem:[#allocation3 + $0x6c] sm:$0xf] %vm3766, %v3725
      %3795 = vst.msk [vmem:[#allocation3 + $0x70] sm:$0xf] %vm3766, %v3727
      %3796 = vst.msk [vmem:[#allocation3 + $0x74] sm:$0xf] %vm3766, %v3729
      %3797 = vst.msk [vmem:[#allocation3 + $0x78] sm:$0xf] %vm3766, %v3731
      %3798 = vst.msk [vmem:[#allocation3 + $0x7c] sm:$0xf] %vm3766, %v3733
      %v3799 = vld [vmem:[%s3044] sm:$0xe]
      %v3800 = vld [vmem:[%s3044 + $0x4] sm:$0xf]
      %v3801 = vld [vmem:[%s3044 + $0x8] sm:$0x1]
      %v3802 = vld [vmem:[%s3044 + $0xc] sm:$0xe]
      %v3803 = vld [vmem:[%s3044 + $0x10] sm:$0xf]
      %v3804 = vld [vmem:[%s3044 + $0x14] sm:$0x1]
      %v3805 = vld [vmem:[%s3044 + $0x18] sm:$0xe]
      %v3806 = vld [vmem:[%s3044 + $0x1c] sm:$0xf]
      %v3807 = vld [vmem:[%s3044 + $0x20] sm:$0x1]
      %v3808 = vld [vmem:[%s3044 + $0x24] sm:$0xe]
      %v3809 = vld [vmem:[%s3044 + $0x28] sm:$0xf]
      %v3810 = vld [vmem:[%s3044 + $0x2c] sm:$0x1]
      %v3811 = vld [vmem:[%s3044 + $0x30] sm:$0xe]
      %v3812 = vld [vmem:[%s3044 + $0x34] sm:$0xf]
      %v3813 = vld [vmem:[%s3044 + $0x38] sm:$0x1]
      %v3814 = vld [vmem:[%s3044 + $0x3c] sm:$0xe]
      %v3815 = vld [vmem:[%s3044 + $0x40] sm:$0xf]
      %v3816 = vld [vmem:[%s3044 + $0x44] sm:$0x1]
      %v3817 = vld [vmem:[%s3044 + $0x48] sm:$0xe]
      %v3818 = vld [vmem:[%s3044 + $0x4c] sm:$0xf]
      %v3819 = vld [vmem:[%s3044 + $0x50] sm:$0x1]
      %v3820 = vld [vmem:[%s3044 + $0x54] sm:$0xe]
      %v3821 = vld [vmem:[%s3044 + $0x58] sm:$0xf]
      %v3822 = vld [vmem:[%s3044 + $0x5c] sm:$0x1]
      %v3823 = vld [vmem:[%s3044 + $0x60] sm:$0xe]
      %v3824 = vld [vmem:[%s3044 + $0x64] sm:$0xf]
      %v3825 = vld [vmem:[%s3044 + $0x68] sm:$0x1]
      %v3826 = vld [vmem:[%s3044 + $0x6c] sm:$0xe]
      %v3827 = vld [vmem:[%s3044 + $0x70] sm:$0xf]
      %v3828 = vld [vmem:[%s3044 + $0x74] sm:$0x1]
      %v3829 = vld [vmem:[%s3044 + $0x78] sm:$0xe]
      %v3830 = vld [vmem:[%s3044 + $0x7c] sm:$0xf]
      %v3831 = vld [vmem:[%s3044 + $0x80] sm:$0x1]
      %v3832 = vld [vmem:[%s3044 + $0x84] sm:$0xe]
      %v3833 = vld [vmem:[%s3044 + $0x88] sm:$0xf]
      %v3834 = vld [vmem:[%s3044 + $0x8c] sm:$0x1]
      %v3835 = vld [vmem:[%s3044 + $0x90] sm:$0xe]
      %v3836 = vld [vmem:[%s3044 + $0x94] sm:$0xf]
      %v3837 = vld [vmem:[%s3044 + $0x98] sm:$0x1]
      %v3838 = vld [vmem:[%s3044 + $0x9c] sm:$0xe]
      %v3839 = vld [vmem:[%s3044 + $0xa0] sm:$0xf]
      %v3840 = vld [vmem:[%s3044 + $0xa4] sm:$0x1]
      %v3841 = vld [vmem:[%s3044 + $0xa8] sm:$0xe]
      %v3842 = vld [vmem:[%s3044 + $0xac] sm:$0xf]
      %v3843 = vld [vmem:[%s3044 + $0xb0] sm:$0x1]
      %v3844 = vld [vmem:[%s3044 + $0xb4] sm:$0xe]
      %v3845 = vld [vmem:[%s3044 + $0xb8] sm:$0xf]
      %v3846 = vld [vmem:[%s3044 + $0xbc] sm:$0x1]
      %v3895 = vrot.slane %v3799, 5
      %v3896 = vrot.slane %v3895, 4
      %v3897 = vrot.slane %v3800, 5
      %v3898 = vsel %vm1711, %v3896, %v3897
      %v3899 = vrot.slane %v3897, 4
      %v3900 = vrot.slane %v3801, 5
      %v3901 = vsel %vm1711, %v3899, %v3900
      %v3902 = vrot.slane %v3802, 5
      %v3903 = vrot.slane %v3902, 4
      %v3904 = vrot.slane %v3803, 5
      %v3905 = vsel %vm1711, %v3903, %v3904
      %v3906 = vrot.slane %v3904, 4
      %v3907 = vrot.slane %v3804, 5
      %v3908 = vsel %vm1711, %v3906, %v3907
      %v3909 = vrot.slane %v3805, 5
      %v3910 = vrot.slane %v3909, 4
      %v3911 = vrot.slane %v3806, 5
      %v3912 = vsel %vm1711, %v3910, %v3911
      %v3913 = vrot.slane %v3911, 4
      %v3914 = vrot.slane %v3807, 5
      %v3915 = vsel %vm1711, %v3913, %v3914
      %v3916 = vrot.slane %v3808, 5
      %v3917 = vrot.slane %v3916, 4
      %v3918 = vrot.slane %v3809, 5
      %v3919 = vsel %vm1711, %v3917, %v3918
      %v3920 = vrot.slane %v3918, 4
      %v3921 = vrot.slane %v3810, 5
      %v3922 = vsel %vm1711, %v3920, %v3921
      %v3923 = vrot.slane %v3811, 5
      %v3924 = vrot.slane %v3923, 4
      %v3925 = vrot.slane %v3812, 5
      %v3926 = vsel %vm1711, %v3924, %v3925
      %v3927 = vrot.slane %v3925, 4
      %v3928 = vrot.slane %v3813, 5
      %v3929 = vsel %vm1711, %v3927, %v3928
      %v3930 = vrot.slane %v3814, 5
      %v3931 = vrot.slane %v3930, 4
      %v3932 = vrot.slane %v3815, 5
      %v3933 = vsel %vm1711, %v3931, %v3932
      %v3934 = vrot.slane %v3932, 4
      %v3935 = vrot.slane %v3816, 5
      %v3936 = vsel %vm1711, %v3934, %v3935
      %v3937 = vrot.slane %v3817, 5
      %v3938 = vrot.slane %v3937, 4
      %v3939 = vrot.slane %v3818, 5
      %v3940 = vsel %vm1711, %v3938, %v3939
      %v3941 = vrot.slane %v3939, 4
      %v3942 = vrot.slane %v3819, 5
      %v3943 = vsel %vm1711, %v3941, %v3942
      %v3944 = vrot.slane %v3820, 5
      %v3945 = vrot.slane %v3944, 4
      %v3946 = vrot.slane %v3821, 5
      %v3947 = vsel %vm1711, %v3945, %v3946
      %v3948 = vrot.slane %v3946, 4
      %v3949 = vrot.slane %v3822, 5
      %v3950 = vsel %vm1711, %v3948, %v3949
      %v3951 = vrot.slane %v3823, 5
      %v3952 = vrot.slane %v3951, 4
      %v3953 = vrot.slane %v3824, 5
      %v3954 = vsel %vm1711, %v3952, %v3953
      %v3955 = vrot.slane %v3953, 4
      %v3956 = vrot.slane %v3825, 5
      %v3957 = vsel %vm1711, %v3955, %v3956
      %v3958 = vrot.slane %v3826, 5
      %v3959 = vrot.slane %v3958, 4
      %v3960 = vrot.slane %v3827, 5
      %v3961 = vsel %vm1711, %v3959, %v3960
      %v3962 = vrot.slane %v3960, 4
      %v3963 = vrot.slane %v3828, 5
      %v3964 = vsel %vm1711, %v3962, %v3963
      %v3965 = vrot.slane %v3829, 5
      %v3966 = vrot.slane %v3965, 4
      %v3967 = vrot.slane %v3830, 5
      %v3968 = vsel %vm1711, %v3966, %v3967
      %v3969 = vrot.slane %v3967, 4
      %v3970 = vrot.slane %v3831, 5
      %v3971 = vsel %vm1711, %v3969, %v3970
      %v3972 = vrot.slane %v3832, 5
      %v3973 = vrot.slane %v3972, 4
      %v3974 = vrot.slane %v3833, 5
      %v3975 = vsel %vm1711, %v3973, %v3974
      %v3976 = vrot.slane %v3974, 4
      %v3977 = vrot.slane %v3834, 5
      %v3978 = vsel %vm1711, %v3976, %v3977
      %v3979 = vrot.slane %v3835, 5
      %v3980 = vrot.slane %v3979, 4
      %v3981 = vrot.slane %v3836, 5
      %v3982 = vsel %vm1711, %v3980, %v3981
      %v3983 = vrot.slane %v3981, 4
      %v3984 = vrot.slane %v3837, 5
      %v3985 = vsel %vm1711, %v3983, %v3984
      %v3986 = vrot.slane %v3838, 5
      %v3987 = vrot.slane %v3986, 4
      %v3988 = vrot.slane %v3839, 5
      %v3989 = vsel %vm1711, %v3987, %v3988
      %v3990 = vrot.slane %v3988, 4
      %v3991 = vrot.slane %v3840, 5
      %v3992 = vsel %vm1711, %v3990, %v3991
      %v3993 = vrot.slane %v3841, 5
      %v3994 = vrot.slane %v3993, 4
      %v3995 = vrot.slane %v3842, 5
      %v3996 = vsel %vm1711, %v3994, %v3995
      %v3997 = vrot.slane %v3995, 4
      %v3998 = vrot.slane %v3843, 5
      %v3999 = vsel %vm1711, %v3997, %v3998
      %v4000 = vrot.slane %v3844, 5
      %v4001 = vrot.slane %v4000, 4
      %v4002 = vrot.slane %v3845, 5
      %v4003 = vsel %vm1711, %v4001, %v4002
      %v4004 = vrot.slane %v4002, 4
      %v4005 = vrot.slane %v3846, 5
      %v4006 = vsel %vm1711, %v4004, %v4005
      %4007 = vrot.lane.b32.xlu0 %v3898, 64
      %v4008 = vpop.permute.xlu0 %4007
      %4009 = vrot.lane.b32.xlu0 %v3901, 64
      %v4010 = vpop.permute.xlu0 %4009
      %4011 = vrot.lane.b32.xlu0 %v3905, 64
      %v4012 = vpop.permute.xlu0 %4011
      %4013 = vrot.lane.b32.xlu0 %v3908, 64
      %v4014 = vpop.permute.xlu0 %4013
      %4015 = vrot.lane.b32.xlu0 %v3912, 64
      %v4016 = vpop.permute.xlu0 %4015
      %4017 = vrot.lane.b32.xlu0 %v3915, 64
      %v4018 = vpop.permute.xlu0 %4017
      %4019 = vrot.lane.b32.xlu0 %v3919, 64
      %v4020 = vpop.permute.xlu0 %4019
      %4021 = vrot.lane.b32.xlu0 %v3922, 64
      %v4022 = vpop.permute.xlu0 %4021
      %4023 = vrot.lane.b32.xlu0 %v3926, 64
      %v4024 = vpop.permute.xlu0 %4023
      %4025 = vrot.lane.b32.xlu0 %v3929, 64
      %v4026 = vpop.permute.xlu0 %4025
      %4027 = vrot.lane.b32.xlu0 %v3933, 64
      %v4028 = vpop.permute.xlu0 %4027
      %4029 = vrot.lane.b32.xlu0 %v3936, 64
      %v4030 = vpop.permute.xlu0 %4029
      %4031 = vrot.lane.b32.xlu0 %v3940, 64
      %v4032 = vpop.permute.xlu0 %4031
      %4033 = vrot.lane.b32.xlu0 %v3943, 64
      %v4034 = vpop.permute.xlu0 %4033
      %4035 = vrot.lane.b32.xlu0 %v3947, 64
      %v4036 = vpop.permute.xlu0 %4035
      %4037 = vrot.lane.b32.xlu0 %v3950, 64
      %v4038 = vpop.permute.xlu0 %4037
      %4039 = vrot.lane.b32.xlu0 %v3954, 64
      %v4040 = vpop.permute.xlu0 %4039
      %4041 = vrot.lane.b32.xlu0 %v3957, 64
      %v4042 = vpop.permute.xlu0 %4041
      %4043 = vrot.lane.b32.xlu0 %v3961, 64
      %v4044 = vpop.permute.xlu0 %4043
      %4045 = vrot.lane.b32.xlu0 %v3964, 64
      %v4046 = vpop.permute.xlu0 %4045
      %4047 = vrot.lane.b32.xlu0 %v3968, 64
      %v4048 = vpop.permute.xlu0 %4047
      %4049 = vrot.lane.b32.xlu0 %v3971, 64
      %v4050 = vpop.permute.xlu0 %4049
      %4051 = vrot.lane.b32.xlu0 %v3975, 64
      %v4052 = vpop.permute.xlu0 %4051
      %4053 = vrot.lane.b32.xlu0 %v3978, 64
      %v4054 = vpop.permute.xlu0 %4053
      %4055 = vrot.lane.b32.xlu0 %v3982, 64
      %v4056 = vpop.permute.xlu0 %4055
      %4057 = vrot.lane.b32.xlu0 %v3985, 64
      %v4058 = vpop.permute.xlu0 %4057
      %4059 = vrot.lane.b32.xlu0 %v3989, 64
      %v4060 = vpop.permute.xlu0 %4059
      %4061 = vrot.lane.b32.xlu0 %v3992, 64
      %v4062 = vpop.permute.xlu0 %4061
      %4063 = vrot.lane.b32.xlu0 %v3996, 64
      %v4064 = vpop.permute.xlu0 %4063
      %4065 = vrot.lane.b32.xlu0 %v3999, 64
      %v4066 = vpop.permute.xlu0 %4065
      %4067 = vrot.lane.b32.xlu0 %v4003, 64
      %v4068 = vpop.permute.xlu0 %4067
      %4069 = vrot.lane.b32.xlu0 %v4006, 64
      %v4070 = vpop.permute.xlu0 %4069
      %vm4103 = vcmask 585216
      %4104 = vst.msk [vmem:[#allocation3] sm:$0xf] %vm4103, %v4008
      %4105 = vst.msk [vmem:[#allocation3 + $0x4] sm:$0xf] %vm4103, %v4010
      %4106 = vst.msk [vmem:[#allocation3 + $0x8] sm:$0xf] %vm4103, %v4012
      %4107 = vst.msk [vmem:[#allocation3 + $0xc] sm:$0xf] %vm4103, %v4014
      %4108 = vst.msk [vmem:[#allocation3 + $0x10] sm:$0xf] %vm4103, %v4016
      %4109 = vst.msk [vmem:[#allocation3 + $0x14] sm:$0xf] %vm4103, %v4018
      %4110 = vst.msk [vmem:[#allocation3 + $0x18] sm:$0xf] %vm4103, %v4020
      %4111 = vst.msk [vmem:[#allocation3 + $0x1c] sm:$0xf] %vm4103, %v4022
      %4112 = vst.msk [vmem:[#allocation3 + $0x20] sm:$0xf] %vm4103, %v4024
      %4113 = vst.msk [vmem:[#allocation3 + $0x24] sm:$0xf] %vm4103, %v4026
      %4114 = vst.msk [vmem:[#allocation3 + $0x28] sm:$0xf] %vm4103, %v4028
      %4115 = vst.msk [vmem:[#allocation3 + $0x2c] sm:$0xf] %vm4103, %v4030
      %4116 = vst.msk [vmem:[#allocation3 + $0x30] sm:$0xf] %vm4103, %v4032
      %4117 = vst.msk [vmem:[#allocation3 + $0x34] sm:$0xf] %vm4103, %v4034
      %4118 = vst.msk [vmem:[#allocation3 + $0x38] sm:$0xf] %vm4103, %v4036
      %4119 = vst.msk [vmem:[#allocation3 + $0x3c] sm:$0xf] %vm4103, %v4038
      %4120 = vst.msk [vmem:[#allocation3 + $0x40] sm:$0xf] %vm4103, %v4040
      %4121 = vst.msk [vmem:[#allocation3 + $0x44] sm:$0xf] %vm4103, %v4042
      %4122 = vst.msk [vmem:[#allocation3 + $0x48] sm:$0xf] %vm4103, %v4044
      %4123 = vst.msk [vmem:[#allocation3 + $0x4c] sm:$0xf] %vm4103, %v4046
      %4124 = vst.msk [vmem:[#allocation3 + $0x50] sm:$0xf] %vm4103, %v4048
      %4125 = vst.msk [vmem:[#allocation3 + $0x54] sm:$0xf] %vm4103, %v4050
      %4126 = vst.msk [vmem:[#allocation3 + $0x58] sm:$0xf] %vm4103, %v4052
      %4127 = vst.msk [vmem:[#allocation3 + $0x5c] sm:$0xf] %vm4103, %v4054
      %4128 = vst.msk [vmem:[#allocation3 + $0x60] sm:$0xf] %vm4103, %v4056
      %4129 = vst.msk [vmem:[#allocation3 + $0x64] sm:$0xf] %vm4103, %v4058
      %4130 = vst.msk [vmem:[#allocation3 + $0x68] sm:$0xf] %vm4103, %v4060
      %4131 = vst.msk [vmem:[#allocation3 + $0x6c] sm:$0xf] %vm4103, %v4062
      %4132 = vst.msk [vmem:[#allocation3 + $0x70] sm:$0xf] %vm4103, %v4064
      %4133 = vst.msk [vmem:[#allocation3 + $0x74] sm:$0xf] %vm4103, %v4066
      %4134 = vst.msk [vmem:[#allocation3 + $0x78] sm:$0xf] %vm4103, %v4068
      %4135 = vst.msk [vmem:[#allocation3 + $0x7c] sm:$0xf] %vm4103, %v4070
      %v4136 = vld [vmem:[#allocation3] sm:$0xf]
      %v4137 = vld [vmem:[#allocation3 + $0x4] sm:$0xf]
      %v4138 = vld [vmem:[#allocation3 + $0x8] sm:$0xf]
      %v4139 = vld [vmem:[#allocation3 + $0xc] sm:$0xf]
      %v4140 = vld [vmem:[#allocation3 + $0x10] sm:$0xf]
      %v4141 = vld [vmem:[#allocation3 + $0x14] sm:$0xf]
      %v4142 = vld [vmem:[#allocation3 + $0x18] sm:$0xf]
      %v4143 = vld [vmem:[#allocation3 + $0x1c] sm:$0xf]
      %v4144 = vld [vmem:[#allocation3 + $0x20] sm:$0xf]
      %v4145 = vld [vmem:[#allocation3 + $0x24] sm:$0xf]
      %v4146 = vld [vmem:[#allocation3 + $0x28] sm:$0xf]
      %v4147 = vld [vmem:[#allocation3 + $0x2c] sm:$0xf]
      %v4148 = vld [vmem:[#allocation3 + $0x30] sm:$0xf]
      %v4149 = vld [vmem:[#allocation3 + $0x34] sm:$0xf]
      %v4150 = vld [vmem:[#allocation3 + $0x38] sm:$0xf]
      %v4151 = vld [vmem:[#allocation3 + $0x3c] sm:$0xf]
      %v4152 = vld [vmem:[#allocation3 + $0x40] sm:$0xf]
      %v4153 = vld [vmem:[#allocation3 + $0x44] sm:$0xf]
      %v4154 = vld [vmem:[#allocation3 + $0x48] sm:$0xf]
      %v4155 = vld [vmem:[#allocation3 + $0x4c] sm:$0xf]
      %v4156 = vld [vmem:[#allocation3 + $0x50] sm:$0xf]
      %v4157 = vld [vmem:[#allocation3 + $0x54] sm:$0xf]
      %v4158 = vld [vmem:[#allocation3 + $0x58] sm:$0xf]
      %v4159 = vld [vmem:[#allocation3 + $0x5c] sm:$0xf]
      %v4160 = vld [vmem:[#allocation3 + $0x60] sm:$0xf]
      %v4161 = vld [vmem:[#allocation3 + $0x64] sm:$0xf]
      %v4162 = vld [vmem:[#allocation3 + $0x68] sm:$0xf]
      %v4163 = vld [vmem:[#allocation3 + $0x6c] sm:$0xf]
      %v4164 = vld [vmem:[#allocation3 + $0x70] sm:$0xf]
      %v4165 = vld [vmem:[#allocation3 + $0x74] sm:$0xf]
      %v4166 = vld [vmem:[#allocation3 + $0x78] sm:$0xf]
      %v4167 = vld [vmem:[#allocation3 + $0x7c] sm:$0xf]
      %v4168 = vld [vmem:[%s3] sm:$0xf]
      %v4169 = vld [vmem:[%s3 + $0x4] sm:$0xf]
      %v4170 = vld [vmem:[%s3 + $0x8] sm:$0xf]
      %v4171 = vld [vmem:[%s3 + $0xc] sm:$0xf]
      %v4172 = vld [vmem:[%s3 + $0x10] sm:$0xf]
      %v4173 = vld [vmem:[%s3 + $0x14] sm:$0xf]
      %v4174 = vld [vmem:[%s3 + $0x18] sm:$0xf]
      %v4175 = vld [vmem:[%s3 + $0x1c] sm:$0xf]
      %v4176 = vld [vmem:[%s3 + $0x20] sm:$0xf]
      %v4177 = vld [vmem:[%s3 + $0x24] sm:$0xf]
      %v4178 = vld [vmem:[%s3 + $0x28] sm:$0xf]
      %v4179 = vld [vmem:[%s3 + $0x2c] sm:$0xf]
      %v4180 = vld [vmem:[%s3 + $0x30] sm:$0xf]
      %v4181 = vld [vmem:[%s3 + $0x34] sm:$0xf]
      %v4182 = vld [vmem:[%s3 + $0x38] sm:$0xf]
      %v4183 = vld [vmem:[%s3 + $0x3c] sm:$0xf]
      %v4216 = vunpack.c.l.b16 %v4136
      %v4217 = vunpack.c.l.b16 %v4137
      %v4218 = vunpack.c.l.b16 %v4138
      %v4219 = vunpack.c.l.b16 %v4139
      %v4220 = vunpack.c.l.b16 %v4140
      %v4221 = vunpack.c.l.b16 %v4141
      %v4222 = vunpack.c.l.b16 %v4142
      %v4223 = vunpack.c.l.b16 %v4143
      %v4224 = vunpack.c.l.b16 %v4144
      %v4225 = vunpack.c.l.b16 %v4145
      %v4226 = vunpack.c.l.b16 %v4146
      %v4227 = vunpack.c.l.b16 %v4147
      %v4228 = vunpack.c.l.b16 %v4148
      %v4229 = vunpack.c.l.b16 %v4149
      %v4230 = vunpack.c.l.b16 %v4150
      %v4231 = vunpack.c.l.b16 %v4151
      %v4232 = vunpack.c.l.b16 %v4152
      %v4233 = vunpack.c.l.b16 %v4153
      %v4234 = vunpack.c.l.b16 %v4154
      %v4235 = vunpack.c.l.b16 %v4155
      %v4236 = vunpack.c.l.b16 %v4156
      %v4237 = vunpack.c.l.b16 %v4157
      %v4238 = vunpack.c.l.b16 %v4158
      %v4239 = vunpack.c.l.b16 %v4159
      %v4240 = vunpack.c.l.b16 %v4160
      %v4241 = vunpack.c.l.b16 %v4161
      %v4242 = vunpack.c.l.b16 %v4162
      %v4243 = vunpack.c.l.b16 %v4163
      %v4244 = vunpack.c.l.b16 %v4164
      %v4245 = vunpack.c.l.b16 %v4165
      %v4246 = vunpack.c.l.b16 %v4166
      %v4247 = vunpack.c.l.b16 %v4167
      %v4248 = vpack.c.b16 %v4217, %v4216
      %v4249 = vpack.c.b16 %v4219, %v4218
      %v4250 = vpack.c.b16 %v4221, %v4220
      %v4251 = vpack.c.b16 %v4223, %v4222
      %v4252 = vpack.c.b16 %v4225, %v4224
      %v4253 = vpack.c.b16 %v4227, %v4226
      %v4254 = vpack.c.b16 %v4229, %v4228
      %v4255 = vpack.c.b16 %v4231, %v4230
      %v4256 = vpack.c.b16 %v4233, %v4232
      %v4257 = vpack.c.b16 %v4235, %v4234
      %v4258 = vpack.c.b16 %v4237, %v4236
      %v4259 = vpack.c.b16 %v4239, %v4238
      %v4260 = vpack.c.b16 %v4241, %v4240
      %v4261 = vpack.c.b16 %v4243, %v4242
      %v4262 = vpack.c.b16 %v4245, %v4244
      %v4263 = vpack.c.b16 %v4247, %v4246
      %v4296 = vunpack.c.l.b16 %v4168
      %v4297 = vunpack.c.l.b16 %v4169
      %v4298 = vunpack.c.l.b16 %v4170
      %v4299 = vunpack.c.l.b16 %v4171
      %v4300 = vunpack.c.l.b16 %v4172
      %v4301 = vunpack.c.l.b16 %v4173
      %v4302 = vunpack.c.l.b16 %v4174
      %v4303 = vunpack.c.l.b16 %v4175
      %v4304 = vunpack.c.l.b16 %v4176
      %v4305 = vunpack.c.l.b16 %v4177
      %v4306 = vunpack.c.l.b16 %v4178
      %v4307 = vunpack.c.l.b16 %v4179
      %v4308 = vunpack.c.l.b16 %v4180
      %v4309 = vunpack.c.l.b16 %v4181
      %v4310 = vunpack.c.l.b16 %v4182
      %v4311 = vunpack.c.l.b16 %v4183
      %v4312 = vpack.c.b16 %v4297, %v4296
      %v4313 = vpack.c.b16 %v4299, %v4298
      %v4314 = vpack.c.b16 %v4301, %v4300
      %v4315 = vpack.c.b16 %v4303, %v4302
      %v4316 = vpack.c.b16 %v4305, %v4304
      %v4317 = vpack.c.b16 %v4307, %v4306
      %v4318 = vpack.c.b16 %v4309, %v4308
      %v4319 = vpack.c.b16 %v4311, %v4310
      %4328 = vmatpush.bf16.msra.mxu0 %v4319
      %4329 = vmatpush.bf16.msra.mxu0 %v4318
      %4330 = vmatpush.bf16.msra.mxu0 %v4317
      %4331 = vmatpush.bf16.msra.mxu0 %v4316
      %4332 = vmatpush.bf16.msra.mxu0 %v4315
      %4333 = vmatpush.bf16.msra.mxu0 %v4314
      %4334 = vmatpush.bf16.msra.mxu0 %v4313
      %4335 = vmatpush.bf16.msra.mxu0 %v4312
      %4336 = vmatmul.bf16.gmra.mxu0 %v4248
      %v4337 = vpop.f32.mrf.mxu0
      %v4338 = vadd.f32 0.0, %v4337
      %v4339 = vpop.f32.mrf.mxu0
      %v4340 = vadd.f32 0.0, %v4339
      %4341 = vmatmul.bf16.gmra.mxu0 %v4249
      %v4342 = vpop.f32.mrf.mxu0
      %v4343 = vadd.f32 0.0, %v4342
      %v4344 = vpop.f32.mrf.mxu0
      %v4345 = vadd.f32 0.0, %v4344
      %4346 = vmatmul.bf16.gmra.mxu0 %v4250
      %v4347 = vpop.f32.mrf.mxu0
      %v4348 = vadd.f32 0.0, %v4347
      %v4349 = vpop.f32.mrf.mxu0
      %v4350 = vadd.f32 0.0, %v4349
      %4351 = vmatmul.bf16.gmra.mxu0 %v4251
      %v4352 = vpop.f32.mrf.mxu0
      %v4353 = vadd.f32 0.0, %v4352
      %v4354 = vpop.f32.mrf.mxu0
      %v4355 = vadd.f32 0.0, %v4354
      %4356 = vmatmul.bf16.gmra.mxu0 %v4252
      %v4357 = vpop.f32.mrf.mxu0
      %v4358 = vadd.f32 0.0, %v4357
      %v4359 = vpop.f32.mrf.mxu0
      %v4360 = vadd.f32 0.0, %v4359
      %4361 = vmatmul.bf16.gmra.mxu0 %v4253
      %v4362 = vpop.f32.mrf.mxu0
      %v4363 = vadd.f32 0.0, %v4362
      %v4364 = vpop.f32.mrf.mxu0
      %v4365 = vadd.f32 0.0, %v4364
      %4366 = vmatmul.bf16.gmra.mxu0 %v4254
      %v4367 = vpop.f32.mrf.mxu0
      %v4368 = vadd.f32 0.0, %v4367
      %v4369 = vpop.f32.mrf.mxu0
      %v4370 = vadd.f32 0.0, %v4369
      %4371 = vmatmul.bf16.gmra.mxu0 %v4255
      %v4372 = vpop.f32.mrf.mxu0
      %v4373 = vadd.f32 0.0, %v4372
      %v4374 = vpop.f32.mrf.mxu0
      %v4375 = vadd.f32 0.0, %v4374
      %4376 = vmatmul.bf16.gmra.mxu0 %v4256
      %v4377 = vpop.f32.mrf.mxu0
      %v4378 = vadd.f32 0.0, %v4377
      %v4379 = vpop.f32.mrf.mxu0
      %v4380 = vadd.f32 0.0, %v4379
      %4381 = vmatmul.bf16.gmra.mxu0 %v4257
      %v4382 = vpop.f32.mrf.mxu0
      %v4383 = vadd.f32 0.0, %v4382
      %v4384 = vpop.f32.mrf.mxu0
      %v4385 = vadd.f32 0.0, %v4384
      %4386 = vmatmul.bf16.gmra.mxu0 %v4258
      %v4387 = vpop.f32.mrf.mxu0
      %v4388 = vadd.f32 0.0, %v4387
      %v4389 = vpop.f32.mrf.mxu0
      %v4390 = vadd.f32 0.0, %v4389
      %4391 = vmatmul.bf16.gmra.mxu0 %v4259
      %v4392 = vpop.f32.mrf.mxu0
      %v4393 = vadd.f32 0.0, %v4392
      %v4394 = vpop.f32.mrf.mxu0
      %v4395 = vadd.f32 0.0, %v4394
      %4396 = vmatmul.bf16.gmra.mxu0 %v4260
      %v4397 = vpop.f32.mrf.mxu0
      %v4398 = vadd.f32 0.0, %v4397
      %v4399 = vpop.f32.mrf.mxu0
      %v4400 = vadd.f32 0.0, %v4399
      %4401 = vmatmul.bf16.gmra.mxu0 %v4261
      %v4402 = vpop.f32.mrf.mxu0
      %v4403 = vadd.f32 0.0, %v4402
      %v4404 = vpop.f32.mrf.mxu0
      %v4405 = vadd.f32 0.0, %v4404
      %4406 = vmatmul.bf16.gmra.mxu0 %v4262
      %v4407 = vpop.f32.mrf.mxu0
      %v4408 = vadd.f32 0.0, %v4407
      %v4409 = vpop.f32.mrf.mxu0
      %v4410 = vadd.f32 0.0, %v4409
      %4411 = vmatmul.bf16.gmra.mxu0 %v4263
      %v4412 = vpop.f32.mrf.mxu0
      %v4413 = vadd.f32 0.0, %v4412
      %v4414 = vpop.f32.mrf.mxu0
      %v4415 = vadd.f32 0.0, %v4414
      %4416 = vdwg.mxu0
      %4417 = vst [vmem:[%s231] sm:$0xff] %v4338
      %4418 = vst [vmem:[%s231 + $0x8] sm:$0xff] %v4340
      %4419 = vst [vmem:[%s231 + $0x10] sm:$0xff] %v4343
      %4420 = vst [vmem:[%s231 + $0x18] sm:$0xff] %v4345
      %4421 = vst [vmem:[%s231 + $0x20] sm:$0xff] %v4348
      %4422 = vst [vmem:[%s231 + $0x28] sm:$0xff] %v4350
      %4423 = vst [vmem:[%s231 + $0x30] sm:$0xff] %v4353
      %4424 = vst [vmem:[%s231 + $0x38] sm:$0xff] %v4355
      %4425 = vst [vmem:[%s231 + $0x40] sm:$0xff] %v4358
      %4426 = vst [vmem:[%s231 + $0x48] sm:$0xff] %v4360
      %4427 = vst [vmem:[%s231 + $0x50] sm:$0xff] %v4363
      %4428 = vst [vmem:[%s231 + $0x58] sm:$0xff] %v4365
      %4429 = vst [vmem:[%s231 + $0x60] sm:$0xff] %v4368
      %4430 = vst [vmem:[%s231 + $0x68] sm:$0xff] %v4370
      %4431 = vst [vmem:[%s231 + $0x70] sm:$0xff] %v4373
      %4432 = vst [vmem:[%s231 + $0x78] sm:$0xff] %v4375
      %4433 = vst [vmem:[%s231 + $0x80] sm:$0xff] %v4378
      %4434 = vst [vmem:[%s231 + $0x88] sm:$0xff] %v4380
      %4435 = vst [vmem:[%s231 + $0x90] sm:$0xff] %v4383
      %4436 = vst [vmem:[%s231 + $0x98] sm:$0xff] %v4385
      %4437 = vst [vmem:[%s231 + $0xa0] sm:$0xff] %v4388
      %4438 = vst [vmem:[%s231 + $0xa8] sm:$0xff] %v4390
      %4439 = vst [vmem:[%s231 + $0xb0] sm:$0xff] %v4393
      %4440 = vst [vmem:[%s231 + $0xb8] sm:$0xff] %v4395
      %4441 = vst [vmem:[%s231 + $0xc0] sm:$0xff] %v4398
      %4442 = vst [vmem:[%s231 + $0xc8] sm:$0xff] %v4400
      %4443 = vst [vmem:[%s231 + $0xd0] sm:$0xff] %v4403
      %4444 = vst [vmem:[%s231 + $0xd8] sm:$0xff] %v4405
      %4445 = vst [vmem:[%s231 + $0xe0] sm:$0xff] %v4408
      %4446 = vst [vmem:[%s231 + $0xe8] sm:$0xff] %v4410
      %4447 = vst [vmem:[%s231 + $0xf0] sm:$0xff] %v4413
      %4448 = vst [vmem:[%s231 + $0xf8] sm:$0xff] %v4415
      %v4449 = vadd.f32 %v4338, %v4340
      %v4450 = vadd.f32 %v4449, %v4343
      %v4451 = vadd.f32 %v4450, %v4345
      %v4452 = vadd.f32 %v4451, %v4348
      %v4453 = vadd.f32 %v4452, %v4350
      %v4454 = vadd.f32 %v4453, %v4353
      %v4455 = vadd.f32 %v4454, %v4355
      %v4456 = vadd.f32 %v4455, %v4358
      %v4457 = vadd.f32 %v4456, %v4360
      %v4458 = vadd.f32 %v4457, %v4363
      %v4459 = vadd.f32 %v4458, %v4365
      %v4460 = vadd.f32 %v4459, %v4368
      %v4461 = vadd.f32 %v4460, %v4370
      %v4462 = vadd.f32 %v4461, %v4373
      %v4463 = vadd.f32 %v4462, %v4375
      %v4464 = vadd.f32 %v4463, %v4378
      %v4465 = vadd.f32 %v4464, %v4380
      %v4466 = vadd.f32 %v4465, %v4383
      %v4467 = vadd.f32 %v4466, %v4385
      %v4468 = vadd.f32 %v4467, %v4388
      %v4469 = vadd.f32 %v4468, %v4390
      %v4470 = vadd.f32 %v4469, %v4393
      %v4471 = vadd.f32 %v4470, %v4395
      %v4472 = vadd.f32 %v4471, %v4398
      %v4473 = vadd.f32 %v4472, %v4400
      %v4474 = vadd.f32 %v4473, %v4403
      %v4475 = vadd.f32 %v4474, %v4405
      %v4476 = vadd.f32 %v4475, %v4408
      %v4477 = vadd.f32 %v4476, %v4410
      %v4478 = vadd.f32 %v4477, %v4413
      %v4479 = vadd.f32 %v4478, %v4415
      %v4480 = vrot.slane %v4479, 4
      %v4481 = vadd.f32 %v4479, %v4480
      %v4482 = vrot.slane %v4481, 2
      %v4483 = vadd.f32 %v4481, %v4482
      %v4484 = vrot.slane %v4483, 1
      %v4485 = vadd.f32 %v4483, %v4484
      %4486 = vst [vmem:[%s235] sm:$0x1] %v4485
      %v4487 = vmul.f32 %v4338, %v4338
      %v4488 = vmul.f32 %v4340, %v4340
      %v4489 = vmul.f32 %v4343, %v4343
      %v4490 = vmul.f32 %v4345, %v4345
      %v4491 = vmul.f32 %v4348, %v4348
      %v4492 = vmul.f32 %v4350, %v4350
      %v4493 = vmul.f32 %v4353, %v4353
      %v4494 = vmul.f32 %v4355, %v4355
      %v4495 = vmul.f32 %v4358, %v4358
      %v4496 = vmul.f32 %v4360, %v4360
      %v4497 = vmul.f32 %v4363, %v4363
      %v4498 = vmul.f32 %v4365, %v4365
      %v4499 = vmul.f32 %v4368, %v4368
      %v4500 = vmul.f32 %v4370, %v4370
      %v4501 = vmul.f32 %v4373, %v4373
      %v4502 = vmul.f32 %v4375, %v4375
      %v4503 = vmul.f32 %v4378, %v4378
      %v4504 = vmul.f32 %v4380, %v4380
      %v4505 = vmul.f32 %v4383, %v4383
      %v4506 = vmul.f32 %v4385, %v4385
      %v4507 = vmul.f32 %v4388, %v4388
      %v4508 = vmul.f32 %v4390, %v4390
      %v4509 = vmul.f32 %v4393, %v4393
      %v4510 = vmul.f32 %v4395, %v4395
      %v4511 = vmul.f32 %v4398, %v4398
      %v4512 = vmul.f32 %v4400, %v4400
      %v4513 = vmul.f32 %v4403, %v4403
      %v4514 = vmul.f32 %v4405, %v4405
      %v4515 = vmul.f32 %v4408, %v4408
      %v4516 = vmul.f32 %v4410, %v4410
      %v4517 = vmul.f32 %v4413, %v4413
      %v4518 = vmul.f32 %v4415, %v4415
      %v4519 = vadd.f32 %v4487, %v4488
      %v4520 = vadd.f32 %v4519, %v4489
      %v4521 = vadd.f32 %v4520, %v4490
      %v4522 = vadd.f32 %v4521, %v4491
      %v4523 = vadd.f32 %v4522, %v4492
      %v4524 = vadd.f32 %v4523, %v4493
      %v4525 = vadd.f32 %v4524, %v4494
      %v4526 = vadd.f32 %v4525, %v4495
      %v4527 = vadd.f32 %v4526, %v4496
      %v4528 = vadd.f32 %v4527, %v4497
      %v4529 = vadd.f32 %v4528, %v4498
      %v4530 = vadd.f32 %v4529, %v4499
      %v4531 = vadd.f32 %v4530, %v4500
      %v4532 = vadd.f32 %v4531, %v4501
      %v4533 = vadd.f32 %v4532, %v4502
      %v4534 = vadd.f32 %v4533, %v4503
      %v4535 = vadd.f32 %v4534, %v4504
      %v4536 = vadd.f32 %v4535, %v4505
      %v4537 = vadd.f32 %v4536, %v4506
      %v4538 = vadd.f32 %v4537, %v4507
      %v4539 = vadd.f32 %v4538, %v4508
      %v4540 = vadd.f32 %v4539, %v4509
      %v4541 = vadd.f32 %v4540, %v4510
      %v4542 = vadd.f32 %v4541, %v4511
      %v4543 = vadd.f32 %v4542, %v4512
      %v4544 = vadd.f32 %v4543, %v4513
      %v4545 = vadd.f32 %v4544, %v4514
      %v4546 = vadd.f32 %v4545, %v4515
      %v4547 = vadd.f32 %v4546, %v4516
      %v4548 = vadd.f32 %v4547, %v4517
      %v4549 = vadd.f32 %v4548, %v4518
      %v4550 = vrot.slane %v4549, 4
      %v4551 = vadd.f32 %v4549, %v4550
      %v4552 = vrot.slane %v4551, 2
      %v4553 = vadd.f32 %v4551, %v4552
      %v4554 = vrot.slane %v4553, 1
      %v4555 = vadd.f32 %v4553, %v4554
      %4556 = vst [vmem:[%s235 + $0x1] sm:$0x1] %v4555
      %p4557 = scmp.lt.s32.totalorder %s17, 1
      %s4558 = scalar_select %p4557, %s17, 1
      %s4559 = smul.addr %s4558, 32
      %s4560 = smul.addr %s4559, 8
      %s4561 = scalar_lea.vmem %s4, %s4560
      %p4562 = scmp.lt.s32.totalorder %s17, 1
      %s4563 = scalar_select %p4562, %s17, 1
      %s4564 = smul.addr %s4563, 2
      %s4565 = scalar_lea.vmem %s5, %s4564
      // Predicated region
      $region37: #{residual_block.4} parent=35 // pred_check
        %p4566 = pneg %p124
      $region38: #{residual_block.4} parent=35 // pred_check_branch
        %4568 = sbr.rel (%p4566) target = $region40
      $region39: #{residual_block.4} parent=35 // pred_region
        _
      $region40: #{residual_block.4} parent=35 // pred_fallthru
        _
      // Predicated region
      $region41: #{residual_block.4} parent=35 // pred_check
        %p4569 = pneg %p150
      $region42: #{residual_block.4} parent=35 // pred_check_branch
        %4571 = sbr.rel (%p4569) target = $region44
      $region43: #{residual_block.4} parent=35 // pred_region
        _
      $region44: #{residual_block.4} parent=35 // pred_fallthru
        _
    $region36: #{residual_block.4} parent=5 // pred_fallthru
      _
    %p4572 = scmp.le.s32.totalorder 2, %s12
    // Predicated region
    $region45: #{residual_block.4} parent=5 // pred_check
      %p4573 = pneg %p4572
    $region46: #{residual_block.4} parent=5 // pred_check_branch
      %4575 = sbr.rel (%p4573) target = $region48
    $region47: #{residual_block.4} parent=5 // pred_region
      %s4576 = ssub.s32 %s12, 2
      // Predicated region
      $region49: #{residual_block.4} parent=47 // pred_check
        %p4577 = pneg %p130
      $region50: #{residual_block.4} parent=47 // pred_check_branch
        %4579 = sbr.rel (%p4577) target = $region52
      $region51: #{residual_block.4} parent=47 // pred_region
        %p4580 = scmp.lt.s32.totalorder %s18, 1
        %s4581 = scalar_select %p4580, %s18, 1
        %s4582 = smul.addr %s4581, 32
        %s4583 = smul.addr %s4582, 8
        %s4584 = scalar_lea.vmem %s4, %s4583
      $region52: #{residual_block.4} parent=47 // pred_fallthru
        _
      // Predicated region
      $region53: #{residual_block.4} parent=47 // pred_check
        %p4585 = pneg %p156
      $region54: #{residual_block.4} parent=47 // pred_check_branch
        %4587 = sbr.rel (%p4585) target = $region56
      $region55: #{residual_block.4} parent=47 // pred_region
        %p4588 = scmp.lt.s32.totalorder %s18, 1
        %s4589 = scalar_select %p4588, %s18, 1
        %s4590 = smul.addr %s4589, 2
        %s4591 = scalar_lea.vmem %s5, %s4590
      $region56: #{residual_block.4} parent=47 // pred_fallthru
        _
    $region48: #{residual_block.4} parent=5 // pred_fallthru
      _
  $region6: #{residual_block.4} parent=0 // loop_footer
    %s16 = sadd.s32 1, %s12
  $region7: #{residual_block.4} parent=0 // loop_footer_branch
    %11 = sbr.rel target = $region3
  $region8: #{residual_block.4} parent=0 // loop_exit
    _

</llo_original>
